<compile_context>
chip_gen: v5e
topology: v5e:2x2
jax: 0.10.0
libtpu: 0.0.40
codegen_flags: <defaults>
</compile_context>

<pallas_src>
import functools
import math

import jax
import jax.numpy as jnp
from jax import lax
from jax.experimental import pallas as pl
from jax.experimental.pallas import tpu as pltpu


def _resblock_kernel(x_ref, w1_ref, b1_ref, w2_ref, b2_ref, o_ref,
                     pad_x_ref, pad_h_ref, *maybe_col,
                     H, W, C, K, pad, TH, res_scale, per_tap, lane_dense_out):
    """One batch element per grid step.

    x_ref    : (1, H, W, C)  bf16 unpadded input tile
    w*_ref   : (K*K*C, C)    bf16 im2col-ordered conv weights (rows: kh, kw, c_in)
    b*_ref   : (1, C)        f32 conv biases
    o_ref    : (1, H, W*C) f32 (lane-dense)   or   (1, H*W, C) f32 (fallback)
    pad_x_ref: (H+2p, W+2p, C) f32 persistent zero-bordered input scratch
    pad_h_ref: (H+2p, W+2p, C) f32 persistent zero-bordered hidden-act scratch
    maybe_col: optional (TH*W, K*C) bf16 im2col slab (only when C < 128)
    """
    col_ref = maybe_col[0] if maybe_col else None
    Hp, Wp = H + 2 * pad, W + 2 * pad
    NCH = H // TH

    # Zero only the halo borders (interiors are fully overwritten each step).
    if pad > 0:
        zrow = jnp.zeros((pad, Wp, C), jnp.float32)
        zcol = jnp.zeros((Hp, pad, C), jnp.float32)
        for ref in (pad_x_ref, pad_h_ref):
            ref[0:pad, :, :] = zrow
            ref[pad + H:Hp, :, :] = zrow
            ref[:, 0:pad, :] = zcol
            ref[:, pad + W:Wp, :] = zcol

    # Stage the input into the padded scratch.
    pad_x_ref[pad:pad + H, pad:pad + W, :] = x_ref[0].astype(jnp.float32)

    def conv_chunk(src_ref, row0, w_ref, b_ref):
        """'same' KxK conv on TH image rows starting at row0 -> (TH*W, C) f32."""
        acc = None
        if per_tap:
            # Depth C already fills the MXU: accumulate K*K dots straight from
            # the taps, no im2col copy traffic at all.
            for kh in range(K):
                for kw in range(K):
                    tap = (src_ref[pl.ds(row0 + kh, TH), kw:kw + W, :]
                           .reshape(TH * W, C).astype(jnp.bfloat16))
                    wt = w_ref[(kh * K + kw) * C:(kh * K + kw + 1) * C, :]
                    d = jnp.dot(tap, wt, preferred_element_type=jnp.float32)
                    acc = d if acc is None else acc + d
        else:
            # Per-kh grouped im2col: (TH*W, K*C) bf16 slab, K accumulating dots
            # of depth K*C (cast to bf16 happens at the slab write).
            for kh in range(K):
                for kw in range(K):
                    col_ref[:, kw * C:(kw + 1) * C] = (
                        src_ref[pl.ds(row0 + kh, TH), kw:kw + W, :]
                        .reshape(TH * W, C).astype(jnp.bfloat16))
                d = jnp.dot(col_ref[...],
                            w_ref[kh * K * C:(kh + 1) * K * C, :],
                            preferred_element_type=jnp.float32)
                acc = d if acc is None else acc + d
        return acc + b_ref[...]                          # (TH*W, C) f32

    def pass1(row0):   # conv1 + bias + ReLU -> padded hidden scratch
        h = jnp.maximum(conv_chunk(pad_x_ref, row0, w1_ref, b1_ref), 0.0)
        pad_h_ref[pl.ds(pad + row0, TH), pad:pad + W, :] = h.reshape(TH, W, C)

    def pass2(row0):   # conv2 + bias, res_scale (f32), residual add, store
        res = conv_chunk(pad_h_ref, row0, w2_ref, b2_ref)
        if res_scale != 1.0:
            res = res * res_scale
        x_res = x_ref[0, pl.ds(row0, TH), :, :].astype(jnp.float32)
        out = res + x_res.reshape(TH * W, C)
        if lane_dense_out:
            o_ref[0, pl.ds(row0, TH), :] = (
                out.reshape(TH, W * C).astype(o_ref.dtype))
        else:
            o_ref[0, pl.ds(row0 * W, TH * W), :] = out.astype(o_ref.dtype)

    def chunk_rows(body):
        # Static unroll for short chunk counts (full LLO visibility, static
        # slice offsets); scf.for via pl.loop for long ones (bounded IR size).
        if NCH <= 16:
            for c in range(NCH):
                body(c * TH)
        else:
            @pl.loop(0, NCH)
            def _(c):
                body(pl.multiple_of(c * TH, TH))

    chunk_rows(pass1)   # all of conv1 before conv2 (conv2 needs the row halo)
    chunk_rows(pass2)


def _pick_row_chunk(H, W, C, K, per_tap, budget_bytes=4 << 20):
    """Largest divisor of H whose per-chunk working set fits the budget."""
    best = 1
    for th in range(2, H + 1):
        if H % th:
            continue
        col = 0 if per_tap else th * W * K * C * 2      # bf16 im2col slab
        tmp = 4 * th * W * C * 4                        # f32 chunk temporaries
        if col + tmp <= budget_bytes:
            best = th
    return best


def resblock_forward(x_nchw, w1, b1, w2, b2, res_scale=1.0):
    """x_nchw: (N, C, H, W); w*: (C_out, C_in, K, K); b*: (C,). Returns NCHW f32."""
    N, C, H, W = x_nchw.shape
    K = w1.shape[-1]
    pad = K // 2                        # PyTorch 'same' conv for odd K
    Hp, Wp = H + 2 * pad, W + 2 * pad
    KKC = K * K * C

    per_tap = C >= 128                  # depth-C taps already fill the MXU
    TH = _pick_row_chunk(H, W, C, K, per_tap)

    # NCHW -> NHWC; activations fed in bf16 (halves HBM/DMA + input buffers).
    x_nhwc = jnp.transpose(x_nchw, (0, 2, 3, 1)).astype(jnp.bfloat16)
    # OIHW -> (kh, kw, C_in, C_out) -> (K*K*C_in, C_out), bf16 (unscaled).
    w1k = jnp.transpose(w1, (2, 3, 1, 0)).reshape(KKC, C).astype(jnp.bfloat16)
    w2k = jnp.transpose(w2, (2, 3, 1, 0)).reshape(KKC, C).astype(jnp.bfloat16)
    b1r = b1.reshape(1, C).astype(jnp.float32)
    b2r = b2.reshape(1, C).astype(jnp.float32)

    scratch = [pltpu.VMEM((Hp, Wp, C), jnp.float32),    # padded input
               pltpu.VMEM((Hp, Wp, C), jnp.float32)]    # padded hidden act
    if not per_tap:
        scratch.append(pltpu.VMEM((TH * W, K * C), jnp.bfloat16))  # im2col slab

    # Generation-aware VMEM limit: cover scratch + pipeline buffers with
    # headroom, but never request more than ~48 MiB (v7x has 64 MiB physical).
    est = (2 * Hp * Wp * C * 4                          # padded f32 scratches
           + (0 if per_tap else TH * W * K * C * 2)     # bf16 im2col slab
           + 2 * H * W * C * 2                          # input double buffer
           + 2 * H * W * C * 4                          # output double buffer
           + 2 * (2 * KKC * C * 2 + 2 * C * 4)          # weights + biases
           + 4 * TH * W * C * 4)                        # per-chunk temporaries
    vmem_limit = int(min(48 << 20, max(32 << 20, int(1.5 * est) + (2 << 20))))

    def _build(lane_dense_out):
        kernel = functools.partial(
            _resblock_kernel, H=H, W=W, C=C, K=K, pad=pad, TH=TH,
            res_scale=float(res_scale), per_tap=per_tap,
            lane_dense_out=lane_dense_out)
        if lane_dense_out:
            out_shape = jax.ShapeDtypeStruct((N, H, W * C), jnp.float32)
            out_spec = pl.BlockSpec((1, H, W * C), lambda n: (n, 0, 0))
        else:
            out_shape = jax.ShapeDtypeStruct((N, H * W, C), jnp.float32)
            out_spec = pl.BlockSpec((1, H * W, C), lambda n: (n, 0, 0))
        return pl.pallas_call(
            kernel,
            out_shape=out_shape,
            grid_spec=pltpu.PrefetchScalarGridSpec(
                num_scalar_prefetch=0,
                grid=(N,),
                in_specs=[
                    pl.BlockSpec((1, H, W, C), lambda n: (n, 0, 0, 0)),
                    pl.BlockSpec((KKC, C), lambda n: (0, 0)),
                    pl.BlockSpec((1, C), lambda n: (0, 0)),
                    pl.BlockSpec((KKC, C), lambda n: (0, 0)),
                    pl.BlockSpec((1, C), lambda n: (0, 0)),
                ],
                out_specs=out_spec,
                scratch_shapes=scratch,
            ),
            compiler_params=pltpu.CompilerParams(
                dimension_semantics=("parallel",),
                vmem_limit_bytes=vmem_limit),
        )

    args = (x_nhwc, w1k, b1r, w2k, b2r)
    try:
        # Preferred: lane-dense (N, H, W*C) output slab (full-lane HBM stores
        # even when C < 128).
        out = jax.block_until_ready(_build(True)(*args))
        out = out.reshape(N, H, W, C)
    except Exception:
        # Fallback for Mosaic builds that cannot lower the sublane->lane
        # reshape used by the lane-dense store; semantics are identical.
        out = _build(False)(*args).reshape(N, H, W, C)

    return jnp.transpose(out, (0, 3, 1, 2))   # NCHW


def _reference_forward(x, w1, b1, w2, b2, res_scale):
    """Pure-JAX reference matching PyTorch ResBlock.forward (NCHW), using the
    same bf16 storage of activations/weights the kernel uses (f32 accumulation),
    so the comparison isolates kernel structure from the chosen precision."""
    f32 = jnp.float32
    xr = x.astype(jnp.bfloat16).astype(f32)
    w1r = w1.astype(jnp.bfloat16).astype(f32)
    w2r = w2.astype(jnp.bfloat16).astype(f32)
    dn = lax.conv_dimension_numbers(x.shape, w1.shape, ('NCHW', 'OIHW', 'NCHW'))
    y = lax.conv_general_dilated(xr, w1r, (1, 1), 'SAME', dimension_numbers=dn,
                                 precision=lax.Precision.HIGHEST)
    y = jnp.maximum(y + b1[None, :, None, None], 0.0)
    y = y.astype(jnp.bfloat16).astype(f32)   # kernel feeds hidden act as bf16
    y = lax.conv_general_dilated(y, w2r, (1, 1), 'SAME', dimension_numbers=dn,
                                 precision=lax.Precision.HIGHEST)
    y = y + b2[None, :, None, None]
    return y * res_scale + xr


if __name__ == "__main__":
    # Small shapes consistent with ResBlock(conv, n_feats=4, kernel_size=3, 'none')
    N, C, H, W, K = 2, 4, 16, 16, 3
    res_scale = 0.5

    key = jax.random.PRNGKey(0)
    kx, kw1, kb1, kw2, kb2 = jax.random.split(key, 5)

    fan_in = C * K * K
    scale = 1.0 / math.sqrt(fan_in)
    x = jax.random.normal(kx, (N, C, H, W), dtype=jnp.float32)
    w1 = jax.random.normal(kw1, (C, C, K, K), dtype=jnp.float32) * scale
    b1 = jax.random.normal(kb1, (C,), dtype=jnp.float32) * scale
    w2 = jax.random.normal(kw2, (C, C, K, K), dtype=jnp.float32) * scale
    b2 = jax.random.normal(kb2, (C,), dtype=jnp.float32) * scale

    out = jax.block_until_ready(resblock_forward(x, w1, b1, w2, b2, res_scale))
    ref = jax.block_until_ready(_reference_forward(x, w1, b1, w2, b2, res_scale))

    assert out.shape == (N, C, H, W)
    max_err = float(jnp.max(jnp.abs(out - ref)))
    assert jnp.allclose(out, ref, atol=5e-3, rtol=5e-3), f"max abs err = {max_err}"

    print("KERNEL_OK")
</pallas_src>

<mosaic_0001>
module attributes {stable_mosaic.version = 11 : i64} {
  func.func @_resblock_kernel(%arg0: i32, %arg1: memref<1x16x16x4xbf16, #tpu.memory_space<vmem>>, %arg2: memref<36x4xbf16, #tpu.memory_space<vmem>>, %arg3: memref<1x4xf32, #tpu.memory_space<vmem>>, %arg4: memref<36x4xbf16, #tpu.memory_space<vmem>>, %arg5: memref<1x4xf32, #tpu.memory_space<vmem>>, %arg6: memref<1x16x64xf32, #tpu.memory_space<vmem>>, %arg7: memref<18x18x4xf32, #tpu.memory_space<vmem>>, %arg8: memref<18x18x4xf32, #tpu.memory_space<vmem>>, %arg9: memref<256x12xbf16, #tpu.memory_space<vmem>>) attributes {dimension_semantics = [#tpu.dimension_semantics<parallel>], iteration_bounds = array<i64: 2>, scalar_prefetch = 0 : i64, scratch_operands = 3 : i64, tpu.core_type = #tpu.core_type<tc>, window_params = [{transform_indices = @transform_0, window_bounds = array<i64: 1, 16, 16, 4>}, {pipeline_mode = #tpu.pipeline_mode<synchronous>, transform_indices = @transform_1, window_bounds = array<i64: 36, 4>}, {pipeline_mode = #tpu.pipeline_mode<synchronous>, transform_indices = @transform_2, window_bounds = array<i64: 1, 4>}, {pipeline_mode = #tpu.pipeline_mode<synchronous>, transform_indices = @transform_3, window_bounds = array<i64: 36, 4>}, {pipeline_mode = #tpu.pipeline_mode<synchronous>, transform_indices = @transform_4, window_bounds = array<i64: 1, 4>}, {transform_indices = @transform_5, window_bounds = array<i64: 1, 16, 64>}]} {
    %cst = arith.constant 0.000000e+00 : f32
    %0 = vector.broadcast %cst : f32 to vector<1x18x4xf32>
    %cst_0 = arith.constant 0.000000e+00 : f32
    %1 = vector.broadcast %cst_0 : f32 to vector<18x1x4xf32>
    %c0 = arith.constant 0 : index
    %c0_1 = arith.constant 0 : index
    %c0_2 = arith.constant 0 : index
    %2 = vector.load %arg7[%c0, %c0_1, %c0_2] : memref<18x18x4xf32, #tpu.memory_space<vmem>>, vector<1x18x4xf32>
    tpu.vector_store %arg7[%c0, %c0_1, %c0_2], %0 {strides = array<i32>} : memref<18x18x4xf32, #tpu.memory_space<vmem>>, vector<1x18x4xf32>,
    %c17 = arith.constant 17 : index
    %c0_3 = arith.constant 0 : index
    %c0_4 = arith.constant 0 : index
    %3 = vector.load %arg7[%c17, %c0_3, %c0_4] : memref<18x18x4xf32, #tpu.memory_space<vmem>>, vector<1x18x4xf32>
    tpu.vector_store %arg7[%c17, %c0_3, %c0_4], %0 {strides = array<i32>} : memref<18x18x4xf32, #tpu.memory_space<vmem>>, vector<1x18x4xf32>,
    %c0_5 = arith.constant 0 : index
    %c0_6 = arith.constant 0 : index
    %c0_7 = arith.constant 0 : index
    %4 = vector.load %arg7[%c0_5, %c0_6, %c0_7] : memref<18x18x4xf32, #tpu.memory_space<vmem>>, vector<18x1x4xf32>
    tpu.vector_store %arg7[%c0_5, %c0_6, %c0_7], %1 {strides = array<i32>} : memref<18x18x4xf32, #tpu.memory_space<vmem>>, vector<18x1x4xf32>,
    %c0_8 = arith.constant 0 : index
    %c17_9 = arith.constant 17 : index
    %c0_10 = arith.constant 0 : index
    %5 = vector.load %arg7[%c0_8, %c17_9, %c0_10] : memref<18x18x4xf32, #tpu.memory_space<vmem>>, vector<18x1x4xf32>
    tpu.vector_store %arg7[%c0_8, %c17_9, %c0_10], %1 {strides = array<i32>} : memref<18x18x4xf32, #tpu.memory_space<vmem>>, vector<18x1x4xf32>,
    %c0_11 = arith.constant 0 : index
    %c0_12 = arith.constant 0 : index
    %c0_13 = arith.constant 0 : index
    %6 = vector.load %arg8[%c0_11, %c0_12, %c0_13] : memref<18x18x4xf32, #tpu.memory_space<vmem>>, vector<1x18x4xf32>
    tpu.vector_store %arg8[%c0_11, %c0_12, %c0_13], %0 {strides = array<i32>} : memref<18x18x4xf32, #tpu.memory_space<vmem>>, vector<1x18x4xf32>,
    %c17_14 = arith.constant 17 : index
    %c0_15 = arith.constant 0 : index
    %c0_16 = arith.constant 0 : index
    %7 = vector.load %arg8[%c17_14, %c0_15, %c0_16] : memref<18x18x4xf32, #tpu.memory_space<vmem>>, vector<1x18x4xf32>
    tpu.vector_store %arg8[%c17_14, %c0_15, %c0_16], %0 {strides = array<i32>} : memref<18x18x4xf32, #tpu.memory_space<vmem>>, vector<1x18x4xf32>,
    %c0_17 = arith.constant 0 : index
    %c0_18 = arith.constant 0 : index
    %c0_19 = arith.constant 0 : index
    %8 = vector.load %arg8[%c0_17, %c0_18, %c0_19] : memref<18x18x4xf32, #tpu.memory_space<vmem>>, vector<18x1x4xf32>
    tpu.vector_store %arg8[%c0_17, %c0_18, %c0_19], %1 {strides = array<i32>} : memref<18x18x4xf32, #tpu.memory_space<vmem>>, vector<18x1x4xf32>,
    %c0_20 = arith.constant 0 : index
    %c17_21 = arith.constant 17 : index
    %c0_22 = arith.constant 0 : index
    %9 = vector.load %arg8[%c0_20, %c17_21, %c0_22] : memref<18x18x4xf32, #tpu.memory_space<vmem>>, vector<18x1x4xf32>
    tpu.vector_store %arg8[%c0_20, %c17_21, %c0_22], %1 {strides = array<i32>} : memref<18x18x4xf32, #tpu.memory_space<vmem>>, vector<18x1x4xf32>,
    %c0_23 = arith.constant 0 : index
    %c0_24 = arith.constant 0 : index
    %c0_25 = arith.constant 0 : index
    %c0_26 = arith.constant 0 : index
    %10 = vector.load %arg1[%c0_23, %c0_24, %c0_25, %c0_26] : memref<1x16x16x4xbf16, #tpu.memory_space<vmem>>, vector<1x16x16x4xbf16>
    %11 = vector.shape_cast %10 : vector<1x16x16x4xbf16> to vector<16x16x4xbf16>
    %12 = arith.extf %11 : vector<16x16x4xbf16> to vector<16x16x4xf32>
    %c1 = arith.constant 1 : index
    %c1_27 = arith.constant 1 : index
    %c0_28 = arith.constant 0 : index
    %13 = vector.load %arg7[%c1, %c1_27, %c0_28] : memref<18x18x4xf32, #tpu.memory_space<vmem>>, vector<16x16x4xf32>
    tpu.vector_store %arg7[%c1, %c1_27, %c0_28], %12 {strides = array<i32>} : memref<18x18x4xf32, #tpu.memory_space<vmem>>, vector<16x16x4xf32>,
    %c0_29 = arith.constant 0 : index
    %c0_30 = arith.constant 0 : index
    %c0_31 = arith.constant 0 : index
    %14 = vector.load %arg7[%c0_29, %c0_30, %c0_31] : memref<18x18x4xf32, #tpu.memory_space<vmem>>, vector<16x16x4xf32>
    %15 = vector.shape_cast %14 : vector<16x16x4xf32> to vector<256x4xf32>
    %16 = arith.truncf %15 : vector<256x4xf32> to vector<256x4xbf16>
    %c0_32 = arith.constant 0 : index
    %c0_33 = arith.constant 0 : index
    %17 = vector.load %arg9[%c0_32, %c0_33] : memref<256x12xbf16, #tpu.memory_space<vmem>>, vector<256x4xbf16>
    tpu.vector_store %arg9[%c0_32, %c0_33], %16 {strides = array<i32>} : memref<256x12xbf16, #tpu.memory_space<vmem>>, vector<256x4xbf16>,
    %c0_34 = arith.constant 0 : index
    %c1_35 = arith.constant 1 : index
    %c0_36 = arith.constant 0 : index
    %18 = vector.load %arg7[%c0_34, %c1_35, %c0_36] : memref<18x18x4xf32, #tpu.memory_space<vmem>>, vector<16x16x4xf32>
    %19 = vector.shape_cast %18 : vector<16x16x4xf32> to vector<256x4xf32>
    %20 = arith.truncf %19 : vector<256x4xf32> to vector<256x4xbf16>
    %c0_37 = arith.constant 0 : index
    %c4 = arith.constant 4 : index
    %21 = vector.load %arg9[%c0_37, %c4] : memref<256x12xbf16, #tpu.memory_space<vmem>>, vector<256x4xbf16>
    tpu.vector_store %arg9[%c0_37, %c4], %20 {strides = array<i32>} : memref<256x12xbf16, #tpu.memory_space<vmem>>, vector<256x4xbf16>,
    %c0_38 = arith.constant 0 : index
    %c2 = arith.constant 2 : index
    %c0_39 = arith.constant 0 : index
    %22 = vector.load %arg7[%c0_38, %c2, %c0_39] : memref<18x18x4xf32, #tpu.memory_space<vmem>>, vector<16x16x4xf32>
    %23 = vector.shape_cast %22 : vector<16x16x4xf32> to vector<256x4xf32>
    %24 = arith.truncf %23 : vector<256x4xf32> to vector<256x4xbf16>
    %c0_40 = arith.constant 0 : index
    %c8 = arith.constant 8 : index
    %25 = vector.load %arg9[%c0_40, %c8] : memref<256x12xbf16, #tpu.memory_space<vmem>>, vector<256x4xbf16>
    tpu.vector_store %arg9[%c0_40, %c8], %24 {strides = array<i32>} : memref<256x12xbf16, #tpu.memory_space<vmem>>, vector<256x4xbf16>,
    %c0_41 = arith.constant 0 : index
    %c0_42 = arith.constant 0 : index
    %26 = vector.load %arg9[%c0_41, %c0_42] : memref<256x12xbf16, #tpu.memory_space<vmem>>, vector<256x12xbf16>
    %c0_43 = arith.constant 0 : index
    %c0_44 = arith.constant 0 : index
    %27 = vector.load %arg2[%c0_43, %c0_44] : memref<36x4xbf16, #tpu.memory_space<vmem>>, vector<12x4xbf16>
    %cst_45 = arith.constant dense<0.000000e+00> : vector<256x4xf32>
    %28 = tpu.matmul %26, %27, %cst_45 {dimension_numbers = #tpu.dot_dimension_numbers<[1], [0], [0], [1], [0, 0, 1, 1], [], []>} : vector<256x12xbf16>, vector<12x4xbf16>, vector<256x4xf32> -> vector<256x4xf32>
    %c1_46 = arith.constant 1 : index
    %c0_47 = arith.constant 0 : index
    %c0_48 = arith.constant 0 : index
    %29 = vector.load %arg7[%c1_46, %c0_47, %c0_48] : memref<18x18x4xf32, #tpu.memory_space<vmem>>, vector<16x16x4xf32>
    %30 = vector.shape_cast %29 : vector<16x16x4xf32> to vector<256x4xf32>
    %31 = arith.truncf %30 : vector<256x4xf32> to vector<256x4xbf16>
    %c0_49 = arith.constant 0 : index
    %c0_50 = arith.constant 0 : index
    %32 = vector.load %arg9[%c0_49, %c0_50] : memref<256x12xbf16, #tpu.memory_space<vmem>>, vector<256x4xbf16>
    tpu.vector_store %arg9[%c0_49, %c0_50], %31 {strides = array<i32>} : memref<256x12xbf16, #tpu.memory_space<vmem>>, vector<256x4xbf16>,
    %c1_51 = arith.constant 1 : index
    %c1_52 = arith.constant 1 : index
    %c0_53 = arith.constant 0 : index
    %33 = vector.load %arg7[%c1_51, %c1_52, %c0_53] : memref<18x18x4xf32, #tpu.memory_space<vmem>>, vector<16x16x4xf32>
    %34 = vector.shape_cast %33 : vector<16x16x4xf32> to vector<256x4xf32>
    %35 = arith.truncf %34 : vector<256x4xf32> to vector<256x4xbf16>
    %c0_54 = arith.constant 0 : index
    %c4_55 = arith.constant 4 : index
    %36 = vector.load %arg9[%c0_54, %c4_55] : memref<256x12xbf16, #tpu.memory_space<vmem>>, vector<256x4xbf16>
    tpu.vector_store %arg9[%c0_54, %c4_55], %35 {strides = array<i32>} : memref<256x12xbf16, #tpu.memory_space<vmem>>, vector<256x4xbf16>,
    %c1_56 = arith.constant 1 : index
    %c2_57 = arith.constant 2 : index
    %c0_58 = arith.constant 0 : index
    %37 = vector.load %arg7[%c1_56, %c2_57, %c0_58] : memref<18x18x4xf32, #tpu.memory_space<vmem>>, vector<16x16x4xf32>
    %38 = vector.shape_cast %37 : vector<16x16x4xf32> to vector<256x4xf32>
    %39 = arith.truncf %38 : vector<256x4xf32> to vector<256x4xbf16>
    %c0_59 = arith.constant 0 : index
    %c8_60 = arith.constant 8 : index
    %40 = vector.load %arg9[%c0_59, %c8_60] : memref<256x12xbf16, #tpu.memory_space<vmem>>, vector<256x4xbf16>
    tpu.vector_store %arg9[%c0_59, %c8_60], %39 {strides = array<i32>} : memref<256x12xbf16, #tpu.memory_space<vmem>>, vector<256x4xbf16>,
    %c0_61 = arith.constant 0 : index
    %c0_62 = arith.constant 0 : index
    %41 = vector.load %arg9[%c0_61, %c0_62] : memref<256x12xbf16, #tpu.memory_space<vmem>>, vector<256x12xbf16>
    %c12 = arith.constant 12 : index
    %c0_63 = arith.constant 0 : index
    %42 = vector.load %arg2[%c12, %c0_63] : memref<36x4xbf16, #tpu.memory_space<vmem>>, vector<12x4xbf16>
    %cst_64 = arith.constant dense<0.000000e+00> : vector<256x4xf32>
    %43 = tpu.matmul %41, %42, %cst_64 {dimension_numbers = #tpu.dot_dimension_numbers<[1], [0], [0], [1], [0, 0, 1, 1], [], []>} : vector<256x12xbf16>, vector<12x4xbf16>, vector<256x4xf32> -> vector<256x4xf32>
    %44 = arith.addf %28, %43 : vector<256x4xf32>
    %c2_65 = arith.constant 2 : index
    %c0_66 = arith.constant 0 : index
    %c0_67 = arith.constant 0 : index
    %45 = vector.load %arg7[%c2_65, %c0_66, %c0_67] : memref<18x18x4xf32, #tpu.memory_space<vmem>>, vector<16x16x4xf32>
    %46 = vector.shape_cast %45 : vector<16x16x4xf32> to vector<256x4xf32>
    %47 = arith.truncf %46 : vector<256x4xf32> to vector<256x4xbf16>
    %c0_68 = arith.constant 0 : index
    %c0_69 = arith.constant 0 : index
    %48 = vector.load %arg9[%c0_68, %c0_69] : memref<256x12xbf16, #tpu.memory_space<vmem>>, vector<256x4xbf16>
    tpu.vector_store %arg9[%c0_68, %c0_69], %47 {strides = array<i32>} : memref<256x12xbf16, #tpu.memory_space<vmem>>, vector<256x4xbf16>,
    %c2_70 = arith.constant 2 : index
    %c1_71 = arith.constant 1 : index
    %c0_72 = arith.constant 0 : index
    %49 = vector.load %arg7[%c2_70, %c1_71, %c0_72] : memref<18x18x4xf32, #tpu.memory_space<vmem>>, vector<16x16x4xf32>
    %50 = vector.shape_cast %49 : vector<16x16x4xf32> to vector<256x4xf32>
    %51 = arith.truncf %50 : vector<256x4xf32> to vector<256x4xbf16>
    %c0_73 = arith.constant 0 : index
    %c4_74 = arith.constant 4 : index
    %52 = vector.load %arg9[%c0_73, %c4_74] : memref<256x12xbf16, #tpu.memory_space<vmem>>, vector<256x4xbf16>
    tpu.vector_store %arg9[%c0_73, %c4_74], %51 {strides = array<i32>} : memref<256x12xbf16, #tpu.memory_space<vmem>>, vector<256x4xbf16>,
    %c2_75 = arith.constant 2 : index
    %c2_76 = arith.constant 2 : index
    %c0_77 = arith.constant 0 : index
    %53 = vector.load %arg7[%c2_75, %c2_76, %c0_77] : memref<18x18x4xf32, #tpu.memory_space<vmem>>, vector<16x16x4xf32>
    %54 = vector.shape_cast %53 : vector<16x16x4xf32> to vector<256x4xf32>
    %55 = arith.truncf %54 : vector<256x4xf32> to vector<256x4xbf16>
    %c0_78 = arith.constant 0 : index
    %c8_79 = arith.constant 8 : index
    %56 = vector.load %arg9[%c0_78, %c8_79] : memref<256x12xbf16, #tpu.memory_space<vmem>>, vector<256x4xbf16>
    tpu.vector_store %arg9[%c0_78, %c8_79], %55 {strides = array<i32>} : memref<256x12xbf16, #tpu.memory_space<vmem>>, vector<256x4xbf16>,
    %c0_80 = arith.constant 0 : index
    %c0_81 = arith.constant 0 : index
    %57 = vector.load %arg9[%c0_80, %c0_81] : memref<256x12xbf16, #tpu.memory_space<vmem>>, vector<256x12xbf16>
    %c24 = arith.constant 24 : index
    %c0_82 = arith.constant 0 : index
    %58 = vector.load %arg2[%c24, %c0_82] : memref<36x4xbf16, #tpu.memory_space<vmem>>, vector<12x4xbf16>
    %cst_83 = arith.constant dense<0.000000e+00> : vector<256x4xf32>
    %59 = tpu.matmul %57, %58, %cst_83 {dimension_numbers = #tpu.dot_dimension_numbers<[1], [0], [0], [1], [0, 0, 1, 1], [], []>} : vector<256x12xbf16>, vector<12x4xbf16>, vector<256x4xf32> -> vector<256x4xf32>
    %60 = arith.addf %44, %59 : vector<256x4xf32>
    %c0_84 = arith.constant 0 : index
    %c0_85 = arith.constant 0 : index
    %61 = vector.load %arg3[%c0_84, %c0_85] : memref<1x4xf32, #tpu.memory_space<vmem>>, vector<1x4xf32>
    %62 = vector.broadcast %61 : vector<1x4xf32> to vector<256x4xf32>
    %63 = arith.addf %60, %62 : vector<256x4xf32>
    %cst_86 = arith.constant 0.000000e+00 : f32
    %64 = vector.broadcast %cst_86 : f32 to vector<256x4xf32>
    %65 = arith.maximumf %63, %64 : vector<256x4xf32>
    %66 = vector.shape_cast %65 : vector<256x4xf32> to vector<16x16x4xf32>
    %c1_87 = arith.constant 1 : index
    %c1_88 = arith.constant 1 : index
    %c0_89 = arith.constant 0 : index
    %67 = vector.load %arg8[%c1_87, %c1_88, %c0_89] : memref<18x18x4xf32, #tpu.memory_space<vmem>>, vector<16x16x4xf32>
    tpu.vector_store %arg8[%c1_87, %c1_88, %c0_89], %66 {strides = array<i32>} : memref<18x18x4xf32, #tpu.memory_space<vmem>>, vector<16x16x4xf32>,
    %c0_90 = arith.constant 0 : index
    %c0_91 = arith.constant 0 : index
    %c0_92 = arith.constant 0 : index
    %68 = vector.load %arg8[%c0_90, %c0_91, %c0_92] : memref<18x18x4xf32, #tpu.memory_space<vmem>>, vector<16x16x4xf32>
    %69 = vector.shape_cast %68 : vector<16x16x4xf32> to vector<256x4xf32>
    %70 = arith.truncf %69 : vector<256x4xf32> to vector<256x4xbf16>
    %c0_93 = arith.constant 0 : index
    %c0_94 = arith.constant 0 : index
    %71 = vector.load %arg9[%c0_93, %c0_94] : memref<256x12xbf16, #tpu.memory_space<vmem>>, vector<256x4xbf16>
    tpu.vector_store %arg9[%c0_93, %c0_94], %70 {strides = array<i32>} : memref<256x12xbf16, #tpu.memory_space<vmem>>, vector<256x4xbf16>,
    %c0_95 = arith.constant 0 : index
    %c1_96 = arith.constant 1 : index
    %c0_97 = arith.constant 0 : index
    %72 = vector.load %arg8[%c0_95, %c1_96, %c0_97] : memref<18x18x4xf32, #tpu.memory_space<vmem>>, vector<16x16x4xf32>
    %73 = vector.shape_cast %72 : vector<16x16x4xf32> to vector<256x4xf32>
    %74 = arith.truncf %73 : vector<256x4xf32> to vector<256x4xbf16>
    %c0_98 = arith.constant 0 : index
    %c4_99 = arith.constant 4 : index
    %75 = vector.load %arg9[%c0_98, %c4_99] : memref<256x12xbf16, #tpu.memory_space<vmem>>, vector<256x4xbf16>
    tpu.vector_store %arg9[%c0_98, %c4_99], %74 {strides = array<i32>} : memref<256x12xbf16, #tpu.memory_space<vmem>>, vector<256x4xbf16>,
    %c0_100 = arith.constant 0 : index
    %c2_101 = arith.constant 2 : index
    %c0_102 = arith.constant 0 : index
    %76 = vector.load %arg8[%c0_100, %c2_101, %c0_102] : memref<18x18x4xf32, #tpu.memory_space<vmem>>, vector<16x16x4xf32>
    %77 = vector.shape_cast %76 : vector<16x16x4xf32> to vector<256x4xf32>
    %78 = arith.truncf %77 : vector<256x4xf32> to vector<256x4xbf16>
    %c0_103 = arith.constant 0 : index
    %c8_104 = arith.constant 8 : index
    %79 = vector.load %arg9[%c0_103, %c8_104] : memref<256x12xbf16, #tpu.memory_space<vmem>>, vector<256x4xbf16>
    tpu.vector_store %arg9[%c0_103, %c8_104], %78 {strides = array<i32>} : memref<256x12xbf16, #tpu.memory_space<vmem>>, vector<256x4xbf16>,
    %c0_105 = arith.constant 0 : index
    %c0_106 = arith.constant 0 : index
    %80 = vector.load %arg9[%c0_105, %c0_106] : memref<256x12xbf16, #tpu.memory_space<vmem>>, vector<256x12xbf16>
    %c0_107 = arith.constant 0 : index
    %c0_108 = arith.constant 0 : index
    %81 = vector.load %arg4[%c0_107, %c0_108] : memref<36x4xbf16, #tpu.memory_space<vmem>>, vector<12x4xbf16>
    %cst_109 = arith.constant dense<0.000000e+00> : vector<256x4xf32>
    %82 = tpu.matmul %80, %81, %cst_109 {dimension_numbers = #tpu.dot_dimension_numbers<[1], [0], [0], [1], [0, 0, 1, 1], [], []>} : vector<256x12xbf16>, vector<12x4xbf16>, vector<256x4xf32> -> vector<256x4xf32>
    %c1_110 = arith.constant 1 : index
    %c0_111 = arith.constant 0 : index
    %c0_112 = arith.constant 0 : index
    %83 = vector.load %arg8[%c1_110, %c0_111, %c0_112] : memref<18x18x4xf32, #tpu.memory_space<vmem>>, vector<16x16x4xf32>
    %84 = vector.shape_cast %83 : vector<16x16x4xf32> to vector<256x4xf32>
    %85 = arith.truncf %84 : vector<256x4xf32> to vector<256x4xbf16>
    %c0_113 = arith.constant 0 : index
    %c0_114 = arith.constant 0 : index
    %86 = vector.load %arg9[%c0_113, %c0_114] : memref<256x12xbf16, #tpu.memory_space<vmem>>, vector<256x4xbf16>
    tpu.vector_store %arg9[%c0_113, %c0_114], %85 {strides = array<i32>} : memref<256x12xbf16, #tpu.memory_space<vmem>>, vector<256x4xbf16>,
    %c1_115 = arith.constant 1 : index
    %c1_116 = arith.constant 1 : index
    %c0_117 = arith.constant 0 : index
    %87 = vector.load %arg8[%c1_115, %c1_116, %c0_117] : memref<18x18x4xf32, #tpu.memory_space<vmem>>, vector<16x16x4xf32>
    %88 = vector.shape_cast %87 : vector<16x16x4xf32> to vector<256x4xf32>
    %89 = arith.truncf %88 : vector<256x4xf32> to vector<256x4xbf16>
    %c0_118 = arith.constant 0 : index
    %c4_119 = arith.constant 4 : index
    %90 = vector.load %arg9[%c0_118, %c4_119] : memref<256x12xbf16, #tpu.memory_space<vmem>>, vector<256x4xbf16>
    tpu.vector_store %arg9[%c0_118, %c4_119], %89 {strides = array<i32>} : memref<256x12xbf16, #tpu.memory_space<vmem>>, vector<256x4xbf16>,
    %c1_120 = arith.constant 1 : index
    %c2_121 = arith.constant 2 : index
    %c0_122 = arith.constant 0 : index
    %91 = vector.load %arg8[%c1_120, %c2_121, %c0_122] : memref<18x18x4xf32, #tpu.memory_space<vmem>>, vector<16x16x4xf32>
    %92 = vector.shape_cast %91 : vector<16x16x4xf32> to vector<256x4xf32>
    %93 = arith.truncf %92 : vector<256x4xf32> to vector<256x4xbf16>
    %c0_123 = arith.constant 0 : index
    %c8_124 = arith.constant 8 : index
    %94 = vector.load %arg9[%c0_123, %c8_124] : memref<256x12xbf16, #tpu.memory_space<vmem>>, vector<256x4xbf16>
    tpu.vector_store %arg9[%c0_123, %c8_124], %93 {strides = array<i32>} : memref<256x12xbf16, #tpu.memory_space<vmem>>, vector<256x4xbf16>,
    %c0_125 = arith.constant 0 : index
    %c0_126 = arith.constant 0 : index
    %95 = vector.load %arg9[%c0_125, %c0_126] : memref<256x12xbf16, #tpu.memory_space<vmem>>, vector<256x12xbf16>
    %c12_127 = arith.constant 12 : index
    %c0_128 = arith.constant 0 : index
    %96 = vector.load %arg4[%c12_127, %c0_128] : memref<36x4xbf16, #tpu.memory_space<vmem>>, vector<12x4xbf16>
    %cst_129 = arith.constant dense<0.000000e+00> : vector<256x4xf32>
    %97 = tpu.matmul %95, %96, %cst_129 {dimension_numbers = #tpu.dot_dimension_numbers<[1], [0], [0], [1], [0, 0, 1, 1], [], []>} : vector<256x12xbf16>, vector<12x4xbf16>, vector<256x4xf32> -> vector<256x4xf32>
    %98 = arith.addf %82, %97 : vector<256x4xf32>
    %c2_130 = arith.constant 2 : index
    %c0_131 = arith.constant 0 : index
    %c0_132 = arith.constant 0 : index
    %99 = vector.load %arg8[%c2_130, %c0_131, %c0_132] : memref<18x18x4xf32, #tpu.memory_space<vmem>>, vector<16x16x4xf32>
    %100 = vector.shape_cast %99 : vector<16x16x4xf32> to vector<256x4xf32>
    %101 = arith.truncf %100 : vector<256x4xf32> to vector<256x4xbf16>
    %c0_133 = arith.constant 0 : index
    %c0_134 = arith.constant 0 : index
    %102 = vector.load %arg9[%c0_133, %c0_134] : memref<256x12xbf16, #tpu.memory_space<vmem>>, vector<256x4xbf16>
    tpu.vector_store %arg9[%c0_133, %c0_134], %101 {strides = array<i32>} : memref<256x12xbf16, #tpu.memory_space<vmem>>, vector<256x4xbf16>,
    %c2_135 = arith.constant 2 : index
    %c1_136 = arith.constant 1 : index
    %c0_137 = arith.constant 0 : index
    %103 = vector.load %arg8[%c2_135, %c1_136, %c0_137] : memref<18x18x4xf32, #tpu.memory_space<vmem>>, vector<16x16x4xf32>
    %104 = vector.shape_cast %103 : vector<16x16x4xf32> to vector<256x4xf32>
    %105 = arith.truncf %104 : vector<256x4xf32> to vector<256x4xbf16>
    %c0_138 = arith.constant 0 : index
    %c4_139 = arith.constant 4 : index
    %106 = vector.load %arg9[%c0_138, %c4_139] : memref<256x12xbf16, #tpu.memory_space<vmem>>, vector<256x4xbf16>
    tpu.vector_store %arg9[%c0_138, %c4_139], %105 {strides = array<i32>} : memref<256x12xbf16, #tpu.memory_space<vmem>>, vector<256x4xbf16>,
    %c2_140 = arith.constant 2 : index
    %c2_141 = arith.constant 2 : index
    %c0_142 = arith.constant 0 : index
    %107 = vector.load %arg8[%c2_140, %c2_141, %c0_142] : memref<18x18x4xf32, #tpu.memory_space<vmem>>, vector<16x16x4xf32>
    %108 = vector.shape_cast %107 : vector<16x16x4xf32> to vector<256x4xf32>
    %109 = arith.truncf %108 : vector<256x4xf32> to vector<256x4xbf16>
    %c0_143 = arith.constant 0 : index
    %c8_144 = arith.constant 8 : index
    %110 = vector.load %arg9[%c0_143, %c8_144] : memref<256x12xbf16, #tpu.memory_space<vmem>>, vector<256x4xbf16>
    tpu.vector_store %arg9[%c0_143, %c8_144], %109 {strides = array<i32>} : memref<256x12xbf16, #tpu.memory_space<vmem>>, vector<256x4xbf16>,
    %c0_145 = arith.constant 0 : index
    %c0_146 = arith.constant 0 : index
    %111 = vector.load %arg9[%c0_145, %c0_146] : memref<256x12xbf16, #tpu.memory_space<vmem>>, vector<256x12xbf16>
    %c24_147 = arith.constant 24 : index
    %c0_148 = arith.constant 0 : index
    %112 = vector.load %arg4[%c24_147, %c0_148] : memref<36x4xbf16, #tpu.memory_space<vmem>>, vector<12x4xbf16>
    %cst_149 = arith.constant dense<0.000000e+00> : vector<256x4xf32>
    %113 = tpu.matmul %111, %112, %cst_149 {dimension_numbers = #tpu.dot_dimension_numbers<[1], [0], [0], [1], [0, 0, 1, 1], [], []>} : vector<256x12xbf16>, vector<12x4xbf16>, vector<256x4xf32> -> vector<256x4xf32>
    %114 = arith.addf %98, %113 : vector<256x4xf32>
    %c0_150 = arith.constant 0 : index
    %c0_151 = arith.constant 0 : index
    %115 = vector.load %arg5[%c0_150, %c0_151] : memref<1x4xf32, #tpu.memory_space<vmem>>, vector<1x4xf32>
    %116 = vector.broadcast %115 : vector<1x4xf32> to vector<256x4xf32>
    %117 = arith.addf %114, %116 : vector<256x4xf32>
    %cst_152 = arith.constant 5.000000e-01 : f32
    %118 = vector.broadcast %cst_152 : f32 to vector<256x4xf32>
    %119 = arith.mulf %117, %118 : vector<256x4xf32>
    %c0_153 = arith.constant 0 : index
    %c0_154 = arith.constant 0 : index
    %c0_155 = arith.constant 0 : index
    %c0_156 = arith.constant 0 : index
    %120 = vector.load %arg1[%c0_153, %c0_154, %c0_155, %c0_156] : memref<1x16x16x4xbf16, #tpu.memory_space<vmem>>, vector<1x16x16x4xbf16>
    %121 = vector.shape_cast %120 : vector<1x16x16x4xbf16> to vector<16x16x4xbf16>
    %122 = arith.extf %121 : vector<16x16x4xbf16> to vector<16x16x4xf32>
    %123 = vector.shape_cast %122 : vector<16x16x4xf32> to vector<256x4xf32>
    %124 = arith.addf %119, %123 : vector<256x4xf32>
    %125 = vector.shape_cast %124 : vector<256x4xf32> to vector<16x64xf32>
    %c0_157 = arith.constant 0 : index
    %c0_158 = arith.constant 0 : index
    %c0_159 = arith.constant 0 : index
    %126 = vector.load %arg6[%c0_157, %c0_158, %c0_159] : memref<1x16x64xf32, #tpu.memory_space<vmem>>, vector<1x16x64xf32>
    %127 = vector.shape_cast %126 : vector<1x16x64xf32> to vector<16x64xf32>
    %128 = vector.shape_cast %125 : vector<16x64xf32> to vector<1x16x64xf32>
    tpu.vector_store %arg6[%c0_157, %c0_158, %c0_159], %128 {strides = array<i32>} : memref<1x16x64xf32, #tpu.memory_space<vmem>>, vector<1x16x64xf32>,
    return
  }
  func.func @transform_0(%arg0: i32) -> (i32, i32, i32, i32) {
    %c0_i32 = arith.constant 0 : i32
    %c0_i32_0 = arith.constant 0 : i32
    %c0_i32_1 = arith.constant 0 : i32
    %c0_i32_2 = arith.constant 0 : i32
    return %arg0, %c0_i32, %c0_i32_0, %c0_i32_1 : i32, i32, i32, i32
  }
  func.func @transform_1(%arg0: i32) -> (i32, i32) {
    %c0_i32 = arith.constant 0 : i32
    %c0_i32_0 = arith.constant 0 : i32
    %c0_i32_1 = arith.constant 0 : i32
    return %c0_i32, %c0_i32_0 : i32, i32
  }
  func.func @transform_2(%arg0: i32) -> (i32, i32) {
    %c0_i32 = arith.constant 0 : i32
    %c0_i32_0 = arith.constant 0 : i32
    %c0_i32_1 = arith.constant 0 : i32
    return %c0_i32, %c0_i32_0 : i32, i32
  }
  func.func @transform_3(%arg0: i32) -> (i32, i32) {
    %c0_i32 = arith.constant 0 : i32
    %c0_i32_0 = arith.constant 0 : i32
    %c0_i32_1 = arith.constant 0 : i32
    return %c0_i32, %c0_i32_0 : i32, i32
  }
  func.func @transform_4(%arg0: i32) -> (i32, i32) {
    %c0_i32 = arith.constant 0 : i32
    %c0_i32_0 = arith.constant 0 : i32
    %c0_i32_1 = arith.constant 0 : i32
    return %c0_i32, %c0_i32_0 : i32, i32
  }
  func.func @transform_5(%arg0: i32) -> (i32, i32, i32) {
    %c0_i32 = arith.constant 0 : i32
    %c0_i32_0 = arith.constant 0 : i32
    %c0_i32_1 = arith.constant 0 : i32
    return %arg0, %c0_i32, %c0_i32_0 : i32, i32, i32
  }
}

module attributes {stable_mosaic.version = 11 : i64} {
  func.func @_resblock_kernel(%arg0: i32, %arg1: memref<1x16x16x4xbf16, #tpu.memory_space<vmem>>, %arg2: memref<36x4xbf16, #tpu.memory_space<vmem>>, %arg3: memref<1x4xf32, #tpu.memory_space<vmem>>, %arg4: memref<36x4xbf16, #tpu.memory_space<vmem>>, %arg5: memref<1x4xf32, #tpu.memory_space<vmem>>, %arg6: memref<1x256x4xf32, #tpu.memory_space<vmem>>, %arg7: memref<18x18x4xf32, #tpu.memory_space<vmem>>, %arg8: memref<18x18x4xf32, #tpu.memory_space<vmem>>, %arg9: memref<256x12xbf16, #tpu.memory_space<vmem>>) attributes {dimension_semantics = [#tpu.dimension_semantics<parallel>], iteration_bounds = array<i64: 2>, scalar_prefetch = 0 : i64, scratch_operands = 3 : i64, tpu.core_type = #tpu.core_type<tc>, window_params = [{transform_indices = @transform_0, window_bounds = array<i64: 1, 16, 16, 4>}, {pipeline_mode = #tpu.pipeline_mode<synchronous>, transform_indices = @transform_1, window_bounds = array<i64: 36, 4>}, {pipeline_mode = #tpu.pipeline_mode<synchronous>, transform_indices = @transform_2, window_bounds = array<i64: 1, 4>}, {pipeline_mode = #tpu.pipeline_mode<synchronous>, transform_indices = @transform_3, window_bounds = array<i64: 36, 4>}, {pipeline_mode = #tpu.pipeline_mode<synchronous>, transform_indices = @transform_4, window_bounds = array<i64: 1, 4>}, {transform_indices = @transform_5, window_bounds = array<i64: 1, 256, 4>}]} {
    %cst = arith.constant 0.000000e+00 : f32
    %0 = vector.broadcast %cst : f32 to vector<1x18x4xf32>
    %cst_0 = arith.constant 0.000000e+00 : f32
    %1 = vector.broadcast %cst_0 : f32 to vector<18x1x4xf32>
    %c0 = arith.constant 0 : index
    %c0_1 = arith.constant 0 : index
    %c0_2 = arith.constant 0 : index
    %2 = vector.load %arg7[%c0, %c0_1, %c0_2] : memref<18x18x4xf32, #tpu.memory_space<vmem>>, vector<1x18x4xf32>
    tpu.vector_store %arg7[%c0, %c0_1, %c0_2], %0 {strides = array<i32>} : memref<18x18x4xf32, #tpu.memory_space<vmem>>, vector<1x18x4xf32>,
    %c17 = arith.constant 17 : index
    %c0_3 = arith.constant 0 : index
    %c0_4 = arith.constant 0 : index
    %3 = vector.load %arg7[%c17, %c0_3, %c0_4] : memref<18x18x4xf32, #tpu.memory_space<vmem>>, vector<1x18x4xf32>
    tpu.vector_store %arg7[%c17, %c0_3, %c0_4], %0 {strides = array<i32>} : memref<18x18x4xf32, #tpu.memory_space<vmem>>, vector<1x18x4xf32>,
    %c0_5 = arith.constant 0 : index
    %c0_6 = arith.constant 0 : index
    %c0_7 = arith.constant 0 : index
    %4 = vector.load %arg7[%c0_5, %c0_6, %c0_7] : memref<18x18x4xf32, #tpu.memory_space<vmem>>, vector<18x1x4xf32>
    tpu.vector_store %arg7[%c0_5, %c0_6, %c0_7], %1 {strides = array<i32>} : memref<18x18x4xf32, #tpu.memory_space<vmem>>, vector<18x1x4xf32>,
    %c0_8 = arith.constant 0 : index
    %c17_9 = arith.constant 17 : index
    %c0_10 = arith.constant 0 : index
    %5 = vector.load %arg7[%c0_8, %c17_9, %c0_10] : memref<18x18x4xf32, #tpu.memory_space<vmem>>, vector<18x1x4xf32>
    tpu.vector_store %arg7[%c0_8, %c17_9, %c0_10], %1 {strides = array<i32>} : memref<18x18x4xf32, #tpu.memory_space<vmem>>, vector<18x1x4xf32>,
    %c0_11 = arith.constant 0 : index
    %c0_12 = arith.constant 0 : index
    %c0_13 = arith.constant 0 : index
    %6 = vector.load %arg8[%c0_11, %c0_12, %c0_13] : memref<18x18x4xf32, #tpu.memory_space<vmem>>, vector<1x18x4xf32>
    tpu.vector_store %arg8[%c0_11, %c0_12, %c0_13], %0 {strides = array<i32>} : memref<18x18x4xf32, #tpu.memory_space<vmem>>, vector<1x18x4xf32>,
    %c17_14 = arith.constant 17 : index
    %c0_15 = arith.constant 0 : index
    %c0_16 = arith.constant 0 : index
    %7 = vector.load %arg8[%c17_14, %c0_15, %c0_16] : memref<18x18x4xf32, #tpu.memory_space<vmem>>, vector<1x18x4xf32>
    tpu.vector_store %arg8[%c17_14, %c0_15, %c0_16], %0 {strides = array<i32>} : memref<18x18x4xf32, #tpu.memory_space<vmem>>, vector<1x18x4xf32>,
    %c0_17 = arith.constant 0 : index
    %c0_18 = arith.constant 0 : index
    %c0_19 = arith.constant 0 : index
    %8 = vector.load %arg8[%c0_17, %c0_18, %c0_19] : memref<18x18x4xf32, #tpu.memory_space<vmem>>, vector<18x1x4xf32>
    tpu.vector_store %arg8[%c0_17, %c0_18, %c0_19], %1 {strides = array<i32>} : memref<18x18x4xf32, #tpu.memory_space<vmem>>, vector<18x1x4xf32>,
    %c0_20 = arith.constant 0 : index
    %c17_21 = arith.constant 17 : index
    %c0_22 = arith.constant 0 : index
    %9 = vector.load %arg8[%c0_20, %c17_21, %c0_22] : memref<18x18x4xf32, #tpu.memory_space<vmem>>, vector<18x1x4xf32>
    tpu.vector_store %arg8[%c0_20, %c17_21, %c0_22], %1 {strides = array<i32>} : memref<18x18x4xf32, #tpu.memory_space<vmem>>, vector<18x1x4xf32>,
    %c0_23 = arith.constant 0 : index
    %c0_24 = arith.constant 0 : index
    %c0_25 = arith.constant 0 : index
    %c0_26 = arith.constant 0 : index
    %10 = vector.load %arg1[%c0_23, %c0_24, %c0_25, %c0_26] : memref<1x16x16x4xbf16, #tpu.memory_space<vmem>>, vector<1x16x16x4xbf16>
    %11 = vector.shape_cast %10 : vector<1x16x16x4xbf16> to vector<16x16x4xbf16>
    %12 = arith.extf %11 : vector<16x16x4xbf16> to vector<16x16x4xf32>
    %c1 = arith.constant 1 : index
    %c1_27 = arith.constant 1 : index
    %c0_28 = arith.constant 0 : index
    %13 = vector.load %arg7[%c1, %c1_27, %c0_28] : memref<18x18x4xf32, #tpu.memory_space<vmem>>, vector<16x16x4xf32>
    tpu.vector_store %arg7[%c1, %c1_27, %c0_28], %12 {strides = array<i32>} : memref<18x18x4xf32, #tpu.memory_space<vmem>>, vector<16x16x4xf32>,
    %c0_29 = arith.constant 0 : index
    %c0_30 = arith.constant 0 : index
    %c0_31 = arith.constant 0 : index
    %14 = vector.load %arg7[%c0_29, %c0_30, %c0_31] : memref<18x18x4xf32, #tpu.memory_space<vmem>>, vector<16x16x4xf32>
    %15 = vector.shape_cast %14 : vector<16x16x4xf32> to vector<256x4xf32>
    %16 = arith.truncf %15 : vector<256x4xf32> to vector<256x4xbf16>
    %c0_32 = arith.constant 0 : index
    %c0_33 = arith.constant 0 : index
    %17 = vector.load %arg9[%c0_32, %c0_33] : memref<256x12xbf16, #tpu.memory_space<vmem>>, vector<256x4xbf16>
    tpu.vector_store %arg9[%c0_32, %c0_33], %16 {strides = array<i32>} : memref<256x12xbf16, #tpu.memory_space<vmem>>, vector<256x4xbf16>,
    %c0_34 = arith.constant 0 : index
    %c1_35 = arith.constant 1 : index
    %c0_36 = arith.constant 0 : index
    %18 = vector.load %arg7[%c0_34, %c1_35, %c0_36] : memref<18x18x4xf32, #tpu.memory_space<vmem>>, vector<16x16x4xf32>
    %19 = vector.shape_cast %18 : vector<16x16x4xf32> to vector<256x4xf32>
    %20 = arith.truncf %19 : vector<256x4xf32> to vector<256x4xbf16>
    %c0_37 = arith.constant 0 : index
    %c4 = arith.constant 4 : index
    %21 = vector.load %arg9[%c0_37, %c4] : memref<256x12xbf16, #tpu.memory_space<vmem>>, vector<256x4xbf16>
    tpu.vector_store %arg9[%c0_37, %c4], %20 {strides = array<i32>} : memref<256x12xbf16, #tpu.memory_space<vmem>>, vector<256x4xbf16>,
    %c0_38 = arith.constant 0 : index
    %c2 = arith.constant 2 : index
    %c0_39 = arith.constant 0 : index
    %22 = vector.load %arg7[%c0_38, %c2, %c0_39] : memref<18x18x4xf32, #tpu.memory_space<vmem>>, vector<16x16x4xf32>
    %23 = vector.shape_cast %22 : vector<16x16x4xf32> to vector<256x4xf32>
    %24 = arith.truncf %23 : vector<256x4xf32> to vector<256x4xbf16>
    %c0_40 = arith.constant 0 : index
    %c8 = arith.constant 8 : index
    %25 = vector.load %arg9[%c0_40, %c8] : memref<256x12xbf16, #tpu.memory_space<vmem>>, vector<256x4xbf16>
    tpu.vector_store %arg9[%c0_40, %c8], %24 {strides = array<i32>} : memref<256x12xbf16, #tpu.memory_space<vmem>>, vector<256x4xbf16>,
    %c0_41 = arith.constant 0 : index
    %c0_42 = arith.constant 0 : index
    %26 = vector.load %arg9[%c0_41, %c0_42] : memref<256x12xbf16, #tpu.memory_space<vmem>>, vector<256x12xbf16>
    %c0_43 = arith.constant 0 : index
    %c0_44 = arith.constant 0 : index
    %27 = vector.load %arg2[%c0_43, %c0_44] : memref<36x4xbf16, #tpu.memory_space<vmem>>, vector<12x4xbf16>
    %cst_45 = arith.constant dense<0.000000e+00> : vector<256x4xf32>
    %28 = tpu.matmul %26, %27, %cst_45 {dimension_numbers = #tpu.dot_dimension_numbers<[1], [0], [0], [1], [0, 0, 1, 1], [], []>} : vector<256x12xbf16>, vector<12x4xbf16>, vector<256x4xf32> -> vector<256x4xf32>
    %c1_46 = arith.constant 1 : index
    %c0_47 = arith.constant 0 : index
    %c0_48 = arith.constant 0 : index
    %29 = vector.load %arg7[%c1_46, %c0_47, %c0_48] : memref<18x18x4xf32, #tpu.memory_space<vmem>>, vector<16x16x4xf32>
    %30 = vector.shape_cast %29 : vector<16x16x4xf32> to vector<256x4xf32>
    %31 = arith.truncf %30 : vector<256x4xf32> to vector<256x4xbf16>
    %c0_49 = arith.constant 0 : index
    %c0_50 = arith.constant 0 : index
    %32 = vector.load %arg9[%c0_49, %c0_50] : memref<256x12xbf16, #tpu.memory_space<vmem>>, vector<256x4xbf16>
    tpu.vector_store %arg9[%c0_49, %c0_50], %31 {strides = array<i32>} : memref<256x12xbf16, #tpu.memory_space<vmem>>, vector<256x4xbf16>,
    %c1_51 = arith.constant 1 : index
    %c1_52 = arith.constant 1 : index
    %c0_53 = arith.constant 0 : index
    %33 = vector.load %arg7[%c1_51, %c1_52, %c0_53] : memref<18x18x4xf32, #tpu.memory_space<vmem>>, vector<16x16x4xf32>
    %34 = vector.shape_cast %33 : vector<16x16x4xf32> to vector<256x4xf32>
    %35 = arith.truncf %34 : vector<256x4xf32> to vector<256x4xbf16>
    %c0_54 = arith.constant 0 : index
    %c4_55 = arith.constant 4 : index
    %36 = vector.load %arg9[%c0_54, %c4_55] : memref<256x12xbf16, #tpu.memory_space<vmem>>, vector<256x4xbf16>
    tpu.vector_store %arg9[%c0_54, %c4_55], %35 {strides = array<i32>} : memref<256x12xbf16, #tpu.memory_space<vmem>>, vector<256x4xbf16>,
    %c1_56 = arith.constant 1 : index
    %c2_57 = arith.constant 2 : index
    %c0_58 = arith.constant 0 : index
    %37 = vector.load %arg7[%c1_56, %c2_57, %c0_58] : memref<18x18x4xf32, #tpu.memory_space<vmem>>, vector<16x16x4xf32>
    %38 = vector.shape_cast %37 : vector<16x16x4xf32> to vector<256x4xf32>
    %39 = arith.truncf %38 : vector<256x4xf32> to vector<256x4xbf16>
    %c0_59 = arith.constant 0 : index
    %c8_60 = arith.constant 8 : index
    %40 = vector.load %arg9[%c0_59, %c8_60] : memref<256x12xbf16, #tpu.memory_space<vmem>>, vector<256x4xbf16>
    tpu.vector_store %arg9[%c0_59, %c8_60], %39 {strides = array<i32>} : memref<256x12xbf16, #tpu.memory_space<vmem>>, vector<256x4xbf16>,
    %c0_61 = arith.constant 0 : index
    %c0_62 = arith.constant 0 : index
    %41 = vector.load %arg9[%c0_61, %c0_62] : memref<256x12xbf16, #tpu.memory_space<vmem>>, vector<256x12xbf16>
    %c12 = arith.constant 12 : index
    %c0_63 = arith.constant 0 : index
    %42 = vector.load %arg2[%c12, %c0_63] : memref<36x4xbf16, #tpu.memory_space<vmem>>, vector<12x4xbf16>
    %cst_64 = arith.constant dense<0.000000e+00> : vector<256x4xf32>
    %43 = tpu.matmul %41, %42, %cst_64 {dimension_numbers = #tpu.dot_dimension_numbers<[1], [0], [0], [1], [0, 0, 1, 1], [], []>} : vector<256x12xbf16>, vector<12x4xbf16>, vector<256x4xf32> -> vector<256x4xf32>
    %44 = arith.addf %28, %43 : vector<256x4xf32>
    %c2_65 = arith.constant 2 : index
    %c0_66 = arith.constant 0 : index
    %c0_67 = arith.constant 0 : index
    %45 = vector.load %arg7[%c2_65, %c0_66, %c0_67] : memref<18x18x4xf32, #tpu.memory_space<vmem>>, vector<16x16x4xf32>
    %46 = vector.shape_cast %45 : vector<16x16x4xf32> to vector<256x4xf32>
    %47 = arith.truncf %46 : vector<256x4xf32> to vector<256x4xbf16>
    %c0_68 = arith.constant 0 : index
    %c0_69 = arith.constant 0 : index
    %48 = vector.load %arg9[%c0_68, %c0_69] : memref<256x12xbf16, #tpu.memory_space<vmem>>, vector<256x4xbf16>
    tpu.vector_store %arg9[%c0_68, %c0_69], %47 {strides = array<i32>} : memref<256x12xbf16, #tpu.memory_space<vmem>>, vector<256x4xbf16>,
    %c2_70 = arith.constant 2 : index
    %c1_71 = arith.constant 1 : index
    %c0_72 = arith.constant 0 : index
    %49 = vector.load %arg7[%c2_70, %c1_71, %c0_72] : memref<18x18x4xf32, #tpu.memory_space<vmem>>, vector<16x16x4xf32>
    %50 = vector.shape_cast %49 : vector<16x16x4xf32> to vector<256x4xf32>
    %51 = arith.truncf %50 : vector<256x4xf32> to vector<256x4xbf16>
    %c0_73 = arith.constant 0 : index
    %c4_74 = arith.constant 4 : index
    %52 = vector.load %arg9[%c0_73, %c4_74] : memref<256x12xbf16, #tpu.memory_space<vmem>>, vector<256x4xbf16>
    tpu.vector_store %arg9[%c0_73, %c4_74], %51 {strides = array<i32>} : memref<256x12xbf16, #tpu.memory_space<vmem>>, vector<256x4xbf16>,
    %c2_75 = arith.constant 2 : index
    %c2_76 = arith.constant 2 : index
    %c0_77 = arith.constant 0 : index
    %53 = vector.load %arg7[%c2_75, %c2_76, %c0_77] : memref<18x18x4xf32, #tpu.memory_space<vmem>>, vector<16x16x4xf32>
    %54 = vector.shape_cast %53 : vector<16x16x4xf32> to vector<256x4xf32>
    %55 = arith.truncf %54 : vector<256x4xf32> to vector<256x4xbf16>
    %c0_78 = arith.constant 0 : index
    %c8_79 = arith.constant 8 : index
    %56 = vector.load %arg9[%c0_78, %c8_79] : memref<256x12xbf16, #tpu.memory_space<vmem>>, vector<256x4xbf16>
    tpu.vector_store %arg9[%c0_78, %c8_79], %55 {strides = array<i32>} : memref<256x12xbf16, #tpu.memory_space<vmem>>, vector<256x4xbf16>,
    %c0_80 = arith.constant 0 : index
    %c0_81 = arith.constant 0 : index
    %57 = vector.load %arg9[%c0_80, %c0_81] : memref<256x12xbf16, #tpu.memory_space<vmem>>, vector<256x12xbf16>
    %c24 = arith.constant 24 : index
    %c0_82 = arith.constant 0 : index
    %58 = vector.load %arg2[%c24, %c0_82] : memref<36x4xbf16, #tpu.memory_space<vmem>>, vector<12x4xbf16>
    %cst_83 = arith.constant dense<0.000000e+00> : vector<256x4xf32>
    %59 = tpu.matmul %57, %58, %cst_83 {dimension_numbers = #tpu.dot_dimension_numbers<[1], [0], [0], [1], [0, 0, 1, 1], [], []>} : vector<256x12xbf16>, vector<12x4xbf16>, vector<256x4xf32> -> vector<256x4xf32>
    %60 = arith.addf %44, %59 : vector<256x4xf32>
    %c0_84 = arith.constant 0 : index
    %c0_85 = arith.constant 0 : index
    %61 = vector.load %arg3[%c0_84, %c0_85] : memref<1x4xf32, #tpu.memory_space<vmem>>, vector<1x4xf32>
    %62 = vector.broadcast %61 : vector<1x4xf32> to vector<256x4xf32>
    %63 = arith.addf %60, %62 : vector<256x4xf32>
    %cst_86 = arith.constant 0.000000e+00 : f32
    %64 = vector.broadcast %cst_86 : f32 to vector<256x4xf32>
    %65 = arith.maximumf %63, %64 : vector<256x4xf32>
    %66 = vector.shape_cast %65 : vector<256x4xf32> to vector<16x16x4xf32>
    %c1_87 = arith.constant 1 : index
    %c1_88 = arith.constant 1 : index
    %c0_89 = arith.constant 0 : index
    %67 = vector.load %arg8[%c1_87, %c1_88, %c0_89] : memref<18x18x4xf32, #tpu.memory_space<vmem>>, vector<16x16x4xf32>
    tpu.vector_store %arg8[%c1_87, %c1_88, %c0_89], %66 {strides = array<i32>} : memref<18x18x4xf32, #tpu.memory_space<vmem>>, vector<16x16x4xf32>,
    %c0_90 = arith.constant 0 : index
    %c0_91 = arith.constant 0 : index
    %c0_92 = arith.constant 0 : index
    %68 = vector.load %arg8[%c0_90, %c0_91, %c0_92] : memref<18x18x4xf32, #tpu.memory_space<vmem>>, vector<16x16x4xf32>
    %69 = vector.shape_cast %68 : vector<16x16x4xf32> to vector<256x4xf32>
    %70 = arith.truncf %69 : vector<256x4xf32> to vector<256x4xbf16>
    %c0_93 = arith.constant 0 : index
    %c0_94 = arith.constant 0 : index
    %71 = vector.load %arg9[%c0_93, %c0_94] : memref<256x12xbf16, #tpu.memory_space<vmem>>, vector<256x4xbf16>
    tpu.vector_store %arg9[%c0_93, %c0_94], %70 {strides = array<i32>} : memref<256x12xbf16, #tpu.memory_space<vmem>>, vector<256x4xbf16>,
    %c0_95 = arith.constant 0 : index
    %c1_96 = arith.constant 1 : index
    %c0_97 = arith.constant 0 : index
    %72 = vector.load %arg8[%c0_95, %c1_96, %c0_97] : memref<18x18x4xf32, #tpu.memory_space<vmem>>, vector<16x16x4xf32>
    %73 = vector.shape_cast %72 : vector<16x16x4xf32> to vector<256x4xf32>
    %74 = arith.truncf %73 : vector<256x4xf32> to vector<256x4xbf16>
    %c0_98 = arith.constant 0 : index
    %c4_99 = arith.constant 4 : index
    %75 = vector.load %arg9[%c0_98, %c4_99] : memref<256x12xbf16, #tpu.memory_space<vmem>>, vector<256x4xbf16>
    tpu.vector_store %arg9[%c0_98, %c4_99], %74 {strides = array<i32>} : memref<256x12xbf16, #tpu.memory_space<vmem>>, vector<256x4xbf16>,
    %c0_100 = arith.constant 0 : index
    %c2_101 = arith.constant 2 : index
    %c0_102 = arith.constant 0 : index
    %76 = vector.load %arg8[%c0_100, %c2_101, %c0_102] : memref<18x18x4xf32, #tpu.memory_space<vmem>>, vector<16x16x4xf32>
    %77 = vector.shape_cast %76 : vector<16x16x4xf32> to vector<256x4xf32>
    %78 = arith.truncf %77 : vector<256x4xf32> to vector<256x4xbf16>
    %c0_103 = arith.constant 0 : index
    %c8_104 = arith.constant 8 : index
    %79 = vector.load %arg9[%c0_103, %c8_104] : memref<256x12xbf16, #tpu.memory_space<vmem>>, vector<256x4xbf16>
    tpu.vector_store %arg9[%c0_103, %c8_104], %78 {strides = array<i32>} : memref<256x12xbf16, #tpu.memory_space<vmem>>, vector<256x4xbf16>,
    %c0_105 = arith.constant 0 : index
    %c0_106 = arith.constant 0 : index
    %80 = vector.load %arg9[%c0_105, %c0_106] : memref<256x12xbf16, #tpu.memory_space<vmem>>, vector<256x12xbf16>
    %c0_107 = arith.constant 0 : index
    %c0_108 = arith.constant 0 : index
    %81 = vector.load %arg4[%c0_107, %c0_108] : memref<36x4xbf16, #tpu.memory_space<vmem>>, vector<12x4xbf16>
    %cst_109 = arith.constant dense<0.000000e+00> : vector<256x4xf32>
    %82 = tpu.matmul %80, %81, %cst_109 {dimension_numbers = #tpu.dot_dimension_numbers<[1], [0], [0], [1], [0, 0, 1, 1], [], []>} : vector<256x12xbf16>, vector<12x4xbf16>, vector<256x4xf32> -> vector<256x4xf32>
    %c1_110 = arith.constant 1 : index
    %c0_111 = arith.constant 0 : index
    %c0_112 = arith.constant 0 : index
    %83 = vector.load %arg8[%c1_110, %c0_111, %c0_112] : memref<18x18x4xf32, #tpu.memory_space<vmem>>, vector<16x16x4xf32>
    %84 = vector.shape_cast %83 : vector<16x16x4xf32> to vector<256x4xf32>
    %85 = arith.truncf %84 : vector<256x4xf32> to vector<256x4xbf16>
    %c0_113 = arith.constant 0 : index
    %c0_114 = arith.constant 0 : index
    %86 = vector.load %arg9[%c0_113, %c0_114] : memref<256x12xbf16, #tpu.memory_space<vmem>>, vector<256x4xbf16>
    tpu.vector_store %arg9[%c0_113, %c0_114], %85 {strides = array<i32>} : memref<256x12xbf16, #tpu.memory_space<vmem>>, vector<256x4xbf16>,
    %c1_115 = arith.constant 1 : index
    %c1_116 = arith.constant 1 : index
    %c0_117 = arith.constant 0 : index
    %87 = vector.load %arg8[%c1_115, %c1_116, %c0_117] : memref<18x18x4xf32, #tpu.memory_space<vmem>>, vector<16x16x4xf32>
    %88 = vector.shape_cast %87 : vector<16x16x4xf32> to vector<256x4xf32>
    %89 = arith.truncf %88 : vector<256x4xf32> to vector<256x4xbf16>
    %c0_118 = arith.constant 0 : index
    %c4_119 = arith.constant 4 : index
    %90 = vector.load %arg9[%c0_118, %c4_119] : memref<256x12xbf16, #tpu.memory_space<vmem>>, vector<256x4xbf16>
    tpu.vector_store %arg9[%c0_118, %c4_119], %89 {strides = array<i32>} : memref<256x12xbf16, #tpu.memory_space<vmem>>, vector<256x4xbf16>,
    %c1_120 = arith.constant 1 : index
    %c2_121 = arith.constant 2 : index
    %c0_122 = arith.constant 0 : index
    %91 = vector.load %arg8[%c1_120, %c2_121, %c0_122] : memref<18x18x4xf32, #tpu.memory_space<vmem>>, vector<16x16x4xf32>
    %92 = vector.shape_cast %91 : vector<16x16x4xf32> to vector<256x4xf32>
    %93 = arith.truncf %92 : vector<256x4xf32> to vector<256x4xbf16>
    %c0_123 = arith.constant 0 : index
    %c8_124 = arith.constant 8 : index
    %94 = vector.load %arg9[%c0_123, %c8_124] : memref<256x12xbf16, #tpu.memory_space<vmem>>, vector<256x4xbf16>
    tpu.vector_store %arg9[%c0_123, %c8_124], %93 {strides = array<i32>} : memref<256x12xbf16, #tpu.memory_space<vmem>>, vector<256x4xbf16>,
    %c0_125 = arith.constant 0 : index
    %c0_126 = arith.constant 0 : index
    %95 = vector.load %arg9[%c0_125, %c0_126] : memref<256x12xbf16, #tpu.memory_space<vmem>>, vector<256x12xbf16>
    %c12_127 = arith.constant 12 : index
    %c0_128 = arith.constant 0 : index
    %96 = vector.load %arg4[%c12_127, %c0_128] : memref<36x4xbf16, #tpu.memory_space<vmem>>, vector<12x4xbf16>
    %cst_129 = arith.constant dense<0.000000e+00> : vector<256x4xf32>
    %97 = tpu.matmul %95, %96, %cst_129 {dimension_numbers = #tpu.dot_dimension_numbers<[1], [0], [0], [1], [0, 0, 1, 1], [], []>} : vector<256x12xbf16>, vector<12x4xbf16>, vector<256x4xf32> -> vector<256x4xf32>
    %98 = arith.addf %82, %97 : vector<256x4xf32>
    %c2_130 = arith.constant 2 : index
    %c0_131 = arith.constant 0 : index
    %c0_132 = arith.constant 0 : index
    %99 = vector.load %arg8[%c2_130, %c0_131, %c0_132] : memref<18x18x4xf32, #tpu.memory_space<vmem>>, vector<16x16x4xf32>
    %100 = vector.shape_cast %99 : vector<16x16x4xf32> to vector<256x4xf32>
    %101 = arith.truncf %100 : vector<256x4xf32> to vector<256x4xbf16>
    %c0_133 = arith.constant 0 : index
    %c0_134 = arith.constant 0 : index
    %102 = vector.load %arg9[%c0_133, %c0_134] : memref<256x12xbf16, #tpu.memory_space<vmem>>, vector<256x4xbf16>
    tpu.vector_store %arg9[%c0_133, %c0_134], %101 {strides = array<i32>} : memref<256x12xbf16, #tpu.memory_space<vmem>>, vector<256x4xbf16>,
    %c2_135 = arith.constant 2 : index
    %c1_136 = arith.constant 1 : index
    %c0_137 = arith.constant 0 : index
    %103 = vector.load %arg8[%c2_135, %c1_136, %c0_137] : memref<18x18x4xf32, #tpu.memory_space<vmem>>, vector<16x16x4xf32>
    %104 = vector.shape_cast %103 : vector<16x16x4xf32> to vector<256x4xf32>
    %105 = arith.truncf %104 : vector<256x4xf32> to vector<256x4xbf16>
    %c0_138 = arith.constant 0 : index
    %c4_139 = arith.constant 4 : index
    %106 = vector.load %arg9[%c0_138, %c4_139] : memref<256x12xbf16, #tpu.memory_space<vmem>>, vector<256x4xbf16>
    tpu.vector_store %arg9[%c0_138, %c4_139], %105 {strides = array<i32>} : memref<256x12xbf16, #tpu.memory_space<vmem>>, vector<256x4xbf16>,
    %c2_140 = arith.constant 2 : index
    %c2_141 = arith.constant 2 : index
    %c0_142 = arith.constant 0 : index
    %107 = vector.load %arg8[%c2_140, %c2_141, %c0_142] : memref<18x18x4xf32, #tpu.memory_space<vmem>>, vector<16x16x4xf32>
    %108 = vector.shape_cast %107 : vector<16x16x4xf32> to vector<256x4xf32>
    %109 = arith.truncf %108 : vector<256x4xf32> to vector<256x4xbf16>
    %c0_143 = arith.constant 0 : index
    %c8_144 = arith.constant 8 : index
    %110 = vector.load %arg9[%c0_143, %c8_144] : memref<256x12xbf16, #tpu.memory_space<vmem>>, vector<256x4xbf16>
    tpu.vector_store %arg9[%c0_143, %c8_144], %109 {strides = array<i32>} : memref<256x12xbf16, #tpu.memory_space<vmem>>, vector<256x4xbf16>,
    %c0_145 = arith.constant 0 : index
    %c0_146 = arith.constant 0 : index
    %111 = vector.load %arg9[%c0_145, %c0_146] : memref<256x12xbf16, #tpu.memory_space<vmem>>, vector<256x12xbf16>
    %c24_147 = arith.constant 24 : index
    %c0_148 = arith.constant 0 : index
    %112 = vector.load %arg4[%c24_147, %c0_148] : memref<36x4xbf16, #tpu.memory_space<vmem>>, vector<12x4xbf16>
    %cst_149 = arith.constant dense<0.000000e+00> : vector<256x4xf32>
    %113 = tpu.matmul %111, %112, %cst_149 {dimension_numbers = #tpu.dot_dimension_numbers<[1], [0], [0], [1], [0, 0, 1, 1], [], []>} : vector<256x12xbf16>, vector<12x4xbf16>, vector<256x4xf32> -> vector<256x4xf32>
    %114 = arith.addf %98, %113 : vector<256x4xf32>
    %c0_150 = arith.constant 0 : index
    %c0_151 = arith.constant 0 : index
    %115 = vector.load %arg5[%c0_150, %c0_151] : memref<1x4xf32, #tpu.memory_space<vmem>>, vector<1x4xf32>
    %116 = vector.broadcast %115 : vector<1x4xf32> to vector<256x4xf32>
    %117 = arith.addf %114, %116 : vector<256x4xf32>
    %cst_152 = arith.constant 5.000000e-01 : f32
    %118 = vector.broadcast %cst_152 : f32 to vector<256x4xf32>
    %119 = arith.mulf %117, %118 : vector<256x4xf32>
    %c0_153 = arith.constant 0 : index
    %c0_154 = arith.constant 0 : index
    %c0_155 = arith.constant 0 : index
    %c0_156 = arith.constant 0 : index
    %120 = vector.load %arg1[%c0_153, %c0_154, %c0_155, %c0_156] : memref<1x16x16x4xbf16, #tpu.memory_space<vmem>>, vector<1x16x16x4xbf16>
    %121 = vector.shape_cast %120 : vector<1x16x16x4xbf16> to vector<16x16x4xbf16>
    %122 = arith.extf %121 : vector<16x16x4xbf16> to vector<16x16x4xf32>
    %123 = vector.shape_cast %122 : vector<16x16x4xf32> to vector<256x4xf32>
    %124 = arith.addf %119, %123 : vector<256x4xf32>
    %c0_157 = arith.constant 0 : index
    %c0_158 = arith.constant 0 : index
    %c0_159 = arith.constant 0 : index
    %125 = vector.load %arg6[%c0_157, %c0_158, %c0_159] : memref<1x256x4xf32, #tpu.memory_space<vmem>>, vector<1x256x4xf32>
    %126 = vector.shape_cast %125 : vector<1x256x4xf32> to vector<256x4xf32>
    %127 = vector.shape_cast %124 : vector<256x4xf32> to vector<1x256x4xf32>
    tpu.vector_store %arg6[%c0_157, %c0_158, %c0_159], %127 {strides = array<i32>} : memref<1x256x4xf32, #tpu.memory_space<vmem>>, vector<1x256x4xf32>,
    return
  }
  func.func @transform_0(%arg0: i32) -> (i32, i32, i32, i32) {
    %c0_i32 = arith.constant 0 : i32
    %c0_i32_0 = arith.constant 0 : i32
    %c0_i32_1 = arith.constant 0 : i32
    %c0_i32_2 = arith.constant 0 : i32
    return %arg0, %c0_i32, %c0_i32_0, %c0_i32_1 : i32, i32, i32, i32
  }
  func.func @transform_1(%arg0: i32) -> (i32, i32) {
    %c0_i32 = arith.constant 0 : i32
    %c0_i32_0 = arith.constant 0 : i32
    %c0_i32_1 = arith.constant 0 : i32
    return %c0_i32, %c0_i32_0 : i32, i32
  }
  func.func @transform_2(%arg0: i32) -> (i32, i32) {
    %c0_i32 = arith.constant 0 : i32
    %c0_i32_0 = arith.constant 0 : i32
    %c0_i32_1 = arith.constant 0 : i32
    return %c0_i32, %c0_i32_0 : i32, i32
  }
  func.func @transform_3(%arg0: i32) -> (i32, i32) {
    %c0_i32 = arith.constant 0 : i32
    %c0_i32_0 = arith.constant 0 : i32
    %c0_i32_1 = arith.constant 0 : i32
    return %c0_i32, %c0_i32_0 : i32, i32
  }
  func.func @transform_4(%arg0: i32) -> (i32, i32) {
    %c0_i32 = arith.constant 0 : i32
    %c0_i32_0 = arith.constant 0 : i32
    %c0_i32_1 = arith.constant 0 : i32
    return %c0_i32, %c0_i32_0 : i32, i32
  }
  func.func @transform_5(%arg0: i32) -> (i32, i32, i32) {
    %c0_i32 = arith.constant 0 : i32
    %c0_i32_0 = arith.constant 0 : i32
    %c0_i32_1 = arith.constant 0 : i32
    return %arg0, %c0_i32, %c0_i32_0 : i32, i32, i32
  }
}

</mosaic_0001>

<llo_original>
// kernel: tpu_custom_call.1
$region0: #{tpu_custom_call.1}
  #allocation0 [shape = 'u32[]', space=smem, size = 0x4, offset = 0x4, fixed_abs, tag = 'smem constant byte address 0x4 - core index']
  #allocation1 [shape = 'u32[72,128]{1,0:T(1,128)}', space=vmem, size = 0x9000, scoped, tag = 'internal scratch']
  #allocation2 [shape = 'f32[18,18,4]{2,1,0:T(8,128)}', space=vmem, size = 0x36000, scoped, tag = 'scratch operand']
  #allocation3 [shape = 'f32[18,18,4]{2,1,0:T(8,128)}', space=vmem, size = 0x36000, scoped, tag = 'scratch operand']
  #allocation4 [shape = 'bf16[256,12]{1,0:T(8,128)(2,1)}', space=vmem, size = 0x10000, scoped, tag = 'scratch operand']
  %s0 = inlined_call_operand.vmem [shape: bf16[2,16,16,4], index: 0, kind: input, shape index: {}]
  %s1 = inlined_call_operand.vmem [shape: bf16[36,4], index: 1, kind: input, shape index: {}]
  %s2 = inlined_call_operand.vmem [shape: f32[1,4], index: 2, kind: input, shape index: {}]
  %s3 = inlined_call_operand.vmem [shape: bf16[36,4], index: 3, kind: input, shape index: {}]
  %s4 = inlined_call_operand.vmem [shape: f32[1,4], index: 4, kind: input, shape index: {}]
  %s5 = inlined_call_operand.vmem [shape: f32[2,256,4], index: 5, kind: output, shape index: {}]
  %s6 = sld [smem:[#allocation0]]
  $region53: #{tpu_custom_call.1} parent=0
    _
  %s8 = ssub.s32 1, %s6
  %s9 = scalar_select 0, %s8, %s6
  loop: start=0, step=1, limit=4
  $region2: #{tpu_custom_call.1} parent=0 // loop_pre_header
    _
  $region3: #{tpu_custom_call.1} parent=0 // loop_header
    %s11 = sphi 0, %s15
    %p12 = scmp.ge.s32.totalorder %s11, 4
    %s21 = sphi 0, %s23
    %s24 = sphi 0, %s21
    %s25 = sphi 0, %s24
    %s41 = sphi 0, %s25
    %s45 = sphi 0, %s45
    %s47 = sphi 0, %s45
    %s48 = sphi 0, %s47
    %s62 = sphi 0, %s48
    %s66 = sphi 0, %s66
    %s68 = sphi 0, %s66
    %s69 = sphi 0, %s68
    %s83 = sphi 0, %s69
    %s87 = sphi 0, %s87
    %s89 = sphi 0, %s87
    %s90 = sphi 0, %s89
    %s104 = sphi 0, %s90
    %s108 = sphi 0, %s108
    %s110 = sphi 0, %s108
    %s111 = sphi 0, %s110
    %s125 = sphi 0, %s111
    %s131 = sphi 0, %s133
    %s134 = sphi 0, %s131
    %s135 = sphi 0, %s134
    %s151 = sphi 0, %s135
  $region4: #{tpu_custom_call.1} parent=0 // loop_header_branch
    %14 = sbr.rel (%p12) target = $region8
  $region5: #{tpu_custom_call.1} parent=0 // loop_body
    %s16 = ssub.s32 %s11, 1
    %s17 = ssub.s32 %s11, 2
    %s18 = sadd.s32 %s11, 1
    %s19 = ssub.s32 %s11, %s18
    %p20 = scmp.eq.s32.totalorder %s19, 0
    %s22 = sadd.s32 %s21, 1
    %s23 = scalar_select %p20, %s21, %s22
    %p26 = pneg %p20
    %p27 = scmp.eq.s32.totalorder %s11, 1
    %p28 = por %p26, %p27
    %p29 = scmp.ne.s32.totalorder %s21, %s24
    %p30 = scmp.eq.s32.totalorder %s11, 0
    %p31 = por %p29, %p30
    %p32 = scmp.ne.s32.totalorder %s21, %s24
    %p33 = scmp.eq.s32.totalorder %s16, 1
    %p34 = por %p32, %p33
    %p35 = scmp.ne.s32.totalorder %s24, %s25
    %p36 = scmp.eq.s32.totalorder %s16, 0
    %p37 = por %p35, %p36
    %p38 = scmp.ne.s32.totalorder %s24, %s25
    %p39 = scmp.eq.s32.totalorder %s17, 1
    %p40 = por %p38, %p39
    %p42 = scmp.ne.s32.totalorder %s25, %s41
    %p43 = scmp.eq.s32.totalorder %s17, 0
    %p44 = por %p42, %p43
    %s46 = sadd.s32 %s45, 1
    %p49 = scmp.eq.s32.totalorder %s11, 1
    %p50 = scmp.ne.s32.totalorder %s45, %s47
    %p51 = scmp.eq.s32.totalorder %s11, 0
    %p52 = por %p50, %p51
    %p53 = scmp.ne.s32.totalorder %s45, %s47
    %p54 = scmp.eq.s32.totalorder %s16, 1
    %p55 = por %p53, %p54
    %p56 = scmp.ne.s32.totalorder %s47, %s48
    %p57 = scmp.eq.s32.totalorder %s16, 0
    %p58 = por %p56, %p57
    %p59 = scmp.ne.s32.totalorder %s47, %s48
    %p60 = scmp.eq.s32.totalorder %s17, 1
    %p61 = por %p59, %p60
    %p63 = scmp.ne.s32.totalorder %s48, %s62
    %p64 = scmp.eq.s32.totalorder %s17, 0
    %p65 = por %p63, %p64
    %s67 = sadd.s32 %s66, 1
    %p70 = scmp.eq.s32.totalorder %s11, 1
    %p71 = scmp.ne.s32.totalorder %s66, %s68
    %p72 = scmp.eq.s32.totalorder %s11, 0
    %p73 = por %p71, %p72
    %p74 = scmp.ne.s32.totalorder %s66, %s68
    %p75 = scmp.eq.s32.totalorder %s16, 1
    %p76 = por %p74, %p75
    %p77 = scmp.ne.s32.totalorder %s68, %s69
    %p78 = scmp.eq.s32.totalorder %s16, 0
    %p79 = por %p77, %p78
    %p80 = scmp.ne.s32.totalorder %s68, %s69
    %p81 = scmp.eq.s32.totalorder %s17, 1
    %p82 = por %p80, %p81
    %p84 = scmp.ne.s32.totalorder %s69, %s83
    %p85 = scmp.eq.s32.totalorder %s17, 0
    %p86 = por %p84, %p85
    %s88 = sadd.s32 %s87, 1
    %p91 = scmp.eq.s32.totalorder %s11, 1
    %p92 = scmp.ne.s32.totalorder %s87, %s89
    %p93 = scmp.eq.s32.totalorder %s11, 0
    %p94 = por %p92, %p93
    %p95 = scmp.ne.s32.totalorder %s87, %s89
    %p96 = scmp.eq.s32.totalorder %s16, 1
    %p97 = por %p95, %p96
    %p98 = scmp.ne.s32.totalorder %s89, %s90
    %p99 = scmp.eq.s32.totalorder %s16, 0
    %p100 = por %p98, %p99
    %p101 = scmp.ne.s32.totalorder %s89, %s90
    %p102 = scmp.eq.s32.totalorder %s17, 1
    %p103 = por %p101, %p102
    %p105 = scmp.ne.s32.totalorder %s90, %s104
    %p106 = scmp.eq.s32.totalorder %s17, 0
    %p107 = por %p105, %p106
    %s109 = sadd.s32 %s108, 1
    %p112 = scmp.eq.s32.totalorder %s11, 1
    %p113 = scmp.ne.s32.totalorder %s108, %s110
    %p114 = scmp.eq.s32.totalorder %s11, 0
    %p115 = por %p113, %p114
    %p116 = scmp.ne.s32.totalorder %s108, %s110
    %p117 = scmp.eq.s32.totalorder %s16, 1
    %p118 = por %p116, %p117
    %p119 = scmp.ne.s32.totalorder %s110, %s111
    %p120 = scmp.eq.s32.totalorder %s16, 0
    %p121 = por %p119, %p120
    %p122 = scmp.ne.s32.totalorder %s110, %s111
    %p123 = scmp.eq.s32.totalorder %s17, 1
    %p124 = por %p122, %p123
    %p126 = scmp.ne.s32.totalorder %s111, %s125
    %p127 = scmp.eq.s32.totalorder %s17, 0
    %p128 = por %p126, %p127
    %s129 = ssub.s32 %s11, %s18
    %p130 = scmp.eq.s32.totalorder %s129, 0
    %s132 = sadd.s32 %s131, 1
    %s133 = scalar_select %p130, %s131, %s132
    %p136 = pneg %p130
    %p137 = scmp.eq.s32.totalorder %s11, 1
    %p138 = por %p136, %p137
    %p139 = scmp.ne.s32.totalorder %s131, %s134
    %p140 = scmp.eq.s32.totalorder %s11, 0
    %p141 = por %p139, %p140
    %p142 = scmp.ne.s32.totalorder %s131, %s134
    %p143 = scmp.eq.s32.totalorder %s16, 1
    %p144 = por %p142, %p143
    %p145 = scmp.ne.s32.totalorder %s134, %s135
    %p146 = scmp.eq.s32.totalorder %s16, 0
    %p147 = por %p145, %p146
    %p148 = scmp.ne.s32.totalorder %s134, %s135
    %p149 = scmp.eq.s32.totalorder %s17, 1
    %p150 = por %p148, %p149
    %p152 = scmp.ne.s32.totalorder %s135, %s151
    %p153 = scmp.eq.s32.totalorder %s17, 0
    %p154 = por %p152, %p153
    %p155 = scmp.le.s32.totalorder 1, %s11
    %p156 = scmp.lt.s32.totalorder %s11, 3
    %p157 = pnand %p155, %p156
    %p158 = pneg %p157
    // Predicated region
    $region9: #{tpu_custom_call.1} parent=5 // pred_check
      _
    $region10: #{tpu_custom_call.1} parent=5 // pred_check_branch
      %160 = sbr.rel (%p157) target = $region12
    $region11: #{tpu_custom_call.1} parent=5 // pred_region
      %s161 = ssub.s32 %s11, 1
      // Predicated region
      $region13: #{tpu_custom_call.1} parent=11 // pred_check
        %p162 = pneg %p58
      $region14: #{tpu_custom_call.1} parent=11 // pred_check_branch
        %164 = sbr.rel (%p162) target = $region16
      $region15: #{tpu_custom_call.1} parent=11 // pred_region
        _
      $region16: #{tpu_custom_call.1} parent=11 // pred_fallthru
        _
      // Predicated region
      $region17: #{tpu_custom_call.1} parent=11 // pred_check
        %p165 = pneg %p79
      $region18: #{tpu_custom_call.1} parent=11 // pred_check_branch
        %167 = sbr.rel (%p165) target = $region20
      $region19: #{tpu_custom_call.1} parent=11 // pred_region
        _
      $region20: #{tpu_custom_call.1} parent=11 // pred_fallthru
        _
      // Predicated region
      $region21: #{tpu_custom_call.1} parent=11 // pred_check
        %p168 = pneg %p100
      $region22: #{tpu_custom_call.1} parent=11 // pred_check_branch
        %170 = sbr.rel (%p168) target = $region24
      $region23: #{tpu_custom_call.1} parent=11 // pred_region
        _
      $region24: #{tpu_custom_call.1} parent=11 // pred_fallthru
        _
      // Predicated region
      $region25: #{tpu_custom_call.1} parent=11 // pred_check
        %p171 = pneg %p121
      $region26: #{tpu_custom_call.1} parent=11 // pred_check_branch
        %173 = sbr.rel (%p171) target = $region28
      $region27: #{tpu_custom_call.1} parent=11 // pred_region
        _
      $region28: #{tpu_custom_call.1} parent=11 // pred_fallthru
        _
    $region12: #{tpu_custom_call.1} parent=5 // pred_fallthru
      _
    %p174 = scmp.lt.s32.totalorder %s11, 2
    // Predicated region
    $region29: #{tpu_custom_call.1} parent=5 // pred_check
      %p175 = pneg %p174
    $region30: #{tpu_custom_call.1} parent=5 // pred_check_branch
      %177 = sbr.rel (%p175) target = $region32
    $region31: #{tpu_custom_call.1} parent=5 // pred_region
      // Predicated region
      $region33: #{tpu_custom_call.1} parent=31 // pred_check
        %p178 = pneg %p31
      $region34: #{tpu_custom_call.1} parent=31 // pred_check_branch
        %180 = sbr.rel (%p178) target = $region36
      $region35: #{tpu_custom_call.1} parent=31 // pred_region
        %p181 = scmp.lt.s32.totalorder %s11, 1
        %s182 = scalar_select %p181, %s11, 1
        %s183 = smul.addr %s182, 32
        %s184 = smul.addr %s183, 4
        %s185 = scalar_lea.vmem %s0, %s184
      $region36: #{tpu_custom_call.1} parent=31 // pred_fallthru
        _
    $region32: #{tpu_custom_call.1} parent=5 // pred_fallthru
      _
    %p186 = scmp.le.s32.totalorder 1, %s11
    %p187 = scmp.lt.s32.totalorder %s11, 3
    %p188 = pnand %p186, %p187
    %p189 = pneg %p188
    // Predicated region
    $region37: #{tpu_custom_call.1} parent=5 // pred_check
      _
    $region38: #{tpu_custom_call.1} parent=5 // pred_check_branch
      %191 = sbr.rel (%p188) target = $region40
    $region39: #{tpu_custom_call.1} parent=5 // pred_region
      %s192 = ssub.s32 %s11, 1
      %p193 = scmp.lt.s32.totalorder %s16, 1
      %s194 = scalar_select %p193, %s16, 1
      %s195 = smul.addr %s194, 32
      %s196 = smul.addr %s195, 4
      %s197 = scalar_lea.vmem %s0, %s196
      %p198 = pneg %p37
      %p199 = pneg %p34
      %p200 = pneg %p58
      %p201 = pneg %p55
      %p202 = pneg %p79
      %p203 = pneg %p76
      %p204 = pneg %p100
      %p205 = pneg %p97
      %p206 = pneg %p121
      %p207 = pneg %p118
      %p208 = pneg %p147
      %p209 = pneg %p144
      %p210 = scmp.lt.s32.totalorder %s16, 1
      %s211 = scalar_select %p210, %s16, 1
      %s212 = smul.addr %s211, 32
      %s213 = smul.addr %s212, 8
      %s214 = scalar_lea.vmem %s5, %s213
      %p215 = scmp.lt.s32.totalorder %s16, 1
      %s216 = scalar_select %p215, %s16, 1
      %s217 = smul.addr %s216, 32
      %s218 = smul.addr %s217, 4
      %s219 = scalar_lea.vmem %s0, %s218
      %p220 = scmp.lt.s32.totalorder %s16, 1
      %s221 = scalar_select %p220, %s16, 1
      %s222 = smul.addr %s221, 32
      %s223 = smul.addr %s222, 8
      %s224 = scalar_lea.vmem %s5, %s223
      %vm226 = vcmask 31744
      %227 = vst.msk [vmem:[#allocation2] sm:$0xff] %vm226, 0.0
      %228 = vst.msk [vmem:[#allocation2 + $0x8] sm:$0xff] %vm226, 0.0
      %vm229 = vcmask 25600
      %230 = vst.msk [vmem:[#allocation2 + $0x10] sm:$0x3] %vm229, 0.0
      %s231 = scalar_lea.vmem [#allocation2], 408
      %232 = vst.msk [vmem:[%s231] sm:$0xff] %vm226, 0.0
      %233 = vst.msk [vmem:[%s231 + $0x8] sm:$0xff] %vm226, 0.0
      %234 = vst.msk [vmem:[%s231 + $0x10] sm:$0x3] %vm229, 0.0
      %vm235 = vcmask 24576
      %236 = vst.msk [vmem:[#allocation2] sm:$0x1] %vm235, 0.0
      %237 = vst.msk [vmem:[#allocation2 + $0x18] sm:$0x1] %vm235, 0.0
      %238 = vst.msk [vmem:[#allocation2 + $0x30] sm:$0x1] %vm235, 0.0
      %239 = vst.msk [vmem:[#allocation2 + $0x48] sm:$0x1] %vm235, 0.0
      %240 = vst.msk [vmem:[#allocation2 + $0x60] sm:$0x1] %vm235, 0.0
      %241 = vst.msk [vmem:[#allocation2 + $0x78] sm:$0x1] %vm235, 0.0
      %242 = vst.msk [vmem:[#allocation2 + $0x90] sm:$0x1] %vm235, 0.0
      %243 = vst.msk [vmem:[#allocation2 + $0xa8] sm:$0x1] %vm235, 0.0
      %244 = vst.msk [vmem:[#allocation2 + $0xc0] sm:$0x1] %vm235, 0.0
      %245 = vst.msk [vmem:[#allocation2 + $0xd8] sm:$0x1] %vm235, 0.0
      %246 = vst.msk [vmem:[#allocation2 + $0xf0] sm:$0x1] %vm235, 0.0
      %247 = vst.msk [vmem:[#allocation2 + $0x108] sm:$0x1] %vm235, 0.0
      %248 = vst.msk [vmem:[#allocation2 + $0x120] sm:$0x1] %vm235, 0.0
      %249 = vst.msk [vmem:[#allocation2 + $0x138] sm:$0x1] %vm235, 0.0
      %250 = vst.msk [vmem:[#allocation2 + $0x150] sm:$0x1] %vm235, 0.0
      %251 = vst.msk [vmem:[#allocation2 + $0x168] sm:$0x1] %vm235, 0.0
      %252 = vst.msk [vmem:[#allocation2 + $0x180] sm:$0x1] %vm235, 0.0
      %253 = vst.msk [vmem:[#allocation2 + $0x198] sm:$0x1] %vm235, 0.0
      %254 = vst.msk [vmem:[#allocation2 + $0x11] sm:$0x1] %vm235, 0.0
      %255 = vst.msk [vmem:[#allocation2 + $0x29] sm:$0x1] %vm235, 0.0
      %256 = vst.msk [vmem:[#allocation2 + $0x41] sm:$0x1] %vm235, 0.0
      %257 = vst.msk [vmem:[#allocation2 + $0x59] sm:$0x1] %vm235, 0.0
      %258 = vst.msk [vmem:[#allocation2 + $0x71] sm:$0x1] %vm235, 0.0
      %259 = vst.msk [vmem:[#allocation2 + $0x89] sm:$0x1] %vm235, 0.0
      %260 = vst.msk [vmem:[#allocation2 + $0xa1] sm:$0x1] %vm235, 0.0
      %261 = vst.msk [vmem:[#allocation2 + $0xb9] sm:$0x1] %vm235, 0.0
      %262 = vst.msk [vmem:[#allocation2 + $0xd1] sm:$0x1] %vm235, 0.0
      %263 = vst.msk [vmem:[#allocation2 + $0xe9] sm:$0x1] %vm235, 0.0
      %264 = vst.msk [vmem:[#allocation2 + $0x101] sm:$0x1] %vm235, 0.0
      %265 = vst.msk [vmem:[#allocation2 + $0x119] sm:$0x1] %vm235, 0.0
      %266 = vst.msk [vmem:[#allocation2 + $0x131] sm:$0x1] %vm235, 0.0
      %267 = vst.msk [vmem:[#allocation2 + $0x149] sm:$0x1] %vm235, 0.0
      %268 = vst.msk [vmem:[#allocation2 + $0x161] sm:$0x1] %vm235, 0.0
      %269 = vst.msk [vmem:[#allocation2 + $0x179] sm:$0x1] %vm235, 0.0
      %270 = vst.msk [vmem:[#allocation2 + $0x191] sm:$0x1] %vm235, 0.0
      %271 = vst.msk [vmem:[#allocation2 + $0x1a9] sm:$0x1] %vm235, 0.0
      %272 = vst.msk [vmem:[#allocation3] sm:$0xff] %vm226, 0.0
      %273 = vst.msk [vmem:[#allocation3 + $0x8] sm:$0xff] %vm226, 0.0
      %274 = vst.msk [vmem:[#allocation3 + $0x10] sm:$0x3] %vm229, 0.0
      %s275 = scalar_lea.vmem [#allocation3], 408
      %276 = vst.msk [vmem:[%s275] sm:$0xff] %vm226, 0.0
      %277 = vst.msk [vmem:[%s275 + $0x8] sm:$0xff] %vm226, 0.0
      %278 = vst.msk [vmem:[%s275 + $0x10] sm:$0x3] %vm229, 0.0
      %279 = vst.msk [vmem:[#allocation3] sm:$0x1] %vm235, 0.0
      %280 = vst.msk [vmem:[#allocation3 + $0x18] sm:$0x1] %vm235, 0.0
      %281 = vst.msk [vmem:[#allocation3 + $0x30] sm:$0x1] %vm235, 0.0
      %282 = vst.msk [vmem:[#allocation3 + $0x48] sm:$0x1] %vm235, 0.0
      %283 = vst.msk [vmem:[#allocation3 + $0x60] sm:$0x1] %vm235, 0.0
      %284 = vst.msk [vmem:[#allocation3 + $0x78] sm:$0x1] %vm235, 0.0
      %285 = vst.msk [vmem:[#allocation3 + $0x90] sm:$0x1] %vm235, 0.0
      %286 = vst.msk [vmem:[#allocation3 + $0xa8] sm:$0x1] %vm235, 0.0
      %287 = vst.msk [vmem:[#allocation3 + $0xc0] sm:$0x1] %vm235, 0.0
      %288 = vst.msk [vmem:[#allocation3 + $0xd8] sm:$0x1] %vm235, 0.0
      %289 = vst.msk [vmem:[#allocation3 + $0xf0] sm:$0x1] %vm235, 0.0
      %290 = vst.msk [vmem:[#allocation3 + $0x108] sm:$0x1] %vm235, 0.0
      %291 = vst.msk [vmem:[#allocation3 + $0x120] sm:$0x1] %vm235, 0.0
      %292 = vst.msk [vmem:[#allocation3 + $0x138] sm:$0x1] %vm235, 0.0
      %293 = vst.msk [vmem:[#allocation3 + $0x150] sm:$0x1] %vm235, 0.0
      %294 = vst.msk [vmem:[#allocation3 + $0x168] sm:$0x1] %vm235, 0.0
      %295 = vst.msk [vmem:[#allocation3 + $0x180] sm:$0x1] %vm235, 0.0
      %296 = vst.msk [vmem:[#allocation3 + $0x198] sm:$0x1] %vm235, 0.0
      %297 = vst.msk [vmem:[#allocation3 + $0x11] sm:$0x1] %vm235, 0.0
      %298 = vst.msk [vmem:[#allocation3 + $0x29] sm:$0x1] %vm235, 0.0
      %299 = vst.msk [vmem:[#allocation3 + $0x41] sm:$0x1] %vm235, 0.0
      %300 = vst.msk [vmem:[#allocation3 + $0x59] sm:$0x1] %vm235, 0.0
      %301 = vst.msk [vmem:[#allocation3 + $0x71] sm:$0x1] %vm235, 0.0
      %302 = vst.msk [vmem:[#allocation3 + $0x89] sm:$0x1] %vm235, 0.0
      %303 = vst.msk [vmem:[#allocation3 + $0xa1] sm:$0x1] %vm235, 0.0
      %304 = vst.msk [vmem:[#allocation3 + $0xb9] sm:$0x1] %vm235, 0.0
      %305 = vst.msk [vmem:[#allocation3 + $0xd1] sm:$0x1] %vm235, 0.0
      %306 = vst.msk [vmem:[#allocation3 + $0xe9] sm:$0x1] %vm235, 0.0
      %307 = vst.msk [vmem:[#allocation3 + $0x101] sm:$0x1] %vm235, 0.0
      %308 = vst.msk [vmem:[#allocation3 + $0x119] sm:$0x1] %vm235, 0.0
      %309 = vst.msk [vmem:[#allocation3 + $0x131] sm:$0x1] %vm235, 0.0
      %310 = vst.msk [vmem:[#allocation3 + $0x149] sm:$0x1] %vm235, 0.0
      %311 = vst.msk [vmem:[#allocation3 + $0x161] sm:$0x1] %vm235, 0.0
      %312 = vst.msk [vmem:[#allocation3 + $0x179] sm:$0x1] %vm235, 0.0
      %313 = vst.msk [vmem:[#allocation3 + $0x191] sm:$0x1] %vm235, 0.0
      %314 = vst.msk [vmem:[#allocation3 + $0x1a9] sm:$0x1] %vm235, 0.0
      %v315 = vld [vmem:[%s219] sm:$0xf]
      %v316 = vld [vmem:[%s219 + $0x4] sm:$0xf]
      %v317 = vld [vmem:[%s219 + $0x8] sm:$0xf]
      %v318 = vld [vmem:[%s219 + $0xc] sm:$0xf]
      %v319 = vld [vmem:[%s219 + $0x10] sm:$0xf]
      %v320 = vld [vmem:[%s219 + $0x14] sm:$0xf]
      %v321 = vld [vmem:[%s219 + $0x18] sm:$0xf]
      %v322 = vld [vmem:[%s219 + $0x1c] sm:$0xf]
      %v323 = vld [vmem:[%s219 + $0x20] sm:$0xf]
      %v324 = vld [vmem:[%s219 + $0x24] sm:$0xf]
      %v325 = vld [vmem:[%s219 + $0x28] sm:$0xf]
      %v326 = vld [vmem:[%s219 + $0x2c] sm:$0xf]
      %v327 = vld [vmem:[%s219 + $0x30] sm:$0xf]
      %v328 = vld [vmem:[%s219 + $0x34] sm:$0xf]
      %v329 = vld [vmem:[%s219 + $0x38] sm:$0xf]
      %v330 = vld [vmem:[%s219 + $0x3c] sm:$0xf]
      %v331 = vld [vmem:[%s219 + $0x40] sm:$0xf]
      %v332 = vld [vmem:[%s219 + $0x44] sm:$0xf]
      %v333 = vld [vmem:[%s219 + $0x48] sm:$0xf]
      %v334 = vld [vmem:[%s219 + $0x4c] sm:$0xf]
      %v335 = vld [vmem:[%s219 + $0x50] sm:$0xf]
      %v336 = vld [vmem:[%s219 + $0x54] sm:$0xf]
      %v337 = vld [vmem:[%s219 + $0x58] sm:$0xf]
      %v338 = vld [vmem:[%s219 + $0x5c] sm:$0xf]
      %v339 = vld [vmem:[%s219 + $0x60] sm:$0xf]
      %v340 = vld [vmem:[%s219 + $0x64] sm:$0xf]
      %v341 = vld [vmem:[%s219 + $0x68] sm:$0xf]
      %v342 = vld [vmem:[%s219 + $0x6c] sm:$0xf]
      %v343 = vld [vmem:[%s219 + $0x70] sm:$0xf]
      %v344 = vld [vmem:[%s219 + $0x74] sm:$0xf]
      %v345 = vld [vmem:[%s219 + $0x78] sm:$0xf]
      %v346 = vld [vmem:[%s219 + $0x7c] sm:$0xf]
      %v347 = vunpack.c.l.bf16 %v315
      %v348 = vunpack.c.l.bf16 %v316
      %v349 = vunpack.c.l.bf16 %v317
      %v350 = vunpack.c.l.bf16 %v318
      %v351 = vunpack.c.l.bf16 %v319
      %v352 = vunpack.c.l.bf16 %v320
      %v353 = vunpack.c.l.bf16 %v321
      %v354 = vunpack.c.l.bf16 %v322
      %v355 = vunpack.c.l.bf16 %v323
      %v356 = vunpack.c.l.bf16 %v324
      %v357 = vunpack.c.l.bf16 %v325
      %v358 = vunpack.c.l.bf16 %v326
      %v359 = vunpack.c.l.bf16 %v327
      %v360 = vunpack.c.l.bf16 %v328
      %v361 = vunpack.c.l.bf16 %v329
      %v362 = vunpack.c.l.bf16 %v330
      %v363 = vunpack.c.l.bf16 %v331
      %v364 = vunpack.c.l.bf16 %v332
      %v365 = vunpack.c.l.bf16 %v333
      %v366 = vunpack.c.l.bf16 %v334
      %v367 = vunpack.c.l.bf16 %v335
      %v368 = vunpack.c.l.bf16 %v336
      %v369 = vunpack.c.l.bf16 %v337
      %v370 = vunpack.c.l.bf16 %v338
      %v371 = vunpack.c.l.bf16 %v339
      %v372 = vunpack.c.l.bf16 %v340
      %v373 = vunpack.c.l.bf16 %v341
      %v374 = vunpack.c.l.bf16 %v342
      %v375 = vunpack.c.l.bf16 %v343
      %v376 = vunpack.c.l.bf16 %v344
      %v377 = vunpack.c.l.bf16 %v345
      %v378 = vunpack.c.l.bf16 %v346
      %s379 = scalar_lea.vmem [#allocation2], 24
      %380 = vst.msk [vmem:[%s379 + $0x1] sm:$0xff] %vm226, %v347
      %381 = vst.msk [vmem:[%s379 + $0x9] sm:$0xff] %vm226, %v348
      %382 = vst.msk [vmem:[%s379 + $0x19] sm:$0xff] %vm226, %v349
      %383 = vst.msk [vmem:[%s379 + $0x21] sm:$0xff] %vm226, %v350
      %384 = vst.msk [vmem:[%s379 + $0x31] sm:$0xff] %vm226, %v351
      %385 = vst.msk [vmem:[%s379 + $0x39] sm:$0xff] %vm226, %v352
      %386 = vst.msk [vmem:[%s379 + $0x49] sm:$0xff] %vm226, %v353
      %387 = vst.msk [vmem:[%s379 + $0x51] sm:$0xff] %vm226, %v354
      %388 = vst.msk [vmem:[%s379 + $0x61] sm:$0xff] %vm226, %v355
      %389 = vst.msk [vmem:[%s379 + $0x69] sm:$0xff] %vm226, %v356
      %390 = vst.msk [vmem:[%s379 + $0x79] sm:$0xff] %vm226, %v357
      %391 = vst.msk [vmem:[%s379 + $0x81] sm:$0xff] %vm226, %v358
      %392 = vst.msk [vmem:[%s379 + $0x91] sm:$0xff] %vm226, %v359
      %393 = vst.msk [vmem:[%s379 + $0x99] sm:$0xff] %vm226, %v360
      %394 = vst.msk [vmem:[%s379 + $0xa9] sm:$0xff] %vm226, %v361
      %395 = vst.msk [vmem:[%s379 + $0xb1] sm:$0xff] %vm226, %v362
      %396 = vst.msk [vmem:[%s379 + $0xc1] sm:$0xff] %vm226, %v363
      %397 = vst.msk [vmem:[%s379 + $0xc9] sm:$0xff] %vm226, %v364
      %398 = vst.msk [vmem:[%s379 + $0xd9] sm:$0xff] %vm226, %v365
      %399 = vst.msk [vmem:[%s379 + $0xe1] sm:$0xff] %vm226, %v366
      %400 = vst.msk [vmem:[%s379 + $0xf1] sm:$0xff] %vm226, %v367
      %401 = vst.msk [vmem:[%s379 + $0xf9] sm:$0xff] %vm226, %v368
      %402 = vst.msk [vmem:[%s379 + $0x109] sm:$0xff] %vm226, %v369
      %403 = vst.msk [vmem:[%s379 + $0x111] sm:$0xff] %vm226, %v370
      %404 = vst.msk [vmem:[%s379 + $0x121] sm:$0xff] %vm226, %v371
      %405 = vst.msk [vmem:[%s379 + $0x129] sm:$0xff] %vm226, %v372
      %406 = vst.msk [vmem:[%s379 + $0x139] sm:$0xff] %vm226, %v373
      %407 = vst.msk [vmem:[%s379 + $0x141] sm:$0xff] %vm226, %v374
      %408 = vst.msk [vmem:[%s379 + $0x151] sm:$0xff] %vm226, %v375
      %409 = vst.msk [vmem:[%s379 + $0x159] sm:$0xff] %vm226, %v376
      %410 = vst.msk [vmem:[%s379 + $0x169] sm:$0xff] %vm226, %v377
      %411 = vst.msk [vmem:[%s379 + $0x171] sm:$0xff] %vm226, %v378
      %v412 = vld [vmem:[#allocation2] sm:$0xff]
      %v413 = vld [vmem:[#allocation2 + $0x8] sm:$0xff]
      %v414 = vld [vmem:[#allocation2 + $0x18] sm:$0xff]
      %v415 = vld [vmem:[#allocation2 + $0x20] sm:$0xff]
      %v416 = vld [vmem:[#allocation2 + $0x30] sm:$0xff]
      %v417 = vld [vmem:[#allocation2 + $0x38] sm:$0xff]
      %v418 = vld [vmem:[#allocation2 + $0x48] sm:$0xff]
      %v419 = vld [vmem:[#allocation2 + $0x50] sm:$0xff]
      %v420 = vld [vmem:[#allocation2 + $0x60] sm:$0xff]
      %v421 = vld [vmem:[#allocation2 + $0x68] sm:$0xff]
      %v422 = vld [vmem:[#allocation2 + $0x78] sm:$0xff]
      %v423 = vld [vmem:[#allocation2 + $0x80] sm:$0xff]
      %v424 = vld [vmem:[#allocation2 + $0x90] sm:$0xff]
      %v425 = vld [vmem:[#allocation2 + $0x98] sm:$0xff]
      %v426 = vld [vmem:[#allocation2 + $0xa8] sm:$0xff]
      %v427 = vld [vmem:[#allocation2 + $0xb0] sm:$0xff]
      %v428 = vld [vmem:[#allocation2 + $0xc0] sm:$0xff]
      %v429 = vld [vmem:[#allocation2 + $0xc8] sm:$0xff]
      %v430 = vld [vmem:[#allocation2 + $0xd8] sm:$0xff]
      %v431 = vld [vmem:[#allocation2 + $0xe0] sm:$0xff]
      %v432 = vld [vmem:[#allocation2 + $0xf0] sm:$0xff]
      %v433 = vld [vmem:[#allocation2 + $0xf8] sm:$0xff]
      %v434 = vld [vmem:[#allocation2 + $0x108] sm:$0xff]
      %v435 = vld [vmem:[#allocation2 + $0x110] sm:$0xff]
      %v436 = vld [vmem:[#allocation2 + $0x120] sm:$0xff]
      %v437 = vld [vmem:[#allocation2 + $0x128] sm:$0xff]
      %v438 = vld [vmem:[#allocation2 + $0x138] sm:$0xff]
      %v439 = vld [vmem:[#allocation2 + $0x140] sm:$0xff]
      %v440 = vld [vmem:[#allocation2 + $0x150] sm:$0xff]
      %v441 = vld [vmem:[#allocation2 + $0x158] sm:$0xff]
      %v442 = vld [vmem:[#allocation2 + $0x168] sm:$0xff]
      %v443 = vld [vmem:[#allocation2 + $0x170] sm:$0xff]
      %v444 = vpack.c.bf16 %v412, %v412
      %v445 = vpack.c.bf16 %v413, %v413
      %v446 = vpack.c.bf16 %v414, %v414
      %v447 = vpack.c.bf16 %v415, %v415
      %v448 = vpack.c.bf16 %v416, %v416
      %v449 = vpack.c.bf16 %v417, %v417
      %v450 = vpack.c.bf16 %v418, %v418
      %v451 = vpack.c.bf16 %v419, %v419
      %v452 = vpack.c.bf16 %v420, %v420
      %v453 = vpack.c.bf16 %v421, %v421
      %v454 = vpack.c.bf16 %v422, %v422
      %v455 = vpack.c.bf16 %v423, %v423
      %v456 = vpack.c.bf16 %v424, %v424
      %v457 = vpack.c.bf16 %v425, %v425
      %v458 = vpack.c.bf16 %v426, %v426
      %v459 = vpack.c.bf16 %v427, %v427
      %v460 = vpack.c.bf16 %v428, %v428
      %v461 = vpack.c.bf16 %v429, %v429
      %v462 = vpack.c.bf16 %v430, %v430
      %v463 = vpack.c.bf16 %v431, %v431
      %v464 = vpack.c.bf16 %v432, %v432
      %v465 = vpack.c.bf16 %v433, %v433
      %v466 = vpack.c.bf16 %v434, %v434
      %v467 = vpack.c.bf16 %v435, %v435
      %v468 = vpack.c.bf16 %v436, %v436
      %v469 = vpack.c.bf16 %v437, %v437
      %v470 = vpack.c.bf16 %v438, %v438
      %v471 = vpack.c.bf16 %v439, %v439
      %v472 = vpack.c.bf16 %v440, %v440
      %v473 = vpack.c.bf16 %v441, %v441
      %v474 = vpack.c.bf16 %v442, %v442
      %v475 = vpack.c.bf16 %v443, %v443
      %vm476 = vcmask 27648
      %477 = vst.msk [vmem:[#allocation4] sm:$0xf] %vm476, %v444
      %478 = vst.msk [vmem:[#allocation4 + $0x4] sm:$0xf] %vm476, %v445
      %479 = vst.msk [vmem:[#allocation4 + $0x8] sm:$0xf] %vm476, %v446
      %480 = vst.msk [vmem:[#allocation4 + $0xc] sm:$0xf] %vm476, %v447
      %481 = vst.msk [vmem:[#allocation4 + $0x10] sm:$0xf] %vm476, %v448
      %482 = vst.msk [vmem:[#allocation4 + $0x14] sm:$0xf] %vm476, %v449
      %483 = vst.msk [vmem:[#allocation4 + $0x18] sm:$0xf] %vm476, %v450
      %484 = vst.msk [vmem:[#allocation4 + $0x1c] sm:$0xf] %vm476, %v451
      %485 = vst.msk [vmem:[#allocation4 + $0x20] sm:$0xf] %vm476, %v452
      %486 = vst.msk [vmem:[#allocation4 + $0x24] sm:$0xf] %vm476, %v453
      %487 = vst.msk [vmem:[#allocation4 + $0x28] sm:$0xf] %vm476, %v454
      %488 = vst.msk [vmem:[#allocation4 + $0x2c] sm:$0xf] %vm476, %v455
      %489 = vst.msk [vmem:[#allocation4 + $0x30] sm:$0xf] %vm476, %v456
      %490 = vst.msk [vmem:[#allocation4 + $0x34] sm:$0xf] %vm476, %v457
      %491 = vst.msk [vmem:[#allocation4 + $0x38] sm:$0xf] %vm476, %v458
      %492 = vst.msk [vmem:[#allocation4 + $0x3c] sm:$0xf] %vm476, %v459
      %493 = vst.msk [vmem:[#allocation4 + $0x40] sm:$0xf] %vm476, %v460
      %494 = vst.msk [vmem:[#allocation4 + $0x44] sm:$0xf] %vm476, %v461
      %495 = vst.msk [vmem:[#allocation4 + $0x48] sm:$0xf] %vm476, %v462
      %496 = vst.msk [vmem:[#allocation4 + $0x4c] sm:$0xf] %vm476, %v463
      %497 = vst.msk [vmem:[#allocation4 + $0x50] sm:$0xf] %vm476, %v464
      %498 = vst.msk [vmem:[#allocation4 + $0x54] sm:$0xf] %vm476, %v465
      %499 = vst.msk [vmem:[#allocation4 + $0x58] sm:$0xf] %vm476, %v466
      %500 = vst.msk [vmem:[#allocation4 + $0x5c] sm:$0xf] %vm476, %v467
      %501 = vst.msk [vmem:[#allocation4 + $0x60] sm:$0xf] %vm476, %v468
      %502 = vst.msk [vmem:[#allocation4 + $0x64] sm:$0xf] %vm476, %v469
      %503 = vst.msk [vmem:[#allocation4 + $0x68] sm:$0xf] %vm476, %v470
      %504 = vst.msk [vmem:[#allocation4 + $0x6c] sm:$0xf] %vm476, %v471
      %505 = vst.msk [vmem:[#allocation4 + $0x70] sm:$0xf] %vm476, %v472
      %506 = vst.msk [vmem:[#allocation4 + $0x74] sm:$0xf] %vm476, %v473
      %507 = vst.msk [vmem:[#allocation4 + $0x78] sm:$0xf] %vm476, %v474
      %508 = vst.msk [vmem:[#allocation4 + $0x7c] sm:$0xf] %vm476, %v475
      %v509 = vld [vmem:[#allocation2 + $0x1] sm:$0xff]
      %v510 = vld [vmem:[#allocation2 + $0x9] sm:$0xff]
      %v511 = vld [vmem:[#allocation2 + $0x19] sm:$0xff]
      %v512 = vld [vmem:[#allocation2 + $0x21] sm:$0xff]
      %v513 = vld [vmem:[#allocation2 + $0x31] sm:$0xff]
      %v514 = vld [vmem:[#allocation2 + $0x39] sm:$0xff]
      %v515 = vld [vmem:[#allocation2 + $0x49] sm:$0xff]
      %v516 = vld [vmem:[#allocation2 + $0x51] sm:$0xff]
      %v517 = vld [vmem:[#allocation2 + $0x61] sm:$0xff]
      %v518 = vld [vmem:[#allocation2 + $0x69] sm:$0xff]
      %v519 = vld [vmem:[#allocation2 + $0x79] sm:$0xff]
      %v520 = vld [vmem:[#allocation2 + $0x81] sm:$0xff]
      %v521 = vld [vmem:[#allocation2 + $0x91] sm:$0xff]
      %v522 = vld [vmem:[#allocation2 + $0x99] sm:$0xff]
      %v523 = vld [vmem:[#allocation2 + $0xa9] sm:$0xff]
      %v524 = vld [vmem:[#allocation2 + $0xb1] sm:$0xff]
      %v525 = vld [vmem:[#allocation2 + $0xc1] sm:$0xff]
      %v526 = vld [vmem:[#allocation2 + $0xc9] sm:$0xff]
      %v527 = vld [vmem:[#allocation2 + $0xd9] sm:$0xff]
      %v528 = vld [vmem:[#allocation2 + $0xe1] sm:$0xff]
      %v529 = vld [vmem:[#allocation2 + $0xf1] sm:$0xff]
      %v530 = vld [vmem:[#allocation2 + $0xf9] sm:$0xff]
      %v531 = vld [vmem:[#allocation2 + $0x109] sm:$0xff]
      %v532 = vld [vmem:[#allocation2 + $0x111] sm:$0xff]
      %v533 = vld [vmem:[#allocation2 + $0x121] sm:$0xff]
      %v534 = vld [vmem:[#allocation2 + $0x129] sm:$0xff]
      %v535 = vld [vmem:[#allocation2 + $0x139] sm:$0xff]
      %v536 = vld [vmem:[#allocation2 + $0x141] sm:$0xff]
      %v537 = vld [vmem:[#allocation2 + $0x151] sm:$0xff]
      %v538 = vld [vmem:[#allocation2 + $0x159] sm:$0xff]
      %v539 = vld [vmem:[#allocation2 + $0x169] sm:$0xff]
      %v540 = vld [vmem:[#allocation2 + $0x171] sm:$0xff]
      %v541 = vpack.c.bf16 %v509, %v509
      %v542 = vpack.c.bf16 %v510, %v510
      %v543 = vpack.c.bf16 %v511, %v511
      %v544 = vpack.c.bf16 %v512, %v512
      %v545 = vpack.c.bf16 %v513, %v513
      %v546 = vpack.c.bf16 %v514, %v514
      %v547 = vpack.c.bf16 %v515, %v515
      %v548 = vpack.c.bf16 %v516, %v516
      %v549 = vpack.c.bf16 %v517, %v517
      %v550 = vpack.c.bf16 %v518, %v518
      %v551 = vpack.c.bf16 %v519, %v519
      %v552 = vpack.c.bf16 %v520, %v520
      %v553 = vpack.c.bf16 %v521, %v521
      %v554 = vpack.c.bf16 %v522, %v522
      %v555 = vpack.c.bf16 %v523, %v523
      %v556 = vpack.c.bf16 %v524, %v524
      %v557 = vpack.c.bf16 %v525, %v525
      %v558 = vpack.c.bf16 %v526, %v526
      %v559 = vpack.c.bf16 %v527, %v527
      %v560 = vpack.c.bf16 %v528, %v528
      %v561 = vpack.c.bf16 %v529, %v529
      %v562 = vpack.c.bf16 %v530, %v530
      %v563 = vpack.c.bf16 %v531, %v531
      %v564 = vpack.c.bf16 %v532, %v532
      %v565 = vpack.c.bf16 %v533, %v533
      %v566 = vpack.c.bf16 %v534, %v534
      %v567 = vpack.c.bf16 %v535, %v535
      %v568 = vpack.c.bf16 %v536, %v536
      %v569 = vpack.c.bf16 %v537, %v537
      %v570 = vpack.c.bf16 %v538, %v538
      %v571 = vpack.c.bf16 %v539, %v539
      %v572 = vpack.c.bf16 %v540, %v540
      %605 = vrot.lane.b32.xlu0 %v541, 4
      %v606 = vpop.permute.xlu0 %605
      %607 = vrot.lane.b32.xlu0 %v542, 4
      %v608 = vpop.permute.xlu0 %607
      %609 = vrot.lane.b32.xlu0 %v543, 4
      %v610 = vpop.permute.xlu0 %609
      %611 = vrot.lane.b32.xlu0 %v544, 4
      %v612 = vpop.permute.xlu0 %611
      %613 = vrot.lane.b32.xlu0 %v545, 4
      %v614 = vpop.permute.xlu0 %613
      %615 = vrot.lane.b32.xlu0 %v546, 4
      %v616 = vpop.permute.xlu0 %615
      %617 = vrot.lane.b32.xlu0 %v547, 4
      %v618 = vpop.permute.xlu0 %617
      %619 = vrot.lane.b32.xlu0 %v548, 4
      %v620 = vpop.permute.xlu0 %619
      %621 = vrot.lane.b32.xlu0 %v549, 4
      %v622 = vpop.permute.xlu0 %621
      %623 = vrot.lane.b32.xlu0 %v550, 4
      %v624 = vpop.permute.xlu0 %623
      %625 = vrot.lane.b32.xlu0 %v551, 4
      %v626 = vpop.permute.xlu0 %625
      %627 = vrot.lane.b32.xlu0 %v552, 4
      %v628 = vpop.permute.xlu0 %627
      %629 = vrot.lane.b32.xlu0 %v553, 4
      %v630 = vpop.permute.xlu0 %629
      %631 = vrot.lane.b32.xlu0 %v554, 4
      %v632 = vpop.permute.xlu0 %631
      %633 = vrot.lane.b32.xlu0 %v555, 4
      %v634 = vpop.permute.xlu0 %633
      %635 = vrot.lane.b32.xlu0 %v556, 4
      %v636 = vpop.permute.xlu0 %635
      %637 = vrot.lane.b32.xlu0 %v557, 4
      %v638 = vpop.permute.xlu0 %637
      %639 = vrot.lane.b32.xlu0 %v558, 4
      %v640 = vpop.permute.xlu0 %639
      %641 = vrot.lane.b32.xlu0 %v559, 4
      %v642 = vpop.permute.xlu0 %641
      %643 = vrot.lane.b32.xlu0 %v560, 4
      %v644 = vpop.permute.xlu0 %643
      %645 = vrot.lane.b32.xlu0 %v561, 4
      %v646 = vpop.permute.xlu0 %645
      %647 = vrot.lane.b32.xlu0 %v562, 4
      %v648 = vpop.permute.xlu0 %647
      %649 = vrot.lane.b32.xlu0 %v563, 4
      %v650 = vpop.permute.xlu0 %649
      %651 = vrot.lane.b32.xlu0 %v564, 4
      %v652 = vpop.permute.xlu0 %651
      %653 = vrot.lane.b32.xlu0 %v565, 4
      %v654 = vpop.permute.xlu0 %653
      %655 = vrot.lane.b32.xlu0 %v566, 4
      %v656 = vpop.permute.xlu0 %655
      %657 = vrot.lane.b32.xlu0 %v567, 4
      %v658 = vpop.permute.xlu0 %657
      %659 = vrot.lane.b32.xlu0 %v568, 4
      %v660 = vpop.permute.xlu0 %659
      %661 = vrot.lane.b32.xlu0 %v569, 4
      %v662 = vpop.permute.xlu0 %661
      %663 = vrot.lane.b32.xlu0 %v570, 4
      %v664 = vpop.permute.xlu0 %663
      %665 = vrot.lane.b32.xlu0 %v571, 4
      %v666 = vpop.permute.xlu0 %665
      %667 = vrot.lane.b32.xlu0 %v572, 4
      %v668 = vpop.permute.xlu0 %667
      %vm701 = vcmask 60448
      %702 = vst.msk [vmem:[#allocation4] sm:$0xf] %vm701, %v606
      %703 = vst.msk [vmem:[#allocation4 + $0x4] sm:$0xf] %vm701, %v608
      %704 = vst.msk [vmem:[#allocation4 + $0x8] sm:$0xf] %vm701, %v610
      %705 = vst.msk [vmem:[#allocation4 + $0xc] sm:$0xf] %vm701, %v612
      %706 = vst.msk [vmem:[#allocation4 + $0x10] sm:$0xf] %vm701, %v614
      %707 = vst.msk [vmem:[#allocation4 + $0x14] sm:$0xf] %vm701, %v616
      %708 = vst.msk [vmem:[#allocation4 + $0x18] sm:$0xf] %vm701, %v618
      %709 = vst.msk [vmem:[#allocation4 + $0x1c] sm:$0xf] %vm701, %v620
      %710 = vst.msk [vmem:[#allocation4 + $0x20] sm:$0xf] %vm701, %v622
      %711 = vst.msk [vmem:[#allocation4 + $0x24] sm:$0xf] %vm701, %v624
      %712 = vst.msk [vmem:[#allocation4 + $0x28] sm:$0xf] %vm701, %v626
      %713 = vst.msk [vmem:[#allocation4 + $0x2c] sm:$0xf] %vm701, %v628
      %714 = vst.msk [vmem:[#allocation4 + $0x30] sm:$0xf] %vm701, %v630
      %715 = vst.msk [vmem:[#allocation4 + $0x34] sm:$0xf] %vm701, %v632
      %716 = vst.msk [vmem:[#allocation4 + $0x38] sm:$0xf] %vm701, %v634
      %717 = vst.msk [vmem:[#allocation4 + $0x3c] sm:$0xf] %vm701, %v636
      %718 = vst.msk [vmem:[#allocation4 + $0x40] sm:$0xf] %vm701, %v638
      %719 = vst.msk [vmem:[#allocation4 + $0x44] sm:$0xf] %vm701, %v640
      %720 = vst.msk [vmem:[#allocation4 + $0x48] sm:$0xf] %vm701, %v642
      %721 = vst.msk [vmem:[#allocation4 + $0x4c] sm:$0xf] %vm701, %v644
      %722 = vst.msk [vmem:[#allocation4 + $0x50] sm:$0xf] %vm701, %v646
      %723 = vst.msk [vmem:[#allocation4 + $0x54] sm:$0xf] %vm701, %v648
      %724 = vst.msk [vmem:[#allocation4 + $0x58] sm:$0xf] %vm701, %v650
      %725 = vst.msk [vmem:[#allocation4 + $0x5c] sm:$0xf] %vm701, %v652
      %726 = vst.msk [vmem:[#allocation4 + $0x60] sm:$0xf] %vm701, %v654
      %727 = vst.msk [vmem:[#allocation4 + $0x64] sm:$0xf] %vm701, %v656
      %728 = vst.msk [vmem:[#allocation4 + $0x68] sm:$0xf] %vm701, %v658
      %729 = vst.msk [vmem:[#allocation4 + $0x6c] sm:$0xf] %vm701, %v660
      %730 = vst.msk [vmem:[#allocation4 + $0x70] sm:$0xf] %vm701, %v662
      %731 = vst.msk [vmem:[#allocation4 + $0x74] sm:$0xf] %vm701, %v664
      %732 = vst.msk [vmem:[#allocation4 + $0x78] sm:$0xf] %vm701, %v666
      %733 = vst.msk [vmem:[#allocation4 + $0x7c] sm:$0xf] %vm701, %v668
      %v734 = vld [vmem:[#allocation2 + $0x2] sm:$0xff]
      %v735 = vld [vmem:[#allocation2 + $0xa] sm:$0xff]
      %v736 = vld [vmem:[#allocation2 + $0x1a] sm:$0xff]
      %v737 = vld [vmem:[#allocation2 + $0x22] sm:$0xff]
      %v738 = vld [vmem:[#allocation2 + $0x32] sm:$0xff]
      %v739 = vld [vmem:[#allocation2 + $0x3a] sm:$0xff]
      %v740 = vld [vmem:[#allocation2 + $0x4a] sm:$0xff]
      %v741 = vld [vmem:[#allocation2 + $0x52] sm:$0xff]
      %v742 = vld [vmem:[#allocation2 + $0x62] sm:$0xff]
      %v743 = vld [vmem:[#allocation2 + $0x6a] sm:$0xff]
      %v744 = vld [vmem:[#allocation2 + $0x7a] sm:$0xff]
      %v745 = vld [vmem:[#allocation2 + $0x82] sm:$0xff]
      %v746 = vld [vmem:[#allocation2 + $0x92] sm:$0xff]
      %v747 = vld [vmem:[#allocation2 + $0x9a] sm:$0xff]
      %v748 = vld [vmem:[#allocation2 + $0xaa] sm:$0xff]
      %v749 = vld [vmem:[#allocation2 + $0xb2] sm:$0xff]
      %v750 = vld [vmem:[#allocation2 + $0xc2] sm:$0xff]
      %v751 = vld [vmem:[#allocation2 + $0xca] sm:$0xff]
      %v752 = vld [vmem:[#allocation2 + $0xda] sm:$0xff]
      %v753 = vld [vmem:[#allocation2 + $0xe2] sm:$0xff]
      %v754 = vld [vmem:[#allocation2 + $0xf2] sm:$0xff]
      %v755 = vld [vmem:[#allocation2 + $0xfa] sm:$0xff]
      %v756 = vld [vmem:[#allocation2 + $0x10a] sm:$0xff]
      %v757 = vld [vmem:[#allocation2 + $0x112] sm:$0xff]
      %v758 = vld [vmem:[#allocation2 + $0x122] sm:$0xff]
      %v759 = vld [vmem:[#allocation2 + $0x12a] sm:$0xff]
      %v760 = vld [vmem:[#allocation2 + $0x13a] sm:$0xff]
      %v761 = vld [vmem:[#allocation2 + $0x142] sm:$0xff]
      %v762 = vld [vmem:[#allocation2 + $0x152] sm:$0xff]
      %v763 = vld [vmem:[#allocation2 + $0x15a] sm:$0xff]
      %v764 = vld [vmem:[#allocation2 + $0x16a] sm:$0xff]
      %v765 = vld [vmem:[#allocation2 + $0x172] sm:$0xff]
      %v766 = vpack.c.bf16 %v734, %v734
      %v767 = vpack.c.bf16 %v735, %v735
      %v768 = vpack.c.bf16 %v736, %v736
      %v769 = vpack.c.bf16 %v737, %v737
      %v770 = vpack.c.bf16 %v738, %v738
      %v771 = vpack.c.bf16 %v739, %v739
      %v772 = vpack.c.bf16 %v740, %v740
      %v773 = vpack.c.bf16 %v741, %v741
      %v774 = vpack.c.bf16 %v742, %v742
      %v775 = vpack.c.bf16 %v743, %v743
      %v776 = vpack.c.bf16 %v744, %v744
      %v777 = vpack.c.bf16 %v745, %v745
      %v778 = vpack.c.bf16 %v746, %v746
      %v779 = vpack.c.bf16 %v747, %v747
      %v780 = vpack.c.bf16 %v748, %v748
      %v781 = vpack.c.bf16 %v749, %v749
      %v782 = vpack.c.bf16 %v750, %v750
      %v783 = vpack.c.bf16 %v751, %v751
      %v784 = vpack.c.bf16 %v752, %v752
      %v785 = vpack.c.bf16 %v753, %v753
      %v786 = vpack.c.bf16 %v754, %v754
      %v787 = vpack.c.bf16 %v755, %v755
      %v788 = vpack.c.bf16 %v756, %v756
      %v789 = vpack.c.bf16 %v757, %v757
      %v790 = vpack.c.bf16 %v758, %v758
      %v791 = vpack.c.bf16 %v759, %v759
      %v792 = vpack.c.bf16 %v760, %v760
      %v793 = vpack.c.bf16 %v761, %v761
      %v794 = vpack.c.bf16 %v762, %v762
      %v795 = vpack.c.bf16 %v763, %v763
      %v796 = vpack.c.bf16 %v764, %v764
      %v797 = vpack.c.bf16 %v765, %v765
      %830 = vrot.lane.b32.xlu0 %v766, 8
      %v831 = vpop.permute.xlu0 %830
      %832 = vrot.lane.b32.xlu0 %v767, 8
      %v833 = vpop.permute.xlu0 %832
      %834 = vrot.lane.b32.xlu0 %v768, 8
      %v835 = vpop.permute.xlu0 %834
      %836 = vrot.lane.b32.xlu0 %v769, 8
      %v837 = vpop.permute.xlu0 %836
      %838 = vrot.lane.b32.xlu0 %v770, 8
      %v839 = vpop.permute.xlu0 %838
      %840 = vrot.lane.b32.xlu0 %v771, 8
      %v841 = vpop.permute.xlu0 %840
      %842 = vrot.lane.b32.xlu0 %v772, 8
      %v843 = vpop.permute.xlu0 %842
      %844 = vrot.lane.b32.xlu0 %v773, 8
      %v845 = vpop.permute.xlu0 %844
      %846 = vrot.lane.b32.xlu0 %v774, 8
      %v847 = vpop.permute.xlu0 %846
      %848 = vrot.lane.b32.xlu0 %v775, 8
      %v849 = vpop.permute.xlu0 %848
      %850 = vrot.lane.b32.xlu0 %v776, 8
      %v851 = vpop.permute.xlu0 %850
      %852 = vrot.lane.b32.xlu0 %v777, 8
      %v853 = vpop.permute.xlu0 %852
      %854 = vrot.lane.b32.xlu0 %v778, 8
      %v855 = vpop.permute.xlu0 %854
      %856 = vrot.lane.b32.xlu0 %v779, 8
      %v857 = vpop.permute.xlu0 %856
      %858 = vrot.lane.b32.xlu0 %v780, 8
      %v859 = vpop.permute.xlu0 %858
      %860 = vrot.lane.b32.xlu0 %v781, 8
      %v861 = vpop.permute.xlu0 %860
      %862 = vrot.lane.b32.xlu0 %v782, 8
      %v863 = vpop.permute.xlu0 %862
      %864 = vrot.lane.b32.xlu0 %v783, 8
      %v865 = vpop.permute.xlu0 %864
      %866 = vrot.lane.b32.xlu0 %v784, 8
      %v867 = vpop.permute.xlu0 %866
      %868 = vrot.lane.b32.xlu0 %v785, 8
      %v869 = vpop.permute.xlu0 %868
      %870 = vrot.lane.b32.xlu0 %v786, 8
      %v871 = vpop.permute.xlu0 %870
      %872 = vrot.lane.b32.xlu0 %v787, 8
      %v873 = vpop.permute.xlu0 %872
      %874 = vrot.lane.b32.xlu0 %v788, 8
      %v875 = vpop.permute.xlu0 %874
      %876 = vrot.lane.b32.xlu0 %v789, 8
      %v877 = vpop.permute.xlu0 %876
      %878 = vrot.lane.b32.xlu0 %v790, 8
      %v879 = vpop.permute.xlu0 %878
      %880 = vrot.lane.b32.xlu0 %v791, 8
      %v881 = vpop.permute.xlu0 %880
      %882 = vrot.lane.b32.xlu0 %v792, 8
      %v883 = vpop.permute.xlu0 %882
      %884 = vrot.lane.b32.xlu0 %v793, 8
      %v885 = vpop.permute.xlu0 %884
      %886 = vrot.lane.b32.xlu0 %v794, 8
      %v887 = vpop.permute.xlu0 %886
      %888 = vrot.lane.b32.xlu0 %v795, 8
      %v889 = vpop.permute.xlu0 %888
      %890 = vrot.lane.b32.xlu0 %v796, 8
      %v891 = vpop.permute.xlu0 %890
      %892 = vrot.lane.b32.xlu0 %v797, 8
      %v893 = vpop.permute.xlu0 %892
      %vm926 = vcmask 93248
      %927 = vst.msk [vmem:[#allocation4] sm:$0xf] %vm926, %v831
      %928 = vst.msk [vmem:[#allocation4 + $0x4] sm:$0xf] %vm926, %v833
      %929 = vst.msk [vmem:[#allocation4 + $0x8] sm:$0xf] %vm926, %v835
      %930 = vst.msk [vmem:[#allocation4 + $0xc] sm:$0xf] %vm926, %v837
      %931 = vst.msk [vmem:[#allocation4 + $0x10] sm:$0xf] %vm926, %v839
      %932 = vst.msk [vmem:[#allocation4 + $0x14] sm:$0xf] %vm926, %v841
      %933 = vst.msk [vmem:[#allocation4 + $0x18] sm:$0xf] %vm926, %v843
      %934 = vst.msk [vmem:[#allocation4 + $0x1c] sm:$0xf] %vm926, %v845
      %935 = vst.msk [vmem:[#allocation4 + $0x20] sm:$0xf] %vm926, %v847
      %936 = vst.msk [vmem:[#allocation4 + $0x24] sm:$0xf] %vm926, %v849
      %937 = vst.msk [vmem:[#allocation4 + $0x28] sm:$0xf] %vm926, %v851
      %938 = vst.msk [vmem:[#allocation4 + $0x2c] sm:$0xf] %vm926, %v853
      %939 = vst.msk [vmem:[#allocation4 + $0x30] sm:$0xf] %vm926, %v855
      %940 = vst.msk [vmem:[#allocation4 + $0x34] sm:$0xf] %vm926, %v857
      %941 = vst.msk [vmem:[#allocation4 + $0x38] sm:$0xf] %vm926, %v859
      %942 = vst.msk [vmem:[#allocation4 + $0x3c] sm:$0xf] %vm926, %v861
      %943 = vst.msk [vmem:[#allocation4 + $0x40] sm:$0xf] %vm926, %v863
      %944 = vst.msk [vmem:[#allocation4 + $0x44] sm:$0xf] %vm926, %v865
      %945 = vst.msk [vmem:[#allocation4 + $0x48] sm:$0xf] %vm926, %v867
      %946 = vst.msk [vmem:[#allocation4 + $0x4c] sm:$0xf] %vm926, %v869
      %947 = vst.msk [vmem:[#allocation4 + $0x50] sm:$0xf] %vm926, %v871
      %948 = vst.msk [vmem:[#allocation4 + $0x54] sm:$0xf] %vm926, %v873
      %949 = vst.msk [vmem:[#allocation4 + $0x58] sm:$0xf] %vm926, %v875
      %950 = vst.msk [vmem:[#allocation4 + $0x5c] sm:$0xf] %vm926, %v877
      %951 = vst.msk [vmem:[#allocation4 + $0x60] sm:$0xf] %vm926, %v879
      %952 = vst.msk [vmem:[#allocation4 + $0x64] sm:$0xf] %vm926, %v881
      %953 = vst.msk [vmem:[#allocation4 + $0x68] sm:$0xf] %vm926, %v883
      %954 = vst.msk [vmem:[#allocation4 + $0x6c] sm:$0xf] %vm926, %v885
      %955 = vst.msk [vmem:[#allocation4 + $0x70] sm:$0xf] %vm926, %v887
      %956 = vst.msk [vmem:[#allocation4 + $0x74] sm:$0xf] %vm926, %v889
      %957 = vst.msk [vmem:[#allocation4 + $0x78] sm:$0xf] %vm926, %v891
      %958 = vst.msk [vmem:[#allocation4 + $0x7c] sm:$0xf] %vm926, %v893
      %v959 = vld [vmem:[#allocation4] sm:$0xf]
      %v960 = vld [vmem:[#allocation4 + $0x4] sm:$0xf]
      %v961 = vld [vmem:[#allocation4 + $0x8] sm:$0xf]
      %v962 = vld [vmem:[#allocation4 + $0xc] sm:$0xf]
      %v963 = vld [vmem:[#allocation4 + $0x10] sm:$0xf]
      %v964 = vld [vmem:[#allocation4 + $0x14] sm:$0xf]
      %v965 = vld [vmem:[#allocation4 + $0x18] sm:$0xf]
      %v966 = vld [vmem:[#allocation4 + $0x1c] sm:$0xf]
      %v967 = vld [vmem:[#allocation4 + $0x20] sm:$0xf]
      %v968 = vld [vmem:[#allocation4 + $0x24] sm:$0xf]
      %v969 = vld [vmem:[#allocation4 + $0x28] sm:$0xf]
      %v970 = vld [vmem:[#allocation4 + $0x2c] sm:$0xf]
      %v971 = vld [vmem:[#allocation4 + $0x30] sm:$0xf]
      %v972 = vld [vmem:[#allocation4 + $0x34] sm:$0xf]
      %v973 = vld [vmem:[#allocation4 + $0x38] sm:$0xf]
      %v974 = vld [vmem:[#allocation4 + $0x3c] sm:$0xf]
      %v975 = vld [vmem:[#allocation4 + $0x40] sm:$0xf]
      %v976 = vld [vmem:[#allocation4 + $0x44] sm:$0xf]
      %v977 = vld [vmem:[#allocation4 + $0x48] sm:$0xf]
      %v978 = vld [vmem:[#allocation4 + $0x4c] sm:$0xf]
      %v979 = vld [vmem:[#allocation4 + $0x50] sm:$0xf]
      %v980 = vld [vmem:[#allocation4 + $0x54] sm:$0xf]
      %v981 = vld [vmem:[#allocation4 + $0x58] sm:$0xf]
      %v982 = vld [vmem:[#allocation4 + $0x5c] sm:$0xf]
      %v983 = vld [vmem:[#allocation4 + $0x60] sm:$0xf]
      %v984 = vld [vmem:[#allocation4 + $0x64] sm:$0xf]
      %v985 = vld [vmem:[#allocation4 + $0x68] sm:$0xf]
      %v986 = vld [vmem:[#allocation4 + $0x6c] sm:$0xf]
      %v987 = vld [vmem:[#allocation4 + $0x70] sm:$0xf]
      %v988 = vld [vmem:[#allocation4 + $0x74] sm:$0xf]
      %v989 = vld [vmem:[#allocation4 + $0x78] sm:$0xf]
      %v990 = vld [vmem:[#allocation4 + $0x7c] sm:$0xf]
      %v991 = vld [vmem:[%s1] sm:$0xf]
      %v992 = vld [vmem:[%s1 + $0x4] sm:$0x3]
      %v993 = vld [vmem:[%s379] sm:$0xff]
      %v994 = vld [vmem:[%s379 + $0x8] sm:$0xff]
      %v995 = vld [vmem:[%s379 + $0x18] sm:$0xff]
      %v996 = vld [vmem:[%s379 + $0x20] sm:$0xff]
      %v997 = vld [vmem:[%s379 + $0x30] sm:$0xff]
      %v998 = vld [vmem:[%s379 + $0x38] sm:$0xff]
      %v999 = vld [vmem:[%s379 + $0x48] sm:$0xff]
      %v1000 = vld [vmem:[%s379 + $0x50] sm:$0xff]
      %v1001 = vld [vmem:[%s379 + $0x60] sm:$0xff]
      %v1002 = vld [vmem:[%s379 + $0x68] sm:$0xff]
      %v1003 = vld [vmem:[%s379 + $0x78] sm:$0xff]
      %v1004 = vld [vmem:[%s379 + $0x80] sm:$0xff]
      %v1005 = vld [vmem:[%s379 + $0x90] sm:$0xff]
      %v1006 = vld [vmem:[%s379 + $0x98] sm:$0xff]
      %v1007 = vld [vmem:[%s379 + $0xa8] sm:$0xff]
      %v1008 = vld [vmem:[%s379 + $0xb0] sm:$0xff]
      %v1009 = vld [vmem:[%s379 + $0xc0] sm:$0xff]
      %v1010 = vld [vmem:[%s379 + $0xc8] sm:$0xff]
      %v1011 = vld [vmem:[%s379 + $0xd8] sm:$0xff]
      %v1012 = vld [vmem:[%s379 + $0xe0] sm:$0xff]
      %v1013 = vld [vmem:[%s379 + $0xf0] sm:$0xff]
      %v1014 = vld [vmem:[%s379 + $0xf8] sm:$0xff]
      %v1015 = vld [vmem:[%s379 + $0x108] sm:$0xff]
      %v1016 = vld [vmem:[%s379 + $0x110] sm:$0xff]
      %v1017 = vld [vmem:[%s379 + $0x120] sm:$0xff]
      %v1018 = vld [vmem:[%s379 + $0x128] sm:$0xff]
      %v1019 = vld [vmem:[%s379 + $0x138] sm:$0xff]
      %v1020 = vld [vmem:[%s379 + $0x140] sm:$0xff]
      %v1021 = vld [vmem:[%s379 + $0x150] sm:$0xff]
      %v1022 = vld [vmem:[%s379 + $0x158] sm:$0xff]
      %v1023 = vld [vmem:[%s379 + $0x168] sm:$0xff]
      %v1024 = vld [vmem:[%s379 + $0x170] sm:$0xff]
      %v1025 = vpack.c.bf16 %v993, %v993
      %v1026 = vpack.c.bf16 %v994, %v994
      %v1027 = vpack.c.bf16 %v995, %v995
      %v1028 = vpack.c.bf16 %v996, %v996
      %v1029 = vpack.c.bf16 %v997, %v997
      %v1030 = vpack.c.bf16 %v998, %v998
      %v1031 = vpack.c.bf16 %v999, %v999
      %v1032 = vpack.c.bf16 %v1000, %v1000
      %v1033 = vpack.c.bf16 %v1001, %v1001
      %v1034 = vpack.c.bf16 %v1002, %v1002
      %v1035 = vpack.c.bf16 %v1003, %v1003
      %v1036 = vpack.c.bf16 %v1004, %v1004
      %v1037 = vpack.c.bf16 %v1005, %v1005
      %v1038 = vpack.c.bf16 %v1006, %v1006
      %v1039 = vpack.c.bf16 %v1007, %v1007
      %v1040 = vpack.c.bf16 %v1008, %v1008
      %v1041 = vpack.c.bf16 %v1009, %v1009
      %v1042 = vpack.c.bf16 %v1010, %v1010
      %v1043 = vpack.c.bf16 %v1011, %v1011
      %v1044 = vpack.c.bf16 %v1012, %v1012
      %v1045 = vpack.c.bf16 %v1013, %v1013
      %v1046 = vpack.c.bf16 %v1014, %v1014
      %v1047 = vpack.c.bf16 %v1015, %v1015
      %v1048 = vpack.c.bf16 %v1016, %v1016
      %v1049 = vpack.c.bf16 %v1017, %v1017
      %v1050 = vpack.c.bf16 %v1018, %v1018
      %v1051 = vpack.c.bf16 %v1019, %v1019
      %v1052 = vpack.c.bf16 %v1020, %v1020
      %v1053 = vpack.c.bf16 %v1021, %v1021
      %v1054 = vpack.c.bf16 %v1022, %v1022
      %v1055 = vpack.c.bf16 %v1023, %v1023
      %v1056 = vpack.c.bf16 %v1024, %v1024
      %1057 = vst.msk [vmem:[#allocation4] sm:$0xf] %vm476, %v1025
      %1058 = vst.msk [vmem:[#allocation4 + $0x4] sm:$0xf] %vm476, %v1026
      %1059 = vst.msk [vmem:[#allocation4 + $0x8] sm:$0xf] %vm476, %v1027
      %1060 = vst.msk [vmem:[#allocation4 + $0xc] sm:$0xf] %vm476, %v1028
      %1061 = vst.msk [vmem:[#allocation4 + $0x10] sm:$0xf] %vm476, %v1029
      %1062 = vst.msk [vmem:[#allocation4 + $0x14] sm:$0xf] %vm476, %v1030
      %1063 = vst.msk [vmem:[#allocation4 + $0x18] sm:$0xf] %vm476, %v1031
      %1064 = vst.msk [vmem:[#allocation4 + $0x1c] sm:$0xf] %vm476, %v1032
      %1065 = vst.msk [vmem:[#allocation4 + $0x20] sm:$0xf] %vm476, %v1033
      %1066 = vst.msk [vmem:[#allocation4 + $0x24] sm:$0xf] %vm476, %v1034
      %1067 = vst.msk [vmem:[#allocation4 + $0x28] sm:$0xf] %vm476, %v1035
      %1068 = vst.msk [vmem:[#allocation4 + $0x2c] sm:$0xf] %vm476, %v1036
      %1069 = vst.msk [vmem:[#allocation4 + $0x30] sm:$0xf] %vm476, %v1037
      %1070 = vst.msk [vmem:[#allocation4 + $0x34] sm:$0xf] %vm476, %v1038
      %1071 = vst.msk [vmem:[#allocation4 + $0x38] sm:$0xf] %vm476, %v1039
      %1072 = vst.msk [vmem:[#allocation4 + $0x3c] sm:$0xf] %vm476, %v1040
      %1073 = vst.msk [vmem:[#allocation4 + $0x40] sm:$0xf] %vm476, %v1041
      %1074 = vst.msk [vmem:[#allocation4 + $0x44] sm:$0xf] %vm476, %v1042
      %1075 = vst.msk [vmem:[#allocation4 + $0x48] sm:$0xf] %vm476, %v1043
      %1076 = vst.msk [vmem:[#allocation4 + $0x4c] sm:$0xf] %vm476, %v1044
      %1077 = vst.msk [vmem:[#allocation4 + $0x50] sm:$0xf] %vm476, %v1045
      %1078 = vst.msk [vmem:[#allocation4 + $0x54] sm:$0xf] %vm476, %v1046
      %1079 = vst.msk [vmem:[#allocation4 + $0x58] sm:$0xf] %vm476, %v1047
      %1080 = vst.msk [vmem:[#allocation4 + $0x5c] sm:$0xf] %vm476, %v1048
      %1081 = vst.msk [vmem:[#allocation4 + $0x60] sm:$0xf] %vm476, %v1049
      %1082 = vst.msk [vmem:[#allocation4 + $0x64] sm:$0xf] %vm476, %v1050
      %1083 = vst.msk [vmem:[#allocation4 + $0x68] sm:$0xf] %vm476, %v1051
      %1084 = vst.msk [vmem:[#allocation4 + $0x6c] sm:$0xf] %vm476, %v1052
      %1085 = vst.msk [vmem:[#allocation4 + $0x70] sm:$0xf] %vm476, %v1053
      %1086 = vst.msk [vmem:[#allocation4 + $0x74] sm:$0xf] %vm476, %v1054
      %1087 = vst.msk [vmem:[#allocation4 + $0x78] sm:$0xf] %vm476, %v1055
      %1088 = vst.msk [vmem:[#allocation4 + $0x7c] sm:$0xf] %vm476, %v1056
      %v1089 = vld [vmem:[%s379 + $0x1] sm:$0xff]
      %v1090 = vld [vmem:[%s379 + $0x9] sm:$0xff]
      %v1091 = vld [vmem:[%s379 + $0x19] sm:$0xff]
      %v1092 = vld [vmem:[%s379 + $0x21] sm:$0xff]
      %v1093 = vld [vmem:[%s379 + $0x31] sm:$0xff]
      %v1094 = vld [vmem:[%s379 + $0x39] sm:$0xff]
      %v1095 = vld [vmem:[%s379 + $0x49] sm:$0xff]
      %v1096 = vld [vmem:[%s379 + $0x51] sm:$0xff]
      %v1097 = vld [vmem:[%s379 + $0x61] sm:$0xff]
      %v1098 = vld [vmem:[%s379 + $0x69] sm:$0xff]
      %v1099 = vld [vmem:[%s379 + $0x79] sm:$0xff]
      %v1100 = vld [vmem:[%s379 + $0x81] sm:$0xff]
      %v1101 = vld [vmem:[%s379 + $0x91] sm:$0xff]
      %v1102 = vld [vmem:[%s379 + $0x99] sm:$0xff]
      %v1103 = vld [vmem:[%s379 + $0xa9] sm:$0xff]
      %v1104 = vld [vmem:[%s379 + $0xb1] sm:$0xff]
      %v1105 = vld [vmem:[%s379 + $0xc1] sm:$0xff]
      %v1106 = vld [vmem:[%s379 + $0xc9] sm:$0xff]
      %v1107 = vld [vmem:[%s379 + $0xd9] sm:$0xff]
      %v1108 = vld [vmem:[%s379 + $0xe1] sm:$0xff]
      %v1109 = vld [vmem:[%s379 + $0xf1] sm:$0xff]
      %v1110 = vld [vmem:[%s379 + $0xf9] sm:$0xff]
      %v1111 = vld [vmem:[%s379 + $0x109] sm:$0xff]
      %v1112 = vld [vmem:[%s379 + $0x111] sm:$0xff]
      %v1113 = vld [vmem:[%s379 + $0x121] sm:$0xff]
      %v1114 = vld [vmem:[%s379 + $0x129] sm:$0xff]
      %v1115 = vld [vmem:[%s379 + $0x139] sm:$0xff]
      %v1116 = vld [vmem:[%s379 + $0x141] sm:$0xff]
      %v1117 = vld [vmem:[%s379 + $0x151] sm:$0xff]
      %v1118 = vld [vmem:[%s379 + $0x159] sm:$0xff]
      %v1119 = vld [vmem:[%s379 + $0x169] sm:$0xff]
      %v1120 = vld [vmem:[%s379 + $0x171] sm:$0xff]
      %v1121 = vpack.c.bf16 %v1089, %v1089
      %v1122 = vpack.c.bf16 %v1090, %v1090
      %v1123 = vpack.c.bf16 %v1091, %v1091
      %v1124 = vpack.c.bf16 %v1092, %v1092
      %v1125 = vpack.c.bf16 %v1093, %v1093
      %v1126 = vpack.c.bf16 %v1094, %v1094
      %v1127 = vpack.c.bf16 %v1095, %v1095
      %v1128 = vpack.c.bf16 %v1096, %v1096
      %v1129 = vpack.c.bf16 %v1097, %v1097
      %v1130 = vpack.c.bf16 %v1098, %v1098
      %v1131 = vpack.c.bf16 %v1099, %v1099
      %v1132 = vpack.c.bf16 %v1100, %v1100
      %v1133 = vpack.c.bf16 %v1101, %v1101
      %v1134 = vpack.c.bf16 %v1102, %v1102
      %v1135 = vpack.c.bf16 %v1103, %v1103
      %v1136 = vpack.c.bf16 %v1104, %v1104
      %v1137 = vpack.c.bf16 %v1105, %v1105
      %v1138 = vpack.c.bf16 %v1106, %v1106
      %v1139 = vpack.c.bf16 %v1107, %v1107
      %v1140 = vpack.c.bf16 %v1108, %v1108
      %v1141 = vpack.c.bf16 %v1109, %v1109
      %v1142 = vpack.c.bf16 %v1110, %v1110
      %v1143 = vpack.c.bf16 %v1111, %v1111
      %v1144 = vpack.c.bf16 %v1112, %v1112
      %v1145 = vpack.c.bf16 %v1113, %v1113
      %v1146 = vpack.c.bf16 %v1114, %v1114
      %v1147 = vpack.c.bf16 %v1115, %v1115
      %v1148 = vpack.c.bf16 %v1116, %v1116
      %v1149 = vpack.c.bf16 %v1117, %v1117
      %v1150 = vpack.c.bf16 %v1118, %v1118
      %v1151 = vpack.c.bf16 %v1119, %v1119
      %v1152 = vpack.c.bf16 %v1120, %v1120
      %1185 = vrot.lane.b32.xlu0 %v1121, 4
      %v1186 = vpop.permute.xlu0 %1185
      %1187 = vrot.lane.b32.xlu0 %v1122, 4
      %v1188 = vpop.permute.xlu0 %1187
      %1189 = vrot.lane.b32.xlu0 %v1123, 4
      %v1190 = vpop.permute.xlu0 %1189
      %1191 = vrot.lane.b32.xlu0 %v1124, 4
      %v1192 = vpop.permute.xlu0 %1191
      %1193 = vrot.lane.b32.xlu0 %v1125, 4
      %v1194 = vpop.permute.xlu0 %1193
      %1195 = vrot.lane.b32.xlu0 %v1126, 4
      %v1196 = vpop.permute.xlu0 %1195
      %1197 = vrot.lane.b32.xlu0 %v1127, 4
      %v1198 = vpop.permute.xlu0 %1197
      %1199 = vrot.lane.b32.xlu0 %v1128, 4
      %v1200 = vpop.permute.xlu0 %1199
      %1201 = vrot.lane.b32.xlu0 %v1129, 4
      %v1202 = vpop.permute.xlu0 %1201
      %1203 = vrot.lane.b32.xlu0 %v1130, 4
      %v1204 = vpop.permute.xlu0 %1203
      %1205 = vrot.lane.b32.xlu0 %v1131, 4
      %v1206 = vpop.permute.xlu0 %1205
      %1207 = vrot.lane.b32.xlu0 %v1132, 4
      %v1208 = vpop.permute.xlu0 %1207
      %1209 = vrot.lane.b32.xlu0 %v1133, 4
      %v1210 = vpop.permute.xlu0 %1209
      %1211 = vrot.lane.b32.xlu0 %v1134, 4
      %v1212 = vpop.permute.xlu0 %1211
      %1213 = vrot.lane.b32.xlu0 %v1135, 4
      %v1214 = vpop.permute.xlu0 %1213
      %1215 = vrot.lane.b32.xlu0 %v1136, 4
      %v1216 = vpop.permute.xlu0 %1215
      %1217 = vrot.lane.b32.xlu0 %v1137, 4
      %v1218 = vpop.permute.xlu0 %1217
      %1219 = vrot.lane.b32.xlu0 %v1138, 4
      %v1220 = vpop.permute.xlu0 %1219
      %1221 = vrot.lane.b32.xlu0 %v1139, 4
      %v1222 = vpop.permute.xlu0 %1221
      %1223 = vrot.lane.b32.xlu0 %v1140, 4
      %v1224 = vpop.permute.xlu0 %1223
      %1225 = vrot.lane.b32.xlu0 %v1141, 4
      %v1226 = vpop.permute.xlu0 %1225
      %1227 = vrot.lane.b32.xlu0 %v1142, 4
      %v1228 = vpop.permute.xlu0 %1227
      %1229 = vrot.lane.b32.xlu0 %v1143, 4
      %v1230 = vpop.permute.xlu0 %1229
      %1231 = vrot.lane.b32.xlu0 %v1144, 4
      %v1232 = vpop.permute.xlu0 %1231
      %1233 = vrot.lane.b32.xlu0 %v1145, 4
      %v1234 = vpop.permute.xlu0 %1233
      %1235 = vrot.lane.b32.xlu0 %v1146, 4
      %v1236 = vpop.permute.xlu0 %1235
      %1237 = vrot.lane.b32.xlu0 %v1147, 4
      %v1238 = vpop.permute.xlu0 %1237
      %1239 = vrot.lane.b32.xlu0 %v1148, 4
      %v1240 = vpop.permute.xlu0 %1239
      %1241 = vrot.lane.b32.xlu0 %v1149, 4
      %v1242 = vpop.permute.xlu0 %1241
      %1243 = vrot.lane.b32.xlu0 %v1150, 4
      %v1244 = vpop.permute.xlu0 %1243
      %1245 = vrot.lane.b32.xlu0 %v1151, 4
      %v1246 = vpop.permute.xlu0 %1245
      %1247 = vrot.lane.b32.xlu0 %v1152, 4
      %v1248 = vpop.permute.xlu0 %1247
      %1281 = vst.msk [vmem:[#allocation4] sm:$0xf] %vm701, %v1186
      %1282 = vst.msk [vmem:[#allocation4 + $0x4] sm:$0xf] %vm701, %v1188
      %1283 = vst.msk [vmem:[#allocation4 + $0x8] sm:$0xf] %vm701, %v1190
      %1284 = vst.msk [vmem:[#allocation4 + $0xc] sm:$0xf] %vm701, %v1192
      %1285 = vst.msk [vmem:[#allocation4 + $0x10] sm:$0xf] %vm701, %v1194
      %1286 = vst.msk [vmem:[#allocation4 + $0x14] sm:$0xf] %vm701, %v1196
      %1287 = vst.msk [vmem:[#allocation4 + $0x18] sm:$0xf] %vm701, %v1198
      %1288 = vst.msk [vmem:[#allocation4 + $0x1c] sm:$0xf] %vm701, %v1200
      %1289 = vst.msk [vmem:[#allocation4 + $0x20] sm:$0xf] %vm701, %v1202
      %1290 = vst.msk [vmem:[#allocation4 + $0x24] sm:$0xf] %vm701, %v1204
      %1291 = vst.msk [vmem:[#allocation4 + $0x28] sm:$0xf] %vm701, %v1206
      %1292 = vst.msk [vmem:[#allocation4 + $0x2c] sm:$0xf] %vm701, %v1208
      %1293 = vst.msk [vmem:[#allocation4 + $0x30] sm:$0xf] %vm701, %v1210
      %1294 = vst.msk [vmem:[#allocation4 + $0x34] sm:$0xf] %vm701, %v1212
      %1295 = vst.msk [vmem:[#allocation4 + $0x38] sm:$0xf] %vm701, %v1214
      %1296 = vst.msk [vmem:[#allocation4 + $0x3c] sm:$0xf] %vm701, %v1216
      %1297 = vst.msk [vmem:[#allocation4 + $0x40] sm:$0xf] %vm701, %v1218
      %1298 = vst.msk [vmem:[#allocation4 + $0x44] sm:$0xf] %vm701, %v1220
      %1299 = vst.msk [vmem:[#allocation4 + $0x48] sm:$0xf] %vm701, %v1222
      %1300 = vst.msk [vmem:[#allocation4 + $0x4c] sm:$0xf] %vm701, %v1224
      %1301 = vst.msk [vmem:[#allocation4 + $0x50] sm:$0xf] %vm701, %v1226
      %1302 = vst.msk [vmem:[#allocation4 + $0x54] sm:$0xf] %vm701, %v1228
      %1303 = vst.msk [vmem:[#allocation4 + $0x58] sm:$0xf] %vm701, %v1230
      %1304 = vst.msk [vmem:[#allocation4 + $0x5c] sm:$0xf] %vm701, %v1232
      %1305 = vst.msk [vmem:[#allocation4 + $0x60] sm:$0xf] %vm701, %v1234
      %1306 = vst.msk [vmem:[#allocation4 + $0x64] sm:$0xf] %vm701, %v1236
      %1307 = vst.msk [vmem:[#allocation4 + $0x68] sm:$0xf] %vm701, %v1238
      %1308 = vst.msk [vmem:[#allocation4 + $0x6c] sm:$0xf] %vm701, %v1240
      %1309 = vst.msk [vmem:[#allocation4 + $0x70] sm:$0xf] %vm701, %v1242
      %1310 = vst.msk [vmem:[#allocation4 + $0x74] sm:$0xf] %vm701, %v1244
      %1311 = vst.msk [vmem:[#allocation4 + $0x78] sm:$0xf] %vm701, %v1246
      %1312 = vst.msk [vmem:[#allocation4 + $0x7c] sm:$0xf] %vm701, %v1248
      %v1313 = vld [vmem:[%s379 + $0x2] sm:$0xff]
      %v1314 = vld [vmem:[%s379 + $0xa] sm:$0xff]
      %v1315 = vld [vmem:[%s379 + $0x1a] sm:$0xff]
      %v1316 = vld [vmem:[%s379 + $0x22] sm:$0xff]
      %v1317 = vld [vmem:[%s379 + $0x32] sm:$0xff]
      %v1318 = vld [vmem:[%s379 + $0x3a] sm:$0xff]
      %v1319 = vld [vmem:[%s379 + $0x4a] sm:$0xff]
      %v1320 = vld [vmem:[%s379 + $0x52] sm:$0xff]
      %v1321 = vld [vmem:[%s379 + $0x62] sm:$0xff]
      %v1322 = vld [vmem:[%s379 + $0x6a] sm:$0xff]
      %v1323 = vld [vmem:[%s379 + $0x7a] sm:$0xff]
      %v1324 = vld [vmem:[%s379 + $0x82] sm:$0xff]
      %v1325 = vld [vmem:[%s379 + $0x92] sm:$0xff]
      %v1326 = vld [vmem:[%s379 + $0x9a] sm:$0xff]
      %v1327 = vld [vmem:[%s379 + $0xaa] sm:$0xff]
      %v1328 = vld [vmem:[%s379 + $0xb2] sm:$0xff]
      %v1329 = vld [vmem:[%s379 + $0xc2] sm:$0xff]
      %v1330 = vld [vmem:[%s379 + $0xca] sm:$0xff]
      %v1331 = vld [vmem:[%s379 + $0xda] sm:$0xff]
      %v1332 = vld [vmem:[%s379 + $0xe2] sm:$0xff]
      %v1333 = vld [vmem:[%s379 + $0xf2] sm:$0xff]
      %v1334 = vld [vmem:[%s379 + $0xfa] sm:$0xff]
      %v1335 = vld [vmem:[%s379 + $0x10a] sm:$0xff]
      %v1336 = vld [vmem:[%s379 + $0x112] sm:$0xff]
      %v1337 = vld [vmem:[%s379 + $0x122] sm:$0xff]
      %v1338 = vld [vmem:[%s379 + $0x12a] sm:$0xff]
      %v1339 = vld [vmem:[%s379 + $0x13a] sm:$0xff]
      %v1340 = vld [vmem:[%s379 + $0x142] sm:$0xff]
      %v1341 = vld [vmem:[%s379 + $0x152] sm:$0xff]
      %v1342 = vld [vmem:[%s379 + $0x15a] sm:$0xff]
      %v1343 = vld [vmem:[%s379 + $0x16a] sm:$0xff]
      %v1344 = vld [vmem:[%s379 + $0x172] sm:$0xff]
      %v1345 = vpack.c.bf16 %v1313, %v1313
      %v1346 = vpack.c.bf16 %v1314, %v1314
      %v1347 = vpack.c.bf16 %v1315, %v1315
      %v1348 = vpack.c.bf16 %v1316, %v1316
      %v1349 = vpack.c.bf16 %v1317, %v1317
      %v1350 = vpack.c.bf16 %v1318, %v1318
      %v1351 = vpack.c.bf16 %v1319, %v1319
      %v1352 = vpack.c.bf16 %v1320, %v1320
      %v1353 = vpack.c.bf16 %v1321, %v1321
      %v1354 = vpack.c.bf16 %v1322, %v1322
      %v1355 = vpack.c.bf16 %v1323, %v1323
      %v1356 = vpack.c.bf16 %v1324, %v1324
      %v1357 = vpack.c.bf16 %v1325, %v1325
      %v1358 = vpack.c.bf16 %v1326, %v1326
      %v1359 = vpack.c.bf16 %v1327, %v1327
      %v1360 = vpack.c.bf16 %v1328, %v1328
      %v1361 = vpack.c.bf16 %v1329, %v1329
      %v1362 = vpack.c.bf16 %v1330, %v1330
      %v1363 = vpack.c.bf16 %v1331, %v1331
      %v1364 = vpack.c.bf16 %v1332, %v1332
      %v1365 = vpack.c.bf16 %v1333, %v1333
      %v1366 = vpack.c.bf16 %v1334, %v1334
      %v1367 = vpack.c.bf16 %v1335, %v1335
      %v1368 = vpack.c.bf16 %v1336, %v1336
      %v1369 = vpack.c.bf16 %v1337, %v1337
      %v1370 = vpack.c.bf16 %v1338, %v1338
      %v1371 = vpack.c.bf16 %v1339, %v1339
      %v1372 = vpack.c.bf16 %v1340, %v1340
      %v1373 = vpack.c.bf16 %v1341, %v1341
      %v1374 = vpack.c.bf16 %v1342, %v1342
      %v1375 = vpack.c.bf16 %v1343, %v1343
      %v1376 = vpack.c.bf16 %v1344, %v1344
      %1409 = vrot.lane.b32.xlu0 %v1345, 8
      %v1410 = vpop.permute.xlu0 %1409
      %1411 = vrot.lane.b32.xlu0 %v1346, 8
      %v1412 = vpop.permute.xlu0 %1411
      %1413 = vrot.lane.b32.xlu0 %v1347, 8
      %v1414 = vpop.permute.xlu0 %1413
      %1415 = vrot.lane.b32.xlu0 %v1348, 8
      %v1416 = vpop.permute.xlu0 %1415
      %1417 = vrot.lane.b32.xlu0 %v1349, 8
      %v1418 = vpop.permute.xlu0 %1417
      %1419 = vrot.lane.b32.xlu0 %v1350, 8
      %v1420 = vpop.permute.xlu0 %1419
      %1421 = vrot.lane.b32.xlu0 %v1351, 8
      %v1422 = vpop.permute.xlu0 %1421
      %1423 = vrot.lane.b32.xlu0 %v1352, 8
      %v1424 = vpop.permute.xlu0 %1423
      %1425 = vrot.lane.b32.xlu0 %v1353, 8
      %v1426 = vpop.permute.xlu0 %1425
      %1427 = vrot.lane.b32.xlu0 %v1354, 8
      %v1428 = vpop.permute.xlu0 %1427
      %1429 = vrot.lane.b32.xlu0 %v1355, 8
      %v1430 = vpop.permute.xlu0 %1429
      %1431 = vrot.lane.b32.xlu0 %v1356, 8
      %v1432 = vpop.permute.xlu0 %1431
      %1433 = vrot.lane.b32.xlu0 %v1357, 8
      %v1434 = vpop.permute.xlu0 %1433
      %1435 = vrot.lane.b32.xlu0 %v1358, 8
      %v1436 = vpop.permute.xlu0 %1435
      %1437 = vrot.lane.b32.xlu0 %v1359, 8
      %v1438 = vpop.permute.xlu0 %1437
      %1439 = vrot.lane.b32.xlu0 %v1360, 8
      %v1440 = vpop.permute.xlu0 %1439
      %1441 = vrot.lane.b32.xlu0 %v1361, 8
      %v1442 = vpop.permute.xlu0 %1441
      %1443 = vrot.lane.b32.xlu0 %v1362, 8
      %v1444 = vpop.permute.xlu0 %1443
      %1445 = vrot.lane.b32.xlu0 %v1363, 8
      %v1446 = vpop.permute.xlu0 %1445
      %1447 = vrot.lane.b32.xlu0 %v1364, 8
      %v1448 = vpop.permute.xlu0 %1447
      %1449 = vrot.lane.b32.xlu0 %v1365, 8
      %v1450 = vpop.permute.xlu0 %1449
      %1451 = vrot.lane.b32.xlu0 %v1366, 8
      %v1452 = vpop.permute.xlu0 %1451
      %1453 = vrot.lane.b32.xlu0 %v1367, 8
      %v1454 = vpop.permute.xlu0 %1453
      %1455 = vrot.lane.b32.xlu0 %v1368, 8
      %v1456 = vpop.permute.xlu0 %1455
      %1457 = vrot.lane.b32.xlu0 %v1369, 8
      %v1458 = vpop.permute.xlu0 %1457
      %1459 = vrot.lane.b32.xlu0 %v1370, 8
      %v1460 = vpop.permute.xlu0 %1459
      %1461 = vrot.lane.b32.xlu0 %v1371, 8
      %v1462 = vpop.permute.xlu0 %1461
      %1463 = vrot.lane.b32.xlu0 %v1372, 8
      %v1464 = vpop.permute.xlu0 %1463
      %1465 = vrot.lane.b32.xlu0 %v1373, 8
      %v1466 = vpop.permute.xlu0 %1465
      %1467 = vrot.lane.b32.xlu0 %v1374, 8
      %v1468 = vpop.permute.xlu0 %1467
      %1469 = vrot.lane.b32.xlu0 %v1375, 8
      %v1470 = vpop.permute.xlu0 %1469
      %1471 = vrot.lane.b32.xlu0 %v1376, 8
      %v1472 = vpop.permute.xlu0 %1471
      %1505 = vst.msk [vmem:[#allocation4] sm:$0xf] %vm926, %v1410
      %1506 = vst.msk [vmem:[#allocation4 + $0x4] sm:$0xf] %vm926, %v1412
      %1507 = vst.msk [vmem:[#allocation4 + $0x8] sm:$0xf] %vm926, %v1414
      %1508 = vst.msk [vmem:[#allocation4 + $0xc] sm:$0xf] %vm926, %v1416
      %1509 = vst.msk [vmem:[#allocation4 + $0x10] sm:$0xf] %vm926, %v1418
      %1510 = vst.msk [vmem:[#allocation4 + $0x14] sm:$0xf] %vm926, %v1420
      %1511 = vst.msk [vmem:[#allocation4 + $0x18] sm:$0xf] %vm926, %v1422
      %1512 = vst.msk [vmem:[#allocation4 + $0x1c] sm:$0xf] %vm926, %v1424
      %1513 = vst.msk [vmem:[#allocation4 + $0x20] sm:$0xf] %vm926, %v1426
      %1514 = vst.msk [vmem:[#allocation4 + $0x24] sm:$0xf] %vm926, %v1428
      %1515 = vst.msk [vmem:[#allocation4 + $0x28] sm:$0xf] %vm926, %v1430
      %1516 = vst.msk [vmem:[#allocation4 + $0x2c] sm:$0xf] %vm926, %v1432
      %1517 = vst.msk [vmem:[#allocation4 + $0x30] sm:$0xf] %vm926, %v1434
      %1518 = vst.msk [vmem:[#allocation4 + $0x34] sm:$0xf] %vm926, %v1436
      %1519 = vst.msk [vmem:[#allocation4 + $0x38] sm:$0xf] %vm926, %v1438
      %1520 = vst.msk [vmem:[#allocation4 + $0x3c] sm:$0xf] %vm926, %v1440
      %1521 = vst.msk [vmem:[#allocation4 + $0x40] sm:$0xf] %vm926, %v1442
      %1522 = vst.msk [vmem:[#allocation4 + $0x44] sm:$0xf] %vm926, %v1444
      %1523 = vst.msk [vmem:[#allocation4 + $0x48] sm:$0xf] %vm926, %v1446
      %1524 = vst.msk [vmem:[#allocation4 + $0x4c] sm:$0xf] %vm926, %v1448
      %1525 = vst.msk [vmem:[#allocation4 + $0x50] sm:$0xf] %vm926, %v1450
      %1526 = vst.msk [vmem:[#allocation4 + $0x54] sm:$0xf] %vm926, %v1452
      %1527 = vst.msk [vmem:[#allocation4 + $0x58] sm:$0xf] %vm926, %v1454
      %1528 = vst.msk [vmem:[#allocation4 + $0x5c] sm:$0xf] %vm926, %v1456
      %1529 = vst.msk [vmem:[#allocation4 + $0x60] sm:$0xf] %vm926, %v1458
      %1530 = vst.msk [vmem:[#allocation4 + $0x64] sm:$0xf] %vm926, %v1460
      %1531 = vst.msk [vmem:[#allocation4 + $0x68] sm:$0xf] %vm926, %v1462
      %1532 = vst.msk [vmem:[#allocation4 + $0x6c] sm:$0xf] %vm926, %v1464
      %1533 = vst.msk [vmem:[#allocation4 + $0x70] sm:$0xf] %vm926, %v1466
      %1534 = vst.msk [vmem:[#allocation4 + $0x74] sm:$0xf] %vm926, %v1468
      %1535 = vst.msk [vmem:[#allocation4 + $0x78] sm:$0xf] %vm926, %v1470
      %1536 = vst.msk [vmem:[#allocation4 + $0x7c] sm:$0xf] %vm926, %v1472
      %v1537 = vld [vmem:[#allocation4] sm:$0xf]
      %v1538 = vld [vmem:[#allocation4 + $0x4] sm:$0xf]
      %v1539 = vld [vmem:[#allocation4 + $0x8] sm:$0xf]
      %v1540 = vld [vmem:[#allocation4 + $0xc] sm:$0xf]
      %v1541 = vld [vmem:[#allocation4 + $0x10] sm:$0xf]
      %v1542 = vld [vmem:[#allocation4 + $0x14] sm:$0xf]
      %v1543 = vld [vmem:[#allocation4 + $0x18] sm:$0xf]
      %v1544 = vld [vmem:[#allocation4 + $0x1c] sm:$0xf]
      %v1545 = vld [vmem:[#allocation4 + $0x20] sm:$0xf]
      %v1546 = vld [vmem:[#allocation4 + $0x24] sm:$0xf]
      %v1547 = vld [vmem:[#allocation4 + $0x28] sm:$0xf]
      %v1548 = vld [vmem:[#allocation4 + $0x2c] sm:$0xf]
      %v1549 = vld [vmem:[#allocation4 + $0x30] sm:$0xf]
      %v1550 = vld [vmem:[#allocation4 + $0x34] sm:$0xf]
      %v1551 = vld [vmem:[#allocation4 + $0x38] sm:$0xf]
      %v1552 = vld [vmem:[#allocation4 + $0x3c] sm:$0xf]
      %v1553 = vld [vmem:[#allocation4 + $0x40] sm:$0xf]
      %v1554 = vld [vmem:[#allocation4 + $0x44] sm:$0xf]
      %v1555 = vld [vmem:[#allocation4 + $0x48] sm:$0xf]
      %v1556 = vld [vmem:[#allocation4 + $0x4c] sm:$0xf]
      %v1557 = vld [vmem:[#allocation4 + $0x50] sm:$0xf]
      %v1558 = vld [vmem:[#allocation4 + $0x54] sm:$0xf]
      %v1559 = vld [vmem:[#allocation4 + $0x58] sm:$0xf]
      %v1560 = vld [vmem:[#allocation4 + $0x5c] sm:$0xf]
      %v1561 = vld [vmem:[#allocation4 + $0x60] sm:$0xf]
      %v1562 = vld [vmem:[#allocation4 + $0x64] sm:$0xf]
      %v1563 = vld [vmem:[#allocation4 + $0x68] sm:$0xf]
      %v1564 = vld [vmem:[#allocation4 + $0x6c] sm:$0xf]
      %v1565 = vld [vmem:[#allocation4 + $0x70] sm:$0xf]
      %v1566 = vld [vmem:[#allocation4 + $0x74] sm:$0xf]
      %v1567 = vld [vmem:[#allocation4 + $0x78] sm:$0xf]
      %v1568 = vld [vmem:[#allocation4 + $0x7c] sm:$0xf]
      %v1569 = vld [vmem:[%s1 + $0x4] sm:$0xc]
      %v1570 = vld [vmem:[%s1 + $0x8] sm:$0xf]
      %v1603 = vunpack.c.l.b16 %v1537
      %v1604 = vunpack.c.l.b16 %v1538
      %v1605 = vunpack.c.l.b16 %v1539
      %v1606 = vunpack.c.l.b16 %v1540
      %v1607 = vunpack.c.l.b16 %v1541
      %v1608 = vunpack.c.l.b16 %v1542
      %v1609 = vunpack.c.l.b16 %v1543
      %v1610 = vunpack.c.l.b16 %v1544
      %v1611 = vunpack.c.l.b16 %v1545
      %v1612 = vunpack.c.l.b16 %v1546
      %v1613 = vunpack.c.l.b16 %v1547
      %v1614 = vunpack.c.l.b16 %v1548
      %v1615 = vunpack.c.l.b16 %v1549
      %v1616 = vunpack.c.l.b16 %v1550
      %v1617 = vunpack.c.l.b16 %v1551
      %v1618 = vunpack.c.l.b16 %v1552
      %v1619 = vunpack.c.l.b16 %v1553
      %v1620 = vunpack.c.l.b16 %v1554
      %v1621 = vunpack.c.l.b16 %v1555
      %v1622 = vunpack.c.l.b16 %v1556
      %v1623 = vunpack.c.l.b16 %v1557
      %v1624 = vunpack.c.l.b16 %v1558
      %v1625 = vunpack.c.l.b16 %v1559
      %v1626 = vunpack.c.l.b16 %v1560
      %v1627 = vunpack.c.l.b16 %v1561
      %v1628 = vunpack.c.l.b16 %v1562
      %v1629 = vunpack.c.l.b16 %v1563
      %v1630 = vunpack.c.l.b16 %v1564
      %v1631 = vunpack.c.l.b16 %v1565
      %v1632 = vunpack.c.l.b16 %v1566
      %v1633 = vunpack.c.l.b16 %v1567
      %v1634 = vunpack.c.l.b16 %v1568
      %v1635 = vpack.c.b16 %v1604, %v1603
      %v1636 = vpack.c.b16 %v1606, %v1605
      %v1637 = vpack.c.b16 %v1608, %v1607
      %v1638 = vpack.c.b16 %v1610, %v1609
      %v1639 = vpack.c.b16 %v1612, %v1611
      %v1640 = vpack.c.b16 %v1614, %v1613
      %v1641 = vpack.c.b16 %v1616, %v1615
      %v1642 = vpack.c.b16 %v1618, %v1617
      %v1643 = vpack.c.b16 %v1620, %v1619
      %v1644 = vpack.c.b16 %v1622, %v1621
      %v1645 = vpack.c.b16 %v1624, %v1623
      %v1646 = vpack.c.b16 %v1626, %v1625
      %v1647 = vpack.c.b16 %v1628, %v1627
      %v1648 = vpack.c.b16 %v1630, %v1629
      %v1649 = vpack.c.b16 %v1632, %v1631
      %v1650 = vpack.c.b16 %v1634, %v1633
      %v1653 = vunpack.c.l.b16 %v1569
      %v1654 = vunpack.c.l.b16 %v1570
      %v1655 = vpack.c.b16 %v1654, %v1653
      %v1656 = vrot.slane %v1655, 2
      %vm1657 = vcmask 97280
      %v1659 = vsel %vm1657, %v1635, 0
      %v1662 = vsel %vm1657, %v1636, 0
      %v1665 = vsel %vm1657, %v1637, 0
      %v1668 = vsel %vm1657, %v1638, 0
      %v1671 = vsel %vm1657, %v1639, 0
      %v1674 = vsel %vm1657, %v1640, 0
      %v1677 = vsel %vm1657, %v1641, 0
      %v1680 = vsel %vm1657, %v1642, 0
      %v1683 = vsel %vm1657, %v1643, 0
      %v1686 = vsel %vm1657, %v1644, 0
      %v1689 = vsel %vm1657, %v1645, 0
      %v1692 = vsel %vm1657, %v1646, 0
      %v1695 = vsel %vm1657, %v1647, 0
      %v1698 = vsel %vm1657, %v1648, 0
      %v1701 = vsel %vm1657, %v1649, 0
      %v1704 = vsel %vm1657, %v1650, 0
      %vm1706 = vcmask 1045504
      %v1708 = vsel %vm1706, %v1656, 0
      %1710 = vmatpush.bf16.msra.mxu0 0
      %1711 = vmatpush.bf16.msra.mxu0 0
      %1712 = vmatpush.bf16.msra.mxu0 0
      %1713 = vmatpush.bf16.msra.mxu0 0
      %1714 = vmatpush.bf16.msra.mxu0 0
      %1715 = vmatpush.bf16.msra.mxu0 0
      %1716 = vmatpush.bf16.msra.mxu0 0
      %1717 = vmatpush.bf16.msra.mxu0 %v1708
      %1718 = vmatmul.bf16.gmra.mxu0 %v1659
      %v1719 = vpop.f32.mrf.mxu0
      %v1720 = vadd.f32 0.0, %v1719
      %v1721 = vpop.f32.mrf.mxu0
      %v1722 = vadd.f32 0.0, %v1721
      %1723 = vmatmul.bf16.gmra.mxu0 %v1662
      %v1724 = vpop.f32.mrf.mxu0
      %v1725 = vadd.f32 0.0, %v1724
      %v1726 = vpop.f32.mrf.mxu0
      %v1727 = vadd.f32 0.0, %v1726
      %1728 = vmatmul.bf16.gmra.mxu0 %v1665
      %v1729 = vpop.f32.mrf.mxu0
      %v1730 = vadd.f32 0.0, %v1729
      %v1731 = vpop.f32.mrf.mxu0
      %v1732 = vadd.f32 0.0, %v1731
      %1733 = vmatmul.bf16.gmra.mxu0 %v1668
      %v1734 = vpop.f32.mrf.mxu0
      %v1735 = vadd.f32 0.0, %v1734
      %v1736 = vpop.f32.mrf.mxu0
      %v1737 = vadd.f32 0.0, %v1736
      %1738 = vmatmul.bf16.gmra.mxu0 %v1671
      %v1739 = vpop.f32.mrf.mxu0
      %v1740 = vadd.f32 0.0, %v1739
      %v1741 = vpop.f32.mrf.mxu0
      %v1742 = vadd.f32 0.0, %v1741
      %1743 = vmatmul.bf16.gmra.mxu0 %v1674
      %v1744 = vpop.f32.mrf.mxu0
      %v1745 = vadd.f32 0.0, %v1744
      %v1746 = vpop.f32.mrf.mxu0
      %v1747 = vadd.f32 0.0, %v1746
      %1748 = vmatmul.bf16.gmra.mxu0 %v1677
      %v1749 = vpop.f32.mrf.mxu0
      %v1750 = vadd.f32 0.0, %v1749
      %v1751 = vpop.f32.mrf.mxu0
      %v1752 = vadd.f32 0.0, %v1751
      %1753 = vmatmul.bf16.gmra.mxu0 %v1680
      %v1754 = vpop.f32.mrf.mxu0
      %v1755 = vadd.f32 0.0, %v1754
      %v1756 = vpop.f32.mrf.mxu0
      %v1757 = vadd.f32 0.0, %v1756
      %1758 = vmatmul.bf16.gmra.mxu0 %v1683
      %v1759 = vpop.f32.mrf.mxu0
      %v1760 = vadd.f32 0.0, %v1759
      %v1761 = vpop.f32.mrf.mxu0
      %v1762 = vadd.f32 0.0, %v1761
      %1763 = vmatmul.bf16.gmra.mxu0 %v1686
      %v1764 = vpop.f32.mrf.mxu0
      %v1765 = vadd.f32 0.0, %v1764
      %v1766 = vpop.f32.mrf.mxu0
      %v1767 = vadd.f32 0.0, %v1766
      %1768 = vmatmul.bf16.gmra.mxu0 %v1689
      %v1769 = vpop.f32.mrf.mxu0
      %v1770 = vadd.f32 0.0, %v1769
      %v1771 = vpop.f32.mrf.mxu0
      %v1772 = vadd.f32 0.0, %v1771
      %1773 = vmatmul.bf16.gmra.mxu0 %v1692
      %v1774 = vpop.f32.mrf.mxu0
      %v1775 = vadd.f32 0.0, %v1774
      %v1776 = vpop.f32.mrf.mxu0
      %v1777 = vadd.f32 0.0, %v1776
      %1778 = vmatmul.bf16.gmra.mxu0 %v1695
      %v1779 = vpop.f32.mrf.mxu0
      %v1780 = vadd.f32 0.0, %v1779
      %v1781 = vpop.f32.mrf.mxu0
      %v1782 = vadd.f32 0.0, %v1781
      %1783 = vmatmul.bf16.gmra.mxu0 %v1698
      %v1784 = vpop.f32.mrf.mxu0
      %v1785 = vadd.f32 0.0, %v1784
      %v1786 = vpop.f32.mrf.mxu0
      %v1787 = vadd.f32 0.0, %v1786
      %1788 = vmatmul.bf16.gmra.mxu0 %v1701
      %v1789 = vpop.f32.mrf.mxu0
      %v1790 = vadd.f32 0.0, %v1789
      %v1791 = vpop.f32.mrf.mxu0
      %v1792 = vadd.f32 0.0, %v1791
      %1793 = vmatmul.bf16.gmra.mxu0 %v1704
      %v1794 = vpop.f32.mrf.mxu0
      %v1795 = vadd.f32 0.0, %v1794
      %v1796 = vpop.f32.mrf.mxu0
      %v1797 = vadd.f32 0.0, %v1796
      %1798 = vdwg.mxu0
      %v1831 = vunpack.c.l.b16 %v959
      %v1832 = vunpack.c.l.b16 %v960
      %v1833 = vunpack.c.l.b16 %v961
      %v1834 = vunpack.c.l.b16 %v962
      %v1835 = vunpack.c.l.b16 %v963
      %v1836 = vunpack.c.l.b16 %v964
      %v1837 = vunpack.c.l.b16 %v965
      %v1838 = vunpack.c.l.b16 %v966
      %v1839 = vunpack.c.l.b16 %v967
      %v1840 = vunpack.c.l.b16 %v968
      %v1841 = vunpack.c.l.b16 %v969
      %v1842 = vunpack.c.l.b16 %v970
      %v1843 = vunpack.c.l.b16 %v971
      %v1844 = vunpack.c.l.b16 %v972
      %v1845 = vunpack.c.l.b16 %v973
      %v1846 = vunpack.c.l.b16 %v974
      %v1847 = vunpack.c.l.b16 %v975
      %v1848 = vunpack.c.l.b16 %v976
      %v1849 = vunpack.c.l.b16 %v977
      %v1850 = vunpack.c.l.b16 %v978
      %v1851 = vunpack.c.l.b16 %v979
      %v1852 = vunpack.c.l.b16 %v980
      %v1853 = vunpack.c.l.b16 %v981
      %v1854 = vunpack.c.l.b16 %v982
      %v1855 = vunpack.c.l.b16 %v983
      %v1856 = vunpack.c.l.b16 %v984
      %v1857 = vunpack.c.l.b16 %v985
      %v1858 = vunpack.c.l.b16 %v986
      %v1859 = vunpack.c.l.b16 %v987
      %v1860 = vunpack.c.l.b16 %v988
      %v1861 = vunpack.c.l.b16 %v989
      %v1862 = vunpack.c.l.b16 %v990
      %v1863 = vpack.c.b16 %v1832, %v1831
      %v1864 = vpack.c.b16 %v1834, %v1833
      %v1865 = vpack.c.b16 %v1836, %v1835
      %v1866 = vpack.c.b16 %v1838, %v1837
      %v1867 = vpack.c.b16 %v1840, %v1839
      %v1868 = vpack.c.b16 %v1842, %v1841
      %v1869 = vpack.c.b16 %v1844, %v1843
      %v1870 = vpack.c.b16 %v1846, %v1845
      %v1871 = vpack.c.b16 %v1848, %v1847
      %v1872 = vpack.c.b16 %v1850, %v1849
      %v1873 = vpack.c.b16 %v1852, %v1851
      %v1874 = vpack.c.b16 %v1854, %v1853
      %v1875 = vpack.c.b16 %v1856, %v1855
      %v1876 = vpack.c.b16 %v1858, %v1857
      %v1877 = vpack.c.b16 %v1860, %v1859
      %v1878 = vpack.c.b16 %v1862, %v1861
      %v1881 = vunpack.c.l.b16 %v991
      %v1882 = vunpack.c.l.b16 %v992
      %v1883 = vpack.c.b16 %v1882, %v1881
      %v1885 = vsel %vm1657, %v1863, 0
      %v1888 = vsel %vm1657, %v1864, 0
      %v1891 = vsel %vm1657, %v1865, 0
      %v1894 = vsel %vm1657, %v1866, 0
      %v1897 = vsel %vm1657, %v1867, 0
      %v1900 = vsel %vm1657, %v1868, 0
      %v1903 = vsel %vm1657, %v1869, 0
      %v1906 = vsel %vm1657, %v1870, 0
      %v1909 = vsel %vm1657, %v1871, 0
      %v1912 = vsel %vm1657, %v1872, 0
      %v1915 = vsel %vm1657, %v1873, 0
      %v1918 = vsel %vm1657, %v1874, 0
      %v1921 = vsel %vm1657, %v1875, 0
      %v1924 = vsel %vm1657, %v1876, 0
      %v1927 = vsel %vm1657, %v1877, 0
      %v1930 = vsel %vm1657, %v1878, 0
      %v1933 = vsel %vm1706, %v1883, 0
      %1935 = vmatpush.bf16.msra.mxu0 0
      %1936 = vmatpush.bf16.msra.mxu0 0
      %1937 = vmatpush.bf16.msra.mxu0 0
      %1938 = vmatpush.bf16.msra.mxu0 0
      %1939 = vmatpush.bf16.msra.mxu0 0
      %1940 = vmatpush.bf16.msra.mxu0 0
      %1941 = vmatpush.bf16.msra.mxu0 0
      %1942 = vmatpush.bf16.msra.mxu0 %v1933
      %1943 = vmatmul.bf16.gmra.mxu0 %v1885
      %v1944 = vpop.f32.mrf.mxu0
      %v1945 = vadd.f32 %v1720, %v1944
      %v1946 = vpop.f32.mrf.mxu0
      %v1947 = vadd.f32 %v1722, %v1946
      %1948 = vmatmul.bf16.gmra.mxu0 %v1888
      %v1949 = vpop.f32.mrf.mxu0
      %v1950 = vadd.f32 %v1725, %v1949
      %v1951 = vpop.f32.mrf.mxu0
      %v1952 = vadd.f32 %v1727, %v1951
      %1953 = vmatmul.bf16.gmra.mxu0 %v1891
      %v1954 = vpop.f32.mrf.mxu0
      %v1955 = vadd.f32 %v1730, %v1954
      %v1956 = vpop.f32.mrf.mxu0
      %v1957 = vadd.f32 %v1732, %v1956
      %1958 = vmatmul.bf16.gmra.mxu0 %v1894
      %v1959 = vpop.f32.mrf.mxu0
      %v1960 = vadd.f32 %v1735, %v1959
      %v1961 = vpop.f32.mrf.mxu0
      %v1962 = vadd.f32 %v1737, %v1961
      %1963 = vmatmul.bf16.gmra.mxu0 %v1897
      %v1964 = vpop.f32.mrf.mxu0
      %v1965 = vadd.f32 %v1740, %v1964
      %v1966 = vpop.f32.mrf.mxu0
      %v1967 = vadd.f32 %v1742, %v1966
      %1968 = vmatmul.bf16.gmra.mxu0 %v1900
      %v1969 = vpop.f32.mrf.mxu0
      %v1970 = vadd.f32 %v1745, %v1969
      %v1971 = vpop.f32.mrf.mxu0
      %v1972 = vadd.f32 %v1747, %v1971
      %1973 = vmatmul.bf16.gmra.mxu0 %v1903
      %v1974 = vpop.f32.mrf.mxu0
      %v1975 = vadd.f32 %v1750, %v1974
      %v1976 = vpop.f32.mrf.mxu0
      %v1977 = vadd.f32 %v1752, %v1976
      %1978 = vmatmul.bf16.gmra.mxu0 %v1906
      %v1979 = vpop.f32.mrf.mxu0
      %v1980 = vadd.f32 %v1755, %v1979
      %v1981 = vpop.f32.mrf.mxu0
      %v1982 = vadd.f32 %v1757, %v1981
      %1983 = vmatmul.bf16.gmra.mxu0 %v1909
      %v1984 = vpop.f32.mrf.mxu0
      %v1985 = vadd.f32 %v1760, %v1984
      %v1986 = vpop.f32.mrf.mxu0
      %v1987 = vadd.f32 %v1762, %v1986
      %1988 = vmatmul.bf16.gmra.mxu0 %v1912
      %v1989 = vpop.f32.mrf.mxu0
      %v1990 = vadd.f32 %v1765, %v1989
      %v1991 = vpop.f32.mrf.mxu0
      %v1992 = vadd.f32 %v1767, %v1991
      %1993 = vmatmul.bf16.gmra.mxu0 %v1915
      %v1994 = vpop.f32.mrf.mxu0
      %v1995 = vadd.f32 %v1770, %v1994
      %v1996 = vpop.f32.mrf.mxu0
      %v1997 = vadd.f32 %v1772, %v1996
      %1998 = vmatmul.bf16.gmra.mxu0 %v1918
      %v1999 = vpop.f32.mrf.mxu0
      %v2000 = vadd.f32 %v1775, %v1999
      %v2001 = vpop.f32.mrf.mxu0
      %v2002 = vadd.f32 %v1777, %v2001
      %2003 = vmatmul.bf16.gmra.mxu0 %v1921
      %v2004 = vpop.f32.mrf.mxu0
      %v2005 = vadd.f32 %v1780, %v2004
      %v2006 = vpop.f32.mrf.mxu0
      %v2007 = vadd.f32 %v1782, %v2006
      %2008 = vmatmul.bf16.gmra.mxu0 %v1924
      %v2009 = vpop.f32.mrf.mxu0
      %v2010 = vadd.f32 %v1785, %v2009
      %v2011 = vpop.f32.mrf.mxu0
      %v2012 = vadd.f32 %v1787, %v2011
      %2013 = vmatmul.bf16.gmra.mxu0 %v1927
      %v2014 = vpop.f32.mrf.mxu0
      %v2015 = vadd.f32 %v1790, %v2014
      %v2016 = vpop.f32.mrf.mxu0
      %v2017 = vadd.f32 %v1792, %v2016
      %2018 = vmatmul.bf16.gmra.mxu0 %v1930
      %v2019 = vpop.f32.mrf.mxu0
      %v2020 = vadd.f32 %v1795, %v2019
      %v2021 = vpop.f32.mrf.mxu0
      %v2022 = vadd.f32 %v1797, %v2021
      %2023 = vdwg.mxu0
      %s2024 = scalar_lea.vmem [#allocation2], 48
      %v2025 = vld [vmem:[%s2024] sm:$0xff]
      %v2026 = vld [vmem:[%s2024 + $0x8] sm:$0xff]
      %v2027 = vld [vmem:[%s2024 + $0x18] sm:$0xff]
      %v2028 = vld [vmem:[%s2024 + $0x20] sm:$0xff]
      %v2029 = vld [vmem:[%s2024 + $0x30] sm:$0xff]
      %v2030 = vld [vmem:[%s2024 + $0x38] sm:$0xff]
      %v2031 = vld [vmem:[%s2024 + $0x48] sm:$0xff]
      %v2032 = vld [vmem:[%s2024 + $0x50] sm:$0xff]
      %v2033 = vld [vmem:[%s2024 + $0x60] sm:$0xff]
      %v2034 = vld [vmem:[%s2024 + $0x68] sm:$0xff]
      %v2035 = vld [vmem:[%s2024 + $0x78] sm:$0xff]
      %v2036 = vld [vmem:[%s2024 + $0x80] sm:$0xff]
      %v2037 = vld [vmem:[%s2024 + $0x90] sm:$0xff]
      %v2038 = vld [vmem:[%s2024 + $0x98] sm:$0xff]
      %v2039 = vld [vmem:[%s2024 + $0xa8] sm:$0xff]
      %v2040 = vld [vmem:[%s2024 + $0xb0] sm:$0xff]
      %v2041 = vld [vmem:[%s2024 + $0xc0] sm:$0xff]
      %v2042 = vld [vmem:[%s2024 + $0xc8] sm:$0xff]
      %v2043 = vld [vmem:[%s2024 + $0xd8] sm:$0xff]
      %v2044 = vld [vmem:[%s2024 + $0xe0] sm:$0xff]
      %v2045 = vld [vmem:[%s2024 + $0xf0] sm:$0xff]
      %v2046 = vld [vmem:[%s2024 + $0xf8] sm:$0xff]
      %v2047 = vld [vmem:[%s2024 + $0x108] sm:$0xff]
      %v2048 = vld [vmem:[%s2024 + $0x110] sm:$0xff]
      %v2049 = vld [vmem:[%s2024 + $0x120] sm:$0xff]
      %v2050 = vld [vmem:[%s2024 + $0x128] sm:$0xff]
      %v2051 = vld [vmem:[%s2024 + $0x138] sm:$0xff]
      %v2052 = vld [vmem:[%s2024 + $0x140] sm:$0xff]
      %v2053 = vld [vmem:[%s2024 + $0x150] sm:$0xff]
      %v2054 = vld [vmem:[%s2024 + $0x158] sm:$0xff]
      %v2055 = vld [vmem:[%s2024 + $0x168] sm:$0xff]
      %v2056 = vld [vmem:[%s2024 + $0x170] sm:$0xff]
      %v2057 = vpack.c.bf16 %v2025, %v2025
      %v2058 = vpack.c.bf16 %v2026, %v2026
      %v2059 = vpack.c.bf16 %v2027, %v2027
      %v2060 = vpack.c.bf16 %v2028, %v2028
      %v2061 = vpack.c.bf16 %v2029, %v2029
      %v2062 = vpack.c.bf16 %v2030, %v2030
      %v2063 = vpack.c.bf16 %v2031, %v2031
      %v2064 = vpack.c.bf16 %v2032, %v2032
      %v2065 = vpack.c.bf16 %v2033, %v2033
      %v2066 = vpack.c.bf16 %v2034, %v2034
      %v2067 = vpack.c.bf16 %v2035, %v2035
      %v2068 = vpack.c.bf16 %v2036, %v2036
      %v2069 = vpack.c.bf16 %v2037, %v2037
      %v2070 = vpack.c.bf16 %v2038, %v2038
      %v2071 = vpack.c.bf16 %v2039, %v2039
      %v2072 = vpack.c.bf16 %v2040, %v2040
      %v2073 = vpack.c.bf16 %v2041, %v2041
      %v2074 = vpack.c.bf16 %v2042, %v2042
      %v2075 = vpack.c.bf16 %v2043, %v2043
      %v2076 = vpack.c.bf16 %v2044, %v2044
      %v2077 = vpack.c.bf16 %v2045, %v2045
      %v2078 = vpack.c.bf16 %v2046, %v2046
      %v2079 = vpack.c.bf16 %v2047, %v2047
      %v2080 = vpack.c.bf16 %v2048, %v2048
      %v2081 = vpack.c.bf16 %v2049, %v2049
      %v2082 = vpack.c.bf16 %v2050, %v2050
      %v2083 = vpack.c.bf16 %v2051, %v2051
      %v2084 = vpack.c.bf16 %v2052, %v2052
      %v2085 = vpack.c.bf16 %v2053, %v2053
      %v2086 = vpack.c.bf16 %v2054, %v2054
      %v2087 = vpack.c.bf16 %v2055, %v2055
      %v2088 = vpack.c.bf16 %v2056, %v2056
      %2089 = vst.msk [vmem:[#allocation4] sm:$0xf] %vm476, %v2057
      %2090 = vst.msk [vmem:[#allocation4 + $0x4] sm:$0xf] %vm476, %v2058
      %2091 = vst.msk [vmem:[#allocation4 + $0x8] sm:$0xf] %vm476, %v2059
      %2092 = vst.msk [vmem:[#allocation4 + $0xc] sm:$0xf] %vm476, %v2060
      %2093 = vst.msk [vmem:[#allocation4 + $0x10] sm:$0xf] %vm476, %v2061
      %2094 = vst.msk [vmem:[#allocation4 + $0x14] sm:$0xf] %vm476, %v2062
      %2095 = vst.msk [vmem:[#allocation4 + $0x18] sm:$0xf] %vm476, %v2063
      %2096 = vst.msk [vmem:[#allocation4 + $0x1c] sm:$0xf] %vm476, %v2064
      %2097 = vst.msk [vmem:[#allocation4 + $0x20] sm:$0xf] %vm476, %v2065
      %2098 = vst.msk [vmem:[#allocation4 + $0x24] sm:$0xf] %vm476, %v2066
      %2099 = vst.msk [vmem:[#allocation4 + $0x28] sm:$0xf] %vm476, %v2067
      %2100 = vst.msk [vmem:[#allocation4 + $0x2c] sm:$0xf] %vm476, %v2068
      %2101 = vst.msk [vmem:[#allocation4 + $0x30] sm:$0xf] %vm476, %v2069
      %2102 = vst.msk [vmem:[#allocation4 + $0x34] sm:$0xf] %vm476, %v2070
      %2103 = vst.msk [vmem:[#allocation4 + $0x38] sm:$0xf] %vm476, %v2071
      %2104 = vst.msk [vmem:[#allocation4 + $0x3c] sm:$0xf] %vm476, %v2072
      %2105 = vst.msk [vmem:[#allocation4 + $0x40] sm:$0xf] %vm476, %v2073
      %2106 = vst.msk [vmem:[#allocation4 + $0x44] sm:$0xf] %vm476, %v2074
      %2107 = vst.msk [vmem:[#allocation4 + $0x48] sm:$0xf] %vm476, %v2075
      %2108 = vst.msk [vmem:[#allocation4 + $0x4c] sm:$0xf] %vm476, %v2076
      %2109 = vst.msk [vmem:[#allocation4 + $0x50] sm:$0xf] %vm476, %v2077
      %2110 = vst.msk [vmem:[#allocation4 + $0x54] sm:$0xf] %vm476, %v2078
      %2111 = vst.msk [vmem:[#allocation4 + $0x58] sm:$0xf] %vm476, %v2079
      %2112 = vst.msk [vmem:[#allocation4 + $0x5c] sm:$0xf] %vm476, %v2080
      %2113 = vst.msk [vmem:[#allocation4 + $0x60] sm:$0xf] %vm476, %v2081
      %2114 = vst.msk [vmem:[#allocation4 + $0x64] sm:$0xf] %vm476, %v2082
      %2115 = vst.msk [vmem:[#allocation4 + $0x68] sm:$0xf] %vm476, %v2083
      %2116 = vst.msk [vmem:[#allocation4 + $0x6c] sm:$0xf] %vm476, %v2084
      %2117 = vst.msk [vmem:[#allocation4 + $0x70] sm:$0xf] %vm476, %v2085
      %2118 = vst.msk [vmem:[#allocation4 + $0x74] sm:$0xf] %vm476, %v2086
      %2119 = vst.msk [vmem:[#allocation4 + $0x78] sm:$0xf] %vm476, %v2087
      %2120 = vst.msk [vmem:[#allocation4 + $0x7c] sm:$0xf] %vm476, %v2088
      %v2121 = vld [vmem:[%s2024 + $0x1] sm:$0xff]
      %v2122 = vld [vmem:[%s2024 + $0x9] sm:$0xff]
      %v2123 = vld [vmem:[%s2024 + $0x19] sm:$0xff]
      %v2124 = vld [vmem:[%s2024 + $0x21] sm:$0xff]
      %v2125 = vld [vmem:[%s2024 + $0x31] sm:$0xff]
      %v2126 = vld [vmem:[%s2024 + $0x39] sm:$0xff]
      %v2127 = vld [vmem:[%s2024 + $0x49] sm:$0xff]
      %v2128 = vld [vmem:[%s2024 + $0x51] sm:$0xff]
      %v2129 = vld [vmem:[%s2024 + $0x61] sm:$0xff]
      %v2130 = vld [vmem:[%s2024 + $0x69] sm:$0xff]
      %v2131 = vld [vmem:[%s2024 + $0x79] sm:$0xff]
      %v2132 = vld [vmem:[%s2024 + $0x81] sm:$0xff]
      %v2133 = vld [vmem:[%s2024 + $0x91] sm:$0xff]
      %v2134 = vld [vmem:[%s2024 + $0x99] sm:$0xff]
      %v2135 = vld [vmem:[%s2024 + $0xa9] sm:$0xff]
      %v2136 = vld [vmem:[%s2024 + $0xb1] sm:$0xff]
      %v2137 = vld [vmem:[%s2024 + $0xc1] sm:$0xff]
      %v2138 = vld [vmem:[%s2024 + $0xc9] sm:$0xff]
      %v2139 = vld [vmem:[%s2024 + $0xd9] sm:$0xff]
      %v2140 = vld [vmem:[%s2024 + $0xe1] sm:$0xff]
      %v2141 = vld [vmem:[%s2024 + $0xf1] sm:$0xff]
      %v2142 = vld [vmem:[%s2024 + $0xf9] sm:$0xff]
      %v2143 = vld [vmem:[%s2024 + $0x109] sm:$0xff]
      %v2144 = vld [vmem:[%s2024 + $0x111] sm:$0xff]
      %v2145 = vld [vmem:[%s2024 + $0x121] sm:$0xff]
      %v2146 = vld [vmem:[%s2024 + $0x129] sm:$0xff]
      %v2147 = vld [vmem:[%s2024 + $0x139] sm:$0xff]
      %v2148 = vld [vmem:[%s2024 + $0x141] sm:$0xff]
      %v2149 = vld [vmem:[%s2024 + $0x151] sm:$0xff]
      %v2150 = vld [vmem:[%s2024 + $0x159] sm:$0xff]
      %v2151 = vld [vmem:[%s2024 + $0x169] sm:$0xff]
      %v2152 = vld [vmem:[%s2024 + $0x171] sm:$0xff]
      %v2153 = vpack.c.bf16 %v2121, %v2121
      %v2154 = vpack.c.bf16 %v2122, %v2122
      %v2155 = vpack.c.bf16 %v2123, %v2123
      %v2156 = vpack.c.bf16 %v2124, %v2124
      %v2157 = vpack.c.bf16 %v2125, %v2125
      %v2158 = vpack.c.bf16 %v2126, %v2126
      %v2159 = vpack.c.bf16 %v2127, %v2127
      %v2160 = vpack.c.bf16 %v2128, %v2128
      %v2161 = vpack.c.bf16 %v2129, %v2129
      %v2162 = vpack.c.bf16 %v2130, %v2130
      %v2163 = vpack.c.bf16 %v2131, %v2131
      %v2164 = vpack.c.bf16 %v2132, %v2132
      %v2165 = vpack.c.bf16 %v2133, %v2133
      %v2166 = vpack.c.bf16 %v2134, %v2134
      %v2167 = vpack.c.bf16 %v2135, %v2135
      %v2168 = vpack.c.bf16 %v2136, %v2136
      %v2169 = vpack.c.bf16 %v2137, %v2137
      %v2170 = vpack.c.bf16 %v2138, %v2138
      %v2171 = vpack.c.bf16 %v2139, %v2139
      %v2172 = vpack.c.bf16 %v2140, %v2140
      %v2173 = vpack.c.bf16 %v2141, %v2141
      %v2174 = vpack.c.bf16 %v2142, %v2142
      %v2175 = vpack.c.bf16 %v2143, %v2143
      %v2176 = vpack.c.bf16 %v2144, %v2144
      %v2177 = vpack.c.bf16 %v2145, %v2145
      %v2178 = vpack.c.bf16 %v2146, %v2146
      %v2179 = vpack.c.bf16 %v2147, %v2147
      %v2180 = vpack.c.bf16 %v2148, %v2148
      %v2181 = vpack.c.bf16 %v2149, %v2149
      %v2182 = vpack.c.bf16 %v2150, %v2150
      %v2183 = vpack.c.bf16 %v2151, %v2151
      %v2184 = vpack.c.bf16 %v2152, %v2152
      %2217 = vrot.lane.b32.xlu0 %v2153, 4
      %v2218 = vpop.permute.xlu0 %2217
      %2219 = vrot.lane.b32.xlu0 %v2154, 4
      %v2220 = vpop.permute.xlu0 %2219
      %2221 = vrot.lane.b32.xlu0 %v2155, 4
      %v2222 = vpop.permute.xlu0 %2221
      %2223 = vrot.lane.b32.xlu0 %v2156, 4
      %v2224 = vpop.permute.xlu0 %2223
      %2225 = vrot.lane.b32.xlu0 %v2157, 4
      %v2226 = vpop.permute.xlu0 %2225
      %2227 = vrot.lane.b32.xlu0 %v2158, 4
      %v2228 = vpop.permute.xlu0 %2227
      %2229 = vrot.lane.b32.xlu0 %v2159, 4
      %v2230 = vpop.permute.xlu0 %2229
      %2231 = vrot.lane.b32.xlu0 %v2160, 4
      %v2232 = vpop.permute.xlu0 %2231
      %2233 = vrot.lane.b32.xlu0 %v2161, 4
      %v2234 = vpop.permute.xlu0 %2233
      %2235 = vrot.lane.b32.xlu0 %v2162, 4
      %v2236 = vpop.permute.xlu0 %2235
      %2237 = vrot.lane.b32.xlu0 %v2163, 4
      %v2238 = vpop.permute.xlu0 %2237
      %2239 = vrot.lane.b32.xlu0 %v2164, 4
      %v2240 = vpop.permute.xlu0 %2239
      %2241 = vrot.lane.b32.xlu0 %v2165, 4
      %v2242 = vpop.permute.xlu0 %2241
      %2243 = vrot.lane.b32.xlu0 %v2166, 4
      %v2244 = vpop.permute.xlu0 %2243
      %2245 = vrot.lane.b32.xlu0 %v2167, 4
      %v2246 = vpop.permute.xlu0 %2245
      %2247 = vrot.lane.b32.xlu0 %v2168, 4
      %v2248 = vpop.permute.xlu0 %2247
      %2249 = vrot.lane.b32.xlu0 %v2169, 4
      %v2250 = vpop.permute.xlu0 %2249
      %2251 = vrot.lane.b32.xlu0 %v2170, 4
      %v2252 = vpop.permute.xlu0 %2251
      %2253 = vrot.lane.b32.xlu0 %v2171, 4
      %v2254 = vpop.permute.xlu0 %2253
      %2255 = vrot.lane.b32.xlu0 %v2172, 4
      %v2256 = vpop.permute.xlu0 %2255
      %2257 = vrot.lane.b32.xlu0 %v2173, 4
      %v2258 = vpop.permute.xlu0 %2257
      %2259 = vrot.lane.b32.xlu0 %v2174, 4
      %v2260 = vpop.permute.xlu0 %2259
      %2261 = vrot.lane.b32.xlu0 %v2175, 4
      %v2262 = vpop.permute.xlu0 %2261
      %2263 = vrot.lane.b32.xlu0 %v2176, 4
      %v2264 = vpop.permute.xlu0 %2263
      %2265 = vrot.lane.b32.xlu0 %v2177, 4
      %v2266 = vpop.permute.xlu0 %2265
      %2267 = vrot.lane.b32.xlu0 %v2178, 4
      %v2268 = vpop.permute.xlu0 %2267
      %2269 = vrot.lane.b32.xlu0 %v2179, 4
      %v2270 = vpop.permute.xlu0 %2269
      %2271 = vrot.lane.b32.xlu0 %v2180, 4
      %v2272 = vpop.permute.xlu0 %2271
      %2273 = vrot.lane.b32.xlu0 %v2181, 4
      %v2274 = vpop.permute.xlu0 %2273
      %2275 = vrot.lane.b32.xlu0 %v2182, 4
      %v2276 = vpop.permute.xlu0 %2275
      %2277 = vrot.lane.b32.xlu0 %v2183, 4
      %v2278 = vpop.permute.xlu0 %2277
      %2279 = vrot.lane.b32.xlu0 %v2184, 4
      %v2280 = vpop.permute.xlu0 %2279
      %2313 = vst.msk [vmem:[#allocation4] sm:$0xf] %vm701, %v2218
      %2314 = vst.msk [vmem:[#allocation4 + $0x4] sm:$0xf] %vm701, %v2220
      %2315 = vst.msk [vmem:[#allocation4 + $0x8] sm:$0xf] %vm701, %v2222
      %2316 = vst.msk [vmem:[#allocation4 + $0xc] sm:$0xf] %vm701, %v2224
      %2317 = vst.msk [vmem:[#allocation4 + $0x10] sm:$0xf] %vm701, %v2226
      %2318 = vst.msk [vmem:[#allocation4 + $0x14] sm:$0xf] %vm701, %v2228
      %2319 = vst.msk [vmem:[#allocation4 + $0x18] sm:$0xf] %vm701, %v2230
      %2320 = vst.msk [vmem:[#allocation4 + $0x1c] sm:$0xf] %vm701, %v2232
      %2321 = vst.msk [vmem:[#allocation4 + $0x20] sm:$0xf] %vm701, %v2234
      %2322 = vst.msk [vmem:[#allocation4 + $0x24] sm:$0xf] %vm701, %v2236
      %2323 = vst.msk [vmem:[#allocation4 + $0x28] sm:$0xf] %vm701, %v2238
      %2324 = vst.msk [vmem:[#allocation4 + $0x2c] sm:$0xf] %vm701, %v2240
      %2325 = vst.msk [vmem:[#allocation4 + $0x30] sm:$0xf] %vm701, %v2242
      %2326 = vst.msk [vmem:[#allocation4 + $0x34] sm:$0xf] %vm701, %v2244
      %2327 = vst.msk [vmem:[#allocation4 + $0x38] sm:$0xf] %vm701, %v2246
      %2328 = vst.msk [vmem:[#allocation4 + $0x3c] sm:$0xf] %vm701, %v2248
      %2329 = vst.msk [vmem:[#allocation4 + $0x40] sm:$0xf] %vm701, %v2250
      %2330 = vst.msk [vmem:[#allocation4 + $0x44] sm:$0xf] %vm701, %v2252
      %2331 = vst.msk [vmem:[#allocation4 + $0x48] sm:$0xf] %vm701, %v2254
      %2332 = vst.msk [vmem:[#allocation4 + $0x4c] sm:$0xf] %vm701, %v2256
      %2333 = vst.msk [vmem:[#allocation4 + $0x50] sm:$0xf] %vm701, %v2258
      %2334 = vst.msk [vmem:[#allocation4 + $0x54] sm:$0xf] %vm701, %v2260
      %2335 = vst.msk [vmem:[#allocation4 + $0x58] sm:$0xf] %vm701, %v2262
      %2336 = vst.msk [vmem:[#allocation4 + $0x5c] sm:$0xf] %vm701, %v2264
      %2337 = vst.msk [vmem:[#allocation4 + $0x60] sm:$0xf] %vm701, %v2266
      %2338 = vst.msk [vmem:[#allocation4 + $0x64] sm:$0xf] %vm701, %v2268
      %2339 = vst.msk [vmem:[#allocation4 + $0x68] sm:$0xf] %vm701, %v2270
      %2340 = vst.msk [vmem:[#allocation4 + $0x6c] sm:$0xf] %vm701, %v2272
      %2341 = vst.msk [vmem:[#allocation4 + $0x70] sm:$0xf] %vm701, %v2274
      %2342 = vst.msk [vmem:[#allocation4 + $0x74] sm:$0xf] %vm701, %v2276
      %2343 = vst.msk [vmem:[#allocation4 + $0x78] sm:$0xf] %vm701, %v2278
      %2344 = vst.msk [vmem:[#allocation4 + $0x7c] sm:$0xf] %vm701, %v2280
      %v2345 = vld [vmem:[%s2024 + $0x2] sm:$0xff]
      %v2346 = vld [vmem:[%s2024 + $0xa] sm:$0xff]
      %v2347 = vld [vmem:[%s2024 + $0x1a] sm:$0xff]
      %v2348 = vld [vmem:[%s2024 + $0x22] sm:$0xff]
      %v2349 = vld [vmem:[%s2024 + $0x32] sm:$0xff]
      %v2350 = vld [vmem:[%s2024 + $0x3a] sm:$0xff]
      %v2351 = vld [vmem:[%s2024 + $0x4a] sm:$0xff]
      %v2352 = vld [vmem:[%s2024 + $0x52] sm:$0xff]
      %v2353 = vld [vmem:[%s2024 + $0x62] sm:$0xff]
      %v2354 = vld [vmem:[%s2024 + $0x6a] sm:$0xff]
      %v2355 = vld [vmem:[%s2024 + $0x7a] sm:$0xff]
      %v2356 = vld [vmem:[%s2024 + $0x82] sm:$0xff]
      %v2357 = vld [vmem:[%s2024 + $0x92] sm:$0xff]
      %v2358 = vld [vmem:[%s2024 + $0x9a] sm:$0xff]
      %v2359 = vld [vmem:[%s2024 + $0xaa] sm:$0xff]
      %v2360 = vld [vmem:[%s2024 + $0xb2] sm:$0xff]
      %v2361 = vld [vmem:[%s2024 + $0xc2] sm:$0xff]
      %v2362 = vld [vmem:[%s2024 + $0xca] sm:$0xff]
      %v2363 = vld [vmem:[%s2024 + $0xda] sm:$0xff]
      %v2364 = vld [vmem:[%s2024 + $0xe2] sm:$0xff]
      %v2365 = vld [vmem:[%s2024 + $0xf2] sm:$0xff]
      %v2366 = vld [vmem:[%s2024 + $0xfa] sm:$0xff]
      %v2367 = vld [vmem:[%s2024 + $0x10a] sm:$0xff]
      %v2368 = vld [vmem:[%s2024 + $0x112] sm:$0xff]
      %v2369 = vld [vmem:[%s2024 + $0x122] sm:$0xff]
      %v2370 = vld [vmem:[%s2024 + $0x12a] sm:$0xff]
      %v2371 = vld [vmem:[%s2024 + $0x13a] sm:$0xff]
      %v2372 = vld [vmem:[%s2024 + $0x142] sm:$0xff]
      %v2373 = vld [vmem:[%s2024 + $0x152] sm:$0xff]
      %v2374 = vld [vmem:[%s2024 + $0x15a] sm:$0xff]
      %v2375 = vld [vmem:[%s2024 + $0x16a] sm:$0xff]
      %v2376 = vld [vmem:[%s2024 + $0x172] sm:$0xff]
      %v2377 = vpack.c.bf16 %v2345, %v2345
      %v2378 = vpack.c.bf16 %v2346, %v2346
      %v2379 = vpack.c.bf16 %v2347, %v2347
      %v2380 = vpack.c.bf16 %v2348, %v2348
      %v2381 = vpack.c.bf16 %v2349, %v2349
      %v2382 = vpack.c.bf16 %v2350, %v2350
      %v2383 = vpack.c.bf16 %v2351, %v2351
      %v2384 = vpack.c.bf16 %v2352, %v2352
      %v2385 = vpack.c.bf16 %v2353, %v2353
      %v2386 = vpack.c.bf16 %v2354, %v2354
      %v2387 = vpack.c.bf16 %v2355, %v2355
      %v2388 = vpack.c.bf16 %v2356, %v2356
      %v2389 = vpack.c.bf16 %v2357, %v2357
      %v2390 = vpack.c.bf16 %v2358, %v2358
      %v2391 = vpack.c.bf16 %v2359, %v2359
      %v2392 = vpack.c.bf16 %v2360, %v2360
      %v2393 = vpack.c.bf16 %v2361, %v2361
      %v2394 = vpack.c.bf16 %v2362, %v2362
      %v2395 = vpack.c.bf16 %v2363, %v2363
      %v2396 = vpack.c.bf16 %v2364, %v2364
      %v2397 = vpack.c.bf16 %v2365, %v2365
      %v2398 = vpack.c.bf16 %v2366, %v2366
      %v2399 = vpack.c.bf16 %v2367, %v2367
      %v2400 = vpack.c.bf16 %v2368, %v2368
      %v2401 = vpack.c.bf16 %v2369, %v2369
      %v2402 = vpack.c.bf16 %v2370, %v2370
      %v2403 = vpack.c.bf16 %v2371, %v2371
      %v2404 = vpack.c.bf16 %v2372, %v2372
      %v2405 = vpack.c.bf16 %v2373, %v2373
      %v2406 = vpack.c.bf16 %v2374, %v2374
      %v2407 = vpack.c.bf16 %v2375, %v2375
      %v2408 = vpack.c.bf16 %v2376, %v2376
      %2441 = vrot.lane.b32.xlu0 %v2377, 8
      %v2442 = vpop.permute.xlu0 %2441
      %2443 = vrot.lane.b32.xlu0 %v2378, 8
      %v2444 = vpop.permute.xlu0 %2443
      %2445 = vrot.lane.b32.xlu0 %v2379, 8
      %v2446 = vpop.permute.xlu0 %2445
      %2447 = vrot.lane.b32.xlu0 %v2380, 8
      %v2448 = vpop.permute.xlu0 %2447
      %2449 = vrot.lane.b32.xlu0 %v2381, 8
      %v2450 = vpop.permute.xlu0 %2449
      %2451 = vrot.lane.b32.xlu0 %v2382, 8
      %v2452 = vpop.permute.xlu0 %2451
      %2453 = vrot.lane.b32.xlu0 %v2383, 8
      %v2454 = vpop.permute.xlu0 %2453
      %2455 = vrot.lane.b32.xlu0 %v2384, 8
      %v2456 = vpop.permute.xlu0 %2455
      %2457 = vrot.lane.b32.xlu0 %v2385, 8
      %v2458 = vpop.permute.xlu0 %2457
      %2459 = vrot.lane.b32.xlu0 %v2386, 8
      %v2460 = vpop.permute.xlu0 %2459
      %2461 = vrot.lane.b32.xlu0 %v2387, 8
      %v2462 = vpop.permute.xlu0 %2461
      %2463 = vrot.lane.b32.xlu0 %v2388, 8
      %v2464 = vpop.permute.xlu0 %2463
      %2465 = vrot.lane.b32.xlu0 %v2389, 8
      %v2466 = vpop.permute.xlu0 %2465
      %2467 = vrot.lane.b32.xlu0 %v2390, 8
      %v2468 = vpop.permute.xlu0 %2467
      %2469 = vrot.lane.b32.xlu0 %v2391, 8
      %v2470 = vpop.permute.xlu0 %2469
      %2471 = vrot.lane.b32.xlu0 %v2392, 8
      %v2472 = vpop.permute.xlu0 %2471
      %2473 = vrot.lane.b32.xlu0 %v2393, 8
      %v2474 = vpop.permute.xlu0 %2473
      %2475 = vrot.lane.b32.xlu0 %v2394, 8
      %v2476 = vpop.permute.xlu0 %2475
      %2477 = vrot.lane.b32.xlu0 %v2395, 8
      %v2478 = vpop.permute.xlu0 %2477
      %2479 = vrot.lane.b32.xlu0 %v2396, 8
      %v2480 = vpop.permute.xlu0 %2479
      %2481 = vrot.lane.b32.xlu0 %v2397, 8
      %v2482 = vpop.permute.xlu0 %2481
      %2483 = vrot.lane.b32.xlu0 %v2398, 8
      %v2484 = vpop.permute.xlu0 %2483
      %2485 = vrot.lane.b32.xlu0 %v2399, 8
      %v2486 = vpop.permute.xlu0 %2485
      %2487 = vrot.lane.b32.xlu0 %v2400, 8
      %v2488 = vpop.permute.xlu0 %2487
      %2489 = vrot.lane.b32.xlu0 %v2401, 8
      %v2490 = vpop.permute.xlu0 %2489
      %2491 = vrot.lane.b32.xlu0 %v2402, 8
      %v2492 = vpop.permute.xlu0 %2491
      %2493 = vrot.lane.b32.xlu0 %v2403, 8
      %v2494 = vpop.permute.xlu0 %2493
      %2495 = vrot.lane.b32.xlu0 %v2404, 8
      %v2496 = vpop.permute.xlu0 %2495
      %2497 = vrot.lane.b32.xlu0 %v2405, 8
      %v2498 = vpop.permute.xlu0 %2497
      %2499 = vrot.lane.b32.xlu0 %v2406, 8
      %v2500 = vpop.permute.xlu0 %2499
      %2501 = vrot.lane.b32.xlu0 %v2407, 8
      %v2502 = vpop.permute.xlu0 %2501
      %2503 = vrot.lane.b32.xlu0 %v2408, 8
      %v2504 = vpop.permute.xlu0 %2503
      %2537 = vst.msk [vmem:[#allocation4] sm:$0xf] %vm926, %v2442
      %2538 = vst.msk [vmem:[#allocation4 + $0x4] sm:$0xf] %vm926, %v2444
      %2539 = vst.msk [vmem:[#allocation4 + $0x8] sm:$0xf] %vm926, %v2446
      %2540 = vst.msk [vmem:[#allocation4 + $0xc] sm:$0xf] %vm926, %v2448
      %2541 = vst.msk [vmem:[#allocation4 + $0x10] sm:$0xf] %vm926, %v2450
      %2542 = vst.msk [vmem:[#allocation4 + $0x14] sm:$0xf] %vm926, %v2452
      %2543 = vst.msk [vmem:[#allocation4 + $0x18] sm:$0xf] %vm926, %v2454
      %2544 = vst.msk [vmem:[#allocation4 + $0x1c] sm:$0xf] %vm926, %v2456
      %2545 = vst.msk [vmem:[#allocation4 + $0x20] sm:$0xf] %vm926, %v2458
      %2546 = vst.msk [vmem:[#allocation4 + $0x24] sm:$0xf] %vm926, %v2460
      %2547 = vst.msk [vmem:[#allocation4 + $0x28] sm:$0xf] %vm926, %v2462
      %2548 = vst.msk [vmem:[#allocation4 + $0x2c] sm:$0xf] %vm926, %v2464
      %2549 = vst.msk [vmem:[#allocation4 + $0x30] sm:$0xf] %vm926, %v2466
      %2550 = vst.msk [vmem:[#allocation4 + $0x34] sm:$0xf] %vm926, %v2468
      %2551 = vst.msk [vmem:[#allocation4 + $0x38] sm:$0xf] %vm926, %v2470
      %2552 = vst.msk [vmem:[#allocation4 + $0x3c] sm:$0xf] %vm926, %v2472
      %2553 = vst.msk [vmem:[#allocation4 + $0x40] sm:$0xf] %vm926, %v2474
      %2554 = vst.msk [vmem:[#allocation4 + $0x44] sm:$0xf] %vm926, %v2476
      %2555 = vst.msk [vmem:[#allocation4 + $0x48] sm:$0xf] %vm926, %v2478
      %2556 = vst.msk [vmem:[#allocation4 + $0x4c] sm:$0xf] %vm926, %v2480
      %2557 = vst.msk [vmem:[#allocation4 + $0x50] sm:$0xf] %vm926, %v2482
      %2558 = vst.msk [vmem:[#allocation4 + $0x54] sm:$0xf] %vm926, %v2484
      %2559 = vst.msk [vmem:[#allocation4 + $0x58] sm:$0xf] %vm926, %v2486
      %2560 = vst.msk [vmem:[#allocation4 + $0x5c] sm:$0xf] %vm926, %v2488
      %2561 = vst.msk [vmem:[#allocation4 + $0x60] sm:$0xf] %vm926, %v2490
      %2562 = vst.msk [vmem:[#allocation4 + $0x64] sm:$0xf] %vm926, %v2492
      %2563 = vst.msk [vmem:[#allocation4 + $0x68] sm:$0xf] %vm926, %v2494
      %2564 = vst.msk [vmem:[#allocation4 + $0x6c] sm:$0xf] %vm926, %v2496
      %2565 = vst.msk [vmem:[#allocation4 + $0x70] sm:$0xf] %vm926, %v2498
      %2566 = vst.msk [vmem:[#allocation4 + $0x74] sm:$0xf] %vm926, %v2500
      %2567 = vst.msk [vmem:[#allocation4 + $0x78] sm:$0xf] %vm926, %v2502
      %2568 = vst.msk [vmem:[#allocation4 + $0x7c] sm:$0xf] %vm926, %v2504
      %v2569 = vld [vmem:[#allocation4] sm:$0xf]
      %v2570 = vld [vmem:[#allocation4 + $0x4] sm:$0xf]
      %v2571 = vld [vmem:[#allocation4 + $0x8] sm:$0xf]
      %v2572 = vld [vmem:[#allocation4 + $0xc] sm:$0xf]
      %v2573 = vld [vmem:[#allocation4 + $0x10] sm:$0xf]
      %v2574 = vld [vmem:[#allocation4 + $0x14] sm:$0xf]
      %v2575 = vld [vmem:[#allocation4 + $0x18] sm:$0xf]
      %v2576 = vld [vmem:[#allocation4 + $0x1c] sm:$0xf]
      %v2577 = vld [vmem:[#allocation4 + $0x20] sm:$0xf]
      %v2578 = vld [vmem:[#allocation4 + $0x24] sm:$0xf]
      %v2579 = vld [vmem:[#allocation4 + $0x28] sm:$0xf]
      %v2580 = vld [vmem:[#allocation4 + $0x2c] sm:$0xf]
      %v2581 = vld [vmem:[#allocation4 + $0x30] sm:$0xf]
      %v2582 = vld [vmem:[#allocation4 + $0x34] sm:$0xf]
      %v2583 = vld [vmem:[#allocation4 + $0x38] sm:$0xf]
      %v2584 = vld [vmem:[#allocation4 + $0x3c] sm:$0xf]
      %v2585 = vld [vmem:[#allocation4 + $0x40] sm:$0xf]
      %v2586 = vld [vmem:[#allocation4 + $0x44] sm:$0xf]
      %v2587 = vld [vmem:[#allocation4 + $0x48] sm:$0xf]
      %v2588 = vld [vmem:[#allocation4 + $0x4c] sm:$0xf]
      %v2589 = vld [vmem:[#allocation4 + $0x50] sm:$0xf]
      %v2590 = vld [vmem:[#allocation4 + $0x54] sm:$0xf]
      %v2591 = vld [vmem:[#allocation4 + $0x58] sm:$0xf]
      %v2592 = vld [vmem:[#allocation4 + $0x5c] sm:$0xf]
      %v2593 = vld [vmem:[#allocation4 + $0x60] sm:$0xf]
      %v2594 = vld [vmem:[#allocation4 + $0x64] sm:$0xf]
      %v2595 = vld [vmem:[#allocation4 + $0x68] sm:$0xf]
      %v2596 = vld [vmem:[#allocation4 + $0x6c] sm:$0xf]
      %v2597 = vld [vmem:[#allocation4 + $0x70] sm:$0xf]
      %v2598 = vld [vmem:[#allocation4 + $0x74] sm:$0xf]
      %v2599 = vld [vmem:[#allocation4 + $0x78] sm:$0xf]
      %v2600 = vld [vmem:[#allocation4 + $0x7c] sm:$0xf]
      %v2601 = vld [vmem:[%s1 + $0xc] sm:$0xf]
      %v2602 = vld [vmem:[%s1 + $0x10] sm:$0x3]
      %v2635 = vunpack.c.l.b16 %v2569
      %v2636 = vunpack.c.l.b16 %v2570
      %v2637 = vunpack.c.l.b16 %v2571
      %v2638 = vunpack.c.l.b16 %v2572
      %v2639 = vunpack.c.l.b16 %v2573
      %v2640 = vunpack.c.l.b16 %v2574
      %v2641 = vunpack.c.l.b16 %v2575
      %v2642 = vunpack.c.l.b16 %v2576
      %v2643 = vunpack.c.l.b16 %v2577
      %v2644 = vunpack.c.l.b16 %v2578
      %v2645 = vunpack.c.l.b16 %v2579
      %v2646 = vunpack.c.l.b16 %v2580
      %v2647 = vunpack.c.l.b16 %v2581
      %v2648 = vunpack.c.l.b16 %v2582
      %v2649 = vunpack.c.l.b16 %v2583
      %v2650 = vunpack.c.l.b16 %v2584
      %v2651 = vunpack.c.l.b16 %v2585
      %v2652 = vunpack.c.l.b16 %v2586
      %v2653 = vunpack.c.l.b16 %v2587
      %v2654 = vunpack.c.l.b16 %v2588
      %v2655 = vunpack.c.l.b16 %v2589
      %v2656 = vunpack.c.l.b16 %v2590
      %v2657 = vunpack.c.l.b16 %v2591
      %v2658 = vunpack.c.l.b16 %v2592
      %v2659 = vunpack.c.l.b16 %v2593
      %v2660 = vunpack.c.l.b16 %v2594
      %v2661 = vunpack.c.l.b16 %v2595
      %v2662 = vunpack.c.l.b16 %v2596
      %v2663 = vunpack.c.l.b16 %v2597
      %v2664 = vunpack.c.l.b16 %v2598
      %v2665 = vunpack.c.l.b16 %v2599
      %v2666 = vunpack.c.l.b16 %v2600
      %v2667 = vpack.c.b16 %v2636, %v2635
      %v2668 = vpack.c.b16 %v2638, %v2637
      %v2669 = vpack.c.b16 %v2640, %v2639
      %v2670 = vpack.c.b16 %v2642, %v2641
      %v2671 = vpack.c.b16 %v2644, %v2643
      %v2672 = vpack.c.b16 %v2646, %v2645
      %v2673 = vpack.c.b16 %v2648, %v2647
      %v2674 = vpack.c.b16 %v2650, %v2649
      %v2675 = vpack.c.b16 %v2652, %v2651
      %v2676 = vpack.c.b16 %v2654, %v2653
      %v2677 = vpack.c.b16 %v2656, %v2655
      %v2678 = vpack.c.b16 %v2658, %v2657
      %v2679 = vpack.c.b16 %v2660, %v2659
      %v2680 = vpack.c.b16 %v2662, %v2661
      %v2681 = vpack.c.b16 %v2664, %v2663
      %v2682 = vpack.c.b16 %v2666, %v2665
      %v2685 = vunpack.c.l.b16 %v2601
      %v2686 = vunpack.c.l.b16 %v2602
      %v2687 = vpack.c.b16 %v2686, %v2685
      %v2689 = vsel %vm1657, %v2667, 0
      %v2692 = vsel %vm1657, %v2668, 0
      %v2695 = vsel %vm1657, %v2669, 0
      %v2698 = vsel %vm1657, %v2670, 0
      %v2701 = vsel %vm1657, %v2671, 0
      %v2704 = vsel %vm1657, %v2672, 0
      %v2707 = vsel %vm1657, %v2673, 0
      %v2710 = vsel %vm1657, %v2674, 0
      %v2713 = vsel %vm1657, %v2675, 0
      %v2716 = vsel %vm1657, %v2676, 0
      %v2719 = vsel %vm1657, %v2677, 0
      %v2722 = vsel %vm1657, %v2678, 0
      %v2725 = vsel %vm1657, %v2679, 0
      %v2728 = vsel %vm1657, %v2680, 0
      %v2731 = vsel %vm1657, %v2681, 0
      %v2734 = vsel %vm1657, %v2682, 0
      %v2737 = vsel %vm1706, %v2687, 0
      %2739 = vmatpush.bf16.msra.mxu0 0
      %2740 = vmatpush.bf16.msra.mxu0 0
      %2741 = vmatpush.bf16.msra.mxu0 0
      %2742 = vmatpush.bf16.msra.mxu0 0
      %2743 = vmatpush.bf16.msra.mxu0 0
      %2744 = vmatpush.bf16.msra.mxu0 0
      %2745 = vmatpush.bf16.msra.mxu0 0
      %2746 = vmatpush.bf16.msra.mxu0 %v2737
      %2747 = vmatmul.bf16.gmra.mxu0 %v2689
      %v2748 = vpop.f32.mrf.mxu0
      %v2749 = vadd.f32 0.0, %v2748
      %v2750 = vpop.f32.mrf.mxu0
      %v2751 = vadd.f32 0.0, %v2750
      %2752 = vmatmul.bf16.gmra.mxu0 %v2692
      %v2753 = vpop.f32.mrf.mxu0
      %v2754 = vadd.f32 0.0, %v2753
      %v2755 = vpop.f32.mrf.mxu0
      %v2756 = vadd.f32 0.0, %v2755
      %2757 = vmatmul.bf16.gmra.mxu0 %v2695
      %v2758 = vpop.f32.mrf.mxu0
      %v2759 = vadd.f32 0.0, %v2758
      %v2760 = vpop.f32.mrf.mxu0
      %v2761 = vadd.f32 0.0, %v2760
      %2762 = vmatmul.bf16.gmra.mxu0 %v2698
      %v2763 = vpop.f32.mrf.mxu0
      %v2764 = vadd.f32 0.0, %v2763
      %v2765 = vpop.f32.mrf.mxu0
      %v2766 = vadd.f32 0.0, %v2765
      %2767 = vmatmul.bf16.gmra.mxu0 %v2701
      %v2768 = vpop.f32.mrf.mxu0
      %v2769 = vadd.f32 0.0, %v2768
      %v2770 = vpop.f32.mrf.mxu0
      %v2771 = vadd.f32 0.0, %v2770
      %2772 = vmatmul.bf16.gmra.mxu0 %v2704
      %v2773 = vpop.f32.mrf.mxu0
      %v2774 = vadd.f32 0.0, %v2773
      %v2775 = vpop.f32.mrf.mxu0
      %v2776 = vadd.f32 0.0, %v2775
      %2777 = vmatmul.bf16.gmra.mxu0 %v2707
      %v2778 = vpop.f32.mrf.mxu0
      %v2779 = vadd.f32 0.0, %v2778
      %v2780 = vpop.f32.mrf.mxu0
      %v2781 = vadd.f32 0.0, %v2780
      %2782 = vmatmul.bf16.gmra.mxu0 %v2710
      %v2783 = vpop.f32.mrf.mxu0
      %v2784 = vadd.f32 0.0, %v2783
      %v2785 = vpop.f32.mrf.mxu0
      %v2786 = vadd.f32 0.0, %v2785
      %2787 = vmatmul.bf16.gmra.mxu0 %v2713
      %v2788 = vpop.f32.mrf.mxu0
      %v2789 = vadd.f32 0.0, %v2788
      %v2790 = vpop.f32.mrf.mxu0
      %v2791 = vadd.f32 0.0, %v2790
      %2792 = vmatmul.bf16.gmra.mxu0 %v2716
      %v2793 = vpop.f32.mrf.mxu0
      %v2794 = vadd.f32 0.0, %v2793
      %v2795 = vpop.f32.mrf.mxu0
      %v2796 = vadd.f32 0.0, %v2795
      %2797 = vmatmul.bf16.gmra.mxu0 %v2719
      %v2798 = vpop.f32.mrf.mxu0
      %v2799 = vadd.f32 0.0, %v2798
      %v2800 = vpop.f32.mrf.mxu0
      %v2801 = vadd.f32 0.0, %v2800
      %2802 = vmatmul.bf16.gmra.mxu0 %v2722
      %v2803 = vpop.f32.mrf.mxu0
      %v2804 = vadd.f32 0.0, %v2803
      %v2805 = vpop.f32.mrf.mxu0
      %v2806 = vadd.f32 0.0, %v2805
      %2807 = vmatmul.bf16.gmra.mxu0 %v2725
      %v2808 = vpop.f32.mrf.mxu0
      %v2809 = vadd.f32 0.0, %v2808
      %v2810 = vpop.f32.mrf.mxu0
      %v2811 = vadd.f32 0.0, %v2810
      %2812 = vmatmul.bf16.gmra.mxu0 %v2728
      %v2813 = vpop.f32.mrf.mxu0
      %v2814 = vadd.f32 0.0, %v2813
      %v2815 = vpop.f32.mrf.mxu0
      %v2816 = vadd.f32 0.0, %v2815
      %2817 = vmatmul.bf16.gmra.mxu0 %v2731
      %v2818 = vpop.f32.mrf.mxu0
      %v2819 = vadd.f32 0.0, %v2818
      %v2820 = vpop.f32.mrf.mxu0
      %v2821 = vadd.f32 0.0, %v2820
      %2822 = vmatmul.bf16.gmra.mxu0 %v2734
      %v2823 = vpop.f32.mrf.mxu0
      %v2824 = vadd.f32 0.0, %v2823
      %v2825 = vpop.f32.mrf.mxu0
      %v2826 = vadd.f32 0.0, %v2825
      %2827 = vdwg.mxu0
      %v2828 = vadd.f32 %v1945, %v2749
      %v2829 = vadd.f32 %v1947, %v2751
      %v2830 = vadd.f32 %v1950, %v2754
      %v2831 = vadd.f32 %v1952, %v2756
      %v2832 = vadd.f32 %v1955, %v2759
      %v2833 = vadd.f32 %v1957, %v2761
      %v2834 = vadd.f32 %v1960, %v2764
      %v2835 = vadd.f32 %v1962, %v2766
      %v2836 = vadd.f32 %v1965, %v2769
      %v2837 = vadd.f32 %v1967, %v2771
      %v2838 = vadd.f32 %v1970, %v2774
      %v2839 = vadd.f32 %v1972, %v2776
      %v2840 = vadd.f32 %v1975, %v2779
      %v2841 = vadd.f32 %v1977, %v2781
      %v2842 = vadd.f32 %v1980, %v2784
      %v2843 = vadd.f32 %v1982, %v2786
      %v2844 = vadd.f32 %v1985, %v2789
      %v2845 = vadd.f32 %v1987, %v2791
      %v2846 = vadd.f32 %v1990, %v2794
      %v2847 = vadd.f32 %v1992, %v2796
      %v2848 = vadd.f32 %v1995, %v2799
      %v2849 = vadd.f32 %v1997, %v2801
      %v2850 = vadd.f32 %v2000, %v2804
      %v2851 = vadd.f32 %v2002, %v2806
      %v2852 = vadd.f32 %v2005, %v2809
      %v2853 = vadd.f32 %v2007, %v2811
      %v2854 = vadd.f32 %v2010, %v2814
      %v2855 = vadd.f32 %v2012, %v2816
      %v2856 = vadd.f32 %v2015, %v2819
      %v2857 = vadd.f32 %v2017, %v2821
      %v2858 = vadd.f32 %v2020, %v2824
      %v2859 = vadd.f32 %v2022, %v2826
      %v2860 = vld [vmem:[%s2] sm:$0x1]
      %v2862 = vperm.slane %v2860, 0
      %v2864 = vadd.f32 %v2828, %v2862
      %v2865 = vadd.f32 %v2829, %v2862
      %v2866 = vadd.f32 %v2830, %v2862
      %v2867 = vadd.f32 %v2831, %v2862
      %v2868 = vadd.f32 %v2832, %v2862
      %v2869 = vadd.f32 %v2833, %v2862
      %v2870 = vadd.f32 %v2834, %v2862
      %v2871 = vadd.f32 %v2835, %v2862
      %v2872 = vadd.f32 %v2836, %v2862
      %v2873 = vadd.f32 %v2837, %v2862
      %v2874 = vadd.f32 %v2838, %v2862
      %v2875 = vadd.f32 %v2839, %v2862
      %v2876 = vadd.f32 %v2840, %v2862
      %v2877 = vadd.f32 %v2841, %v2862
      %v2878 = vadd.f32 %v2842, %v2862
      %v2879 = vadd.f32 %v2843, %v2862
      %v2880 = vadd.f32 %v2844, %v2862
      %v2881 = vadd.f32 %v2845, %v2862
      %v2882 = vadd.f32 %v2846, %v2862
      %v2883 = vadd.f32 %v2847, %v2862
      %v2884 = vadd.f32 %v2848, %v2862
      %v2885 = vadd.f32 %v2849, %v2862
      %v2886 = vadd.f32 %v2850, %v2862
      %v2887 = vadd.f32 %v2851, %v2862
      %v2888 = vadd.f32 %v2852, %v2862
      %v2889 = vadd.f32 %v2853, %v2862
      %v2890 = vadd.f32 %v2854, %v2862
      %v2891 = vadd.f32 %v2855, %v2862
      %v2892 = vadd.f32 %v2856, %v2862
      %v2893 = vadd.f32 %v2857, %v2862
      %v2894 = vadd.f32 %v2858, %v2862
      %v2895 = vadd.f32 %v2859, %v2862
      %v2896 = vmax.f32 %v2864, 0.0
      %v2897 = vmax.f32 %v2865, 0.0
      %v2898 = vmax.f32 %v2866, 0.0
      %v2899 = vmax.f32 %v2867, 0.0
      %v2900 = vmax.f32 %v2868, 0.0
      %v2901 = vmax.f32 %v2869, 0.0
      %v2902 = vmax.f32 %v2870, 0.0
      %v2903 = vmax.f32 %v2871, 0.0
      %v2904 = vmax.f32 %v2872, 0.0
      %v2905 = vmax.f32 %v2873, 0.0
      %v2906 = vmax.f32 %v2874, 0.0
      %v2907 = vmax.f32 %v2875, 0.0
      %v2908 = vmax.f32 %v2876, 0.0
      %v2909 = vmax.f32 %v2877, 0.0
      %v2910 = vmax.f32 %v2878, 0.0
      %v2911 = vmax.f32 %v2879, 0.0
      %v2912 = vmax.f32 %v2880, 0.0
      %v2913 = vmax.f32 %v2881, 0.0
      %v2914 = vmax.f32 %v2882, 0.0
      %v2915 = vmax.f32 %v2883, 0.0
      %v2916 = vmax.f32 %v2884, 0.0
      %v2917 = vmax.f32 %v2885, 0.0
      %v2918 = vmax.f32 %v2886, 0.0
      %v2919 = vmax.f32 %v2887, 0.0
      %v2920 = vmax.f32 %v2888, 0.0
      %v2921 = vmax.f32 %v2889, 0.0
      %v2922 = vmax.f32 %v2890, 0.0
      %v2923 = vmax.f32 %v2891, 0.0
      %v2924 = vmax.f32 %v2892, 0.0
      %v2925 = vmax.f32 %v2893, 0.0
      %v2926 = vmax.f32 %v2894, 0.0
      %v2927 = vmax.f32 %v2895, 0.0
      %s2928 = scalar_lea.vmem [#allocation3], 24
      %2929 = vst.msk [vmem:[%s2928 + $0x1] sm:$0xff] %vm226, %v2896
      %2930 = vst.msk [vmem:[%s2928 + $0x9] sm:$0xff] %vm226, %v2897
      %2931 = vst.msk [vmem:[%s2928 + $0x19] sm:$0xff] %vm226, %v2898
      %2932 = vst.msk [vmem:[%s2928 + $0x21] sm:$0xff] %vm226, %v2899
      %2933 = vst.msk [vmem:[%s2928 + $0x31] sm:$0xff] %vm226, %v2900
      %2934 = vst.msk [vmem:[%s2928 + $0x39] sm:$0xff] %vm226, %v2901
      %2935 = vst.msk [vmem:[%s2928 + $0x49] sm:$0xff] %vm226, %v2902
      %2936 = vst.msk [vmem:[%s2928 + $0x51] sm:$0xff] %vm226, %v2903
      %2937 = vst.msk [vmem:[%s2928 + $0x61] sm:$0xff] %vm226, %v2904
      %2938 = vst.msk [vmem:[%s2928 + $0x69] sm:$0xff] %vm226, %v2905
      %2939 = vst.msk [vmem:[%s2928 + $0x79] sm:$0xff] %vm226, %v2906
      %2940 = vst.msk [vmem:[%s2928 + $0x81] sm:$0xff] %vm226, %v2907
      %2941 = vst.msk [vmem:[%s2928 + $0x91] sm:$0xff] %vm226, %v2908
      %2942 = vst.msk [vmem:[%s2928 + $0x99] sm:$0xff] %vm226, %v2909
      %2943 = vst.msk [vmem:[%s2928 + $0xa9] sm:$0xff] %vm226, %v2910
      %2944 = vst.msk [vmem:[%s2928 + $0xb1] sm:$0xff] %vm226, %v2911
      %2945 = vst.msk [vmem:[%s2928 + $0xc1] sm:$0xff] %vm226, %v2912
      %2946 = vst.msk [vmem:[%s2928 + $0xc9] sm:$0xff] %vm226, %v2913
      %2947 = vst.msk [vmem:[%s2928 + $0xd9] sm:$0xff] %vm226, %v2914
      %2948 = vst.msk [vmem:[%s2928 + $0xe1] sm:$0xff] %vm226, %v2915
      %2949 = vst.msk [vmem:[%s2928 + $0xf1] sm:$0xff] %vm226, %v2916
      %2950 = vst.msk [vmem:[%s2928 + $0xf9] sm:$0xff] %vm226, %v2917
      %2951 = vst.msk [vmem:[%s2928 + $0x109] sm:$0xff] %vm226, %v2918
      %2952 = vst.msk [vmem:[%s2928 + $0x111] sm:$0xff] %vm226, %v2919
      %2953 = vst.msk [vmem:[%s2928 + $0x121] sm:$0xff] %vm226, %v2920
      %2954 = vst.msk [vmem:[%s2928 + $0x129] sm:$0xff] %vm226, %v2921
      %2955 = vst.msk [vmem:[%s2928 + $0x139] sm:$0xff] %vm226, %v2922
      %2956 = vst.msk [vmem:[%s2928 + $0x141] sm:$0xff] %vm226, %v2923
      %2957 = vst.msk [vmem:[%s2928 + $0x151] sm:$0xff] %vm226, %v2924
      %2958 = vst.msk [vmem:[%s2928 + $0x159] sm:$0xff] %vm226, %v2925
      %2959 = vst.msk [vmem:[%s2928 + $0x169] sm:$0xff] %vm226, %v2926
      %2960 = vst.msk [vmem:[%s2928 + $0x171] sm:$0xff] %vm226, %v2927
      %v2961 = vld [vmem:[#allocation3] sm:$0xff]
      %v2962 = vld [vmem:[#allocation3 + $0x8] sm:$0xff]
      %v2963 = vld [vmem:[#allocation3 + $0x18] sm:$0xff]
      %v2964 = vld [vmem:[#allocation3 + $0x20] sm:$0xff]
      %v2965 = vld [vmem:[#allocation3 + $0x30] sm:$0xff]
      %v2966 = vld [vmem:[#allocation3 + $0x38] sm:$0xff]
      %v2967 = vld [vmem:[#allocation3 + $0x48] sm:$0xff]
      %v2968 = vld [vmem:[#allocation3 + $0x50] sm:$0xff]
      %v2969 = vld [vmem:[#allocation3 + $0x60] sm:$0xff]
      %v2970 = vld [vmem:[#allocation3 + $0x68] sm:$0xff]
      %v2971 = vld [vmem:[#allocation3 + $0x78] sm:$0xff]
      %v2972 = vld [vmem:[#allocation3 + $0x80] sm:$0xff]
      %v2973 = vld [vmem:[#allocation3 + $0x90] sm:$0xff]
      %v2974 = vld [vmem:[#allocation3 + $0x98] sm:$0xff]
      %v2975 = vld [vmem:[#allocation3 + $0xa8] sm:$0xff]
      %v2976 = vld [vmem:[#allocation3 + $0xb0] sm:$0xff]
      %v2977 = vld [vmem:[#allocation3 + $0xc0] sm:$0xff]
      %v2978 = vld [vmem:[#allocation3 + $0xc8] sm:$0xff]
      %v2979 = vld [vmem:[#allocation3 + $0xd8] sm:$0xff]
      %v2980 = vld [vmem:[#allocation3 + $0xe0] sm:$0xff]
      %v2981 = vld [vmem:[#allocation3 + $0xf0] sm:$0xff]
      %v2982 = vld [vmem:[#allocation3 + $0xf8] sm:$0xff]
      %v2983 = vld [vmem:[#allocation3 + $0x108] sm:$0xff]
      %v2984 = vld [vmem:[#allocation3 + $0x110] sm:$0xff]
      %v2985 = vld [vmem:[#allocation3 + $0x120] sm:$0xff]
      %v2986 = vld [vmem:[#allocation3 + $0x128] sm:$0xff]
      %v2987 = vld [vmem:[#allocation3 + $0x138] sm:$0xff]
      %v2988 = vld [vmem:[#allocation3 + $0x140] sm:$0xff]
      %v2989 = vld [vmem:[#allocation3 + $0x150] sm:$0xff]
      %v2990 = vld [vmem:[#allocation3 + $0x158] sm:$0xff]
      %v2991 = vld [vmem:[#allocation3 + $0x168] sm:$0xff]
      %v2992 = vld [vmem:[#allocation3 + $0x170] sm:$0xff]
      %v2993 = vpack.c.bf16 %v2961, %v2961
      %v2994 = vpack.c.bf16 %v2962, %v2962
      %v2995 = vpack.c.bf16 %v2963, %v2963
      %v2996 = vpack.c.bf16 %v2964, %v2964
      %v2997 = vpack.c.bf16 %v2965, %v2965
      %v2998 = vpack.c.bf16 %v2966, %v2966
      %v2999 = vpack.c.bf16 %v2967, %v2967
      %v3000 = vpack.c.bf16 %v2968, %v2968
      %v3001 = vpack.c.bf16 %v2969, %v2969
      %v3002 = vpack.c.bf16 %v2970, %v2970
      %v3003 = vpack.c.bf16 %v2971, %v2971
      %v3004 = vpack.c.bf16 %v2972, %v2972
      %v3005 = vpack.c.bf16 %v2973, %v2973
      %v3006 = vpack.c.bf16 %v2974, %v2974
      %v3007 = vpack.c.bf16 %v2975, %v2975
      %v3008 = vpack.c.bf16 %v2976, %v2976
      %v3009 = vpack.c.bf16 %v2977, %v2977
      %v3010 = vpack.c.bf16 %v2978, %v2978
      %v3011 = vpack.c.bf16 %v2979, %v2979
      %v3012 = vpack.c.bf16 %v2980, %v2980
      %v3013 = vpack.c.bf16 %v2981, %v2981
      %v3014 = vpack.c.bf16 %v2982, %v2982
      %v3015 = vpack.c.bf16 %v2983, %v2983
      %v3016 = vpack.c.bf16 %v2984, %v2984
      %v3017 = vpack.c.bf16 %v2985, %v2985
      %v3018 = vpack.c.bf16 %v2986, %v2986
      %v3019 = vpack.c.bf16 %v2987, %v2987
      %v3020 = vpack.c.bf16 %v2988, %v2988
      %v3021 = vpack.c.bf16 %v2989, %v2989
      %v3022 = vpack.c.bf16 %v2990, %v2990
      %v3023 = vpack.c.bf16 %v2991, %v2991
      %v3024 = vpack.c.bf16 %v2992, %v2992
      %3025 = vst.msk [vmem:[#allocation4] sm:$0xf] %vm476, %v2993
      %3026 = vst.msk [vmem:[#allocation4 + $0x4] sm:$0xf] %vm476, %v2994
      %3027 = vst.msk [vmem:[#allocation4 + $0x8] sm:$0xf] %vm476, %v2995
      %3028 = vst.msk [vmem:[#allocation4 + $0xc] sm:$0xf] %vm476, %v2996
      %3029 = vst.msk [vmem:[#allocation4 + $0x10] sm:$0xf] %vm476, %v2997
      %3030 = vst.msk [vmem:[#allocation4 + $0x14] sm:$0xf] %vm476, %v2998
      %3031 = vst.msk [vmem:[#allocation4 + $0x18] sm:$0xf] %vm476, %v2999
      %3032 = vst.msk [vmem:[#allocation4 + $0x1c] sm:$0xf] %vm476, %v3000
      %3033 = vst.msk [vmem:[#allocation4 + $0x20] sm:$0xf] %vm476, %v3001
      %3034 = vst.msk [vmem:[#allocation4 + $0x24] sm:$0xf] %vm476, %v3002
      %3035 = vst.msk [vmem:[#allocation4 + $0x28] sm:$0xf] %vm476, %v3003
      %3036 = vst.msk [vmem:[#allocation4 + $0x2c] sm:$0xf] %vm476, %v3004
      %3037 = vst.msk [vmem:[#allocation4 + $0x30] sm:$0xf] %vm476, %v3005
      %3038 = vst.msk [vmem:[#allocation4 + $0x34] sm:$0xf] %vm476, %v3006
      %3039 = vst.msk [vmem:[#allocation4 + $0x38] sm:$0xf] %vm476, %v3007
      %3040 = vst.msk [vmem:[#allocation4 + $0x3c] sm:$0xf] %vm476, %v3008
      %3041 = vst.msk [vmem:[#allocation4 + $0x40] sm:$0xf] %vm476, %v3009
      %3042 = vst.msk [vmem:[#allocation4 + $0x44] sm:$0xf] %vm476, %v3010
      %3043 = vst.msk [vmem:[#allocation4 + $0x48] sm:$0xf] %vm476, %v3011
      %3044 = vst.msk [vmem:[#allocation4 + $0x4c] sm:$0xf] %vm476, %v3012
      %3045 = vst.msk [vmem:[#allocation4 + $0x50] sm:$0xf] %vm476, %v3013
      %3046 = vst.msk [vmem:[#allocation4 + $0x54] sm:$0xf] %vm476, %v3014
      %3047 = vst.msk [vmem:[#allocation4 + $0x58] sm:$0xf] %vm476, %v3015
      %3048 = vst.msk [vmem:[#allocation4 + $0x5c] sm:$0xf] %vm476, %v3016
      %3049 = vst.msk [vmem:[#allocation4 + $0x60] sm:$0xf] %vm476, %v3017
      %3050 = vst.msk [vmem:[#allocation4 + $0x64] sm:$0xf] %vm476, %v3018
      %3051 = vst.msk [vmem:[#allocation4 + $0x68] sm:$0xf] %vm476, %v3019
      %3052 = vst.msk [vmem:[#allocation4 + $0x6c] sm:$0xf] %vm476, %v3020
      %3053 = vst.msk [vmem:[#allocation4 + $0x70] sm:$0xf] %vm476, %v3021
      %3054 = vst.msk [vmem:[#allocation4 + $0x74] sm:$0xf] %vm476, %v3022
      %3055 = vst.msk [vmem:[#allocation4 + $0x78] sm:$0xf] %vm476, %v3023
      %3056 = vst.msk [vmem:[#allocation4 + $0x7c] sm:$0xf] %vm476, %v3024
      %v3057 = vld [vmem:[#allocation3 + $0x1] sm:$0xff]
      %v3058 = vld [vmem:[#allocation3 + $0x9] sm:$0xff]
      %v3059 = vld [vmem:[#allocation3 + $0x19] sm:$0xff]
      %v3060 = vld [vmem:[#allocation3 + $0x21] sm:$0xff]
      %v3061 = vld [vmem:[#allocation3 + $0x31] sm:$0xff]
      %v3062 = vld [vmem:[#allocation3 + $0x39] sm:$0xff]
      %v3063 = vld [vmem:[#allocation3 + $0x49] sm:$0xff]
      %v3064 = vld [vmem:[#allocation3 + $0x51] sm:$0xff]
      %v3065 = vld [vmem:[#allocation3 + $0x61] sm:$0xff]
      %v3066 = vld [vmem:[#allocation3 + $0x69] sm:$0xff]
      %v3067 = vld [vmem:[#allocation3 + $0x79] sm:$0xff]
      %v3068 = vld [vmem:[#allocation3 + $0x81] sm:$0xff]
      %v3069 = vld [vmem:[#allocation3 + $0x91] sm:$0xff]
      %v3070 = vld [vmem:[#allocation3 + $0x99] sm:$0xff]
      %v3071 = vld [vmem:[#allocation3 + $0xa9] sm:$0xff]
      %v3072 = vld [vmem:[#allocation3 + $0xb1] sm:$0xff]
      %v3073 = vld [vmem:[#allocation3 + $0xc1] sm:$0xff]
      %v3074 = vld [vmem:[#allocation3 + $0xc9] sm:$0xff]
      %v3075 = vld [vmem:[#allocation3 + $0xd9] sm:$0xff]
      %v3076 = vld [vmem:[#allocation3 + $0xe1] sm:$0xff]
      %v3077 = vld [vmem:[#allocation3 + $0xf1] sm:$0xff]
      %v3078 = vld [vmem:[#allocation3 + $0xf9] sm:$0xff]
      %v3079 = vld [vmem:[#allocation3 + $0x109] sm:$0xff]
      %v3080 = vld [vmem:[#allocation3 + $0x111] sm:$0xff]
      %v3081 = vld [vmem:[#allocation3 + $0x121] sm:$0xff]
      %v3082 = vld [vmem:[#allocation3 + $0x129] sm:$0xff]
      %v3083 = vld [vmem:[#allocation3 + $0x139] sm:$0xff]
      %v3084 = vld [vmem:[#allocation3 + $0x141] sm:$0xff]
      %v3085 = vld [vmem:[#allocation3 + $0x151] sm:$0xff]
      %v3086 = vld [vmem:[#allocation3 + $0x159] sm:$0xff]
      %v3087 = vld [vmem:[#allocation3 + $0x169] sm:$0xff]
      %v3088 = vld [vmem:[#allocation3 + $0x171] sm:$0xff]
      %v3089 = vpack.c.bf16 %v3057, %v3057
      %v3090 = vpack.c.bf16 %v3058, %v3058
      %v3091 = vpack.c.bf16 %v3059, %v3059
      %v3092 = vpack.c.bf16 %v3060, %v3060
      %v3093 = vpack.c.bf16 %v3061, %v3061
      %v3094 = vpack.c.bf16 %v3062, %v3062
      %v3095 = vpack.c.bf16 %v3063, %v3063
      %v3096 = vpack.c.bf16 %v3064, %v3064
      %v3097 = vpack.c.bf16 %v3065, %v3065
      %v3098 = vpack.c.bf16 %v3066, %v3066
      %v3099 = vpack.c.bf16 %v3067, %v3067
      %v3100 = vpack.c.bf16 %v3068, %v3068
      %v3101 = vpack.c.bf16 %v3069, %v3069
      %v3102 = vpack.c.bf16 %v3070, %v3070
      %v3103 = vpack.c.bf16 %v3071, %v3071
      %v3104 = vpack.c.bf16 %v3072, %v3072
      %v3105 = vpack.c.bf16 %v3073, %v3073
      %v3106 = vpack.c.bf16 %v3074, %v3074
      %v3107 = vpack.c.bf16 %v3075, %v3075
      %v3108 = vpack.c.bf16 %v3076, %v3076
      %v3109 = vpack.c.bf16 %v3077, %v3077
      %v3110 = vpack.c.bf16 %v3078, %v3078
      %v3111 = vpack.c.bf16 %v3079, %v3079
      %v3112 = vpack.c.bf16 %v3080, %v3080
      %v3113 = vpack.c.bf16 %v3081, %v3081
      %v3114 = vpack.c.bf16 %v3082, %v3082
      %v3115 = vpack.c.bf16 %v3083, %v3083
      %v3116 = vpack.c.bf16 %v3084, %v3084
      %v3117 = vpack.c.bf16 %v3085, %v3085
      %v3118 = vpack.c.bf16 %v3086, %v3086
      %v3119 = vpack.c.bf16 %v3087, %v3087
      %v3120 = vpack.c.bf16 %v3088, %v3088
      %3153 = vrot.lane.b32.xlu0 %v3089, 4
      %v3154 = vpop.permute.xlu0 %3153
      %3155 = vrot.lane.b32.xlu0 %v3090, 4
      %v3156 = vpop.permute.xlu0 %3155
      %3157 = vrot.lane.b32.xlu0 %v3091, 4
      %v3158 = vpop.permute.xlu0 %3157
      %3159 = vrot.lane.b32.xlu0 %v3092, 4
      %v3160 = vpop.permute.xlu0 %3159
      %3161 = vrot.lane.b32.xlu0 %v3093, 4
      %v3162 = vpop.permute.xlu0 %3161
      %3163 = vrot.lane.b32.xlu0 %v3094, 4
      %v3164 = vpop.permute.xlu0 %3163
      %3165 = vrot.lane.b32.xlu0 %v3095, 4
      %v3166 = vpop.permute.xlu0 %3165
      %3167 = vrot.lane.b32.xlu0 %v3096, 4
      %v3168 = vpop.permute.xlu0 %3167
      %3169 = vrot.lane.b32.xlu0 %v3097, 4
      %v3170 = vpop.permute.xlu0 %3169
      %3171 = vrot.lane.b32.xlu0 %v3098, 4
      %v3172 = vpop.permute.xlu0 %3171
      %3173 = vrot.lane.b32.xlu0 %v3099, 4
      %v3174 = vpop.permute.xlu0 %3173
      %3175 = vrot.lane.b32.xlu0 %v3100, 4
      %v3176 = vpop.permute.xlu0 %3175
      %3177 = vrot.lane.b32.xlu0 %v3101, 4
      %v3178 = vpop.permute.xlu0 %3177
      %3179 = vrot.lane.b32.xlu0 %v3102, 4
      %v3180 = vpop.permute.xlu0 %3179
      %3181 = vrot.lane.b32.xlu0 %v3103, 4
      %v3182 = vpop.permute.xlu0 %3181
      %3183 = vrot.lane.b32.xlu0 %v3104, 4
      %v3184 = vpop.permute.xlu0 %3183
      %3185 = vrot.lane.b32.xlu0 %v3105, 4
      %v3186 = vpop.permute.xlu0 %3185
      %3187 = vrot.lane.b32.xlu0 %v3106, 4
      %v3188 = vpop.permute.xlu0 %3187
      %3189 = vrot.lane.b32.xlu0 %v3107, 4
      %v3190 = vpop.permute.xlu0 %3189
      %3191 = vrot.lane.b32.xlu0 %v3108, 4
      %v3192 = vpop.permute.xlu0 %3191
      %3193 = vrot.lane.b32.xlu0 %v3109, 4
      %v3194 = vpop.permute.xlu0 %3193
      %3195 = vrot.lane.b32.xlu0 %v3110, 4
      %v3196 = vpop.permute.xlu0 %3195
      %3197 = vrot.lane.b32.xlu0 %v3111, 4
      %v3198 = vpop.permute.xlu0 %3197
      %3199 = vrot.lane.b32.xlu0 %v3112, 4
      %v3200 = vpop.permute.xlu0 %3199
      %3201 = vrot.lane.b32.xlu0 %v3113, 4
      %v3202 = vpop.permute.xlu0 %3201
      %3203 = vrot.lane.b32.xlu0 %v3114, 4
      %v3204 = vpop.permute.xlu0 %3203
      %3205 = vrot.lane.b32.xlu0 %v3115, 4
      %v3206 = vpop.permute.xlu0 %3205
      %3207 = vrot.lane.b32.xlu0 %v3116, 4
      %v3208 = vpop.permute.xlu0 %3207
      %3209 = vrot.lane.b32.xlu0 %v3117, 4
      %v3210 = vpop.permute.xlu0 %3209
      %3211 = vrot.lane.b32.xlu0 %v3118, 4
      %v3212 = vpop.permute.xlu0 %3211
      %3213 = vrot.lane.b32.xlu0 %v3119, 4
      %v3214 = vpop.permute.xlu0 %3213
      %3215 = vrot.lane.b32.xlu0 %v3120, 4
      %v3216 = vpop.permute.xlu0 %3215
      %3249 = vst.msk [vmem:[#allocation4] sm:$0xf] %vm701, %v3154
      %3250 = vst.msk [vmem:[#allocation4 + $0x4] sm:$0xf] %vm701, %v3156
      %3251 = vst.msk [vmem:[#allocation4 + $0x8] sm:$0xf] %vm701, %v3158
      %3252 = vst.msk [vmem:[#allocation4 + $0xc] sm:$0xf] %vm701, %v3160
      %3253 = vst.msk [vmem:[#allocation4 + $0x10] sm:$0xf] %vm701, %v3162
      %3254 = vst.msk [vmem:[#allocation4 + $0x14] sm:$0xf] %vm701, %v3164
      %3255 = vst.msk [vmem:[#allocation4 + $0x18] sm:$0xf] %vm701, %v3166
      %3256 = vst.msk [vmem:[#allocation4 + $0x1c] sm:$0xf] %vm701, %v3168
      %3257 = vst.msk [vmem:[#allocation4 + $0x20] sm:$0xf] %vm701, %v3170
      %3258 = vst.msk [vmem:[#allocation4 + $0x24] sm:$0xf] %vm701, %v3172
      %3259 = vst.msk [vmem:[#allocation4 + $0x28] sm:$0xf] %vm701, %v3174
      %3260 = vst.msk [vmem:[#allocation4 + $0x2c] sm:$0xf] %vm701, %v3176
      %3261 = vst.msk [vmem:[#allocation4 + $0x30] sm:$0xf] %vm701, %v3178
      %3262 = vst.msk [vmem:[#allocation4 + $0x34] sm:$0xf] %vm701, %v3180
      %3263 = vst.msk [vmem:[#allocation4 + $0x38] sm:$0xf] %vm701, %v3182
      %3264 = vst.msk [vmem:[#allocation4 + $0x3c] sm:$0xf] %vm701, %v3184
      %3265 = vst.msk [vmem:[#allocation4 + $0x40] sm:$0xf] %vm701, %v3186
      %3266 = vst.msk [vmem:[#allocation4 + $0x44] sm:$0xf] %vm701, %v3188
      %3267 = vst.msk [vmem:[#allocation4 + $0x48] sm:$0xf] %vm701, %v3190
      %3268 = vst.msk [vmem:[#allocation4 + $0x4c] sm:$0xf] %vm701, %v3192
      %3269 = vst.msk [vmem:[#allocation4 + $0x50] sm:$0xf] %vm701, %v3194
      %3270 = vst.msk [vmem:[#allocation4 + $0x54] sm:$0xf] %vm701, %v3196
      %3271 = vst.msk [vmem:[#allocation4 + $0x58] sm:$0xf] %vm701, %v3198
      %3272 = vst.msk [vmem:[#allocation4 + $0x5c] sm:$0xf] %vm701, %v3200
      %3273 = vst.msk [vmem:[#allocation4 + $0x60] sm:$0xf] %vm701, %v3202
      %3274 = vst.msk [vmem:[#allocation4 + $0x64] sm:$0xf] %vm701, %v3204
      %3275 = vst.msk [vmem:[#allocation4 + $0x68] sm:$0xf] %vm701, %v3206
      %3276 = vst.msk [vmem:[#allocation4 + $0x6c] sm:$0xf] %vm701, %v3208
      %3277 = vst.msk [vmem:[#allocation4 + $0x70] sm:$0xf] %vm701, %v3210
      %3278 = vst.msk [vmem:[#allocation4 + $0x74] sm:$0xf] %vm701, %v3212
      %3279 = vst.msk [vmem:[#allocation4 + $0x78] sm:$0xf] %vm701, %v3214
      %3280 = vst.msk [vmem:[#allocation4 + $0x7c] sm:$0xf] %vm701, %v3216
      %v3281 = vld [vmem:[#allocation3 + $0x2] sm:$0xff]
      %v3282 = vld [vmem:[#allocation3 + $0xa] sm:$0xff]
      %v3283 = vld [vmem:[#allocation3 + $0x1a] sm:$0xff]
      %v3284 = vld [vmem:[#allocation3 + $0x22] sm:$0xff]
      %v3285 = vld [vmem:[#allocation3 + $0x32] sm:$0xff]
      %v3286 = vld [vmem:[#allocation3 + $0x3a] sm:$0xff]
      %v3287 = vld [vmem:[#allocation3 + $0x4a] sm:$0xff]
      %v3288 = vld [vmem:[#allocation3 + $0x52] sm:$0xff]
      %v3289 = vld [vmem:[#allocation3 + $0x62] sm:$0xff]
      %v3290 = vld [vmem:[#allocation3 + $0x6a] sm:$0xff]
      %v3291 = vld [vmem:[#allocation3 + $0x7a] sm:$0xff]
      %v3292 = vld [vmem:[#allocation3 + $0x82] sm:$0xff]
      %v3293 = vld [vmem:[#allocation3 + $0x92] sm:$0xff]
      %v3294 = vld [vmem:[#allocation3 + $0x9a] sm:$0xff]
      %v3295 = vld [vmem:[#allocation3 + $0xaa] sm:$0xff]
      %v3296 = vld [vmem:[#allocation3 + $0xb2] sm:$0xff]
      %v3297 = vld [vmem:[#allocation3 + $0xc2] sm:$0xff]
      %v3298 = vld [vmem:[#allocation3 + $0xca] sm:$0xff]
      %v3299 = vld [vmem:[#allocation3 + $0xda] sm:$0xff]
      %v3300 = vld [vmem:[#allocation3 + $0xe2] sm:$0xff]
      %v3301 = vld [vmem:[#allocation3 + $0xf2] sm:$0xff]
      %v3302 = vld [vmem:[#allocation3 + $0xfa] sm:$0xff]
      %v3303 = vld [vmem:[#allocation3 + $0x10a] sm:$0xff]
      %v3304 = vld [vmem:[#allocation3 + $0x112] sm:$0xff]
      %v3305 = vld [vmem:[#allocation3 + $0x122] sm:$0xff]
      %v3306 = vld [vmem:[#allocation3 + $0x12a] sm:$0xff]
      %v3307 = vld [vmem:[#allocation3 + $0x13a] sm:$0xff]
      %v3308 = vld [vmem:[#allocation3 + $0x142] sm:$0xff]
      %v3309 = vld [vmem:[#allocation3 + $0x152] sm:$0xff]
      %v3310 = vld [vmem:[#allocation3 + $0x15a] sm:$0xff]
      %v3311 = vld [vmem:[#allocation3 + $0x16a] sm:$0xff]
      %v3312 = vld [vmem:[#allocation3 + $0x172] sm:$0xff]
      %v3313 = vpack.c.bf16 %v3281, %v3281
      %v3314 = vpack.c.bf16 %v3282, %v3282
      %v3315 = vpack.c.bf16 %v3283, %v3283
      %v3316 = vpack.c.bf16 %v3284, %v3284
      %v3317 = vpack.c.bf16 %v3285, %v3285
      %v3318 = vpack.c.bf16 %v3286, %v3286
      %v3319 = vpack.c.bf16 %v3287, %v3287
      %v3320 = vpack.c.bf16 %v3288, %v3288
      %v3321 = vpack.c.bf16 %v3289, %v3289
      %v3322 = vpack.c.bf16 %v3290, %v3290
      %v3323 = vpack.c.bf16 %v3291, %v3291
      %v3324 = vpack.c.bf16 %v3292, %v3292
      %v3325 = vpack.c.bf16 %v3293, %v3293
      %v3326 = vpack.c.bf16 %v3294, %v3294
      %v3327 = vpack.c.bf16 %v3295, %v3295
      %v3328 = vpack.c.bf16 %v3296, %v3296
      %v3329 = vpack.c.bf16 %v3297, %v3297
      %v3330 = vpack.c.bf16 %v3298, %v3298
      %v3331 = vpack.c.bf16 %v3299, %v3299
      %v3332 = vpack.c.bf16 %v3300, %v3300
      %v3333 = vpack.c.bf16 %v3301, %v3301
      %v3334 = vpack.c.bf16 %v3302, %v3302
      %v3335 = vpack.c.bf16 %v3303, %v3303
      %v3336 = vpack.c.bf16 %v3304, %v3304
      %v3337 = vpack.c.bf16 %v3305, %v3305
      %v3338 = vpack.c.bf16 %v3306, %v3306
      %v3339 = vpack.c.bf16 %v3307, %v3307
      %v3340 = vpack.c.bf16 %v3308, %v3308
      %v3341 = vpack.c.bf16 %v3309, %v3309
      %v3342 = vpack.c.bf16 %v3310, %v3310
      %v3343 = vpack.c.bf16 %v3311, %v3311
      %v3344 = vpack.c.bf16 %v3312, %v3312
      %3377 = vrot.lane.b32.xlu0 %v3313, 8
      %v3378 = vpop.permute.xlu0 %3377
      %3379 = vrot.lane.b32.xlu0 %v3314, 8
      %v3380 = vpop.permute.xlu0 %3379
      %3381 = vrot.lane.b32.xlu0 %v3315, 8
      %v3382 = vpop.permute.xlu0 %3381
      %3383 = vrot.lane.b32.xlu0 %v3316, 8
      %v3384 = vpop.permute.xlu0 %3383
      %3385 = vrot.lane.b32.xlu0 %v3317, 8
      %v3386 = vpop.permute.xlu0 %3385
      %3387 = vrot.lane.b32.xlu0 %v3318, 8
      %v3388 = vpop.permute.xlu0 %3387
      %3389 = vrot.lane.b32.xlu0 %v3319, 8
      %v3390 = vpop.permute.xlu0 %3389
      %3391 = vrot.lane.b32.xlu0 %v3320, 8
      %v3392 = vpop.permute.xlu0 %3391
      %3393 = vrot.lane.b32.xlu0 %v3321, 8
      %v3394 = vpop.permute.xlu0 %3393
      %3395 = vrot.lane.b32.xlu0 %v3322, 8
      %v3396 = vpop.permute.xlu0 %3395
      %3397 = vrot.lane.b32.xlu0 %v3323, 8
      %v3398 = vpop.permute.xlu0 %3397
      %3399 = vrot.lane.b32.xlu0 %v3324, 8
      %v3400 = vpop.permute.xlu0 %3399
      %3401 = vrot.lane.b32.xlu0 %v3325, 8
      %v3402 = vpop.permute.xlu0 %3401
      %3403 = vrot.lane.b32.xlu0 %v3326, 8
      %v3404 = vpop.permute.xlu0 %3403
      %3405 = vrot.lane.b32.xlu0 %v3327, 8
      %v3406 = vpop.permute.xlu0 %3405
      %3407 = vrot.lane.b32.xlu0 %v3328, 8
      %v3408 = vpop.permute.xlu0 %3407
      %3409 = vrot.lane.b32.xlu0 %v3329, 8
      %v3410 = vpop.permute.xlu0 %3409
      %3411 = vrot.lane.b32.xlu0 %v3330, 8
      %v3412 = vpop.permute.xlu0 %3411
      %3413 = vrot.lane.b32.xlu0 %v3331, 8
      %v3414 = vpop.permute.xlu0 %3413
      %3415 = vrot.lane.b32.xlu0 %v3332, 8
      %v3416 = vpop.permute.xlu0 %3415
      %3417 = vrot.lane.b32.xlu0 %v3333, 8
      %v3418 = vpop.permute.xlu0 %3417
      %3419 = vrot.lane.b32.xlu0 %v3334, 8
      %v3420 = vpop.permute.xlu0 %3419
      %3421 = vrot.lane.b32.xlu0 %v3335, 8
      %v3422 = vpop.permute.xlu0 %3421
      %3423 = vrot.lane.b32.xlu0 %v3336, 8
      %v3424 = vpop.permute.xlu0 %3423
      %3425 = vrot.lane.b32.xlu0 %v3337, 8
      %v3426 = vpop.permute.xlu0 %3425
      %3427 = vrot.lane.b32.xlu0 %v3338, 8
      %v3428 = vpop.permute.xlu0 %3427
      %3429 = vrot.lane.b32.xlu0 %v3339, 8
      %v3430 = vpop.permute.xlu0 %3429
      %3431 = vrot.lane.b32.xlu0 %v3340, 8
      %v3432 = vpop.permute.xlu0 %3431
      %3433 = vrot.lane.b32.xlu0 %v3341, 8
      %v3434 = vpop.permute.xlu0 %3433
      %3435 = vrot.lane.b32.xlu0 %v3342, 8
      %v3436 = vpop.permute.xlu0 %3435
      %3437 = vrot.lane.b32.xlu0 %v3343, 8
      %v3438 = vpop.permute.xlu0 %3437
      %3439 = vrot.lane.b32.xlu0 %v3344, 8
      %v3440 = vpop.permute.xlu0 %3439
      %3473 = vst.msk [vmem:[#allocation4] sm:$0xf] %vm926, %v3378
      %3474 = vst.msk [vmem:[#allocation4 + $0x4] sm:$0xf] %vm926, %v3380
      %3475 = vst.msk [vmem:[#allocation4 + $0x8] sm:$0xf] %vm926, %v3382
      %3476 = vst.msk [vmem:[#allocation4 + $0xc] sm:$0xf] %vm926, %v3384
      %3477 = vst.msk [vmem:[#allocation4 + $0x10] sm:$0xf] %vm926, %v3386
      %3478 = vst.msk [vmem:[#allocation4 + $0x14] sm:$0xf] %vm926, %v3388
      %3479 = vst.msk [vmem:[#allocation4 + $0x18] sm:$0xf] %vm926, %v3390
      %3480 = vst.msk [vmem:[#allocation4 + $0x1c] sm:$0xf] %vm926, %v3392
      %3481 = vst.msk [vmem:[#allocation4 + $0x20] sm:$0xf] %vm926, %v3394
      %3482 = vst.msk [vmem:[#allocation4 + $0x24] sm:$0xf] %vm926, %v3396
      %3483 = vst.msk [vmem:[#allocation4 + $0x28] sm:$0xf] %vm926, %v3398
      %3484 = vst.msk [vmem:[#allocation4 + $0x2c] sm:$0xf] %vm926, %v3400
      %3485 = vst.msk [vmem:[#allocation4 + $0x30] sm:$0xf] %vm926, %v3402
      %3486 = vst.msk [vmem:[#allocation4 + $0x34] sm:$0xf] %vm926, %v3404
      %3487 = vst.msk [vmem:[#allocation4 + $0x38] sm:$0xf] %vm926, %v3406
      %3488 = vst.msk [vmem:[#allocation4 + $0x3c] sm:$0xf] %vm926, %v3408
      %3489 = vst.msk [vmem:[#allocation4 + $0x40] sm:$0xf] %vm926, %v3410
      %3490 = vst.msk [vmem:[#allocation4 + $0x44] sm:$0xf] %vm926, %v3412
      %3491 = vst.msk [vmem:[#allocation4 + $0x48] sm:$0xf] %vm926, %v3414
      %3492 = vst.msk [vmem:[#allocation4 + $0x4c] sm:$0xf] %vm926, %v3416
      %3493 = vst.msk [vmem:[#allocation4 + $0x50] sm:$0xf] %vm926, %v3418
      %3494 = vst.msk [vmem:[#allocation4 + $0x54] sm:$0xf] %vm926, %v3420
      %3495 = vst.msk [vmem:[#allocation4 + $0x58] sm:$0xf] %vm926, %v3422
      %3496 = vst.msk [vmem:[#allocation4 + $0x5c] sm:$0xf] %vm926, %v3424
      %3497 = vst.msk [vmem:[#allocation4 + $0x60] sm:$0xf] %vm926, %v3426
      %3498 = vst.msk [vmem:[#allocation4 + $0x64] sm:$0xf] %vm926, %v3428
      %3499 = vst.msk [vmem:[#allocation4 + $0x68] sm:$0xf] %vm926, %v3430
      %3500 = vst.msk [vmem:[#allocation4 + $0x6c] sm:$0xf] %vm926, %v3432
      %3501 = vst.msk [vmem:[#allocation4 + $0x70] sm:$0xf] %vm926, %v3434
      %3502 = vst.msk [vmem:[#allocation4 + $0x74] sm:$0xf] %vm926, %v3436
      %3503 = vst.msk [vmem:[#allocation4 + $0x78] sm:$0xf] %vm926, %v3438
      %3504 = vst.msk [vmem:[#allocation4 + $0x7c] sm:$0xf] %vm926, %v3440
      %v3505 = vld [vmem:[#allocation4] sm:$0xf]
      %v3506 = vld [vmem:[#allocation4 + $0x4] sm:$0xf]
      %v3507 = vld [vmem:[#allocation4 + $0x8] sm:$0xf]
      %v3508 = vld [vmem:[#allocation4 + $0xc] sm:$0xf]
      %v3509 = vld [vmem:[#allocation4 + $0x10] sm:$0xf]
      %v3510 = vld [vmem:[#allocation4 + $0x14] sm:$0xf]
      %v3511 = vld [vmem:[#allocation4 + $0x18] sm:$0xf]
      %v3512 = vld [vmem:[#allocation4 + $0x1c] sm:$0xf]
      %v3513 = vld [vmem:[#allocation4 + $0x20] sm:$0xf]
      %v3514 = vld [vmem:[#allocation4 + $0x24] sm:$0xf]
      %v3515 = vld [vmem:[#allocation4 + $0x28] sm:$0xf]
      %v3516 = vld [vmem:[#allocation4 + $0x2c] sm:$0xf]
      %v3517 = vld [vmem:[#allocation4 + $0x30] sm:$0xf]
      %v3518 = vld [vmem:[#allocation4 + $0x34] sm:$0xf]
      %v3519 = vld [vmem:[#allocation4 + $0x38] sm:$0xf]
      %v3520 = vld [vmem:[#allocation4 + $0x3c] sm:$0xf]
      %v3521 = vld [vmem:[#allocation4 + $0x40] sm:$0xf]
      %v3522 = vld [vmem:[#allocation4 + $0x44] sm:$0xf]
      %v3523 = vld [vmem:[#allocation4 + $0x48] sm:$0xf]
      %v3524 = vld [vmem:[#allocation4 + $0x4c] sm:$0xf]
      %v3525 = vld [vmem:[#allocation4 + $0x50] sm:$0xf]
      %v3526 = vld [vmem:[#allocation4 + $0x54] sm:$0xf]
      %v3527 = vld [vmem:[#allocation4 + $0x58] sm:$0xf]
      %v3528 = vld [vmem:[#allocation4 + $0x5c] sm:$0xf]
      %v3529 = vld [vmem:[#allocation4 + $0x60] sm:$0xf]
      %v3530 = vld [vmem:[#allocation4 + $0x64] sm:$0xf]
      %v3531 = vld [vmem:[#allocation4 + $0x68] sm:$0xf]
      %v3532 = vld [vmem:[#allocation4 + $0x6c] sm:$0xf]
      %v3533 = vld [vmem:[#allocation4 + $0x70] sm:$0xf]
      %v3534 = vld [vmem:[#allocation4 + $0x74] sm:$0xf]
      %v3535 = vld [vmem:[#allocation4 + $0x78] sm:$0xf]
      %v3536 = vld [vmem:[#allocation4 + $0x7c] sm:$0xf]
      %v3537 = vld [vmem:[%s3] sm:$0xf]
      %v3538 = vld [vmem:[%s3 + $0x4] sm:$0x3]
      %v3539 = vld [vmem:[%s2928] sm:$0xff]
      %v3540 = vld [vmem:[%s2928 + $0x8] sm:$0xff]
      %v3541 = vld [vmem:[%s2928 + $0x18] sm:$0xff]
      %v3542 = vld [vmem:[%s2928 + $0x20] sm:$0xff]
      %v3543 = vld [vmem:[%s2928 + $0x30] sm:$0xff]
      %v3544 = vld [vmem:[%s2928 + $0x38] sm:$0xff]
      %v3545 = vld [vmem:[%s2928 + $0x48] sm:$0xff]
      %v3546 = vld [vmem:[%s2928 + $0x50] sm:$0xff]
      %v3547 = vld [vmem:[%s2928 + $0x60] sm:$0xff]
      %v3548 = vld [vmem:[%s2928 + $0x68] sm:$0xff]
      %v3549 = vld [vmem:[%s2928 + $0x78] sm:$0xff]
      %v3550 = vld [vmem:[%s2928 + $0x80] sm:$0xff]
      %v3551 = vld [vmem:[%s2928 + $0x90] sm:$0xff]
      %v3552 = vld [vmem:[%s2928 + $0x98] sm:$0xff]
      %v3553 = vld [vmem:[%s2928 + $0xa8] sm:$0xff]
      %v3554 = vld [vmem:[%s2928 + $0xb0] sm:$0xff]
      %v3555 = vld [vmem:[%s2928 + $0xc0] sm:$0xff]
      %v3556 = vld [vmem:[%s2928 + $0xc8] sm:$0xff]
      %v3557 = vld [vmem:[%s2928 + $0xd8] sm:$0xff]
      %v3558 = vld [vmem:[%s2928 + $0xe0] sm:$0xff]
      %v3559 = vld [vmem:[%s2928 + $0xf0] sm:$0xff]
      %v3560 = vld [vmem:[%s2928 + $0xf8] sm:$0xff]
      %v3561 = vld [vmem:[%s2928 + $0x108] sm:$0xff]
      %v3562 = vld [vmem:[%s2928 + $0x110] sm:$0xff]
      %v3563 = vld [vmem:[%s2928 + $0x120] sm:$0xff]
      %v3564 = vld [vmem:[%s2928 + $0x128] sm:$0xff]
      %v3565 = vld [vmem:[%s2928 + $0x138] sm:$0xff]
      %v3566 = vld [vmem:[%s2928 + $0x140] sm:$0xff]
      %v3567 = vld [vmem:[%s2928 + $0x150] sm:$0xff]
      %v3568 = vld [vmem:[%s2928 + $0x158] sm:$0xff]
      %v3569 = vld [vmem:[%s2928 + $0x168] sm:$0xff]
      %v3570 = vld [vmem:[%s2928 + $0x170] sm:$0xff]
      %v3571 = vpack.c.bf16 %v3539, %v3539
      %v3572 = vpack.c.bf16 %v3540, %v3540
      %v3573 = vpack.c.bf16 %v3541, %v3541
      %v3574 = vpack.c.bf16 %v3542, %v3542
      %v3575 = vpack.c.bf16 %v3543, %v3543
      %v3576 = vpack.c.bf16 %v3544, %v3544
      %v3577 = vpack.c.bf16 %v3545, %v3545
      %v3578 = vpack.c.bf16 %v3546, %v3546
      %v3579 = vpack.c.bf16 %v3547, %v3547
      %v3580 = vpack.c.bf16 %v3548, %v3548
      %v3581 = vpack.c.bf16 %v3549, %v3549
      %v3582 = vpack.c.bf16 %v3550, %v3550
      %v3583 = vpack.c.bf16 %v3551, %v3551
      %v3584 = vpack.c.bf16 %v3552, %v3552
      %v3585 = vpack.c.bf16 %v3553, %v3553
      %v3586 = vpack.c.bf16 %v3554, %v3554
      %v3587 = vpack.c.bf16 %v3555, %v3555
      %v3588 = vpack.c.bf16 %v3556, %v3556
      %v3589 = vpack.c.bf16 %v3557, %v3557
      %v3590 = vpack.c.bf16 %v3558, %v3558
      %v3591 = vpack.c.bf16 %v3559, %v3559
      %v3592 = vpack.c.bf16 %v3560, %v3560
      %v3593 = vpack.c.bf16 %v3561, %v3561
      %v3594 = vpack.c.bf16 %v3562, %v3562
      %v3595 = vpack.c.bf16 %v3563, %v3563
      %v3596 = vpack.c.bf16 %v3564, %v3564
      %v3597 = vpack.c.bf16 %v3565, %v3565
      %v3598 = vpack.c.bf16 %v3566, %v3566
      %v3599 = vpack.c.bf16 %v3567, %v3567
      %v3600 = vpack.c.bf16 %v3568, %v3568
      %v3601 = vpack.c.bf16 %v3569, %v3569
      %v3602 = vpack.c.bf16 %v3570, %v3570
      %3603 = vst.msk [vmem:[#allocation4] sm:$0xf] %vm476, %v3571
      %3604 = vst.msk [vmem:[#allocation4 + $0x4] sm:$0xf] %vm476, %v3572
      %3605 = vst.msk [vmem:[#allocation4 + $0x8] sm:$0xf] %vm476, %v3573
      %3606 = vst.msk [vmem:[#allocation4 + $0xc] sm:$0xf] %vm476, %v3574
      %3607 = vst.msk [vmem:[#allocation4 + $0x10] sm:$0xf] %vm476, %v3575
      %3608 = vst.msk [vmem:[#allocation4 + $0x14] sm:$0xf] %vm476, %v3576
      %3609 = vst.msk [vmem:[#allocation4 + $0x18] sm:$0xf] %vm476, %v3577
      %3610 = vst.msk [vmem:[#allocation4 + $0x1c] sm:$0xf] %vm476, %v3578
      %3611 = vst.msk [vmem:[#allocation4 + $0x20] sm:$0xf] %vm476, %v3579
      %3612 = vst.msk [vmem:[#allocation4 + $0x24] sm:$0xf] %vm476, %v3580
      %3613 = vst.msk [vmem:[#allocation4 + $0x28] sm:$0xf] %vm476, %v3581
      %3614 = vst.msk [vmem:[#allocation4 + $0x2c] sm:$0xf] %vm476, %v3582
      %3615 = vst.msk [vmem:[#allocation4 + $0x30] sm:$0xf] %vm476, %v3583
      %3616 = vst.msk [vmem:[#allocation4 + $0x34] sm:$0xf] %vm476, %v3584
      %3617 = vst.msk [vmem:[#allocation4 + $0x38] sm:$0xf] %vm476, %v3585
      %3618 = vst.msk [vmem:[#allocation4 + $0x3c] sm:$0xf] %vm476, %v3586
      %3619 = vst.msk [vmem:[#allocation4 + $0x40] sm:$0xf] %vm476, %v3587
      %3620 = vst.msk [vmem:[#allocation4 + $0x44] sm:$0xf] %vm476, %v3588
      %3621 = vst.msk [vmem:[#allocation4 + $0x48] sm:$0xf] %vm476, %v3589
      %3622 = vst.msk [vmem:[#allocation4 + $0x4c] sm:$0xf] %vm476, %v3590
      %3623 = vst.msk [vmem:[#allocation4 + $0x50] sm:$0xf] %vm476, %v3591
      %3624 = vst.msk [vmem:[#allocation4 + $0x54] sm:$0xf] %vm476, %v3592
      %3625 = vst.msk [vmem:[#allocation4 + $0x58] sm:$0xf] %vm476, %v3593
      %3626 = vst.msk [vmem:[#allocation4 + $0x5c] sm:$0xf] %vm476, %v3594
      %3627 = vst.msk [vmem:[#allocation4 + $0x60] sm:$0xf] %vm476, %v3595
      %3628 = vst.msk [vmem:[#allocation4 + $0x64] sm:$0xf] %vm476, %v3596
      %3629 = vst.msk [vmem:[#allocation4 + $0x68] sm:$0xf] %vm476, %v3597
      %3630 = vst.msk [vmem:[#allocation4 + $0x6c] sm:$0xf] %vm476, %v3598
      %3631 = vst.msk [vmem:[#allocation4 + $0x70] sm:$0xf] %vm476, %v3599
      %3632 = vst.msk [vmem:[#allocation4 + $0x74] sm:$0xf] %vm476, %v3600
      %3633 = vst.msk [vmem:[#allocation4 + $0x78] sm:$0xf] %vm476, %v3601
      %3634 = vst.msk [vmem:[#allocation4 + $0x7c] sm:$0xf] %vm476, %v3602
      %v3635 = vld [vmem:[%s2928 + $0x1] sm:$0xff]
      %v3636 = vld [vmem:[%s2928 + $0x9] sm:$0xff]
      %v3637 = vld [vmem:[%s2928 + $0x19] sm:$0xff]
      %v3638 = vld [vmem:[%s2928 + $0x21] sm:$0xff]
      %v3639 = vld [vmem:[%s2928 + $0x31] sm:$0xff]
      %v3640 = vld [vmem:[%s2928 + $0x39] sm:$0xff]
      %v3641 = vld [vmem:[%s2928 + $0x49] sm:$0xff]
      %v3642 = vld [vmem:[%s2928 + $0x51] sm:$0xff]
      %v3643 = vld [vmem:[%s2928 + $0x61] sm:$0xff]
      %v3644 = vld [vmem:[%s2928 + $0x69] sm:$0xff]
      %v3645 = vld [vmem:[%s2928 + $0x79] sm:$0xff]
      %v3646 = vld [vmem:[%s2928 + $0x81] sm:$0xff]
      %v3647 = vld [vmem:[%s2928 + $0x91] sm:$0xff]
      %v3648 = vld [vmem:[%s2928 + $0x99] sm:$0xff]
      %v3649 = vld [vmem:[%s2928 + $0xa9] sm:$0xff]
      %v3650 = vld [vmem:[%s2928 + $0xb1] sm:$0xff]
      %v3651 = vld [vmem:[%s2928 + $0xc1] sm:$0xff]
      %v3652 = vld [vmem:[%s2928 + $0xc9] sm:$0xff]
      %v3653 = vld [vmem:[%s2928 + $0xd9] sm:$0xff]
      %v3654 = vld [vmem:[%s2928 + $0xe1] sm:$0xff]
      %v3655 = vld [vmem:[%s2928 + $0xf1] sm:$0xff]
      %v3656 = vld [vmem:[%s2928 + $0xf9] sm:$0xff]
      %v3657 = vld [vmem:[%s2928 + $0x109] sm:$0xff]
      %v3658 = vld [vmem:[%s2928 + $0x111] sm:$0xff]
      %v3659 = vld [vmem:[%s2928 + $0x121] sm:$0xff]
      %v3660 = vld [vmem:[%s2928 + $0x129] sm:$0xff]
      %v3661 = vld [vmem:[%s2928 + $0x139] sm:$0xff]
      %v3662 = vld [vmem:[%s2928 + $0x141] sm:$0xff]
      %v3663 = vld [vmem:[%s2928 + $0x151] sm:$0xff]
      %v3664 = vld [vmem:[%s2928 + $0x159] sm:$0xff]
      %v3665 = vld [vmem:[%s2928 + $0x169] sm:$0xff]
      %v3666 = vld [vmem:[%s2928 + $0x171] sm:$0xff]
      %v3667 = vpack.c.bf16 %v3635, %v3635
      %v3668 = vpack.c.bf16 %v3636, %v3636
      %v3669 = vpack.c.bf16 %v3637, %v3637
      %v3670 = vpack.c.bf16 %v3638, %v3638
      %v3671 = vpack.c.bf16 %v3639, %v3639
      %v3672 = vpack.c.bf16 %v3640, %v3640
      %v3673 = vpack.c.bf16 %v3641, %v3641
      %v3674 = vpack.c.bf16 %v3642, %v3642
      %v3675 = vpack.c.bf16 %v3643, %v3643
      %v3676 = vpack.c.bf16 %v3644, %v3644
      %v3677 = vpack.c.bf16 %v3645, %v3645
      %v3678 = vpack.c.bf16 %v3646, %v3646
      %v3679 = vpack.c.bf16 %v3647, %v3647
      %v3680 = vpack.c.bf16 %v3648, %v3648
      %v3681 = vpack.c.bf16 %v3649, %v3649
      %v3682 = vpack.c.bf16 %v3650, %v3650
      %v3683 = vpack.c.bf16 %v3651, %v3651
      %v3684 = vpack.c.bf16 %v3652, %v3652
      %v3685 = vpack.c.bf16 %v3653, %v3653
      %v3686 = vpack.c.bf16 %v3654, %v3654
      %v3687 = vpack.c.bf16 %v3655, %v3655
      %v3688 = vpack.c.bf16 %v3656, %v3656
      %v3689 = vpack.c.bf16 %v3657, %v3657
      %v3690 = vpack.c.bf16 %v3658, %v3658
      %v3691 = vpack.c.bf16 %v3659, %v3659
      %v3692 = vpack.c.bf16 %v3660, %v3660
      %v3693 = vpack.c.bf16 %v3661, %v3661
      %v3694 = vpack.c.bf16 %v3662, %v3662
      %v3695 = vpack.c.bf16 %v3663, %v3663
      %v3696 = vpack.c.bf16 %v3664, %v3664
      %v3697 = vpack.c.bf16 %v3665, %v3665
      %v3698 = vpack.c.bf16 %v3666, %v3666
      %3731 = vrot.lane.b32.xlu0 %v3667, 4
      %v3732 = vpop.permute.xlu0 %3731
      %3733 = vrot.lane.b32.xlu0 %v3668, 4
      %v3734 = vpop.permute.xlu0 %3733
      %3735 = vrot.lane.b32.xlu0 %v3669, 4
      %v3736 = vpop.permute.xlu0 %3735
      %3737 = vrot.lane.b32.xlu0 %v3670, 4
      %v3738 = vpop.permute.xlu0 %3737
      %3739 = vrot.lane.b32.xlu0 %v3671, 4
      %v3740 = vpop.permute.xlu0 %3739
      %3741 = vrot.lane.b32.xlu0 %v3672, 4
      %v3742 = vpop.permute.xlu0 %3741
      %3743 = vrot.lane.b32.xlu0 %v3673, 4
      %v3744 = vpop.permute.xlu0 %3743
      %3745 = vrot.lane.b32.xlu0 %v3674, 4
      %v3746 = vpop.permute.xlu0 %3745
      %3747 = vrot.lane.b32.xlu0 %v3675, 4
      %v3748 = vpop.permute.xlu0 %3747
      %3749 = vrot.lane.b32.xlu0 %v3676, 4
      %v3750 = vpop.permute.xlu0 %3749
      %3751 = vrot.lane.b32.xlu0 %v3677, 4
      %v3752 = vpop.permute.xlu0 %3751
      %3753 = vrot.lane.b32.xlu0 %v3678, 4
      %v3754 = vpop.permute.xlu0 %3753
      %3755 = vrot.lane.b32.xlu0 %v3679, 4
      %v3756 = vpop.permute.xlu0 %3755
      %3757 = vrot.lane.b32.xlu0 %v3680, 4
      %v3758 = vpop.permute.xlu0 %3757
      %3759 = vrot.lane.b32.xlu0 %v3681, 4
      %v3760 = vpop.permute.xlu0 %3759
      %3761 = vrot.lane.b32.xlu0 %v3682, 4
      %v3762 = vpop.permute.xlu0 %3761
      %3763 = vrot.lane.b32.xlu0 %v3683, 4
      %v3764 = vpop.permute.xlu0 %3763
      %3765 = vrot.lane.b32.xlu0 %v3684, 4
      %v3766 = vpop.permute.xlu0 %3765
      %3767 = vrot.lane.b32.xlu0 %v3685, 4
      %v3768 = vpop.permute.xlu0 %3767
      %3769 = vrot.lane.b32.xlu0 %v3686, 4
      %v3770 = vpop.permute.xlu0 %3769
      %3771 = vrot.lane.b32.xlu0 %v3687, 4
      %v3772 = vpop.permute.xlu0 %3771
      %3773 = vrot.lane.b32.xlu0 %v3688, 4
      %v3774 = vpop.permute.xlu0 %3773
      %3775 = vrot.lane.b32.xlu0 %v3689, 4
      %v3776 = vpop.permute.xlu0 %3775
      %3777 = vrot.lane.b32.xlu0 %v3690, 4
      %v3778 = vpop.permute.xlu0 %3777
      %3779 = vrot.lane.b32.xlu0 %v3691, 4
      %v3780 = vpop.permute.xlu0 %3779
      %3781 = vrot.lane.b32.xlu0 %v3692, 4
      %v3782 = vpop.permute.xlu0 %3781
      %3783 = vrot.lane.b32.xlu0 %v3693, 4
      %v3784 = vpop.permute.xlu0 %3783
      %3785 = vrot.lane.b32.xlu0 %v3694, 4
      %v3786 = vpop.permute.xlu0 %3785
      %3787 = vrot.lane.b32.xlu0 %v3695, 4
      %v3788 = vpop.permute.xlu0 %3787
      %3789 = vrot.lane.b32.xlu0 %v3696, 4
      %v3790 = vpop.permute.xlu0 %3789
      %3791 = vrot.lane.b32.xlu0 %v3697, 4
      %v3792 = vpop.permute.xlu0 %3791
      %3793 = vrot.lane.b32.xlu0 %v3698, 4
      %v3794 = vpop.permute.xlu0 %3793
      %3827 = vst.msk [vmem:[#allocation4] sm:$0xf] %vm701, %v3732
      %3828 = vst.msk [vmem:[#allocation4 + $0x4] sm:$0xf] %vm701, %v3734
      %3829 = vst.msk [vmem:[#allocation4 + $0x8] sm:$0xf] %vm701, %v3736
      %3830 = vst.msk [vmem:[#allocation4 + $0xc] sm:$0xf] %vm701, %v3738
      %3831 = vst.msk [vmem:[#allocation4 + $0x10] sm:$0xf] %vm701, %v3740
      %3832 = vst.msk [vmem:[#allocation4 + $0x14] sm:$0xf] %vm701, %v3742
      %3833 = vst.msk [vmem:[#allocation4 + $0x18] sm:$0xf] %vm701, %v3744
      %3834 = vst.msk [vmem:[#allocation4 + $0x1c] sm:$0xf] %vm701, %v3746
      %3835 = vst.msk [vmem:[#allocation4 + $0x20] sm:$0xf] %vm701, %v3748
      %3836 = vst.msk [vmem:[#allocation4 + $0x24] sm:$0xf] %vm701, %v3750
      %3837 = vst.msk [vmem:[#allocation4 + $0x28] sm:$0xf] %vm701, %v3752
      %3838 = vst.msk [vmem:[#allocation4 + $0x2c] sm:$0xf] %vm701, %v3754
      %3839 = vst.msk [vmem:[#allocation4 + $0x30] sm:$0xf] %vm701, %v3756
      %3840 = vst.msk [vmem:[#allocation4 + $0x34] sm:$0xf] %vm701, %v3758
      %3841 = vst.msk [vmem:[#allocation4 + $0x38] sm:$0xf] %vm701, %v3760
      %3842 = vst.msk [vmem:[#allocation4 + $0x3c] sm:$0xf] %vm701, %v3762
      %3843 = vst.msk [vmem:[#allocation4 + $0x40] sm:$0xf] %vm701, %v3764
      %3844 = vst.msk [vmem:[#allocation4 + $0x44] sm:$0xf] %vm701, %v3766
      %3845 = vst.msk [vmem:[#allocation4 + $0x48] sm:$0xf] %vm701, %v3768
      %3846 = vst.msk [vmem:[#allocation4 + $0x4c] sm:$0xf] %vm701, %v3770
      %3847 = vst.msk [vmem:[#allocation4 + $0x50] sm:$0xf] %vm701, %v3772
      %3848 = vst.msk [vmem:[#allocation4 + $0x54] sm:$0xf] %vm701, %v3774
      %3849 = vst.msk [vmem:[#allocation4 + $0x58] sm:$0xf] %vm701, %v3776
      %3850 = vst.msk [vmem:[#allocation4 + $0x5c] sm:$0xf] %vm701, %v3778
      %3851 = vst.msk [vmem:[#allocation4 + $0x60] sm:$0xf] %vm701, %v3780
      %3852 = vst.msk [vmem:[#allocation4 + $0x64] sm:$0xf] %vm701, %v3782
      %3853 = vst.msk [vmem:[#allocation4 + $0x68] sm:$0xf] %vm701, %v3784
      %3854 = vst.msk [vmem:[#allocation4 + $0x6c] sm:$0xf] %vm701, %v3786
      %3855 = vst.msk [vmem:[#allocation4 + $0x70] sm:$0xf] %vm701, %v3788
      %3856 = vst.msk [vmem:[#allocation4 + $0x74] sm:$0xf] %vm701, %v3790
      %3857 = vst.msk [vmem:[#allocation4 + $0x78] sm:$0xf] %vm701, %v3792
      %3858 = vst.msk [vmem:[#allocation4 + $0x7c] sm:$0xf] %vm701, %v3794
      %v3859 = vld [vmem:[%s2928 + $0x2] sm:$0xff]
      %v3860 = vld [vmem:[%s2928 + $0xa] sm:$0xff]
      %v3861 = vld [vmem:[%s2928 + $0x1a] sm:$0xff]
      %v3862 = vld [vmem:[%s2928 + $0x22] sm:$0xff]
      %v3863 = vld [vmem:[%s2928 + $0x32] sm:$0xff]
      %v3864 = vld [vmem:[%s2928 + $0x3a] sm:$0xff]
      %v3865 = vld [vmem:[%s2928 + $0x4a] sm:$0xff]
      %v3866 = vld [vmem:[%s2928 + $0x52] sm:$0xff]
      %v3867 = vld [vmem:[%s2928 + $0x62] sm:$0xff]
      %v3868 = vld [vmem:[%s2928 + $0x6a] sm:$0xff]
      %v3869 = vld [vmem:[%s2928 + $0x7a] sm:$0xff]
      %v3870 = vld [vmem:[%s2928 + $0x82] sm:$0xff]
      %v3871 = vld [vmem:[%s2928 + $0x92] sm:$0xff]
      %v3872 = vld [vmem:[%s2928 + $0x9a] sm:$0xff]
      %v3873 = vld [vmem:[%s2928 + $0xaa] sm:$0xff]
      %v3874 = vld [vmem:[%s2928 + $0xb2] sm:$0xff]
      %v3875 = vld [vmem:[%s2928 + $0xc2] sm:$0xff]
      %v3876 = vld [vmem:[%s2928 + $0xca] sm:$0xff]
      %v3877 = vld [vmem:[%s2928 + $0xda] sm:$0xff]
      %v3878 = vld [vmem:[%s2928 + $0xe2] sm:$0xff]
      %v3879 = vld [vmem:[%s2928 + $0xf2] sm:$0xff]
      %v3880 = vld [vmem:[%s2928 + $0xfa] sm:$0xff]
      %v3881 = vld [vmem:[%s2928 + $0x10a] sm:$0xff]
      %v3882 = vld [vmem:[%s2928 + $0x112] sm:$0xff]
      %v3883 = vld [vmem:[%s2928 + $0x122] sm:$0xff]
      %v3884 = vld [vmem:[%s2928 + $0x12a] sm:$0xff]
      %v3885 = vld [vmem:[%s2928 + $0x13a] sm:$0xff]
      %v3886 = vld [vmem:[%s2928 + $0x142] sm:$0xff]
      %v3887 = vld [vmem:[%s2928 + $0x152] sm:$0xff]
      %v3888 = vld [vmem:[%s2928 + $0x15a] sm:$0xff]
      %v3889 = vld [vmem:[%s2928 + $0x16a] sm:$0xff]
      %v3890 = vld [vmem:[%s2928 + $0x172] sm:$0xff]
      %v3891 = vpack.c.bf16 %v3859, %v3859
      %v3892 = vpack.c.bf16 %v3860, %v3860
      %v3893 = vpack.c.bf16 %v3861, %v3861
      %v3894 = vpack.c.bf16 %v3862, %v3862
      %v3895 = vpack.c.bf16 %v3863, %v3863
      %v3896 = vpack.c.bf16 %v3864, %v3864
      %v3897 = vpack.c.bf16 %v3865, %v3865
      %v3898 = vpack.c.bf16 %v3866, %v3866
      %v3899 = vpack.c.bf16 %v3867, %v3867
      %v3900 = vpack.c.bf16 %v3868, %v3868
      %v3901 = vpack.c.bf16 %v3869, %v3869
      %v3902 = vpack.c.bf16 %v3870, %v3870
      %v3903 = vpack.c.bf16 %v3871, %v3871
      %v3904 = vpack.c.bf16 %v3872, %v3872
      %v3905 = vpack.c.bf16 %v3873, %v3873
      %v3906 = vpack.c.bf16 %v3874, %v3874
      %v3907 = vpack.c.bf16 %v3875, %v3875
      %v3908 = vpack.c.bf16 %v3876, %v3876
      %v3909 = vpack.c.bf16 %v3877, %v3877
      %v3910 = vpack.c.bf16 %v3878, %v3878
      %v3911 = vpack.c.bf16 %v3879, %v3879
      %v3912 = vpack.c.bf16 %v3880, %v3880
      %v3913 = vpack.c.bf16 %v3881, %v3881
      %v3914 = vpack.c.bf16 %v3882, %v3882
      %v3915 = vpack.c.bf16 %v3883, %v3883
      %v3916 = vpack.c.bf16 %v3884, %v3884
      %v3917 = vpack.c.bf16 %v3885, %v3885
      %v3918 = vpack.c.bf16 %v3886, %v3886
      %v3919 = vpack.c.bf16 %v3887, %v3887
      %v3920 = vpack.c.bf16 %v3888, %v3888
      %v3921 = vpack.c.bf16 %v3889, %v3889
      %v3922 = vpack.c.bf16 %v3890, %v3890
      %3955 = vrot.lane.b32.xlu0 %v3891, 8
      %v3956 = vpop.permute.xlu0 %3955
      %3957 = vrot.lane.b32.xlu0 %v3892, 8
      %v3958 = vpop.permute.xlu0 %3957
      %3959 = vrot.lane.b32.xlu0 %v3893, 8
      %v3960 = vpop.permute.xlu0 %3959
      %3961 = vrot.lane.b32.xlu0 %v3894, 8
      %v3962 = vpop.permute.xlu0 %3961
      %3963 = vrot.lane.b32.xlu0 %v3895, 8
      %v3964 = vpop.permute.xlu0 %3963
      %3965 = vrot.lane.b32.xlu0 %v3896, 8
      %v3966 = vpop.permute.xlu0 %3965
      %3967 = vrot.lane.b32.xlu0 %v3897, 8
      %v3968 = vpop.permute.xlu0 %3967
      %3969 = vrot.lane.b32.xlu0 %v3898, 8
      %v3970 = vpop.permute.xlu0 %3969
      %3971 = vrot.lane.b32.xlu0 %v3899, 8
      %v3972 = vpop.permute.xlu0 %3971
      %3973 = vrot.lane.b32.xlu0 %v3900, 8
      %v3974 = vpop.permute.xlu0 %3973
      %3975 = vrot.lane.b32.xlu0 %v3901, 8
      %v3976 = vpop.permute.xlu0 %3975
      %3977 = vrot.lane.b32.xlu0 %v3902, 8
      %v3978 = vpop.permute.xlu0 %3977
      %3979 = vrot.lane.b32.xlu0 %v3903, 8
      %v3980 = vpop.permute.xlu0 %3979
      %3981 = vrot.lane.b32.xlu0 %v3904, 8
      %v3982 = vpop.permute.xlu0 %3981
      %3983 = vrot.lane.b32.xlu0 %v3905, 8
      %v3984 = vpop.permute.xlu0 %3983
      %3985 = vrot.lane.b32.xlu0 %v3906, 8
      %v3986 = vpop.permute.xlu0 %3985
      %3987 = vrot.lane.b32.xlu0 %v3907, 8
      %v3988 = vpop.permute.xlu0 %3987
      %3989 = vrot.lane.b32.xlu0 %v3908, 8
      %v3990 = vpop.permute.xlu0 %3989
      %3991 = vrot.lane.b32.xlu0 %v3909, 8
      %v3992 = vpop.permute.xlu0 %3991
      %3993 = vrot.lane.b32.xlu0 %v3910, 8
      %v3994 = vpop.permute.xlu0 %3993
      %3995 = vrot.lane.b32.xlu0 %v3911, 8
      %v3996 = vpop.permute.xlu0 %3995
      %3997 = vrot.lane.b32.xlu0 %v3912, 8
      %v3998 = vpop.permute.xlu0 %3997
      %3999 = vrot.lane.b32.xlu0 %v3913, 8
      %v4000 = vpop.permute.xlu0 %3999
      %4001 = vrot.lane.b32.xlu0 %v3914, 8
      %v4002 = vpop.permute.xlu0 %4001
      %4003 = vrot.lane.b32.xlu0 %v3915, 8
      %v4004 = vpop.permute.xlu0 %4003
      %4005 = vrot.lane.b32.xlu0 %v3916, 8
      %v4006 = vpop.permute.xlu0 %4005
      %4007 = vrot.lane.b32.xlu0 %v3917, 8
      %v4008 = vpop.permute.xlu0 %4007
      %4009 = vrot.lane.b32.xlu0 %v3918, 8
      %v4010 = vpop.permute.xlu0 %4009
      %4011 = vrot.lane.b32.xlu0 %v3919, 8
      %v4012 = vpop.permute.xlu0 %4011
      %4013 = vrot.lane.b32.xlu0 %v3920, 8
      %v4014 = vpop.permute.xlu0 %4013
      %4015 = vrot.lane.b32.xlu0 %v3921, 8
      %v4016 = vpop.permute.xlu0 %4015
      %4017 = vrot.lane.b32.xlu0 %v3922, 8
      %v4018 = vpop.permute.xlu0 %4017
      %4051 = vst.msk [vmem:[#allocation4] sm:$0xf] %vm926, %v3956
      %4052 = vst.msk [vmem:[#allocation4 + $0x4] sm:$0xf] %vm926, %v3958
      %4053 = vst.msk [vmem:[#allocation4 + $0x8] sm:$0xf] %vm926, %v3960
      %4054 = vst.msk [vmem:[#allocation4 + $0xc] sm:$0xf] %vm926, %v3962
      %4055 = vst.msk [vmem:[#allocation4 + $0x10] sm:$0xf] %vm926, %v3964
      %4056 = vst.msk [vmem:[#allocation4 + $0x14] sm:$0xf] %vm926, %v3966
      %4057 = vst.msk [vmem:[#allocation4 + $0x18] sm:$0xf] %vm926, %v3968
      %4058 = vst.msk [vmem:[#allocation4 + $0x1c] sm:$0xf] %vm926, %v3970
      %4059 = vst.msk [vmem:[#allocation4 + $0x20] sm:$0xf] %vm926, %v3972
      %4060 = vst.msk [vmem:[#allocation4 + $0x24] sm:$0xf] %vm926, %v3974
      %4061 = vst.msk [vmem:[#allocation4 + $0x28] sm:$0xf] %vm926, %v3976
      %4062 = vst.msk [vmem:[#allocation4 + $0x2c] sm:$0xf] %vm926, %v3978
      %4063 = vst.msk [vmem:[#allocation4 + $0x30] sm:$0xf] %vm926, %v3980
      %4064 = vst.msk [vmem:[#allocation4 + $0x34] sm:$0xf] %vm926, %v3982
      %4065 = vst.msk [vmem:[#allocation4 + $0x38] sm:$0xf] %vm926, %v3984
      %4066 = vst.msk [vmem:[#allocation4 + $0x3c] sm:$0xf] %vm926, %v3986
      %4067 = vst.msk [vmem:[#allocation4 + $0x40] sm:$0xf] %vm926, %v3988
      %4068 = vst.msk [vmem:[#allocation4 + $0x44] sm:$0xf] %vm926, %v3990
      %4069 = vst.msk [vmem:[#allocation4 + $0x48] sm:$0xf] %vm926, %v3992
      %4070 = vst.msk [vmem:[#allocation4 + $0x4c] sm:$0xf] %vm926, %v3994
      %4071 = vst.msk [vmem:[#allocation4 + $0x50] sm:$0xf] %vm926, %v3996
      %4072 = vst.msk [vmem:[#allocation4 + $0x54] sm:$0xf] %vm926, %v3998
      %4073 = vst.msk [vmem:[#allocation4 + $0x58] sm:$0xf] %vm926, %v4000
      %4074 = vst.msk [vmem:[#allocation4 + $0x5c] sm:$0xf] %vm926, %v4002
      %4075 = vst.msk [vmem:[#allocation4 + $0x60] sm:$0xf] %vm926, %v4004
      %4076 = vst.msk [vmem:[#allocation4 + $0x64] sm:$0xf] %vm926, %v4006
      %4077 = vst.msk [vmem:[#allocation4 + $0x68] sm:$0xf] %vm926, %v4008
      %4078 = vst.msk [vmem:[#allocation4 + $0x6c] sm:$0xf] %vm926, %v4010
      %4079 = vst.msk [vmem:[#allocation4 + $0x70] sm:$0xf] %vm926, %v4012
      %4080 = vst.msk [vmem:[#allocation4 + $0x74] sm:$0xf] %vm926, %v4014
      %4081 = vst.msk [vmem:[#allocation4 + $0x78] sm:$0xf] %vm926, %v4016
      %4082 = vst.msk [vmem:[#allocation4 + $0x7c] sm:$0xf] %vm926, %v4018
      %v4083 = vld [vmem:[#allocation4] sm:$0xf]
      %v4084 = vld [vmem:[#allocation4 + $0x4] sm:$0xf]
      %v4085 = vld [vmem:[#allocation4 + $0x8] sm:$0xf]
      %v4086 = vld [vmem:[#allocation4 + $0xc] sm:$0xf]
      %v4087 = vld [vmem:[#allocation4 + $0x10] sm:$0xf]
      %v4088 = vld [vmem:[#allocation4 + $0x14] sm:$0xf]
      %v4089 = vld [vmem:[#allocation4 + $0x18] sm:$0xf]
      %v4090 = vld [vmem:[#allocation4 + $0x1c] sm:$0xf]
      %v4091 = vld [vmem:[#allocation4 + $0x20] sm:$0xf]
      %v4092 = vld [vmem:[#allocation4 + $0x24] sm:$0xf]
      %v4093 = vld [vmem:[#allocation4 + $0x28] sm:$0xf]
      %v4094 = vld [vmem:[#allocation4 + $0x2c] sm:$0xf]
      %v4095 = vld [vmem:[#allocation4 + $0x30] sm:$0xf]
      %v4096 = vld [vmem:[#allocation4 + $0x34] sm:$0xf]
      %v4097 = vld [vmem:[#allocation4 + $0x38] sm:$0xf]
      %v4098 = vld [vmem:[#allocation4 + $0x3c] sm:$0xf]
      %v4099 = vld [vmem:[#allocation4 + $0x40] sm:$0xf]
      %v4100 = vld [vmem:[#allocation4 + $0x44] sm:$0xf]
      %v4101 = vld [vmem:[#allocation4 + $0x48] sm:$0xf]
      %v4102 = vld [vmem:[#allocation4 + $0x4c] sm:$0xf]
      %v4103 = vld [vmem:[#allocation4 + $0x50] sm:$0xf]
      %v4104 = vld [vmem:[#allocation4 + $0x54] sm:$0xf]
      %v4105 = vld [vmem:[#allocation4 + $0x58] sm:$0xf]
      %v4106 = vld [vmem:[#allocation4 + $0x5c] sm:$0xf]
      %v4107 = vld [vmem:[#allocation4 + $0x60] sm:$0xf]
      %v4108 = vld [vmem:[#allocation4 + $0x64] sm:$0xf]
      %v4109 = vld [vmem:[#allocation4 + $0x68] sm:$0xf]
      %v4110 = vld [vmem:[#allocation4 + $0x6c] sm:$0xf]
      %v4111 = vld [vmem:[#allocation4 + $0x70] sm:$0xf]
      %v4112 = vld [vmem:[#allocation4 + $0x74] sm:$0xf]
      %v4113 = vld [vmem:[#allocation4 + $0x78] sm:$0xf]
      %v4114 = vld [vmem:[#allocation4 + $0x7c] sm:$0xf]
      %v4115 = vld [vmem:[%s3 + $0x4] sm:$0xc]
      %v4116 = vld [vmem:[%s3 + $0x8] sm:$0xf]
      %v4149 = vunpack.c.l.b16 %v4083
      %v4150 = vunpack.c.l.b16 %v4084
      %v4151 = vunpack.c.l.b16 %v4085
      %v4152 = vunpack.c.l.b16 %v4086
      %v4153 = vunpack.c.l.b16 %v4087
      %v4154 = vunpack.c.l.b16 %v4088
      %v4155 = vunpack.c.l.b16 %v4089
      %v4156 = vunpack.c.l.b16 %v4090
      %v4157 = vunpack.c.l.b16 %v4091
      %v4158 = vunpack.c.l.b16 %v4092
      %v4159 = vunpack.c.l.b16 %v4093
      %v4160 = vunpack.c.l.b16 %v4094
      %v4161 = vunpack.c.l.b16 %v4095
      %v4162 = vunpack.c.l.b16 %v4096
      %v4163 = vunpack.c.l.b16 %v4097
      %v4164 = vunpack.c.l.b16 %v4098
      %v4165 = vunpack.c.l.b16 %v4099
      %v4166 = vunpack.c.l.b16 %v4100
      %v4167 = vunpack.c.l.b16 %v4101
      %v4168 = vunpack.c.l.b16 %v4102
      %v4169 = vunpack.c.l.b16 %v4103
      %v4170 = vunpack.c.l.b16 %v4104
      %v4171 = vunpack.c.l.b16 %v4105
      %v4172 = vunpack.c.l.b16 %v4106
      %v4173 = vunpack.c.l.b16 %v4107
      %v4174 = vunpack.c.l.b16 %v4108
      %v4175 = vunpack.c.l.b16 %v4109
      %v4176 = vunpack.c.l.b16 %v4110
      %v4177 = vunpack.c.l.b16 %v4111
      %v4178 = vunpack.c.l.b16 %v4112
      %v4179 = vunpack.c.l.b16 %v4113
      %v4180 = vunpack.c.l.b16 %v4114
      %v4181 = vpack.c.b16 %v4150, %v4149
      %v4182 = vpack.c.b16 %v4152, %v4151
      %v4183 = vpack.c.b16 %v4154, %v4153
      %v4184 = vpack.c.b16 %v4156, %v4155
      %v4185 = vpack.c.b16 %v4158, %v4157
      %v4186 = vpack.c.b16 %v4160, %v4159
      %v4187 = vpack.c.b16 %v4162, %v4161
      %v4188 = vpack.c.b16 %v4164, %v4163
      %v4189 = vpack.c.b16 %v4166, %v4165
      %v4190 = vpack.c.b16 %v4168, %v4167
      %v4191 = vpack.c.b16 %v4170, %v4169
      %v4192 = vpack.c.b16 %v4172, %v4171
      %v4193 = vpack.c.b16 %v4174, %v4173
      %v4194 = vpack.c.b16 %v4176, %v4175
      %v4195 = vpack.c.b16 %v4178, %v4177
      %v4196 = vpack.c.b16 %v4180, %v4179
      %v4199 = vunpack.c.l.b16 %v4115
      %v4200 = vunpack.c.l.b16 %v4116
      %v4201 = vpack.c.b16 %v4200, %v4199
      %v4202 = vrot.slane %v4201, 2
      %v4204 = vsel %vm1657, %v4181, 0
      %v4207 = vsel %vm1657, %v4182, 0
      %v4210 = vsel %vm1657, %v4183, 0
      %v4213 = vsel %vm1657, %v4184, 0
      %v4216 = vsel %vm1657, %v4185, 0
      %v4219 = vsel %vm1657, %v4186, 0
      %v4222 = vsel %vm1657, %v4187, 0
      %v4225 = vsel %vm1657, %v4188, 0
      %v4228 = vsel %vm1657, %v4189, 0
      %v4231 = vsel %vm1657, %v4190, 0
      %v4234 = vsel %vm1657, %v4191, 0
      %v4237 = vsel %vm1657, %v4192, 0
      %v4240 = vsel %vm1657, %v4193, 0
      %v4243 = vsel %vm1657, %v4194, 0
      %v4246 = vsel %vm1657, %v4195, 0
      %v4249 = vsel %vm1657, %v4196, 0
      %v4252 = vsel %vm1706, %v4202, 0
      %4254 = vmatpush.bf16.msra.mxu0 0
      %4255 = vmatpush.bf16.msra.mxu0 0
      %4256 = vmatpush.bf16.msra.mxu0 0
      %4257 = vmatpush.bf16.msra.mxu0 0
      %4258 = vmatpush.bf16.msra.mxu0 0
      %4259 = vmatpush.bf16.msra.mxu0 0
      %4260 = vmatpush.bf16.msra.mxu0 0
      %4261 = vmatpush.bf16.msra.mxu0 %v4252
      %4262 = vmatmul.bf16.gmra.mxu0 %v4204
      %v4263 = vpop.f32.mrf.mxu0
      %v4264 = vadd.f32 0.0, %v4263
      %v4265 = vpop.f32.mrf.mxu0
      %v4266 = vadd.f32 0.0, %v4265
      %4267 = vmatmul.bf16.gmra.mxu0 %v4207
      %v4268 = vpop.f32.mrf.mxu0
      %v4269 = vadd.f32 0.0, %v4268
      %v4270 = vpop.f32.mrf.mxu0
      %v4271 = vadd.f32 0.0, %v4270
      %4272 = vmatmul.bf16.gmra.mxu0 %v4210
      %v4273 = vpop.f32.mrf.mxu0
      %v4274 = vadd.f32 0.0, %v4273
      %v4275 = vpop.f32.mrf.mxu0
      %v4276 = vadd.f32 0.0, %v4275
      %4277 = vmatmul.bf16.gmra.mxu0 %v4213
      %v4278 = vpop.f32.mrf.mxu0
      %v4279 = vadd.f32 0.0, %v4278
      %v4280 = vpop.f32.mrf.mxu0
      %v4281 = vadd.f32 0.0, %v4280
      %4282 = vmatmul.bf16.gmra.mxu0 %v4216
      %v4283 = vpop.f32.mrf.mxu0
      %v4284 = vadd.f32 0.0, %v4283
      %v4285 = vpop.f32.mrf.mxu0
      %v4286 = vadd.f32 0.0, %v4285
      %4287 = vmatmul.bf16.gmra.mxu0 %v4219
      %v4288 = vpop.f32.mrf.mxu0
      %v4289 = vadd.f32 0.0, %v4288
      %v4290 = vpop.f32.mrf.mxu0
      %v4291 = vadd.f32 0.0, %v4290
      %4292 = vmatmul.bf16.gmra.mxu0 %v4222
      %v4293 = vpop.f32.mrf.mxu0
      %v4294 = vadd.f32 0.0, %v4293
      %v4295 = vpop.f32.mrf.mxu0
      %v4296 = vadd.f32 0.0, %v4295
      %4297 = vmatmul.bf16.gmra.mxu0 %v4225
      %v4298 = vpop.f32.mrf.mxu0
      %v4299 = vadd.f32 0.0, %v4298
      %v4300 = vpop.f32.mrf.mxu0
      %v4301 = vadd.f32 0.0, %v4300
      %4302 = vmatmul.bf16.gmra.mxu0 %v4228
      %v4303 = vpop.f32.mrf.mxu0
      %v4304 = vadd.f32 0.0, %v4303
      %v4305 = vpop.f32.mrf.mxu0
      %v4306 = vadd.f32 0.0, %v4305
      %4307 = vmatmul.bf16.gmra.mxu0 %v4231
      %v4308 = vpop.f32.mrf.mxu0
      %v4309 = vadd.f32 0.0, %v4308
      %v4310 = vpop.f32.mrf.mxu0
      %v4311 = vadd.f32 0.0, %v4310
      %4312 = vmatmul.bf16.gmra.mxu0 %v4234
      %v4313 = vpop.f32.mrf.mxu0
      %v4314 = vadd.f32 0.0, %v4313
      %v4315 = vpop.f32.mrf.mxu0
      %v4316 = vadd.f32 0.0, %v4315
      %4317 = vmatmul.bf16.gmra.mxu0 %v4237
      %v4318 = vpop.f32.mrf.mxu0
      %v4319 = vadd.f32 0.0, %v4318
      %v4320 = vpop.f32.mrf.mxu0
      %v4321 = vadd.f32 0.0, %v4320
      %4322 = vmatmul.bf16.gmra.mxu0 %v4240
      %v4323 = vpop.f32.mrf.mxu0
      %v4324 = vadd.f32 0.0, %v4323
      %v4325 = vpop.f32.mrf.mxu0
      %v4326 = vadd.f32 0.0, %v4325
      %4327 = vmatmul.bf16.gmra.mxu0 %v4243
      %v4328 = vpop.f32.mrf.mxu0
      %v4329 = vadd.f32 0.0, %v4328
      %v4330 = vpop.f32.mrf.mxu0
      %v4331 = vadd.f32 0.0, %v4330
      %4332 = vmatmul.bf16.gmra.mxu0 %v4246
      %v4333 = vpop.f32.mrf.mxu0
      %v4334 = vadd.f32 0.0, %v4333
      %v4335 = vpop.f32.mrf.mxu0
      %v4336 = vadd.f32 0.0, %v4335
      %4337 = vmatmul.bf16.gmra.mxu0 %v4249
      %v4338 = vpop.f32.mrf.mxu0
      %v4339 = vadd.f32 0.0, %v4338
      %v4340 = vpop.f32.mrf.mxu0
      %v4341 = vadd.f32 0.0, %v4340
      %4342 = vdwg.mxu0
      %v4375 = vunpack.c.l.b16 %v3505
      %v4376 = vunpack.c.l.b16 %v3506
      %v4377 = vunpack.c.l.b16 %v3507
      %v4378 = vunpack.c.l.b16 %v3508
      %v4379 = vunpack.c.l.b16 %v3509
      %v4380 = vunpack.c.l.b16 %v3510
      %v4381 = vunpack.c.l.b16 %v3511
      %v4382 = vunpack.c.l.b16 %v3512
      %v4383 = vunpack.c.l.b16 %v3513
      %v4384 = vunpack.c.l.b16 %v3514
      %v4385 = vunpack.c.l.b16 %v3515
      %v4386 = vunpack.c.l.b16 %v3516
      %v4387 = vunpack.c.l.b16 %v3517
      %v4388 = vunpack.c.l.b16 %v3518
      %v4389 = vunpack.c.l.b16 %v3519
      %v4390 = vunpack.c.l.b16 %v3520
      %v4391 = vunpack.c.l.b16 %v3521
      %v4392 = vunpack.c.l.b16 %v3522
      %v4393 = vunpack.c.l.b16 %v3523
      %v4394 = vunpack.c.l.b16 %v3524
      %v4395 = vunpack.c.l.b16 %v3525
      %v4396 = vunpack.c.l.b16 %v3526
      %v4397 = vunpack.c.l.b16 %v3527
      %v4398 = vunpack.c.l.b16 %v3528
      %v4399 = vunpack.c.l.b16 %v3529
      %v4400 = vunpack.c.l.b16 %v3530
      %v4401 = vunpack.c.l.b16 %v3531
      %v4402 = vunpack.c.l.b16 %v3532
      %v4403 = vunpack.c.l.b16 %v3533
      %v4404 = vunpack.c.l.b16 %v3534
      %v4405 = vunpack.c.l.b16 %v3535
      %v4406 = vunpack.c.l.b16 %v3536
      %v4407 = vpack.c.b16 %v4376, %v4375
      %v4408 = vpack.c.b16 %v4378, %v4377
      %v4409 = vpack.c.b16 %v4380, %v4379
      %v4410 = vpack.c.b16 %v4382, %v4381
      %v4411 = vpack.c.b16 %v4384, %v4383
      %v4412 = vpack.c.b16 %v4386, %v4385
      %v4413 = vpack.c.b16 %v4388, %v4387
      %v4414 = vpack.c.b16 %v4390, %v4389
      %v4415 = vpack.c.b16 %v4392, %v4391
      %v4416 = vpack.c.b16 %v4394, %v4393
      %v4417 = vpack.c.b16 %v4396, %v4395
      %v4418 = vpack.c.b16 %v4398, %v4397
      %v4419 = vpack.c.b16 %v4400, %v4399
      %v4420 = vpack.c.b16 %v4402, %v4401
      %v4421 = vpack.c.b16 %v4404, %v4403
      %v4422 = vpack.c.b16 %v4406, %v4405
      %v4425 = vunpack.c.l.b16 %v3537
      %v4426 = vunpack.c.l.b16 %v3538
      %v4427 = vpack.c.b16 %v4426, %v4425
      %v4429 = vsel %vm1657, %v4407, 0
      %v4432 = vsel %vm1657, %v4408, 0
      %v4435 = vsel %vm1657, %v4409, 0
      %v4438 = vsel %vm1657, %v4410, 0
      %v4441 = vsel %vm1657, %v4411, 0
      %v4444 = vsel %vm1657, %v4412, 0
      %v4447 = vsel %vm1657, %v4413, 0
      %v4450 = vsel %vm1657, %v4414, 0
      %v4453 = vsel %vm1657, %v4415, 0
      %v4456 = vsel %vm1657, %v4416, 0
      %v4459 = vsel %vm1657, %v4417, 0
      %v4462 = vsel %vm1657, %v4418, 0
      %v4465 = vsel %vm1657, %v4419, 0
      %v4468 = vsel %vm1657, %v4420, 0
      %v4471 = vsel %vm1657, %v4421, 0
      %v4474 = vsel %vm1657, %v4422, 0
      %v4477 = vsel %vm1706, %v4427, 0
      %4479 = vmatpush.bf16.msra.mxu0 0
      %4480 = vmatpush.bf16.msra.mxu0 0
      %4481 = vmatpush.bf16.msra.mxu0 0
      %4482 = vmatpush.bf16.msra.mxu0 0
      %4483 = vmatpush.bf16.msra.mxu0 0
      %4484 = vmatpush.bf16.msra.mxu0 0
      %4485 = vmatpush.bf16.msra.mxu0 0
      %4486 = vmatpush.bf16.msra.mxu0 %v4477
      %4487 = vmatmul.bf16.gmra.mxu0 %v4429
      %v4488 = vpop.f32.mrf.mxu0
      %v4489 = vadd.f32 %v4264, %v4488
      %v4490 = vpop.f32.mrf.mxu0
      %v4491 = vadd.f32 %v4266, %v4490
      %4492 = vmatmul.bf16.gmra.mxu0 %v4432
      %v4493 = vpop.f32.mrf.mxu0
      %v4494 = vadd.f32 %v4269, %v4493
      %v4495 = vpop.f32.mrf.mxu0
      %v4496 = vadd.f32 %v4271, %v4495
      %4497 = vmatmul.bf16.gmra.mxu0 %v4435
      %v4498 = vpop.f32.mrf.mxu0
      %v4499 = vadd.f32 %v4274, %v4498
      %v4500 = vpop.f32.mrf.mxu0
      %v4501 = vadd.f32 %v4276, %v4500
      %4502 = vmatmul.bf16.gmra.mxu0 %v4438
      %v4503 = vpop.f32.mrf.mxu0
      %v4504 = vadd.f32 %v4279, %v4503
      %v4505 = vpop.f32.mrf.mxu0
      %v4506 = vadd.f32 %v4281, %v4505
      %4507 = vmatmul.bf16.gmra.mxu0 %v4441
      %v4508 = vpop.f32.mrf.mxu0
      %v4509 = vadd.f32 %v4284, %v4508
      %v4510 = vpop.f32.mrf.mxu0
      %v4511 = vadd.f32 %v4286, %v4510
      %4512 = vmatmul.bf16.gmra.mxu0 %v4444
      %v4513 = vpop.f32.mrf.mxu0
      %v4514 = vadd.f32 %v4289, %v4513
      %v4515 = vpop.f32.mrf.mxu0
      %v4516 = vadd.f32 %v4291, %v4515
      %4517 = vmatmul.bf16.gmra.mxu0 %v4447
      %v4518 = vpop.f32.mrf.mxu0
      %v4519 = vadd.f32 %v4294, %v4518
      %v4520 = vpop.f32.mrf.mxu0
      %v4521 = vadd.f32 %v4296, %v4520
      %4522 = vmatmul.bf16.gmra.mxu0 %v4450
      %v4523 = vpop.f32.mrf.mxu0
      %v4524 = vadd.f32 %v4299, %v4523
      %v4525 = vpop.f32.mrf.mxu0
      %v4526 = vadd.f32 %v4301, %v4525
      %4527 = vmatmul.bf16.gmra.mxu0 %v4453
      %v4528 = vpop.f32.mrf.mxu0
      %v4529 = vadd.f32 %v4304, %v4528
      %v4530 = vpop.f32.mrf.mxu0
      %v4531 = vadd.f32 %v4306, %v4530
      %4532 = vmatmul.bf16.gmra.mxu0 %v4456
      %v4533 = vpop.f32.mrf.mxu0
      %v4534 = vadd.f32 %v4309, %v4533
      %v4535 = vpop.f32.mrf.mxu0
      %v4536 = vadd.f32 %v4311, %v4535
      %4537 = vmatmul.bf16.gmra.mxu0 %v4459
      %v4538 = vpop.f32.mrf.mxu0
      %v4539 = vadd.f32 %v4314, %v4538
      %v4540 = vpop.f32.mrf.mxu0
      %v4541 = vadd.f32 %v4316, %v4540
      %4542 = vmatmul.bf16.gmra.mxu0 %v4462
      %v4543 = vpop.f32.mrf.mxu0
      %v4544 = vadd.f32 %v4319, %v4543
      %v4545 = vpop.f32.mrf.mxu0
      %v4546 = vadd.f32 %v4321, %v4545
      %4547 = vmatmul.bf16.gmra.mxu0 %v4465
      %v4548 = vpop.f32.mrf.mxu0
      %v4549 = vadd.f32 %v4324, %v4548
      %v4550 = vpop.f32.mrf.mxu0
      %v4551 = vadd.f32 %v4326, %v4550
      %4552 = vmatmul.bf16.gmra.mxu0 %v4468
      %v4553 = vpop.f32.mrf.mxu0
      %v4554 = vadd.f32 %v4329, %v4553
      %v4555 = vpop.f32.mrf.mxu0
      %v4556 = vadd.f32 %v4331, %v4555
      %4557 = vmatmul.bf16.gmra.mxu0 %v4471
      %v4558 = vpop.f32.mrf.mxu0
      %v4559 = vadd.f32 %v4334, %v4558
      %v4560 = vpop.f32.mrf.mxu0
      %v4561 = vadd.f32 %v4336, %v4560
      %4562 = vmatmul.bf16.gmra.mxu0 %v4474
      %v4563 = vpop.f32.mrf.mxu0
      %v4564 = vadd.f32 %v4339, %v4563
      %v4565 = vpop.f32.mrf.mxu0
      %v4566 = vadd.f32 %v4341, %v4565
      %4567 = vdwg.mxu0
      %s4568 = scalar_lea.vmem [#allocation3], 48
      %v4569 = vld [vmem:[%s4568] sm:$0xff]
      %v4570 = vld [vmem:[%s4568 + $0x8] sm:$0xff]
      %v4571 = vld [vmem:[%s4568 + $0x18] sm:$0xff]
      %v4572 = vld [vmem:[%s4568 + $0x20] sm:$0xff]
      %v4573 = vld [vmem:[%s4568 + $0x30] sm:$0xff]
      %v4574 = vld [vmem:[%s4568 + $0x38] sm:$0xff]
      %v4575 = vld [vmem:[%s4568 + $0x48] sm:$0xff]
      %v4576 = vld [vmem:[%s4568 + $0x50] sm:$0xff]
      %v4577 = vld [vmem:[%s4568 + $0x60] sm:$0xff]
      %v4578 = vld [vmem:[%s4568 + $0x68] sm:$0xff]
      %v4579 = vld [vmem:[%s4568 + $0x78] sm:$0xff]
      %v4580 = vld [vmem:[%s4568 + $0x80] sm:$0xff]
      %v4581 = vld [vmem:[%s4568 + $0x90] sm:$0xff]
      %v4582 = vld [vmem:[%s4568 + $0x98] sm:$0xff]
      %v4583 = vld [vmem:[%s4568 + $0xa8] sm:$0xff]
      %v4584 = vld [vmem:[%s4568 + $0xb0] sm:$0xff]
      %v4585 = vld [vmem:[%s4568 + $0xc0] sm:$0xff]
      %v4586 = vld [vmem:[%s4568 + $0xc8] sm:$0xff]
      %v4587 = vld [vmem:[%s4568 + $0xd8] sm:$0xff]
      %v4588 = vld [vmem:[%s4568 + $0xe0] sm:$0xff]
      %v4589 = vld [vmem:[%s4568 + $0xf0] sm:$0xff]
      %v4590 = vld [vmem:[%s4568 + $0xf8] sm:$0xff]
      %v4591 = vld [vmem:[%s4568 + $0x108] sm:$0xff]
      %v4592 = vld [vmem:[%s4568 + $0x110] sm:$0xff]
      %v4593 = vld [vmem:[%s4568 + $0x120] sm:$0xff]
      %v4594 = vld [vmem:[%s4568 + $0x128] sm:$0xff]
      %v4595 = vld [vmem:[%s4568 + $0x138] sm:$0xff]
      %v4596 = vld [vmem:[%s4568 + $0x140] sm:$0xff]
      %v4597 = vld [vmem:[%s4568 + $0x150] sm:$0xff]
      %v4598 = vld [vmem:[%s4568 + $0x158] sm:$0xff]
      %v4599 = vld [vmem:[%s4568 + $0x168] sm:$0xff]
      %v4600 = vld [vmem:[%s4568 + $0x170] sm:$0xff]
      %v4601 = vpack.c.bf16 %v4569, %v4569
      %v4602 = vpack.c.bf16 %v4570, %v4570
      %v4603 = vpack.c.bf16 %v4571, %v4571
      %v4604 = vpack.c.bf16 %v4572, %v4572
      %v4605 = vpack.c.bf16 %v4573, %v4573
      %v4606 = vpack.c.bf16 %v4574, %v4574
      %v4607 = vpack.c.bf16 %v4575, %v4575
      %v4608 = vpack.c.bf16 %v4576, %v4576
      %v4609 = vpack.c.bf16 %v4577, %v4577
      %v4610 = vpack.c.bf16 %v4578, %v4578
      %v4611 = vpack.c.bf16 %v4579, %v4579
      %v4612 = vpack.c.bf16 %v4580, %v4580
      %v4613 = vpack.c.bf16 %v4581, %v4581
      %v4614 = vpack.c.bf16 %v4582, %v4582
      %v4615 = vpack.c.bf16 %v4583, %v4583
      %v4616 = vpack.c.bf16 %v4584, %v4584
      %v4617 = vpack.c.bf16 %v4585, %v4585
      %v4618 = vpack.c.bf16 %v4586, %v4586
      %v4619 = vpack.c.bf16 %v4587, %v4587
      %v4620 = vpack.c.bf16 %v4588, %v4588
      %v4621 = vpack.c.bf16 %v4589, %v4589
      %v4622 = vpack.c.bf16 %v4590, %v4590
      %v4623 = vpack.c.bf16 %v4591, %v4591
      %v4624 = vpack.c.bf16 %v4592, %v4592
      %v4625 = vpack.c.bf16 %v4593, %v4593
      %v4626 = vpack.c.bf16 %v4594, %v4594
      %v4627 = vpack.c.bf16 %v4595, %v4595
      %v4628 = vpack.c.bf16 %v4596, %v4596
      %v4629 = vpack.c.bf16 %v4597, %v4597
      %v4630 = vpack.c.bf16 %v4598, %v4598
      %v4631 = vpack.c.bf16 %v4599, %v4599
      %v4632 = vpack.c.bf16 %v4600, %v4600
      %4633 = vst.msk [vmem:[#allocation4] sm:$0xf] %vm476, %v4601
      %4634 = vst.msk [vmem:[#allocation4 + $0x4] sm:$0xf] %vm476, %v4602
      %4635 = vst.msk [vmem:[#allocation4 + $0x8] sm:$0xf] %vm476, %v4603
      %4636 = vst.msk [vmem:[#allocation4 + $0xc] sm:$0xf] %vm476, %v4604
      %4637 = vst.msk [vmem:[#allocation4 + $0x10] sm:$0xf] %vm476, %v4605
      %4638 = vst.msk [vmem:[#allocation4 + $0x14] sm:$0xf] %vm476, %v4606
      %4639 = vst.msk [vmem:[#allocation4 + $0x18] sm:$0xf] %vm476, %v4607
      %4640 = vst.msk [vmem:[#allocation4 + $0x1c] sm:$0xf] %vm476, %v4608
      %4641 = vst.msk [vmem:[#allocation4 + $0x20] sm:$0xf] %vm476, %v4609
      %4642 = vst.msk [vmem:[#allocation4 + $0x24] sm:$0xf] %vm476, %v4610
      %4643 = vst.msk [vmem:[#allocation4 + $0x28] sm:$0xf] %vm476, %v4611
      %4644 = vst.msk [vmem:[#allocation4 + $0x2c] sm:$0xf] %vm476, %v4612
      %4645 = vst.msk [vmem:[#allocation4 + $0x30] sm:$0xf] %vm476, %v4613
      %4646 = vst.msk [vmem:[#allocation4 + $0x34] sm:$0xf] %vm476, %v4614
      %4647 = vst.msk [vmem:[#allocation4 + $0x38] sm:$0xf] %vm476, %v4615
      %4648 = vst.msk [vmem:[#allocation4 + $0x3c] sm:$0xf] %vm476, %v4616
      %4649 = vst.msk [vmem:[#allocation4 + $0x40] sm:$0xf] %vm476, %v4617
      %4650 = vst.msk [vmem:[#allocation4 + $0x44] sm:$0xf] %vm476, %v4618
      %4651 = vst.msk [vmem:[#allocation4 + $0x48] sm:$0xf] %vm476, %v4619
      %4652 = vst.msk [vmem:[#allocation4 + $0x4c] sm:$0xf] %vm476, %v4620
      %4653 = vst.msk [vmem:[#allocation4 + $0x50] sm:$0xf] %vm476, %v4621
      %4654 = vst.msk [vmem:[#allocation4 + $0x54] sm:$0xf] %vm476, %v4622
      %4655 = vst.msk [vmem:[#allocation4 + $0x58] sm:$0xf] %vm476, %v4623
      %4656 = vst.msk [vmem:[#allocation4 + $0x5c] sm:$0xf] %vm476, %v4624
      %4657 = vst.msk [vmem:[#allocation4 + $0x60] sm:$0xf] %vm476, %v4625
      %4658 = vst.msk [vmem:[#allocation4 + $0x64] sm:$0xf] %vm476, %v4626
      %4659 = vst.msk [vmem:[#allocation4 + $0x68] sm:$0xf] %vm476, %v4627
      %4660 = vst.msk [vmem:[#allocation4 + $0x6c] sm:$0xf] %vm476, %v4628
      %4661 = vst.msk [vmem:[#allocation4 + $0x70] sm:$0xf] %vm476, %v4629
      %4662 = vst.msk [vmem:[#allocation4 + $0x74] sm:$0xf] %vm476, %v4630
      %4663 = vst.msk [vmem:[#allocation4 + $0x78] sm:$0xf] %vm476, %v4631
      %4664 = vst.msk [vmem:[#allocation4 + $0x7c] sm:$0xf] %vm476, %v4632
      %v4665 = vld [vmem:[%s4568 + $0x1] sm:$0xff]
      %v4666 = vld [vmem:[%s4568 + $0x9] sm:$0xff]
      %v4667 = vld [vmem:[%s4568 + $0x19] sm:$0xff]
      %v4668 = vld [vmem:[%s4568 + $0x21] sm:$0xff]
      %v4669 = vld [vmem:[%s4568 + $0x31] sm:$0xff]
      %v4670 = vld [vmem:[%s4568 + $0x39] sm:$0xff]
      %v4671 = vld [vmem:[%s4568 + $0x49] sm:$0xff]
      %v4672 = vld [vmem:[%s4568 + $0x51] sm:$0xff]
      %v4673 = vld [vmem:[%s4568 + $0x61] sm:$0xff]
      %v4674 = vld [vmem:[%s4568 + $0x69] sm:$0xff]
      %v4675 = vld [vmem:[%s4568 + $0x79] sm:$0xff]
      %v4676 = vld [vmem:[%s4568 + $0x81] sm:$0xff]
      %v4677 = vld [vmem:[%s4568 + $0x91] sm:$0xff]
      %v4678 = vld [vmem:[%s4568 + $0x99] sm:$0xff]
      %v4679 = vld [vmem:[%s4568 + $0xa9] sm:$0xff]
      %v4680 = vld [vmem:[%s4568 + $0xb1] sm:$0xff]
      %v4681 = vld [vmem:[%s4568 + $0xc1] sm:$0xff]
      %v4682 = vld [vmem:[%s4568 + $0xc9] sm:$0xff]
      %v4683 = vld [vmem:[%s4568 + $0xd9] sm:$0xff]
      %v4684 = vld [vmem:[%s4568 + $0xe1] sm:$0xff]
      %v4685 = vld [vmem:[%s4568 + $0xf1] sm:$0xff]
      %v4686 = vld [vmem:[%s4568 + $0xf9] sm:$0xff]
      %v4687 = vld [vmem:[%s4568 + $0x109] sm:$0xff]
      %v4688 = vld [vmem:[%s4568 + $0x111] sm:$0xff]
      %v4689 = vld [vmem:[%s4568 + $0x121] sm:$0xff]
      %v4690 = vld [vmem:[%s4568 + $0x129] sm:$0xff]
      %v4691 = vld [vmem:[%s4568 + $0x139] sm:$0xff]
      %v4692 = vld [vmem:[%s4568 + $0x141] sm:$0xff]
      %v4693 = vld [vmem:[%s4568 + $0x151] sm:$0xff]
      %v4694 = vld [vmem:[%s4568 + $0x159] sm:$0xff]
      %v4695 = vld [vmem:[%s4568 + $0x169] sm:$0xff]
      %v4696 = vld [vmem:[%s4568 + $0x171] sm:$0xff]
      %v4697 = vpack.c.bf16 %v4665, %v4665
      %v4698 = vpack.c.bf16 %v4666, %v4666
      %v4699 = vpack.c.bf16 %v4667, %v4667
      %v4700 = vpack.c.bf16 %v4668, %v4668
      %v4701 = vpack.c.bf16 %v4669, %v4669
      %v4702 = vpack.c.bf16 %v4670, %v4670
      %v4703 = vpack.c.bf16 %v4671, %v4671
      %v4704 = vpack.c.bf16 %v4672, %v4672
      %v4705 = vpack.c.bf16 %v4673, %v4673
      %v4706 = vpack.c.bf16 %v4674, %v4674
      %v4707 = vpack.c.bf16 %v4675, %v4675
      %v4708 = vpack.c.bf16 %v4676, %v4676
      %v4709 = vpack.c.bf16 %v4677, %v4677
      %v4710 = vpack.c.bf16 %v4678, %v4678
      %v4711 = vpack.c.bf16 %v4679, %v4679
      %v4712 = vpack.c.bf16 %v4680, %v4680
      %v4713 = vpack.c.bf16 %v4681, %v4681
      %v4714 = vpack.c.bf16 %v4682, %v4682
      %v4715 = vpack.c.bf16 %v4683, %v4683
      %v4716 = vpack.c.bf16 %v4684, %v4684
      %v4717 = vpack.c.bf16 %v4685, %v4685
      %v4718 = vpack.c.bf16 %v4686, %v4686
      %v4719 = vpack.c.bf16 %v4687, %v4687
      %v4720 = vpack.c.bf16 %v4688, %v4688
      %v4721 = vpack.c.bf16 %v4689, %v4689
      %v4722 = vpack.c.bf16 %v4690, %v4690
      %v4723 = vpack.c.bf16 %v4691, %v4691
      %v4724 = vpack.c.bf16 %v4692, %v4692
      %v4725 = vpack.c.bf16 %v4693, %v4693
      %v4726 = vpack.c.bf16 %v4694, %v4694
      %v4727 = vpack.c.bf16 %v4695, %v4695
      %v4728 = vpack.c.bf16 %v4696, %v4696
      %4761 = vrot.lane.b32.xlu0 %v4697, 4
      %v4762 = vpop.permute.xlu0 %4761
      %4763 = vrot.lane.b32.xlu0 %v4698, 4
      %v4764 = vpop.permute.xlu0 %4763
      %4765 = vrot.lane.b32.xlu0 %v4699, 4
      %v4766 = vpop.permute.xlu0 %4765
      %4767 = vrot.lane.b32.xlu0 %v4700, 4
      %v4768 = vpop.permute.xlu0 %4767
      %4769 = vrot.lane.b32.xlu0 %v4701, 4
      %v4770 = vpop.permute.xlu0 %4769
      %4771 = vrot.lane.b32.xlu0 %v4702, 4
      %v4772 = vpop.permute.xlu0 %4771
      %4773 = vrot.lane.b32.xlu0 %v4703, 4
      %v4774 = vpop.permute.xlu0 %4773
      %4775 = vrot.lane.b32.xlu0 %v4704, 4
      %v4776 = vpop.permute.xlu0 %4775
      %4777 = vrot.lane.b32.xlu0 %v4705, 4
      %v4778 = vpop.permute.xlu0 %4777
      %4779 = vrot.lane.b32.xlu0 %v4706, 4
      %v4780 = vpop.permute.xlu0 %4779
      %4781 = vrot.lane.b32.xlu0 %v4707, 4
      %v4782 = vpop.permute.xlu0 %4781
      %4783 = vrot.lane.b32.xlu0 %v4708, 4
      %v4784 = vpop.permute.xlu0 %4783
      %4785 = vrot.lane.b32.xlu0 %v4709, 4
      %v4786 = vpop.permute.xlu0 %4785
      %4787 = vrot.lane.b32.xlu0 %v4710, 4
      %v4788 = vpop.permute.xlu0 %4787
      %4789 = vrot.lane.b32.xlu0 %v4711, 4
      %v4790 = vpop.permute.xlu0 %4789
      %4791 = vrot.lane.b32.xlu0 %v4712, 4
      %v4792 = vpop.permute.xlu0 %4791
      %4793 = vrot.lane.b32.xlu0 %v4713, 4
      %v4794 = vpop.permute.xlu0 %4793
      %4795 = vrot.lane.b32.xlu0 %v4714, 4
      %v4796 = vpop.permute.xlu0 %4795
      %4797 = vrot.lane.b32.xlu0 %v4715, 4
      %v4798 = vpop.permute.xlu0 %4797
      %4799 = vrot.lane.b32.xlu0 %v4716, 4
      %v4800 = vpop.permute.xlu0 %4799
      %4801 = vrot.lane.b32.xlu0 %v4717, 4
      %v4802 = vpop.permute.xlu0 %4801
      %4803 = vrot.lane.b32.xlu0 %v4718, 4
      %v4804 = vpop.permute.xlu0 %4803
      %4805 = vrot.lane.b32.xlu0 %v4719, 4
      %v4806 = vpop.permute.xlu0 %4805
      %4807 = vrot.lane.b32.xlu0 %v4720, 4
      %v4808 = vpop.permute.xlu0 %4807
      %4809 = vrot.lane.b32.xlu0 %v4721, 4
      %v4810 = vpop.permute.xlu0 %4809
      %4811 = vrot.lane.b32.xlu0 %v4722, 4
      %v4812 = vpop.permute.xlu0 %4811
      %4813 = vrot.lane.b32.xlu0 %v4723, 4
      %v4814 = vpop.permute.xlu0 %4813
      %4815 = vrot.lane.b32.xlu0 %v4724, 4
      %v4816 = vpop.permute.xlu0 %4815
      %4817 = vrot.lane.b32.xlu0 %v4725, 4
      %v4818 = vpop.permute.xlu0 %4817
      %4819 = vrot.lane.b32.xlu0 %v4726, 4
      %v4820 = vpop.permute.xlu0 %4819
      %4821 = vrot.lane.b32.xlu0 %v4727, 4
      %v4822 = vpop.permute.xlu0 %4821
      %4823 = vrot.lane.b32.xlu0 %v4728, 4
      %v4824 = vpop.permute.xlu0 %4823
      %4857 = vst.msk [vmem:[#allocation4] sm:$0xf] %vm701, %v4762
      %4858 = vst.msk [vmem:[#allocation4 + $0x4] sm:$0xf] %vm701, %v4764
      %4859 = vst.msk [vmem:[#allocation4 + $0x8] sm:$0xf] %vm701, %v4766
      %4860 = vst.msk [vmem:[#allocation4 + $0xc] sm:$0xf] %vm701, %v4768
      %4861 = vst.msk [vmem:[#allocation4 + $0x10] sm:$0xf] %vm701, %v4770
      %4862 = vst.msk [vmem:[#allocation4 + $0x14] sm:$0xf] %vm701, %v4772
      %4863 = vst.msk [vmem:[#allocation4 + $0x18] sm:$0xf] %vm701, %v4774
      %4864 = vst.msk [vmem:[#allocation4 + $0x1c] sm:$0xf] %vm701, %v4776
      %4865 = vst.msk [vmem:[#allocation4 + $0x20] sm:$0xf] %vm701, %v4778
      %4866 = vst.msk [vmem:[#allocation4 + $0x24] sm:$0xf] %vm701, %v4780
      %4867 = vst.msk [vmem:[#allocation4 + $0x28] sm:$0xf] %vm701, %v4782
      %4868 = vst.msk [vmem:[#allocation4 + $0x2c] sm:$0xf] %vm701, %v4784
      %4869 = vst.msk [vmem:[#allocation4 + $0x30] sm:$0xf] %vm701, %v4786
      %4870 = vst.msk [vmem:[#allocation4 + $0x34] sm:$0xf] %vm701, %v4788
      %4871 = vst.msk [vmem:[#allocation4 + $0x38] sm:$0xf] %vm701, %v4790
      %4872 = vst.msk [vmem:[#allocation4 + $0x3c] sm:$0xf] %vm701, %v4792
      %4873 = vst.msk [vmem:[#allocation4 + $0x40] sm:$0xf] %vm701, %v4794
      %4874 = vst.msk [vmem:[#allocation4 + $0x44] sm:$0xf] %vm701, %v4796
      %4875 = vst.msk [vmem:[#allocation4 + $0x48] sm:$0xf] %vm701, %v4798
      %4876 = vst.msk [vmem:[#allocation4 + $0x4c] sm:$0xf] %vm701, %v4800
      %4877 = vst.msk [vmem:[#allocation4 + $0x50] sm:$0xf] %vm701, %v4802
      %4878 = vst.msk [vmem:[#allocation4 + $0x54] sm:$0xf] %vm701, %v4804
      %4879 = vst.msk [vmem:[#allocation4 + $0x58] sm:$0xf] %vm701, %v4806
      %4880 = vst.msk [vmem:[#allocation4 + $0x5c] sm:$0xf] %vm701, %v4808
      %4881 = vst.msk [vmem:[#allocation4 + $0x60] sm:$0xf] %vm701, %v4810
      %4882 = vst.msk [vmem:[#allocation4 + $0x64] sm:$0xf] %vm701, %v4812
      %4883 = vst.msk [vmem:[#allocation4 + $0x68] sm:$0xf] %vm701, %v4814
      %4884 = vst.msk [vmem:[#allocation4 + $0x6c] sm:$0xf] %vm701, %v4816
      %4885 = vst.msk [vmem:[#allocation4 + $0x70] sm:$0xf] %vm701, %v4818
      %4886 = vst.msk [vmem:[#allocation4 + $0x74] sm:$0xf] %vm701, %v4820
      %4887 = vst.msk [vmem:[#allocation4 + $0x78] sm:$0xf] %vm701, %v4822
      %4888 = vst.msk [vmem:[#allocation4 + $0x7c] sm:$0xf] %vm701, %v4824
      %v4889 = vld [vmem:[%s4568 + $0x2] sm:$0xff]
      %v4890 = vld [vmem:[%s4568 + $0xa] sm:$0xff]
      %v4891 = vld [vmem:[%s4568 + $0x1a] sm:$0xff]
      %v4892 = vld [vmem:[%s4568 + $0x22] sm:$0xff]
      %v4893 = vld [vmem:[%s4568 + $0x32] sm:$0xff]
      %v4894 = vld [vmem:[%s4568 + $0x3a] sm:$0xff]
      %v4895 = vld [vmem:[%s4568 + $0x4a] sm:$0xff]
      %v4896 = vld [vmem:[%s4568 + $0x52] sm:$0xff]
      %v4897 = vld [vmem:[%s4568 + $0x62] sm:$0xff]
      %v4898 = vld [vmem:[%s4568 + $0x6a] sm:$0xff]
      %v4899 = vld [vmem:[%s4568 + $0x7a] sm:$0xff]
      %v4900 = vld [vmem:[%s4568 + $0x82] sm:$0xff]
      %v4901 = vld [vmem:[%s4568 + $0x92] sm:$0xff]
      %v4902 = vld [vmem:[%s4568 + $0x9a] sm:$0xff]
      %v4903 = vld [vmem:[%s4568 + $0xaa] sm:$0xff]
      %v4904 = vld [vmem:[%s4568 + $0xb2] sm:$0xff]
      %v4905 = vld [vmem:[%s4568 + $0xc2] sm:$0xff]
      %v4906 = vld [vmem:[%s4568 + $0xca] sm:$0xff]
      %v4907 = vld [vmem:[%s4568 + $0xda] sm:$0xff]
      %v4908 = vld [vmem:[%s4568 + $0xe2] sm:$0xff]
      %v4909 = vld [vmem:[%s4568 + $0xf2] sm:$0xff]
      %v4910 = vld [vmem:[%s4568 + $0xfa] sm:$0xff]
      %v4911 = vld [vmem:[%s4568 + $0x10a] sm:$0xff]
      %v4912 = vld [vmem:[%s4568 + $0x112] sm:$0xff]
      %v4913 = vld [vmem:[%s4568 + $0x122] sm:$0xff]
      %v4914 = vld [vmem:[%s4568 + $0x12a] sm:$0xff]
      %v4915 = vld [vmem:[%s4568 + $0x13a] sm:$0xff]
      %v4916 = vld [vmem:[%s4568 + $0x142] sm:$0xff]
      %v4917 = vld [vmem:[%s4568 + $0x152] sm:$0xff]
      %v4918 = vld [vmem:[%s4568 + $0x15a] sm:$0xff]
      %v4919 = vld [vmem:[%s4568 + $0x16a] sm:$0xff]
      %v4920 = vld [vmem:[%s4568 + $0x172] sm:$0xff]
      %v4921 = vpack.c.bf16 %v4889, %v4889
      %v4922 = vpack.c.bf16 %v4890, %v4890
      %v4923 = vpack.c.bf16 %v4891, %v4891
      %v4924 = vpack.c.bf16 %v4892, %v4892
      %v4925 = vpack.c.bf16 %v4893, %v4893
      %v4926 = vpack.c.bf16 %v4894, %v4894
      %v4927 = vpack.c.bf16 %v4895, %v4895
      %v4928 = vpack.c.bf16 %v4896, %v4896
      %v4929 = vpack.c.bf16 %v4897, %v4897
      %v4930 = vpack.c.bf16 %v4898, %v4898
      %v4931 = vpack.c.bf16 %v4899, %v4899
      %v4932 = vpack.c.bf16 %v4900, %v4900
      %v4933 = vpack.c.bf16 %v4901, %v4901
      %v4934 = vpack.c.bf16 %v4902, %v4902
      %v4935 = vpack.c.bf16 %v4903, %v4903
      %v4936 = vpack.c.bf16 %v4904, %v4904
      %v4937 = vpack.c.bf16 %v4905, %v4905
      %v4938 = vpack.c.bf16 %v4906, %v4906
      %v4939 = vpack.c.bf16 %v4907, %v4907
      %v4940 = vpack.c.bf16 %v4908, %v4908
      %v4941 = vpack.c.bf16 %v4909, %v4909
      %v4942 = vpack.c.bf16 %v4910, %v4910
      %v4943 = vpack.c.bf16 %v4911, %v4911
      %v4944 = vpack.c.bf16 %v4912, %v4912
      %v4945 = vpack.c.bf16 %v4913, %v4913
      %v4946 = vpack.c.bf16 %v4914, %v4914
      %v4947 = vpack.c.bf16 %v4915, %v4915
      %v4948 = vpack.c.bf16 %v4916, %v4916
      %v4949 = vpack.c.bf16 %v4917, %v4917
      %v4950 = vpack.c.bf16 %v4918, %v4918
      %v4951 = vpack.c.bf16 %v4919, %v4919
      %v4952 = vpack.c.bf16 %v4920, %v4920
      %4985 = vrot.lane.b32.xlu0 %v4921, 8
      %v4986 = vpop.permute.xlu0 %4985
      %4987 = vrot.lane.b32.xlu0 %v4922, 8
      %v4988 = vpop.permute.xlu0 %4987
      %4989 = vrot.lane.b32.xlu0 %v4923, 8
      %v4990 = vpop.permute.xlu0 %4989
      %4991 = vrot.lane.b32.xlu0 %v4924, 8
      %v4992 = vpop.permute.xlu0 %4991
      %4993 = vrot.lane.b32.xlu0 %v4925, 8
      %v4994 = vpop.permute.xlu0 %4993
      %4995 = vrot.lane.b32.xlu0 %v4926, 8
      %v4996 = vpop.permute.xlu0 %4995
      %4997 = vrot.lane.b32.xlu0 %v4927, 8
      %v4998 = vpop.permute.xlu0 %4997
      %4999 = vrot.lane.b32.xlu0 %v4928, 8
      %v5000 = vpop.permute.xlu0 %4999
      %5001 = vrot.lane.b32.xlu0 %v4929, 8
      %v5002 = vpop.permute.xlu0 %5001
      %5003 = vrot.lane.b32.xlu0 %v4930, 8
      %v5004 = vpop.permute.xlu0 %5003
      %5005 = vrot.lane.b32.xlu0 %v4931, 8
      %v5006 = vpop.permute.xlu0 %5005
      %5007 = vrot.lane.b32.xlu0 %v4932, 8
      %v5008 = vpop.permute.xlu0 %5007
      %5009 = vrot.lane.b32.xlu0 %v4933, 8
      %v5010 = vpop.permute.xlu0 %5009
      %5011 = vrot.lane.b32.xlu0 %v4934, 8
      %v5012 = vpop.permute.xlu0 %5011
      %5013 = vrot.lane.b32.xlu0 %v4935, 8
      %v5014 = vpop.permute.xlu0 %5013
      %5015 = vrot.lane.b32.xlu0 %v4936, 8
      %v5016 = vpop.permute.xlu0 %5015
      %5017 = vrot.lane.b32.xlu0 %v4937, 8
      %v5018 = vpop.permute.xlu0 %5017
      %5019 = vrot.lane.b32.xlu0 %v4938, 8
      %v5020 = vpop.permute.xlu0 %5019
      %5021 = vrot.lane.b32.xlu0 %v4939, 8
      %v5022 = vpop.permute.xlu0 %5021
      %5023 = vrot.lane.b32.xlu0 %v4940, 8
      %v5024 = vpop.permute.xlu0 %5023
      %5025 = vrot.lane.b32.xlu0 %v4941, 8
      %v5026 = vpop.permute.xlu0 %5025
      %5027 = vrot.lane.b32.xlu0 %v4942, 8
      %v5028 = vpop.permute.xlu0 %5027
      %5029 = vrot.lane.b32.xlu0 %v4943, 8
      %v5030 = vpop.permute.xlu0 %5029
      %5031 = vrot.lane.b32.xlu0 %v4944, 8
      %v5032 = vpop.permute.xlu0 %5031
      %5033 = vrot.lane.b32.xlu0 %v4945, 8
      %v5034 = vpop.permute.xlu0 %5033
      %5035 = vrot.lane.b32.xlu0 %v4946, 8
      %v5036 = vpop.permute.xlu0 %5035
      %5037 = vrot.lane.b32.xlu0 %v4947, 8
      %v5038 = vpop.permute.xlu0 %5037
      %5039 = vrot.lane.b32.xlu0 %v4948, 8
      %v5040 = vpop.permute.xlu0 %5039
      %5041 = vrot.lane.b32.xlu0 %v4949, 8
      %v5042 = vpop.permute.xlu0 %5041
      %5043 = vrot.lane.b32.xlu0 %v4950, 8
      %v5044 = vpop.permute.xlu0 %5043
      %5045 = vrot.lane.b32.xlu0 %v4951, 8
      %v5046 = vpop.permute.xlu0 %5045
      %5047 = vrot.lane.b32.xlu0 %v4952, 8
      %v5048 = vpop.permute.xlu0 %5047
      %5081 = vst.msk [vmem:[#allocation4] sm:$0xf] %vm926, %v4986
      %5082 = vst.msk [vmem:[#allocation4 + $0x4] sm:$0xf] %vm926, %v4988
      %5083 = vst.msk [vmem:[#allocation4 + $0x8] sm:$0xf] %vm926, %v4990
      %5084 = vst.msk [vmem:[#allocation4 + $0xc] sm:$0xf] %vm926, %v4992
      %5085 = vst.msk [vmem:[#allocation4 + $0x10] sm:$0xf] %vm926, %v4994
      %5086 = vst.msk [vmem:[#allocation4 + $0x14] sm:$0xf] %vm926, %v4996
      %5087 = vst.msk [vmem:[#allocation4 + $0x18] sm:$0xf] %vm926, %v4998
      %5088 = vst.msk [vmem:[#allocation4 + $0x1c] sm:$0xf] %vm926, %v5000
      %5089 = vst.msk [vmem:[#allocation4 + $0x20] sm:$0xf] %vm926, %v5002
      %5090 = vst.msk [vmem:[#allocation4 + $0x24] sm:$0xf] %vm926, %v5004
      %5091 = vst.msk [vmem:[#allocation4 + $0x28] sm:$0xf] %vm926, %v5006
      %5092 = vst.msk [vmem:[#allocation4 + $0x2c] sm:$0xf] %vm926, %v5008
      %5093 = vst.msk [vmem:[#allocation4 + $0x30] sm:$0xf] %vm926, %v5010
      %5094 = vst.msk [vmem:[#allocation4 + $0x34] sm:$0xf] %vm926, %v5012
      %5095 = vst.msk [vmem:[#allocation4 + $0x38] sm:$0xf] %vm926, %v5014
      %5096 = vst.msk [vmem:[#allocation4 + $0x3c] sm:$0xf] %vm926, %v5016
      %5097 = vst.msk [vmem:[#allocation4 + $0x40] sm:$0xf] %vm926, %v5018
      %5098 = vst.msk [vmem:[#allocation4 + $0x44] sm:$0xf] %vm926, %v5020
      %5099 = vst.msk [vmem:[#allocation4 + $0x48] sm:$0xf] %vm926, %v5022
      %5100 = vst.msk [vmem:[#allocation4 + $0x4c] sm:$0xf] %vm926, %v5024
      %5101 = vst.msk [vmem:[#allocation4 + $0x50] sm:$0xf] %vm926, %v5026
      %5102 = vst.msk [vmem:[#allocation4 + $0x54] sm:$0xf] %vm926, %v5028
      %5103 = vst.msk [vmem:[#allocation4 + $0x58] sm:$0xf] %vm926, %v5030
      %5104 = vst.msk [vmem:[#allocation4 + $0x5c] sm:$0xf] %vm926, %v5032
      %5105 = vst.msk [vmem:[#allocation4 + $0x60] sm:$0xf] %vm926, %v5034
      %5106 = vst.msk [vmem:[#allocation4 + $0x64] sm:$0xf] %vm926, %v5036
      %5107 = vst.msk [vmem:[#allocation4 + $0x68] sm:$0xf] %vm926, %v5038
      %5108 = vst.msk [vmem:[#allocation4 + $0x6c] sm:$0xf] %vm926, %v5040
      %5109 = vst.msk [vmem:[#allocation4 + $0x70] sm:$0xf] %vm926, %v5042
      %5110 = vst.msk [vmem:[#allocation4 + $0x74] sm:$0xf] %vm926, %v5044
      %5111 = vst.msk [vmem:[#allocation4 + $0x78] sm:$0xf] %vm926, %v5046
      %5112 = vst.msk [vmem:[#allocation4 + $0x7c] sm:$0xf] %vm926, %v5048
      %v5113 = vld [vmem:[#allocation4] sm:$0xf]
      %v5114 = vld [vmem:[#allocation4 + $0x4] sm:$0xf]
      %v5115 = vld [vmem:[#allocation4 + $0x8] sm:$0xf]
      %v5116 = vld [vmem:[#allocation4 + $0xc] sm:$0xf]
      %v5117 = vld [vmem:[#allocation4 + $0x10] sm:$0xf]
      %v5118 = vld [vmem:[#allocation4 + $0x14] sm:$0xf]
      %v5119 = vld [vmem:[#allocation4 + $0x18] sm:$0xf]
      %v5120 = vld [vmem:[#allocation4 + $0x1c] sm:$0xf]
      %v5121 = vld [vmem:[#allocation4 + $0x20] sm:$0xf]
      %v5122 = vld [vmem:[#allocation4 + $0x24] sm:$0xf]
      %v5123 = vld [vmem:[#allocation4 + $0x28] sm:$0xf]
      %v5124 = vld [vmem:[#allocation4 + $0x2c] sm:$0xf]
      %v5125 = vld [vmem:[#allocation4 + $0x30] sm:$0xf]
      %v5126 = vld [vmem:[#allocation4 + $0x34] sm:$0xf]
      %v5127 = vld [vmem:[#allocation4 + $0x38] sm:$0xf]
      %v5128 = vld [vmem:[#allocation4 + $0x3c] sm:$0xf]
      %v5129 = vld [vmem:[#allocation4 + $0x40] sm:$0xf]
      %v5130 = vld [vmem:[#allocation4 + $0x44] sm:$0xf]
      %v5131 = vld [vmem:[#allocation4 + $0x48] sm:$0xf]
      %v5132 = vld [vmem:[#allocation4 + $0x4c] sm:$0xf]
      %v5133 = vld [vmem:[#allocation4 + $0x50] sm:$0xf]
      %v5134 = vld [vmem:[#allocation4 + $0x54] sm:$0xf]
      %v5135 = vld [vmem:[#allocation4 + $0x58] sm:$0xf]
      %v5136 = vld [vmem:[#allocation4 + $0x5c] sm:$0xf]
      %v5137 = vld [vmem:[#allocation4 + $0x60] sm:$0xf]
      %v5138 = vld [vmem:[#allocation4 + $0x64] sm:$0xf]
      %v5139 = vld [vmem:[#allocation4 + $0x68] sm:$0xf]
      %v5140 = vld [vmem:[#allocation4 + $0x6c] sm:$0xf]
      %v5141 = vld [vmem:[#allocation4 + $0x70] sm:$0xf]
      %v5142 = vld [vmem:[#allocation4 + $0x74] sm:$0xf]
      %v5143 = vld [vmem:[#allocation4 + $0x78] sm:$0xf]
      %v5144 = vld [vmem:[#allocation4 + $0x7c] sm:$0xf]
      %v5145 = vld [vmem:[%s3 + $0xc] sm:$0xf]
      %v5146 = vld [vmem:[%s3 + $0x10] sm:$0x3]
      %v5179 = vunpack.c.l.b16 %v5113
      %v5180 = vunpack.c.l.b16 %v5114
      %v5181 = vunpack.c.l.b16 %v5115
      %v5182 = vunpack.c.l.b16 %v5116
      %v5183 = vunpack.c.l.b16 %v5117
      %v5184 = vunpack.c.l.b16 %v5118
      %v5185 = vunpack.c.l.b16 %v5119
      %v5186 = vunpack.c.l.b16 %v5120
      %v5187 = vunpack.c.l.b16 %v5121
      %v5188 = vunpack.c.l.b16 %v5122
      %v5189 = vunpack.c.l.b16 %v5123
      %v5190 = vunpack.c.l.b16 %v5124
      %v5191 = vunpack.c.l.b16 %v5125
      %v5192 = vunpack.c.l.b16 %v5126
      %v5193 = vunpack.c.l.b16 %v5127
      %v5194 = vunpack.c.l.b16 %v5128
      %v5195 = vunpack.c.l.b16 %v5129
      %v5196 = vunpack.c.l.b16 %v5130
      %v5197 = vunpack.c.l.b16 %v5131
      %v5198 = vunpack.c.l.b16 %v5132
      %v5199 = vunpack.c.l.b16 %v5133
      %v5200 = vunpack.c.l.b16 %v5134
      %v5201 = vunpack.c.l.b16 %v5135
      %v5202 = vunpack.c.l.b16 %v5136
      %v5203 = vunpack.c.l.b16 %v5137
      %v5204 = vunpack.c.l.b16 %v5138
      %v5205 = vunpack.c.l.b16 %v5139
      %v5206 = vunpack.c.l.b16 %v5140
      %v5207 = vunpack.c.l.b16 %v5141
      %v5208 = vunpack.c.l.b16 %v5142
      %v5209 = vunpack.c.l.b16 %v5143
      %v5210 = vunpack.c.l.b16 %v5144
      %v5211 = vpack.c.b16 %v5180, %v5179
      %v5212 = vpack.c.b16 %v5182, %v5181
      %v5213 = vpack.c.b16 %v5184, %v5183
      %v5214 = vpack.c.b16 %v5186, %v5185
      %v5215 = vpack.c.b16 %v5188, %v5187
      %v5216 = vpack.c.b16 %v5190, %v5189
      %v5217 = vpack.c.b16 %v5192, %v5191
      %v5218 = vpack.c.b16 %v5194, %v5193
      %v5219 = vpack.c.b16 %v5196, %v5195
      %v5220 = vpack.c.b16 %v5198, %v5197
      %v5221 = vpack.c.b16 %v5200, %v5199
      %v5222 = vpack.c.b16 %v5202, %v5201
      %v5223 = vpack.c.b16 %v5204, %v5203
      %v5224 = vpack.c.b16 %v5206, %v5205
      %v5225 = vpack.c.b16 %v5208, %v5207
      %v5226 = vpack.c.b16 %v5210, %v5209
      %v5229 = vunpack.c.l.b16 %v5145
      %v5230 = vunpack.c.l.b16 %v5146
      %v5231 = vpack.c.b16 %v5230, %v5229
      %v5233 = vsel %vm1657, %v5211, 0
      %v5236 = vsel %vm1657, %v5212, 0
      %v5239 = vsel %vm1657, %v5213, 0
      %v5242 = vsel %vm1657, %v5214, 0
      %v5245 = vsel %vm1657, %v5215, 0
      %v5248 = vsel %vm1657, %v5216, 0
      %v5251 = vsel %vm1657, %v5217, 0
      %v5254 = vsel %vm1657, %v5218, 0
      %v5257 = vsel %vm1657, %v5219, 0
      %v5260 = vsel %vm1657, %v5220, 0
      %v5263 = vsel %vm1657, %v5221, 0
      %v5266 = vsel %vm1657, %v5222, 0
      %v5269 = vsel %vm1657, %v5223, 0
      %v5272 = vsel %vm1657, %v5224, 0
      %v5275 = vsel %vm1657, %v5225, 0
      %v5278 = vsel %vm1657, %v5226, 0
      %v5281 = vsel %vm1706, %v5231, 0
      %5283 = vmatpush.bf16.msra.mxu0 0
      %5284 = vmatpush.bf16.msra.mxu0 0
      %5285 = vmatpush.bf16.msra.mxu0 0
      %5286 = vmatpush.bf16.msra.mxu0 0
      %5287 = vmatpush.bf16.msra.mxu0 0
      %5288 = vmatpush.bf16.msra.mxu0 0
      %5289 = vmatpush.bf16.msra.mxu0 0
      %5290 = vmatpush.bf16.msra.mxu0 %v5281
      %5291 = vmatmul.bf16.gmra.mxu0 %v5233
      %v5292 = vpop.f32.mrf.mxu0
      %v5293 = vadd.f32 0.0, %v5292
      %v5294 = vpop.f32.mrf.mxu0
      %v5295 = vadd.f32 0.0, %v5294
      %5296 = vmatmul.bf16.gmra.mxu0 %v5236
      %v5297 = vpop.f32.mrf.mxu0
      %v5298 = vadd.f32 0.0, %v5297
      %v5299 = vpop.f32.mrf.mxu0
      %v5300 = vadd.f32 0.0, %v5299
      %5301 = vmatmul.bf16.gmra.mxu0 %v5239
      %v5302 = vpop.f32.mrf.mxu0
      %v5303 = vadd.f32 0.0, %v5302
      %v5304 = vpop.f32.mrf.mxu0
      %v5305 = vadd.f32 0.0, %v5304
      %5306 = vmatmul.bf16.gmra.mxu0 %v5242
      %v5307 = vpop.f32.mrf.mxu0
      %v5308 = vadd.f32 0.0, %v5307
      %v5309 = vpop.f32.mrf.mxu0
      %v5310 = vadd.f32 0.0, %v5309
      %5311 = vmatmul.bf16.gmra.mxu0 %v5245
      %v5312 = vpop.f32.mrf.mxu0
      %v5313 = vadd.f32 0.0, %v5312
      %v5314 = vpop.f32.mrf.mxu0
      %v5315 = vadd.f32 0.0, %v5314
      %5316 = vmatmul.bf16.gmra.mxu0 %v5248
      %v5317 = vpop.f32.mrf.mxu0
      %v5318 = vadd.f32 0.0, %v5317
      %v5319 = vpop.f32.mrf.mxu0
      %v5320 = vadd.f32 0.0, %v5319
      %5321 = vmatmul.bf16.gmra.mxu0 %v5251
      %v5322 = vpop.f32.mrf.mxu0
      %v5323 = vadd.f32 0.0, %v5322
      %v5324 = vpop.f32.mrf.mxu0
      %v5325 = vadd.f32 0.0, %v5324
      %5326 = vmatmul.bf16.gmra.mxu0 %v5254
      %v5327 = vpop.f32.mrf.mxu0
      %v5328 = vadd.f32 0.0, %v5327
      %v5329 = vpop.f32.mrf.mxu0
      %v5330 = vadd.f32 0.0, %v5329
      %5331 = vmatmul.bf16.gmra.mxu0 %v5257
      %v5332 = vpop.f32.mrf.mxu0
      %v5333 = vadd.f32 0.0, %v5332
      %v5334 = vpop.f32.mrf.mxu0
      %v5335 = vadd.f32 0.0, %v5334
      %5336 = vmatmul.bf16.gmra.mxu0 %v5260
      %v5337 = vpop.f32.mrf.mxu0
      %v5338 = vadd.f32 0.0, %v5337
      %v5339 = vpop.f32.mrf.mxu0
      %v5340 = vadd.f32 0.0, %v5339
      %5341 = vmatmul.bf16.gmra.mxu0 %v5263
      %v5342 = vpop.f32.mrf.mxu0
      %v5343 = vadd.f32 0.0, %v5342
      %v5344 = vpop.f32.mrf.mxu0
      %v5345 = vadd.f32 0.0, %v5344
      %5346 = vmatmul.bf16.gmra.mxu0 %v5266
      %v5347 = vpop.f32.mrf.mxu0
      %v5348 = vadd.f32 0.0, %v5347
      %v5349 = vpop.f32.mrf.mxu0
      %v5350 = vadd.f32 0.0, %v5349
      %5351 = vmatmul.bf16.gmra.mxu0 %v5269
      %v5352 = vpop.f32.mrf.mxu0
      %v5353 = vadd.f32 0.0, %v5352
      %v5354 = vpop.f32.mrf.mxu0
      %v5355 = vadd.f32 0.0, %v5354
      %5356 = vmatmul.bf16.gmra.mxu0 %v5272
      %v5357 = vpop.f32.mrf.mxu0
      %v5358 = vadd.f32 0.0, %v5357
      %v5359 = vpop.f32.mrf.mxu0
      %v5360 = vadd.f32 0.0, %v5359
      %5361 = vmatmul.bf16.gmra.mxu0 %v5275
      %v5362 = vpop.f32.mrf.mxu0
      %v5363 = vadd.f32 0.0, %v5362
      %v5364 = vpop.f32.mrf.mxu0
      %v5365 = vadd.f32 0.0, %v5364
      %5366 = vmatmul.bf16.gmra.mxu0 %v5278
      %v5367 = vpop.f32.mrf.mxu0
      %v5368 = vadd.f32 0.0, %v5367
      %v5369 = vpop.f32.mrf.mxu0
      %v5370 = vadd.f32 0.0, %v5369
      %5371 = vdwg.mxu0
      %v5372 = vadd.f32 %v4489, %v5293
      %v5373 = vadd.f32 %v4491, %v5295
      %v5374 = vadd.f32 %v4494, %v5298
      %v5375 = vadd.f32 %v4496, %v5300
      %v5376 = vadd.f32 %v4499, %v5303
      %v5377 = vadd.f32 %v4501, %v5305
      %v5378 = vadd.f32 %v4504, %v5308
      %v5379 = vadd.f32 %v4506, %v5310
      %v5380 = vadd.f32 %v4509, %v5313
      %v5381 = vadd.f32 %v4511, %v5315
      %v5382 = vadd.f32 %v4514, %v5318
      %v5383 = vadd.f32 %v4516, %v5320
      %v5384 = vadd.f32 %v4519, %v5323
      %v5385 = vadd.f32 %v4521, %v5325
      %v5386 = vadd.f32 %v4524, %v5328
      %v5387 = vadd.f32 %v4526, %v5330
      %v5388 = vadd.f32 %v4529, %v5333
      %v5389 = vadd.f32 %v4531, %v5335
      %v5390 = vadd.f32 %v4534, %v5338
      %v5391 = vadd.f32 %v4536, %v5340
      %v5392 = vadd.f32 %v4539, %v5343
      %v5393 = vadd.f32 %v4541, %v5345
      %v5394 = vadd.f32 %v4544, %v5348
      %v5395 = vadd.f32 %v4546, %v5350
      %v5396 = vadd.f32 %v4549, %v5353
      %v5397 = vadd.f32 %v4551, %v5355
      %v5398 = vadd.f32 %v4554, %v5358
      %v5399 = vadd.f32 %v4556, %v5360
      %v5400 = vadd.f32 %v4559, %v5363
      %v5401 = vadd.f32 %v4561, %v5365
      %v5402 = vadd.f32 %v4564, %v5368
      %v5403 = vadd.f32 %v4566, %v5370
      %v5404 = vld [vmem:[%s4] sm:$0x1]
      %v5406 = vperm.slane %v5404, 0
      %v5408 = vadd.f32 %v5372, %v5406
      %v5409 = vadd.f32 %v5373, %v5406
      %v5410 = vadd.f32 %v5374, %v5406
      %v5411 = vadd.f32 %v5375, %v5406
      %v5412 = vadd.f32 %v5376, %v5406
      %v5413 = vadd.f32 %v5377, %v5406
      %v5414 = vadd.f32 %v5378, %v5406
      %v5415 = vadd.f32 %v5379, %v5406
      %v5416 = vadd.f32 %v5380, %v5406
      %v5417 = vadd.f32 %v5381, %v5406
      %v5418 = vadd.f32 %v5382, %v5406
      %v5419 = vadd.f32 %v5383, %v5406
      %v5420 = vadd.f32 %v5384, %v5406
      %v5421 = vadd.f32 %v5385, %v5406
      %v5422 = vadd.f32 %v5386, %v5406
      %v5423 = vadd.f32 %v5387, %v5406
      %v5424 = vadd.f32 %v5388, %v5406
      %v5425 = vadd.f32 %v5389, %v5406
      %v5426 = vadd.f32 %v5390, %v5406
      %v5427 = vadd.f32 %v5391, %v5406
      %v5428 = vadd.f32 %v5392, %v5406
      %v5429 = vadd.f32 %v5393, %v5406
      %v5430 = vadd.f32 %v5394, %v5406
      %v5431 = vadd.f32 %v5395, %v5406
      %v5432 = vadd.f32 %v5396, %v5406
      %v5433 = vadd.f32 %v5397, %v5406
      %v5434 = vadd.f32 %v5398, %v5406
      %v5435 = vadd.f32 %v5399, %v5406
      %v5436 = vadd.f32 %v5400, %v5406
      %v5437 = vadd.f32 %v5401, %v5406
      %v5438 = vadd.f32 %v5402, %v5406
      %v5439 = vadd.f32 %v5403, %v5406
      %v5440 = vmul.f32 %v5408, 0.5
      %v5441 = vmul.f32 %v5409, 0.5
      %v5442 = vmul.f32 %v5410, 0.5
      %v5443 = vmul.f32 %v5411, 0.5
      %v5444 = vmul.f32 %v5412, 0.5
      %v5445 = vmul.f32 %v5413, 0.5
      %v5446 = vmul.f32 %v5414, 0.5
      %v5447 = vmul.f32 %v5415, 0.5
      %v5448 = vmul.f32 %v5416, 0.5
      %v5449 = vmul.f32 %v5417, 0.5
      %v5450 = vmul.f32 %v5418, 0.5
      %v5451 = vmul.f32 %v5419, 0.5
      %v5452 = vmul.f32 %v5420, 0.5
      %v5453 = vmul.f32 %v5421, 0.5
      %v5454 = vmul.f32 %v5422, 0.5
      %v5455 = vmul.f32 %v5423, 0.5
      %v5456 = vmul.f32 %v5424, 0.5
      %v5457 = vmul.f32 %v5425, 0.5
      %v5458 = vmul.f32 %v5426, 0.5
      %v5459 = vmul.f32 %v5427, 0.5
      %v5460 = vmul.f32 %v5428, 0.5
      %v5461 = vmul.f32 %v5429, 0.5
      %v5462 = vmul.f32 %v5430, 0.5
      %v5463 = vmul.f32 %v5431, 0.5
      %v5464 = vmul.f32 %v5432, 0.5
      %v5465 = vmul.f32 %v5433, 0.5
      %v5466 = vmul.f32 %v5434, 0.5
      %v5467 = vmul.f32 %v5435, 0.5
      %v5468 = vmul.f32 %v5436, 0.5
      %v5469 = vmul.f32 %v5437, 0.5
      %v5470 = vmul.f32 %v5438, 0.5
      %v5471 = vmul.f32 %v5439, 0.5
      %v5472 = vld [vmem:[%s219] sm:$0xf]
      %v5473 = vld [vmem:[%s219 + $0x4] sm:$0xf]
      %v5474 = vld [vmem:[%s219 + $0x8] sm:$0xf]
      %v5475 = vld [vmem:[%s219 + $0xc] sm:$0xf]
      %v5476 = vld [vmem:[%s219 + $0x10] sm:$0xf]
      %v5477 = vld [vmem:[%s219 + $0x14] sm:$0xf]
      %v5478 = vld [vmem:[%s219 + $0x18] sm:$0xf]
      %v5479 = vld [vmem:[%s219 + $0x1c] sm:$0xf]
      %v5480 = vld [vmem:[%s219 + $0x20] sm:$0xf]
      %v5481 = vld [vmem:[%s219 + $0x24] sm:$0xf]
      %v5482 = vld [vmem:[%s219 + $0x28] sm:$0xf]
      %v5483 = vld [vmem:[%s219 + $0x2c] sm:$0xf]
      %v5484 = vld [vmem:[%s219 + $0x30] sm:$0xf]
      %v5485 = vld [vmem:[%s219 + $0x34] sm:$0xf]
      %v5486 = vld [vmem:[%s219 + $0x38] sm:$0xf]
      %v5487 = vld [vmem:[%s219 + $0x3c] sm:$0xf]
      %v5488 = vld [vmem:[%s219 + $0x40] sm:$0xf]
      %v5489 = vld [vmem:[%s219 + $0x44] sm:$0xf]
      %v5490 = vld [vmem:[%s219 + $0x48] sm:$0xf]
      %v5491 = vld [vmem:[%s219 + $0x4c] sm:$0xf]
      %v5492 = vld [vmem:[%s219 + $0x50] sm:$0xf]
      %v5493 = vld [vmem:[%s219 + $0x54] sm:$0xf]
      %v5494 = vld [vmem:[%s219 + $0x58] sm:$0xf]
      %v5495 = vld [vmem:[%s219 + $0x5c] sm:$0xf]
      %v5496 = vld [vmem:[%s219 + $0x60] sm:$0xf]
      %v5497 = vld [vmem:[%s219 + $0x64] sm:$0xf]
      %v5498 = vld [vmem:[%s219 + $0x68] sm:$0xf]
      %v5499 = vld [vmem:[%s219 + $0x6c] sm:$0xf]
      %v5500 = vld [vmem:[%s219 + $0x70] sm:$0xf]
      %v5501 = vld [vmem:[%s219 + $0x74] sm:$0xf]
      %v5502 = vld [vmem:[%s219 + $0x78] sm:$0xf]
      %v5503 = vld [vmem:[%s219 + $0x7c] sm:$0xf]
      %v5504 = vunpack.c.l.bf16 %v5472
      %v5505 = vunpack.c.l.bf16 %v5473
      %v5506 = vunpack.c.l.bf16 %v5474
      %v5507 = vunpack.c.l.bf16 %v5475
      %v5508 = vunpack.c.l.bf16 %v5476
      %v5509 = vunpack.c.l.bf16 %v5477
      %v5510 = vunpack.c.l.bf16 %v5478
      %v5511 = vunpack.c.l.bf16 %v5479
      %v5512 = vunpack.c.l.bf16 %v5480
      %v5513 = vunpack.c.l.bf16 %v5481
      %v5514 = vunpack.c.l.bf16 %v5482
      %v5515 = vunpack.c.l.bf16 %v5483
      %v5516 = vunpack.c.l.bf16 %v5484
      %v5517 = vunpack.c.l.bf16 %v5485
      %v5518 = vunpack.c.l.bf16 %v5486
      %v5519 = vunpack.c.l.bf16 %v5487
      %v5520 = vunpack.c.l.bf16 %v5488
      %v5521 = vunpack.c.l.bf16 %v5489
      %v5522 = vunpack.c.l.bf16 %v5490
      %v5523 = vunpack.c.l.bf16 %v5491
      %v5524 = vunpack.c.l.bf16 %v5492
      %v5525 = vunpack.c.l.bf16 %v5493
      %v5526 = vunpack.c.l.bf16 %v5494
      %v5527 = vunpack.c.l.bf16 %v5495
      %v5528 = vunpack.c.l.bf16 %v5496
      %v5529 = vunpack.c.l.bf16 %v5497
      %v5530 = vunpack.c.l.bf16 %v5498
      %v5531 = vunpack.c.l.bf16 %v5499
      %v5532 = vunpack.c.l.bf16 %v5500
      %v5533 = vunpack.c.l.bf16 %v5501
      %v5534 = vunpack.c.l.bf16 %v5502
      %v5535 = vunpack.c.l.bf16 %v5503
      %v5536 = vadd.f32 %v5440, %v5504
      %v5537 = vadd.f32 %v5441, %v5505
      %v5538 = vadd.f32 %v5442, %v5506
      %v5539 = vadd.f32 %v5443, %v5507
      %v5540 = vadd.f32 %v5444, %v5508
      %v5541 = vadd.f32 %v5445, %v5509
      %v5542 = vadd.f32 %v5446, %v5510
      %v5543 = vadd.f32 %v5447, %v5511
      %v5544 = vadd.f32 %v5448, %v5512
      %v5545 = vadd.f32 %v5449, %v5513
      %v5546 = vadd.f32 %v5450, %v5514
      %v5547 = vadd.f32 %v5451, %v5515
      %v5548 = vadd.f32 %v5452, %v5516
      %v5549 = vadd.f32 %v5453, %v5517
      %v5550 = vadd.f32 %v5454, %v5518
      %v5551 = vadd.f32 %v5455, %v5519
      %v5552 = vadd.f32 %v5456, %v5520
      %v5553 = vadd.f32 %v5457, %v5521
      %v5554 = vadd.f32 %v5458, %v5522
      %v5555 = vadd.f32 %v5459, %v5523
      %v5556 = vadd.f32 %v5460, %v5524
      %v5557 = vadd.f32 %v5461, %v5525
      %v5558 = vadd.f32 %v5462, %v5526
      %v5559 = vadd.f32 %v5463, %v5527
      %v5560 = vadd.f32 %v5464, %v5528
      %v5561 = vadd.f32 %v5465, %v5529
      %v5562 = vadd.f32 %v5466, %v5530
      %v5563 = vadd.f32 %v5467, %v5531
      %v5564 = vadd.f32 %v5468, %v5532
      %v5565 = vadd.f32 %v5469, %v5533
      %v5566 = vadd.f32 %v5470, %v5534
      %v5567 = vadd.f32 %v5471, %v5535
      %5568 = vst.msk [vmem:[%s224] sm:$0xff] %vm226, %v5536
      %5569 = vst.msk [vmem:[%s224 + $0x8] sm:$0xff] %vm226, %v5537
      %5570 = vst.msk [vmem:[%s224 + $0x10] sm:$0xff] %vm226, %v5538
      %5571 = vst.msk [vmem:[%s224 + $0x18] sm:$0xff] %vm226, %v5539
      %5572 = vst.msk [vmem:[%s224 + $0x20] sm:$0xff] %vm226, %v5540
      %5573 = vst.msk [vmem:[%s224 + $0x28] sm:$0xff] %vm226, %v5541
      %5574 = vst.msk [vmem:[%s224 + $0x30] sm:$0xff] %vm226, %v5542
      %5575 = vst.msk [vmem:[%s224 + $0x38] sm:$0xff] %vm226, %v5543
      %5576 = vst.msk [vmem:[%s224 + $0x40] sm:$0xff] %vm226, %v5544
      %5577 = vst.msk [vmem:[%s224 + $0x48] sm:$0xff] %vm226, %v5545
      %5578 = vst.msk [vmem:[%s224 + $0x50] sm:$0xff] %vm226, %v5546
      %5579 = vst.msk [vmem:[%s224 + $0x58] sm:$0xff] %vm226, %v5547
      %5580 = vst.msk [vmem:[%s224 + $0x60] sm:$0xff] %vm226, %v5548
      %5581 = vst.msk [vmem:[%s224 + $0x68] sm:$0xff] %vm226, %v5549
      %5582 = vst.msk [vmem:[%s224 + $0x70] sm:$0xff] %vm226, %v5550
      %5583 = vst.msk [vmem:[%s224 + $0x78] sm:$0xff] %vm226, %v5551
      %5584 = vst.msk [vmem:[%s224 + $0x80] sm:$0xff] %vm226, %v5552
      %5585 = vst.msk [vmem:[%s224 + $0x88] sm:$0xff] %vm226, %v5553
      %5586 = vst.msk [vmem:[%s224 + $0x90] sm:$0xff] %vm226, %v5554
      %5587 = vst.msk [vmem:[%s224 + $0x98] sm:$0xff] %vm226, %v5555
      %5588 = vst.msk [vmem:[%s224 + $0xa0] sm:$0xff] %vm226, %v5556
      %5589 = vst.msk [vmem:[%s224 + $0xa8] sm:$0xff] %vm226, %v5557
      %5590 = vst.msk [vmem:[%s224 + $0xb0] sm:$0xff] %vm226, %v5558
      %5591 = vst.msk [vmem:[%s224 + $0xb8] sm:$0xff] %vm226, %v5559
      %5592 = vst.msk [vmem:[%s224 + $0xc0] sm:$0xff] %vm226, %v5560
      %5593 = vst.msk [vmem:[%s224 + $0xc8] sm:$0xff] %vm226, %v5561
      %5594 = vst.msk [vmem:[%s224 + $0xd0] sm:$0xff] %vm226, %v5562
      %5595 = vst.msk [vmem:[%s224 + $0xd8] sm:$0xff] %vm226, %v5563
      %5596 = vst.msk [vmem:[%s224 + $0xe0] sm:$0xff] %vm226, %v5564
      %5597 = vst.msk [vmem:[%s224 + $0xe8] sm:$0xff] %vm226, %v5565
      %5598 = vst.msk [vmem:[%s224 + $0xf0] sm:$0xff] %vm226, %v5566
      %5599 = vst.msk [vmem:[%s224 + $0xf8] sm:$0xff] %vm226, %v5567
      %p5600 = scmp.lt.s32.totalorder %s16, 1
      %s5601 = scalar_select %p5600, %s16, 1
      %s5602 = smul.addr %s5601, 32
      %s5603 = smul.addr %s5602, 8
      %s5604 = scalar_lea.vmem %s5, %s5603
      // Predicated region
      $region41: #{tpu_custom_call.1} parent=39 // pred_check
        %p5605 = pneg %p144
      $region42: #{tpu_custom_call.1} parent=39 // pred_check_branch
        %5607 = sbr.rel (%p5605) target = $region44
      $region43: #{tpu_custom_call.1} parent=39 // pred_region
        _
      $region44: #{tpu_custom_call.1} parent=39 // pred_fallthru
        _
    $region40: #{tpu_custom_call.1} parent=5 // pred_fallthru
      _
    %p5608 = scmp.le.s32.totalorder 2, %s11
    // Predicated region
    $region45: #{tpu_custom_call.1} parent=5 // pred_check
      %p5609 = pneg %p5608
    $region46: #{tpu_custom_call.1} parent=5 // pred_check_branch
      %5611 = sbr.rel (%p5609) target = $region48
    $region47: #{tpu_custom_call.1} parent=5 // pred_region
      %s5612 = ssub.s32 %s11, 2
      // Predicated region
      $region49: #{tpu_custom_call.1} parent=47 // pred_check
        %p5613 = pneg %p150
      $region50: #{tpu_custom_call.1} parent=47 // pred_check_branch
        %5615 = sbr.rel (%p5613) target = $region52
      $region51: #{tpu_custom_call.1} parent=47 // pred_region
        %p5616 = scmp.lt.s32.totalorder %s17, 1
        %s5617 = scalar_select %p5616, %s17, 1
        %s5618 = smul.addr %s5617, 32
        %s5619 = smul.addr %s5618, 8
        %s5620 = scalar_lea.vmem %s5, %s5619
      $region52: #{tpu_custom_call.1} parent=47 // pred_fallthru
        _
    $region48: #{tpu_custom_call.1} parent=5 // pred_fallthru
      _
  $region6: #{tpu_custom_call.1} parent=0 // loop_footer
    %s15 = sadd.s32 1, %s11
  $region7: #{tpu_custom_call.1} parent=0 // loop_footer_branch
    %10 = sbr.rel target = $region3
  $region8: #{tpu_custom_call.1} parent=0 // loop_exit
    _

</llo_original>
